<compile_context>
chip_gen: v6e
topology: v6e:2x2x1
jax: 0.10.0
libtpu: 0.0.40
codegen_flags: <defaults>
</compile_context>

<pallas_src>
import functools
import math

import jax
import jax.numpy as jnp
import numpy as np
from jax import lax
from jax.experimental import pallas as pl
from jax.experimental.pallas import tpu as pltpu


# ----------------------------------------------------------------------------
# Pallas kernel: one grid step == TN items of the flattened (B*T) batch
# ----------------------------------------------------------------------------
def patch_selecter_kernel(nhead,
                          patch_ref, va_ref,
                          w_qkv_ref, b_qkv_ref, w_so_ref, b_so_ref,
                          w_cq_ref, b_cq_ref, w_ckv_ref, b_ckv_ref,
                          w_co_ref, b_co_ref,
                          w1_ref, b1_ref, w2_ref, b2_ref,
                          lng_ref, lnb_ref,
                          out_ref):
    f32, bf16 = jnp.float32, jnp.bfloat16
    TN, P, D = patch_ref.shape
    hd = D // nhead
    M = TN * P

    # (b, q, d) x (b, k, d) -> (b, q, k)   /   (b, q, k) x (b, k, d) -> (b, q, d)
    score_dims = (((2,), (2,)), ((0,), (0,)))
    pv_dims = (((2,), (1,)), ((0,), (0,)))

    def mm(a_bf, w_ref, b_ref):
        # bf16 MXU matmul with f32 accumulation; bias add stays f32.
        return jnp.dot(a_bf, w_ref[...], preferred_element_type=f32) + b_ref[...]

    def bmm(a, b, dims):
        return lax.dot_general(a, b, dims, preferred_element_type=f32)

    def softmax_bf16(s):
        m = jnp.max(s, axis=-1, keepdims=True)
        e = jnp.exp(s - m)
        r = pl.reciprocal(jnp.sum(e, axis=-1, keepdims=True), approx=True)
        return (e * r).astype(bf16)

    # ------------------------------------------------------------------
    # self-attention over the P patch tokens of each item (+ residual)
    # ------------------------------------------------------------------
    x = patch_ref[...].reshape(M, D)                       # (M, D) f32
    xb = x.astype(bf16)
    qkv = mm(xb, w_qkv_ref, b_qkv_ref)                     # fused (D, 3D) proj,
    qkvb = qkv.astype(bf16).reshape(TN, P, 3 * D)          # q pre-scaled; 1 cast

    sa = jnp.zeros((M, D), f32)
    for h in range(nhead):                                 # static, small
        lo = h * hd
        q = qkvb[:, :, lo:lo + hd]                         # (TN, P, hd) bf16
        k = qkvb[:, :, D + lo:D + lo + hd]
        v = qkvb[:, :, 2 * D + lo:2 * D + lo + hd]
        p = softmax_bf16(bmm(q, k, score_dims))            # (TN, P, P)
        o = bmm(p, v, pv_dims)                             # (TN, P, hd) f32
        # per-head output projection, summed == concat(heads) @ W_out
        sa = sa + jnp.dot(o.reshape(M, hd).astype(bf16), w_so_ref[h],
                          preferred_element_type=f32)
    x = x + sa + b_so_ref[...]                             # residual, f32
    xb = x.astype(bf16)

    # ------------------------------------------------------------------
    # cross-attention: [video | audio] queries attend over updated patches
    # ------------------------------------------------------------------
    va = va_ref[...]                                       # (2TN, D) rows v,a,v,a,...
    qc = mm(va.astype(bf16), w_cq_ref, b_cq_ref)           # q-proj (scale folded)
    qcb = qc.astype(bf16).reshape(TN, 2, D)
    kv = mm(xb, w_ckv_ref, b_ckv_ref)                      # kv-proj on updated patches
    kvb = kv.astype(bf16).reshape(TN, P, 2 * D)

    ca = jnp.zeros((2 * TN, D), f32)
    for h in range(nhead):
        lo = h * hd
        q = qcb[:, :, lo:lo + hd]                          # (TN, 2, hd)
        k = kvb[:, :, lo:lo + hd]                          # (TN, P, hd)
        v = kvb[:, :, D + lo:D + lo + hd]
        p = softmax_bf16(bmm(q, k, score_dims))            # (TN, 2, P)
        o = bmm(p, v, pv_dims)                             # (TN, 2, hd)
        ca = ca + jnp.dot(o.reshape(2 * TN, hd).astype(bf16), w_co_ref[h],
                          preferred_element_type=f32)
    attn = ca + b_co_ref[...]                              # (2TN, D) f32

    # ------------------------------------------------------------------
    # MLP (dropout = identity in eval mode) + per-stream LayerNorm
    # ------------------------------------------------------------------
    h1 = jnp.maximum(mm(attn.astype(bf16), w1_ref, b1_ref), 0.0)   # (2TN, Dh)
    y = mm(h1.astype(bf16), w2_ref, b2_ref)                # (2TN, D) f32

    mu = jnp.mean(y, axis=-1, keepdims=True)
    var = jnp.mean(jnp.square(y - mu), axis=-1, keepdims=True)
    yn = (y - mu) * lax.rsqrt(var + 1e-5) * lng_ref[...] + lnb_ref[...]

    out_ref[...] = yn                                      # (2TN, D), rows v,a,v,a,...


# ----------------------------------------------------------------------------
# wrapper helpers
# ----------------------------------------------------------------------------
def _ceil_to(a, m):
    return ((a + m - 1) // m) * m


def _choose_tile(N, cap):
    """TN (items per grid step) and padded batch size N_pad.

    Keeps TN a multiple of 16 (tile-legal blocks) and caps it at ceil(N/2) so
    the parallel grid has >= 2 steps whenever N > 16 (keeps both v7x
    TensorCores busy); larger caps (e.g. 512 on v6e) can be passed via
    tile_cap.
    """
    cap = max(16, (int(cap) // 16) * 16)
    if N <= 16:
        return N, N
    tn = min(cap, _ceil_to((N + 1) // 2, 16))
    return tn, _ceil_to(N, tn)


def _full_spec(shape):
    zeros = (0,) * len(shape)
    return pl.BlockSpec(shape, lambda n, _z=zeros: _z)


def _prepare_weights(params, nhead, TN):
    """Host-side parameter transforms (scale folding, head splits, LN tiling)."""
    f32, bf16 = jnp.float32, jnp.bfloat16
    D = params["s_out_w"].shape[0]
    hd = D // nhead
    scale = 1.0 / math.sqrt(hd)

    s_in_w = params["s_in_w"].astype(f32)
    s_in_b = params["s_in_b"].astype(f32).reshape(1, 3 * D)
    qscale = jnp.concatenate([jnp.full((D,), scale, f32), jnp.ones((2 * D,), f32)])
    w_qkv = (s_in_w * qscale[None, :]).astype(bf16)        # q columns pre-scaled
    b_qkv = s_in_b * qscale[None, :]

    w_so = params["s_out_w"].astype(f32).reshape(nhead, hd, D).astype(bf16)
    b_so = params["s_out_b"].astype(f32).reshape(1, D)

    c_in_w = params["c_in_w"].astype(f32)
    c_in_b = params["c_in_b"].astype(f32).reshape(1, 3 * D)
    w_cq = (c_in_w[:, :D] * scale).astype(bf16)
    b_cq = c_in_b[:, :D] * scale
    w_ckv = c_in_w[:, D:].astype(bf16)
    b_ckv = c_in_b[:, D:]
    w_co = params["c_out_w"].astype(f32).reshape(nhead, hd, D).astype(bf16)
    b_co = params["c_out_b"].astype(f32).reshape(1, D)

    w1 = params["w1"].astype(bf16)
    b1 = params["b1"].astype(f32).reshape(1, -1)
    w2 = params["w2"].astype(bf16)
    b2 = params["b2"].astype(f32).reshape(1, D)

    # ln rows: 0 = vnorm, 1 = anorm, tiled to the interleaved (2*TN, D) layout.
    ln_g = jnp.tile(params["ln_g"].astype(f32), (TN, 1))
    ln_b = jnp.tile(params["ln_b"].astype(f32), (TN, 1))

    return [w_qkv, b_qkv, w_so, b_so, w_cq, b_cq, w_ckv, b_ckv, w_co, b_co,
            w1, b1, w2, b2, ln_g, ln_b]


# ----------------------------------------------------------------------------
# wrapper
# ----------------------------------------------------------------------------
def patch_selecter_forward(patch, audio, video, params, nhead, tile_cap=256):
    B, T, P, D = patch.shape
    N = B * T
    Dh = params["w1"].shape[1]
    f32 = jnp.float32

    TN, N_pad = _choose_tile(N, tile_cap)
    grid = (N_pad // TN,)

    x = patch.reshape(N, P, D).astype(f32)
    v_in = video.reshape(N, D).astype(f32)
    a_in = audio.reshape(N, D).astype(f32)
    if N_pad > N:
        pad = N_pad - N
        x = jnp.pad(x, ((0, pad), (0, 0), (0, 0)))
        v_in = jnp.pad(v_in, ((0, pad), (0, 0)))
        a_in = jnp.pad(a_in, ((0, pad), (0, 0)))
    # interleave video/audio rows once host-side: [v0, a0, v1, a1, ...]
    va = jnp.stack([v_in, a_in], axis=1).reshape(2 * N_pad, D)

    weights = _prepare_weights(params, nhead, TN)

    in_specs = [
        pl.BlockSpec((TN, P, D), lambda n: (n, 0, 0)),     # patch block
        pl.BlockSpec((2 * TN, D), lambda n: (n, 0)),       # interleaved video/audio
    ] + [_full_spec(tuple(w.shape)) for w in weights]

    flops_item = (2 * P * D * 3 * D            # fused QKV projection
                  + 4 * P * P * D              # self-attn scores + PV
                  + 2 * P * D * D              # self-attn output projection
                  + 4 * D * D                  # cross q projection
                  + 4 * P * D * D              # cross kv projection
                  + 8 * P * D                  # cross scores + PV
                  + 4 * D * D                  # cross output projection
                  + 8 * D * Dh)                # MLP (both streams, both layers)
    weight_bytes = sum(int(np.prod(w.shape)) * w.dtype.itemsize for w in weights)
    cost = pl.CostEstimate(
        flops=int(N_pad) * int(flops_item),
        transcendentals=int(N_pad) * int(nhead * (P * P + 2 * P)),
        bytes_accessed=int(4 * (N_pad * P * D    # patch in
                                + 2 * N_pad * D  # video/audio in
                                + 2 * N_pad * D  # output write
                                )) + int(weight_bytes),
    )

    out = pl.pallas_call(
        functools.partial(patch_selecter_kernel, nhead),
        out_shape=jax.ShapeDtypeStruct((2 * N_pad, D), f32),
        grid=grid,
        in_specs=in_specs,
        out_specs=pl.BlockSpec((2 * TN, D), lambda n: (n, 0)),
        compiler_params=pltpu.CompilerParams(
            dimension_semantics=("parallel",),
            vmem_limit_bytes=32 * 1024 * 1024),
        cost_estimate=cost,
    )(x, va, *weights)

    out = out.reshape(N_pad, 2, D)[:N]
    v_out = out[:, 0, :].reshape(B, T, D)
    a_out = out[:, 1, :].reshape(B, T, D)
    # PyTorch module returns [anorm(a), vnorm(v)], each (B, T, D)
    return [a_out, v_out]


# ----------------------------------------------------------------------------
# deterministic parameter init (synthetic; shapes from the module __init__)
# ----------------------------------------------------------------------------
def init_params(key, D):
    Dh = D // 2
    ks = jax.random.split(key, 12)

    def rnd(k, shape, scale):
        return (jax.random.normal(k, shape) * scale).astype(jnp.float32)

    return {
        "s_in_w":  rnd(ks[0], (D, 3 * D), 1.0 / math.sqrt(D)),
        "s_in_b":  rnd(ks[1], (1, 3 * D), 0.02),
        "s_out_w": rnd(ks[2], (D, D), 1.0 / math.sqrt(D)),
        "s_out_b": rnd(ks[3], (1, D), 0.02),
        "c_in_w":  rnd(ks[4], (D, 3 * D), 1.0 / math.sqrt(D)),
        "c_in_b":  rnd(ks[5], (1, 3 * D), 0.02),
        "c_out_w": rnd(ks[6], (D, D), 1.0 / math.sqrt(D)),
        "c_out_b": rnd(ks[7], (1, D), 0.02),
        # mlp: kaiming_normal weights, zero bias (matches _init_weights)
        "w1": rnd(ks[8], (D, Dh), math.sqrt(2.0 / D)),
        "b1": jnp.zeros((1, Dh), jnp.float32),
        "w2": rnd(ks[9], (Dh, D), math.sqrt(2.0 / Dh)),
        "b2": jnp.zeros((1, D), jnp.float32),
        # LayerNorm: row 0 = vnorm, row 1 = anorm (torch default init)
        "ln_g": jnp.ones((2, D), jnp.float32),
        "ln_b": jnp.zeros((2, D), jnp.float32),
    }


# ----------------------------------------------------------------------------
# pure-JAX reference (mirrors the PyTorch eval-mode forward) for validation
# ----------------------------------------------------------------------------
def reference_forward(patch, audio, video, p, nhead):
    B, T, P, D = patch.shape
    N = B * T
    hd = D // nhead
    x = patch.reshape(N, P, D).astype(jnp.float32)
    q = jnp.stack([video.reshape(N, D), audio.reshape(N, D)], axis=1).astype(jnp.float32)

    def mha(qr, kv, in_w, in_b, out_w, out_b):
        Q = qr @ in_w[:, :D] + in_b[:, :D]
        K = kv @ in_w[:, D:2 * D] + in_b[:, D:2 * D]
        V = kv @ in_w[:, 2 * D:] + in_b[:, 2 * D:]
        Qh = Q.reshape(-1, nhead, hd).transpose(1, 0, 2)
        Kh = K.reshape(-1, nhead, hd).transpose(1, 0, 2)
        Vh = V.reshape(-1, nhead, hd).transpose(1, 0, 2)
        s = jnp.einsum('hld,hsd->hls', Qh, Kh) / math.sqrt(hd)
        a = jax.nn.softmax(s, axis=-1)
        o = jnp.einsum('hls,hsd->hld', a, Vh).transpose(1, 0, 2).reshape(-1, D)
        return o @ out_w + out_b

    def single(xn, qn):
        xn = xn + mha(xn, xn, p["s_in_w"], p["s_in_b"], p["s_out_w"], p["s_out_b"])
        attn = mha(qn, xn, p["c_in_w"], p["c_in_b"], p["c_out_w"], p["c_out_b"])
        h = jax.nn.relu(attn @ p["w1"] + p["b1"])
        y = h @ p["w2"] + p["b2"]
        mu = y.mean(-1, keepdims=True)
        var = ((y - mu) ** 2).mean(-1, keepdims=True)
        yn = (y - mu) / jnp.sqrt(var + 1e-5)
        return yn * p["ln_g"] + p["ln_b"]

    out = jax.vmap(single)(x, q)
    v = out[:, 0, :].reshape(B, T, D)
    a = out[:, 1, :].reshape(B, T, D)
    return [a, v]


if __name__ == "__main__":
    key = jax.random.PRNGKey(0)

    # config 1: N=8  -> TN=8,  grid=1 (no padding)
    # config 2: N=24 -> TN=16, grid=2 (padded to 32) -> exercises multi-step
    #           grid, block index_maps and batch padding (review concern).
    configs = [(2, 4, 16, 32, 4),
               (2, 12, 16, 32, 4)]

    for (B, T, P, D, nhead) in configs:
        kp, ka, kv, kw, key = jax.random.split(key, 5)
        patch = jax.random.normal(kp, (B, T, P, D), dtype=jnp.float32)
        audio = jax.random.normal(ka, (B, T, D), dtype=jnp.float32)
        video = jax.random.normal(kv, (B, T, D), dtype=jnp.float32)
        params = init_params(kw, D)

        a_out, v_out = patch_selecter_forward(patch, audio, video, params, nhead)
        jax.block_until_ready(a_out)
        jax.block_until_ready(v_out)

        a_ref, v_ref = reference_forward(patch, audio, video, params, nhead)
        # matmul operands are bf16 inside the kernel (f32 accumulation) and the
        # softmax denominator uses the EUP approximate reciprocal, so the
        # tolerance is correspondingly looser than a pure-f32 comparison.
        np.testing.assert_allclose(np.asarray(a_out), np.asarray(a_ref),
                                   rtol=5e-2, atol=5e-2)
        np.testing.assert_allclose(np.asarray(v_out), np.asarray(v_ref),
                                   rtol=5e-2, atol=5e-2)

    print("KERNEL_OK")
</pallas_src>

<mosaic_0001>
module attributes {stable_mosaic.version = 11 : i64} {
  func.func @patch_selecter_kernel(%arg0: i32, %arg1: memref<8x16x32xf32, #tpu.memory_space<vmem>>, %arg2: memref<16x32xf32, #tpu.memory_space<vmem>>, %arg3: memref<32x96xbf16, #tpu.memory_space<vmem>>, %arg4: memref<1x96xf32, #tpu.memory_space<vmem>>, %arg5: memref<4x8x32xbf16, #tpu.memory_space<vmem>>, %arg6: memref<1x32xf32, #tpu.memory_space<vmem>>, %arg7: memref<32x32xbf16, #tpu.memory_space<vmem>>, %arg8: memref<1x32xf32, #tpu.memory_space<vmem>>, %arg9: memref<32x64xbf16, #tpu.memory_space<vmem>>, %arg10: memref<1x64xf32, #tpu.memory_space<vmem>>, %arg11: memref<4x8x32xbf16, #tpu.memory_space<vmem>>, %arg12: memref<1x32xf32, #tpu.memory_space<vmem>>, %arg13: memref<32x16xbf16, #tpu.memory_space<vmem>>, %arg14: memref<1x16xf32, #tpu.memory_space<vmem>>, %arg15: memref<16x32xbf16, #tpu.memory_space<vmem>>, %arg16: memref<1x32xf32, #tpu.memory_space<vmem>>, %arg17: memref<16x32xf32, #tpu.memory_space<vmem>>, %arg18: memref<16x32xf32, #tpu.memory_space<vmem>>, %arg19: memref<16x32xf32, #tpu.memory_space<vmem>>) attributes {dimension_semantics = [#tpu.dimension_semantics<parallel>], iteration_bounds = array<i64: 1>, scalar_prefetch = 0 : i64, scratch_operands = 0 : i64, tpu.core_type = #tpu.core_type<tc>, window_params = [{transform_indices = @transform_0, window_bounds = array<i64: 8, 16, 32>}, {transform_indices = @transform_1, window_bounds = array<i64: 16, 32>}, {pipeline_mode = #tpu.pipeline_mode<synchronous>, transform_indices = @transform_2, window_bounds = array<i64: 32, 96>}, {pipeline_mode = #tpu.pipeline_mode<synchronous>, transform_indices = @transform_3, window_bounds = array<i64: 1, 96>}, {pipeline_mode = #tpu.pipeline_mode<synchronous>, transform_indices = @transform_4, window_bounds = array<i64: 4, 8, 32>}, {pipeline_mode = #tpu.pipeline_mode<synchronous>, transform_indices = @transform_5, window_bounds = array<i64: 1, 32>}, {pipeline_mode = #tpu.pipeline_mode<synchronous>, transform_indices = @transform_6, window_bounds = array<i64: 32, 32>}, {pipeline_mode = #tpu.pipeline_mode<synchronous>, transform_indices = @transform_7, window_bounds = array<i64: 1, 32>}, {pipeline_mode = #tpu.pipeline_mode<synchronous>, transform_indices = @transform_8, window_bounds = array<i64: 32, 64>}, {pipeline_mode = #tpu.pipeline_mode<synchronous>, transform_indices = @transform_9, window_bounds = array<i64: 1, 64>}, {pipeline_mode = #tpu.pipeline_mode<synchronous>, transform_indices = @transform_10, window_bounds = array<i64: 4, 8, 32>}, {pipeline_mode = #tpu.pipeline_mode<synchronous>, transform_indices = @transform_11, window_bounds = array<i64: 1, 32>}, {pipeline_mode = #tpu.pipeline_mode<synchronous>, transform_indices = @transform_12, window_bounds = array<i64: 32, 16>}, {pipeline_mode = #tpu.pipeline_mode<synchronous>, transform_indices = @transform_13, window_bounds = array<i64: 1, 16>}, {pipeline_mode = #tpu.pipeline_mode<synchronous>, transform_indices = @transform_14, window_bounds = array<i64: 16, 32>}, {pipeline_mode = #tpu.pipeline_mode<synchronous>, transform_indices = @transform_15, window_bounds = array<i64: 1, 32>}, {pipeline_mode = #tpu.pipeline_mode<synchronous>, transform_indices = @transform_16, window_bounds = array<i64: 16, 32>}, {pipeline_mode = #tpu.pipeline_mode<synchronous>, transform_indices = @transform_17, window_bounds = array<i64: 16, 32>}, {transform_indices = @transform_18, window_bounds = array<i64: 16, 32>}]} {
    %c0 = arith.constant 0 : index
    %c0_0 = arith.constant 0 : index
    %c0_1 = arith.constant 0 : index
    %0 = vector.load %arg1[%c0, %c0_0, %c0_1] : memref<8x16x32xf32, #tpu.memory_space<vmem>>, vector<8x16x32xf32>
    %1 = vector.shape_cast %0 : vector<8x16x32xf32> to vector<128x32xf32>
    %2 = arith.truncf %1 : vector<128x32xf32> to vector<128x32xbf16>
    %c0_2 = arith.constant 0 : index
    %c0_3 = arith.constant 0 : index
    %3 = vector.load %arg3[%c0_2, %c0_3] : memref<32x96xbf16, #tpu.memory_space<vmem>>, vector<32x96xbf16>
    %cst = arith.constant dense<0.000000e+00> : vector<128x96xf32>
    %4 = tpu.matmul %2, %3, %cst {dimension_numbers = #tpu.dot_dimension_numbers<[1], [0], [0], [1], [0, 0, 1, 1], [], []>} : vector<128x32xbf16>, vector<32x96xbf16>, vector<128x96xf32> -> vector<128x96xf32>
    %c0_4 = arith.constant 0 : index
    %c0_5 = arith.constant 0 : index
    %5 = vector.load %arg4[%c0_4, %c0_5] : memref<1x96xf32, #tpu.memory_space<vmem>>, vector<1x96xf32>
    %6 = vector.broadcast %5 : vector<1x96xf32> to vector<128x96xf32>
    %7 = arith.addf %4, %6 : vector<128x96xf32>
    %8 = arith.truncf %7 : vector<128x96xf32> to vector<128x96xbf16>
    %9 = vector.shape_cast %8 : vector<128x96xbf16> to vector<8x16x96xbf16>
    %cst_6 = arith.constant 0.000000e+00 : f32
    %10 = vector.broadcast %cst_6 : f32 to vector<128x32xf32>
    %11 = vector.extract_strided_slice %9 {offsets = [0, 0, 0], sizes = [8, 16, 8], strides = [1, 1, 1]} : vector<8x16x96xbf16> to vector<8x16x8xbf16>
    %12 = vector.extract_strided_slice %9 {offsets = [0, 0, 32], sizes = [8, 16, 8], strides = [1, 1, 1]} : vector<8x16x96xbf16> to vector<8x16x8xbf16>
    %13 = vector.extract_strided_slice %9 {offsets = [0, 0, 64], sizes = [8, 16, 8], strides = [1, 1, 1]} : vector<8x16x96xbf16> to vector<8x16x8xbf16>
    %cst_7 = arith.constant dense<0.000000e+00> : vector<8x16x16xf32>
    %14 = tpu.matmul %11, %12, %cst_7 {dimension_numbers = #tpu.dot_dimension_numbers<[2], [2], [1], [1], [0, 0, 0, 1, 1, 1], [0], [0]>} : vector<8x16x8xbf16>, vector<8x16x8xbf16>, vector<8x16x16xf32> -> vector<8x16x16xf32>
    %cst_8 = arith.constant dense<0xFF800000> : vector<8x16xf32>
    %15 = vector.multi_reduction <maximumf>, %14, %cst_8 [2] : vector<8x16x16xf32> to vector<8x16xf32>
    %16 = vector.shape_cast %15 : vector<8x16xf32> to vector<8x16x1xf32>
    %17 = vector.broadcast %16 : vector<8x16x1xf32> to vector<8x16x16xf32>
    %18 = arith.subf %14, %17 : vector<8x16x16xf32>
    %19 = math.exp %18 : vector<8x16x16xf32>
    %cst_9 = arith.constant dense<0.000000e+00> : vector<8x16xf32>
    %20 = vector.multi_reduction <add>, %19, %cst_9 [2] : vector<8x16x16xf32> to vector<8x16xf32>
    %21 = vector.shape_cast %20 : vector<8x16xf32> to vector<8x16x1xf32>
    %22 = tpu.reciprocal %21 {approx = true} : vector<8x16x1xf32> -> vector<8x16x1xf32>
    %23 = vector.broadcast %22 : vector<8x16x1xf32> to vector<8x16x16xf32>
    %24 = arith.mulf %19, %23 : vector<8x16x16xf32>
    %25 = arith.truncf %24 : vector<8x16x16xf32> to vector<8x16x16xbf16>
    %cst_10 = arith.constant dense<0.000000e+00> : vector<8x16x8xf32>
    %26 = tpu.matmul %25, %13, %cst_10 {dimension_numbers = #tpu.dot_dimension_numbers<[2], [1], [1], [2], [0, 0, 0, 1, 1, 2], [0], [0]>} : vector<8x16x16xbf16>, vector<8x16x8xbf16>, vector<8x16x8xf32> -> vector<8x16x8xf32>
    %27 = vector.shape_cast %26 : vector<8x16x8xf32> to vector<128x8xf32>
    %28 = arith.truncf %27 : vector<128x8xf32> to vector<128x8xbf16>
    %c0_11 = arith.constant 0 : index
    %c0_12 = arith.constant 0 : index
    %c0_13 = arith.constant 0 : index
    %29 = vector.load %arg5[%c0_11, %c0_12, %c0_13] : memref<4x8x32xbf16, #tpu.memory_space<vmem>>, vector<1x8x32xbf16>
    %30 = vector.shape_cast %29 : vector<1x8x32xbf16> to vector<8x32xbf16>
    %cst_14 = arith.constant dense<0.000000e+00> : vector<128x32xf32>
    %31 = tpu.matmul %28, %30, %cst_14 {dimension_numbers = #tpu.dot_dimension_numbers<[1], [0], [0], [1], [0, 0, 1, 1], [], []>} : vector<128x8xbf16>, vector<8x32xbf16>, vector<128x32xf32> -> vector<128x32xf32>
    %32 = arith.addf %10, %31 : vector<128x32xf32>
    %33 = vector.extract_strided_slice %9 {offsets = [0, 0, 8], sizes = [8, 16, 8], strides = [1, 1, 1]} : vector<8x16x96xbf16> to vector<8x16x8xbf16>
    %34 = vector.extract_strided_slice %9 {offsets = [0, 0, 40], sizes = [8, 16, 8], strides = [1, 1, 1]} : vector<8x16x96xbf16> to vector<8x16x8xbf16>
    %35 = vector.extract_strided_slice %9 {offsets = [0, 0, 72], sizes = [8, 16, 8], strides = [1, 1, 1]} : vector<8x16x96xbf16> to vector<8x16x8xbf16>
    %cst_15 = arith.constant dense<0.000000e+00> : vector<8x16x16xf32>
    %36 = tpu.matmul %33, %34, %cst_15 {dimension_numbers = #tpu.dot_dimension_numbers<[2], [2], [1], [1], [0, 0, 0, 1, 1, 1], [0], [0]>} : vector<8x16x8xbf16>, vector<8x16x8xbf16>, vector<8x16x16xf32> -> vector<8x16x16xf32>
    %cst_16 = arith.constant dense<0xFF800000> : vector<8x16xf32>
    %37 = vector.multi_reduction <maximumf>, %36, %cst_16 [2] : vector<8x16x16xf32> to vector<8x16xf32>
    %38 = vector.shape_cast %37 : vector<8x16xf32> to vector<8x16x1xf32>
    %39 = vector.broadcast %38 : vector<8x16x1xf32> to vector<8x16x16xf32>
    %40 = arith.subf %36, %39 : vector<8x16x16xf32>
    %41 = math.exp %40 : vector<8x16x16xf32>
    %cst_17 = arith.constant dense<0.000000e+00> : vector<8x16xf32>
    %42 = vector.multi_reduction <add>, %41, %cst_17 [2] : vector<8x16x16xf32> to vector<8x16xf32>
    %43 = vector.shape_cast %42 : vector<8x16xf32> to vector<8x16x1xf32>
    %44 = tpu.reciprocal %43 {approx = true} : vector<8x16x1xf32> -> vector<8x16x1xf32>
    %45 = vector.broadcast %44 : vector<8x16x1xf32> to vector<8x16x16xf32>
    %46 = arith.mulf %41, %45 : vector<8x16x16xf32>
    %47 = arith.truncf %46 : vector<8x16x16xf32> to vector<8x16x16xbf16>
    %cst_18 = arith.constant dense<0.000000e+00> : vector<8x16x8xf32>
    %48 = tpu.matmul %47, %35, %cst_18 {dimension_numbers = #tpu.dot_dimension_numbers<[2], [1], [1], [2], [0, 0, 0, 1, 1, 2], [0], [0]>} : vector<8x16x16xbf16>, vector<8x16x8xbf16>, vector<8x16x8xf32> -> vector<8x16x8xf32>
    %49 = vector.shape_cast %48 : vector<8x16x8xf32> to vector<128x8xf32>
    %50 = arith.truncf %49 : vector<128x8xf32> to vector<128x8xbf16>
    %c1 = arith.constant 1 : index
    %c0_19 = arith.constant 0 : index
    %c0_20 = arith.constant 0 : index
    %51 = vector.load %arg5[%c1, %c0_19, %c0_20] : memref<4x8x32xbf16, #tpu.memory_space<vmem>>, vector<1x8x32xbf16>
    %52 = vector.shape_cast %51 : vector<1x8x32xbf16> to vector<8x32xbf16>
    %cst_21 = arith.constant dense<0.000000e+00> : vector<128x32xf32>
    %53 = tpu.matmul %50, %52, %cst_21 {dimension_numbers = #tpu.dot_dimension_numbers<[1], [0], [0], [1], [0, 0, 1, 1], [], []>} : vector<128x8xbf16>, vector<8x32xbf16>, vector<128x32xf32> -> vector<128x32xf32>
    %54 = arith.addf %32, %53 : vector<128x32xf32>
    %55 = vector.extract_strided_slice %9 {offsets = [0, 0, 16], sizes = [8, 16, 8], strides = [1, 1, 1]} : vector<8x16x96xbf16> to vector<8x16x8xbf16>
    %56 = vector.extract_strided_slice %9 {offsets = [0, 0, 48], sizes = [8, 16, 8], strides = [1, 1, 1]} : vector<8x16x96xbf16> to vector<8x16x8xbf16>
    %57 = vector.extract_strided_slice %9 {offsets = [0, 0, 80], sizes = [8, 16, 8], strides = [1, 1, 1]} : vector<8x16x96xbf16> to vector<8x16x8xbf16>
    %cst_22 = arith.constant dense<0.000000e+00> : vector<8x16x16xf32>
    %58 = tpu.matmul %55, %56, %cst_22 {dimension_numbers = #tpu.dot_dimension_numbers<[2], [2], [1], [1], [0, 0, 0, 1, 1, 1], [0], [0]>} : vector<8x16x8xbf16>, vector<8x16x8xbf16>, vector<8x16x16xf32> -> vector<8x16x16xf32>
    %cst_23 = arith.constant dense<0xFF800000> : vector<8x16xf32>
    %59 = vector.multi_reduction <maximumf>, %58, %cst_23 [2] : vector<8x16x16xf32> to vector<8x16xf32>
    %60 = vector.shape_cast %59 : vector<8x16xf32> to vector<8x16x1xf32>
    %61 = vector.broadcast %60 : vector<8x16x1xf32> to vector<8x16x16xf32>
    %62 = arith.subf %58, %61 : vector<8x16x16xf32>
    %63 = math.exp %62 : vector<8x16x16xf32>
    %cst_24 = arith.constant dense<0.000000e+00> : vector<8x16xf32>
    %64 = vector.multi_reduction <add>, %63, %cst_24 [2] : vector<8x16x16xf32> to vector<8x16xf32>
    %65 = vector.shape_cast %64 : vector<8x16xf32> to vector<8x16x1xf32>
    %66 = tpu.reciprocal %65 {approx = true} : vector<8x16x1xf32> -> vector<8x16x1xf32>
    %67 = vector.broadcast %66 : vector<8x16x1xf32> to vector<8x16x16xf32>
    %68 = arith.mulf %63, %67 : vector<8x16x16xf32>
    %69 = arith.truncf %68 : vector<8x16x16xf32> to vector<8x16x16xbf16>
    %cst_25 = arith.constant dense<0.000000e+00> : vector<8x16x8xf32>
    %70 = tpu.matmul %69, %57, %cst_25 {dimension_numbers = #tpu.dot_dimension_numbers<[2], [1], [1], [2], [0, 0, 0, 1, 1, 2], [0], [0]>} : vector<8x16x16xbf16>, vector<8x16x8xbf16>, vector<8x16x8xf32> -> vector<8x16x8xf32>
    %71 = vector.shape_cast %70 : vector<8x16x8xf32> to vector<128x8xf32>
    %72 = arith.truncf %71 : vector<128x8xf32> to vector<128x8xbf16>
    %c2 = arith.constant 2 : index
    %c0_26 = arith.constant 0 : index
    %c0_27 = arith.constant 0 : index
    %73 = vector.load %arg5[%c2, %c0_26, %c0_27] : memref<4x8x32xbf16, #tpu.memory_space<vmem>>, vector<1x8x32xbf16>
    %74 = vector.shape_cast %73 : vector<1x8x32xbf16> to vector<8x32xbf16>
    %cst_28 = arith.constant dense<0.000000e+00> : vector<128x32xf32>
    %75 = tpu.matmul %72, %74, %cst_28 {dimension_numbers = #tpu.dot_dimension_numbers<[1], [0], [0], [1], [0, 0, 1, 1], [], []>} : vector<128x8xbf16>, vector<8x32xbf16>, vector<128x32xf32> -> vector<128x32xf32>
    %76 = arith.addf %54, %75 : vector<128x32xf32>
    %77 = vector.extract_strided_slice %9 {offsets = [0, 0, 24], sizes = [8, 16, 8], strides = [1, 1, 1]} : vector<8x16x96xbf16> to vector<8x16x8xbf16>
    %78 = vector.extract_strided_slice %9 {offsets = [0, 0, 56], sizes = [8, 16, 8], strides = [1, 1, 1]} : vector<8x16x96xbf16> to vector<8x16x8xbf16>
    %79 = vector.extract_strided_slice %9 {offsets = [0, 0, 88], sizes = [8, 16, 8], strides = [1, 1, 1]} : vector<8x16x96xbf16> to vector<8x16x8xbf16>
    %cst_29 = arith.constant dense<0.000000e+00> : vector<8x16x16xf32>
    %80 = tpu.matmul %77, %78, %cst_29 {dimension_numbers = #tpu.dot_dimension_numbers<[2], [2], [1], [1], [0, 0, 0, 1, 1, 1], [0], [0]>} : vector<8x16x8xbf16>, vector<8x16x8xbf16>, vector<8x16x16xf32> -> vector<8x16x16xf32>
    %cst_30 = arith.constant dense<0xFF800000> : vector<8x16xf32>
    %81 = vector.multi_reduction <maximumf>, %80, %cst_30 [2] : vector<8x16x16xf32> to vector<8x16xf32>
    %82 = vector.shape_cast %81 : vector<8x16xf32> to vector<8x16x1xf32>
    %83 = vector.broadcast %82 : vector<8x16x1xf32> to vector<8x16x16xf32>
    %84 = arith.subf %80, %83 : vector<8x16x16xf32>
    %85 = math.exp %84 : vector<8x16x16xf32>
    %cst_31 = arith.constant dense<0.000000e+00> : vector<8x16xf32>
    %86 = vector.multi_reduction <add>, %85, %cst_31 [2] : vector<8x16x16xf32> to vector<8x16xf32>
    %87 = vector.shape_cast %86 : vector<8x16xf32> to vector<8x16x1xf32>
    %88 = tpu.reciprocal %87 {approx = true} : vector<8x16x1xf32> -> vector<8x16x1xf32>
    %89 = vector.broadcast %88 : vector<8x16x1xf32> to vector<8x16x16xf32>
    %90 = arith.mulf %85, %89 : vector<8x16x16xf32>
    %91 = arith.truncf %90 : vector<8x16x16xf32> to vector<8x16x16xbf16>
    %cst_32 = arith.constant dense<0.000000e+00> : vector<8x16x8xf32>
    %92 = tpu.matmul %91, %79, %cst_32 {dimension_numbers = #tpu.dot_dimension_numbers<[2], [1], [1], [2], [0, 0, 0, 1, 1, 2], [0], [0]>} : vector<8x16x16xbf16>, vector<8x16x8xbf16>, vector<8x16x8xf32> -> vector<8x16x8xf32>
    %93 = vector.shape_cast %92 : vector<8x16x8xf32> to vector<128x8xf32>
    %94 = arith.truncf %93 : vector<128x8xf32> to vector<128x8xbf16>
    %c3 = arith.constant 3 : index
    %c0_33 = arith.constant 0 : index
    %c0_34 = arith.constant 0 : index
    %95 = vector.load %arg5[%c3, %c0_33, %c0_34] : memref<4x8x32xbf16, #tpu.memory_space<vmem>>, vector<1x8x32xbf16>
    %96 = vector.shape_cast %95 : vector<1x8x32xbf16> to vector<8x32xbf16>
    %cst_35 = arith.constant dense<0.000000e+00> : vector<128x32xf32>
    %97 = tpu.matmul %94, %96, %cst_35 {dimension_numbers = #tpu.dot_dimension_numbers<[1], [0], [0], [1], [0, 0, 1, 1], [], []>} : vector<128x8xbf16>, vector<8x32xbf16>, vector<128x32xf32> -> vector<128x32xf32>
    %98 = arith.addf %76, %97 : vector<128x32xf32>
    %99 = arith.addf %1, %98 : vector<128x32xf32>
    %c0_36 = arith.constant 0 : index
    %c0_37 = arith.constant 0 : index
    %100 = vector.load %arg6[%c0_36, %c0_37] : memref<1x32xf32, #tpu.memory_space<vmem>>, vector<1x32xf32>
    %101 = vector.broadcast %100 : vector<1x32xf32> to vector<128x32xf32>
    %102 = arith.addf %99, %101 : vector<128x32xf32>
    %103 = arith.truncf %102 : vector<128x32xf32> to vector<128x32xbf16>
    %c0_38 = arith.constant 0 : index
    %c0_39 = arith.constant 0 : index
    %104 = vector.load %arg2[%c0_38, %c0_39] : memref<16x32xf32, #tpu.memory_space<vmem>>, vector<16x32xf32>
    %105 = arith.truncf %104 : vector<16x32xf32> to vector<16x32xbf16>
    %c0_40 = arith.constant 0 : index
    %c0_41 = arith.constant 0 : index
    %106 = vector.load %arg7[%c0_40, %c0_41] : memref<32x32xbf16, #tpu.memory_space<vmem>>, vector<32x32xbf16>
    %cst_42 = arith.constant dense<0.000000e+00> : vector<16x32xf32>
    %107 = tpu.matmul %105, %106, %cst_42 {dimension_numbers = #tpu.dot_dimension_numbers<[1], [0], [0], [1], [0, 0, 1, 1], [], []>} : vector<16x32xbf16>, vector<32x32xbf16>, vector<16x32xf32> -> vector<16x32xf32>
    %c0_43 = arith.constant 0 : index
    %c0_44 = arith.constant 0 : index
    %108 = vector.load %arg8[%c0_43, %c0_44] : memref<1x32xf32, #tpu.memory_space<vmem>>, vector<1x32xf32>
    %109 = vector.broadcast %108 : vector<1x32xf32> to vector<16x32xf32>
    %110 = arith.addf %107, %109 : vector<16x32xf32>
    %111 = arith.truncf %110 : vector<16x32xf32> to vector<16x32xbf16>
    %112 = vector.shape_cast %111 : vector<16x32xbf16> to vector<8x2x32xbf16>
    %c0_45 = arith.constant 0 : index
    %c0_46 = arith.constant 0 : index
    %113 = vector.load %arg9[%c0_45, %c0_46] : memref<32x64xbf16, #tpu.memory_space<vmem>>, vector<32x64xbf16>
    %cst_47 = arith.constant dense<0.000000e+00> : vector<128x64xf32>
    %114 = tpu.matmul %103, %113, %cst_47 {dimension_numbers = #tpu.dot_dimension_numbers<[1], [0], [0], [1], [0, 0, 1, 1], [], []>} : vector<128x32xbf16>, vector<32x64xbf16>, vector<128x64xf32> -> vector<128x64xf32>
    %c0_48 = arith.constant 0 : index
    %c0_49 = arith.constant 0 : index
    %115 = vector.load %arg10[%c0_48, %c0_49] : memref<1x64xf32, #tpu.memory_space<vmem>>, vector<1x64xf32>
    %116 = vector.broadcast %115 : vector<1x64xf32> to vector<128x64xf32>
    %117 = arith.addf %114, %116 : vector<128x64xf32>
    %118 = arith.truncf %117 : vector<128x64xf32> to vector<128x64xbf16>
    %119 = vector.shape_cast %118 : vector<128x64xbf16> to vector<8x16x64xbf16>
    %cst_50 = arith.constant 0.000000e+00 : f32
    %120 = vector.broadcast %cst_50 : f32 to vector<16x32xf32>
    %121 = vector.extract_strided_slice %112 {offsets = [0, 0, 0], sizes = [8, 2, 8], strides = [1, 1, 1]} : vector<8x2x32xbf16> to vector<8x2x8xbf16>
    %122 = vector.extract_strided_slice %119 {offsets = [0, 0, 0], sizes = [8, 16, 8], strides = [1, 1, 1]} : vector<8x16x64xbf16> to vector<8x16x8xbf16>
    %123 = vector.extract_strided_slice %119 {offsets = [0, 0, 32], sizes = [8, 16, 8], strides = [1, 1, 1]} : vector<8x16x64xbf16> to vector<8x16x8xbf16>
    %cst_51 = arith.constant dense<0.000000e+00> : vector<8x2x16xf32>
    %124 = tpu.matmul %121, %122, %cst_51 {dimension_numbers = #tpu.dot_dimension_numbers<[2], [2], [1], [1], [0, 0, 0, 1, 1, 1], [0], [0]>} : vector<8x2x8xbf16>, vector<8x16x8xbf16>, vector<8x2x16xf32> -> vector<8x2x16xf32>
    %cst_52 = arith.constant dense<0xFF800000> : vector<8x2xf32>
    %125 = vector.multi_reduction <maximumf>, %124, %cst_52 [2] : vector<8x2x16xf32> to vector<8x2xf32>
    %126 = vector.shape_cast %125 : vector<8x2xf32> to vector<8x2x1xf32>
    %127 = vector.broadcast %126 : vector<8x2x1xf32> to vector<8x2x16xf32>
    %128 = arith.subf %124, %127 : vector<8x2x16xf32>
    %129 = math.exp %128 : vector<8x2x16xf32>
    %cst_53 = arith.constant dense<0.000000e+00> : vector<8x2xf32>
    %130 = vector.multi_reduction <add>, %129, %cst_53 [2] : vector<8x2x16xf32> to vector<8x2xf32>
    %131 = vector.shape_cast %130 : vector<8x2xf32> to vector<8x2x1xf32>
    %132 = tpu.reciprocal %131 {approx = true} : vector<8x2x1xf32> -> vector<8x2x1xf32>
    %133 = vector.broadcast %132 : vector<8x2x1xf32> to vector<8x2x16xf32>
    %134 = arith.mulf %129, %133 : vector<8x2x16xf32>
    %135 = arith.truncf %134 : vector<8x2x16xf32> to vector<8x2x16xbf16>
    %cst_54 = arith.constant dense<0.000000e+00> : vector<8x2x8xf32>
    %136 = tpu.matmul %135, %123, %cst_54 {dimension_numbers = #tpu.dot_dimension_numbers<[2], [1], [1], [2], [0, 0, 0, 1, 1, 2], [0], [0]>} : vector<8x2x16xbf16>, vector<8x16x8xbf16>, vector<8x2x8xf32> -> vector<8x2x8xf32>
    %137 = vector.shape_cast %136 : vector<8x2x8xf32> to vector<16x8xf32>
    %138 = arith.truncf %137 : vector<16x8xf32> to vector<16x8xbf16>
    %c0_55 = arith.constant 0 : index
    %c0_56 = arith.constant 0 : index
    %c0_57 = arith.constant 0 : index
    %139 = vector.load %arg11[%c0_55, %c0_56, %c0_57] : memref<4x8x32xbf16, #tpu.memory_space<vmem>>, vector<1x8x32xbf16>
    %140 = vector.shape_cast %139 : vector<1x8x32xbf16> to vector<8x32xbf16>
    %cst_58 = arith.constant dense<0.000000e+00> : vector<16x32xf32>
    %141 = tpu.matmul %138, %140, %cst_58 {dimension_numbers = #tpu.dot_dimension_numbers<[1], [0], [0], [1], [0, 0, 1, 1], [], []>} : vector<16x8xbf16>, vector<8x32xbf16>, vector<16x32xf32> -> vector<16x32xf32>
    %142 = arith.addf %120, %141 : vector<16x32xf32>
    %143 = vector.extract_strided_slice %112 {offsets = [0, 0, 8], sizes = [8, 2, 8], strides = [1, 1, 1]} : vector<8x2x32xbf16> to vector<8x2x8xbf16>
    %144 = vector.extract_strided_slice %119 {offsets = [0, 0, 8], sizes = [8, 16, 8], strides = [1, 1, 1]} : vector<8x16x64xbf16> to vector<8x16x8xbf16>
    %145 = vector.extract_strided_slice %119 {offsets = [0, 0, 40], sizes = [8, 16, 8], strides = [1, 1, 1]} : vector<8x16x64xbf16> to vector<8x16x8xbf16>
    %cst_59 = arith.constant dense<0.000000e+00> : vector<8x2x16xf32>
    %146 = tpu.matmul %143, %144, %cst_59 {dimension_numbers = #tpu.dot_dimension_numbers<[2], [2], [1], [1], [0, 0, 0, 1, 1, 1], [0], [0]>} : vector<8x2x8xbf16>, vector<8x16x8xbf16>, vector<8x2x16xf32> -> vector<8x2x16xf32>
    %cst_60 = arith.constant dense<0xFF800000> : vector<8x2xf32>
    %147 = vector.multi_reduction <maximumf>, %146, %cst_60 [2] : vector<8x2x16xf32> to vector<8x2xf32>
    %148 = vector.shape_cast %147 : vector<8x2xf32> to vector<8x2x1xf32>
    %149 = vector.broadcast %148 : vector<8x2x1xf32> to vector<8x2x16xf32>
    %150 = arith.subf %146, %149 : vector<8x2x16xf32>
    %151 = math.exp %150 : vector<8x2x16xf32>
    %cst_61 = arith.constant dense<0.000000e+00> : vector<8x2xf32>
    %152 = vector.multi_reduction <add>, %151, %cst_61 [2] : vector<8x2x16xf32> to vector<8x2xf32>
    %153 = vector.shape_cast %152 : vector<8x2xf32> to vector<8x2x1xf32>
    %154 = tpu.reciprocal %153 {approx = true} : vector<8x2x1xf32> -> vector<8x2x1xf32>
    %155 = vector.broadcast %154 : vector<8x2x1xf32> to vector<8x2x16xf32>
    %156 = arith.mulf %151, %155 : vector<8x2x16xf32>
    %157 = arith.truncf %156 : vector<8x2x16xf32> to vector<8x2x16xbf16>
    %cst_62 = arith.constant dense<0.000000e+00> : vector<8x2x8xf32>
    %158 = tpu.matmul %157, %145, %cst_62 {dimension_numbers = #tpu.dot_dimension_numbers<[2], [1], [1], [2], [0, 0, 0, 1, 1, 2], [0], [0]>} : vector<8x2x16xbf16>, vector<8x16x8xbf16>, vector<8x2x8xf32> -> vector<8x2x8xf32>
    %159 = vector.shape_cast %158 : vector<8x2x8xf32> to vector<16x8xf32>
    %160 = arith.truncf %159 : vector<16x8xf32> to vector<16x8xbf16>
    %c1_63 = arith.constant 1 : index
    %c0_64 = arith.constant 0 : index
    %c0_65 = arith.constant 0 : index
    %161 = vector.load %arg11[%c1_63, %c0_64, %c0_65] : memref<4x8x32xbf16, #tpu.memory_space<vmem>>, vector<1x8x32xbf16>
    %162 = vector.shape_cast %161 : vector<1x8x32xbf16> to vector<8x32xbf16>
    %cst_66 = arith.constant dense<0.000000e+00> : vector<16x32xf32>
    %163 = tpu.matmul %160, %162, %cst_66 {dimension_numbers = #tpu.dot_dimension_numbers<[1], [0], [0], [1], [0, 0, 1, 1], [], []>} : vector<16x8xbf16>, vector<8x32xbf16>, vector<16x32xf32> -> vector<16x32xf32>
    %164 = arith.addf %142, %163 : vector<16x32xf32>
    %165 = vector.extract_strided_slice %112 {offsets = [0, 0, 16], sizes = [8, 2, 8], strides = [1, 1, 1]} : vector<8x2x32xbf16> to vector<8x2x8xbf16>
    %166 = vector.extract_strided_slice %119 {offsets = [0, 0, 16], sizes = [8, 16, 8], strides = [1, 1, 1]} : vector<8x16x64xbf16> to vector<8x16x8xbf16>
    %167 = vector.extract_strided_slice %119 {offsets = [0, 0, 48], sizes = [8, 16, 8], strides = [1, 1, 1]} : vector<8x16x64xbf16> to vector<8x16x8xbf16>
    %cst_67 = arith.constant dense<0.000000e+00> : vector<8x2x16xf32>
    %168 = tpu.matmul %165, %166, %cst_67 {dimension_numbers = #tpu.dot_dimension_numbers<[2], [2], [1], [1], [0, 0, 0, 1, 1, 1], [0], [0]>} : vector<8x2x8xbf16>, vector<8x16x8xbf16>, vector<8x2x16xf32> -> vector<8x2x16xf32>
    %cst_68 = arith.constant dense<0xFF800000> : vector<8x2xf32>
    %169 = vector.multi_reduction <maximumf>, %168, %cst_68 [2] : vector<8x2x16xf32> to vector<8x2xf32>
    %170 = vector.shape_cast %169 : vector<8x2xf32> to vector<8x2x1xf32>
    %171 = vector.broadcast %170 : vector<8x2x1xf32> to vector<8x2x16xf32>
    %172 = arith.subf %168, %171 : vector<8x2x16xf32>
    %173 = math.exp %172 : vector<8x2x16xf32>
    %cst_69 = arith.constant dense<0.000000e+00> : vector<8x2xf32>
    %174 = vector.multi_reduction <add>, %173, %cst_69 [2] : vector<8x2x16xf32> to vector<8x2xf32>
    %175 = vector.shape_cast %174 : vector<8x2xf32> to vector<8x2x1xf32>
    %176 = tpu.reciprocal %175 {approx = true} : vector<8x2x1xf32> -> vector<8x2x1xf32>
    %177 = vector.broadcast %176 : vector<8x2x1xf32> to vector<8x2x16xf32>
    %178 = arith.mulf %173, %177 : vector<8x2x16xf32>
    %179 = arith.truncf %178 : vector<8x2x16xf32> to vector<8x2x16xbf16>
    %cst_70 = arith.constant dense<0.000000e+00> : vector<8x2x8xf32>
    %180 = tpu.matmul %179, %167, %cst_70 {dimension_numbers = #tpu.dot_dimension_numbers<[2], [1], [1], [2], [0, 0, 0, 1, 1, 2], [0], [0]>} : vector<8x2x16xbf16>, vector<8x16x8xbf16>, vector<8x2x8xf32> -> vector<8x2x8xf32>
    %181 = vector.shape_cast %180 : vector<8x2x8xf32> to vector<16x8xf32>
    %182 = arith.truncf %181 : vector<16x8xf32> to vector<16x8xbf16>
    %c2_71 = arith.constant 2 : index
    %c0_72 = arith.constant 0 : index
    %c0_73 = arith.constant 0 : index
    %183 = vector.load %arg11[%c2_71, %c0_72, %c0_73] : memref<4x8x32xbf16, #tpu.memory_space<vmem>>, vector<1x8x32xbf16>
    %184 = vector.shape_cast %183 : vector<1x8x32xbf16> to vector<8x32xbf16>
    %cst_74 = arith.constant dense<0.000000e+00> : vector<16x32xf32>
    %185 = tpu.matmul %182, %184, %cst_74 {dimension_numbers = #tpu.dot_dimension_numbers<[1], [0], [0], [1], [0, 0, 1, 1], [], []>} : vector<16x8xbf16>, vector<8x32xbf16>, vector<16x32xf32> -> vector<16x32xf32>
    %186 = arith.addf %164, %185 : vector<16x32xf32>
    %187 = vector.extract_strided_slice %112 {offsets = [0, 0, 24], sizes = [8, 2, 8], strides = [1, 1, 1]} : vector<8x2x32xbf16> to vector<8x2x8xbf16>
    %188 = vector.extract_strided_slice %119 {offsets = [0, 0, 24], sizes = [8, 16, 8], strides = [1, 1, 1]} : vector<8x16x64xbf16> to vector<8x16x8xbf16>
    %189 = vector.extract_strided_slice %119 {offsets = [0, 0, 56], sizes = [8, 16, 8], strides = [1, 1, 1]} : vector<8x16x64xbf16> to vector<8x16x8xbf16>
    %cst_75 = arith.constant dense<0.000000e+00> : vector<8x2x16xf32>
    %190 = tpu.matmul %187, %188, %cst_75 {dimension_numbers = #tpu.dot_dimension_numbers<[2], [2], [1], [1], [0, 0, 0, 1, 1, 1], [0], [0]>} : vector<8x2x8xbf16>, vector<8x16x8xbf16>, vector<8x2x16xf32> -> vector<8x2x16xf32>
    %cst_76 = arith.constant dense<0xFF800000> : vector<8x2xf32>
    %191 = vector.multi_reduction <maximumf>, %190, %cst_76 [2] : vector<8x2x16xf32> to vector<8x2xf32>
    %192 = vector.shape_cast %191 : vector<8x2xf32> to vector<8x2x1xf32>
    %193 = vector.broadcast %192 : vector<8x2x1xf32> to vector<8x2x16xf32>
    %194 = arith.subf %190, %193 : vector<8x2x16xf32>
    %195 = math.exp %194 : vector<8x2x16xf32>
    %cst_77 = arith.constant dense<0.000000e+00> : vector<8x2xf32>
    %196 = vector.multi_reduction <add>, %195, %cst_77 [2] : vector<8x2x16xf32> to vector<8x2xf32>
    %197 = vector.shape_cast %196 : vector<8x2xf32> to vector<8x2x1xf32>
    %198 = tpu.reciprocal %197 {approx = true} : vector<8x2x1xf32> -> vector<8x2x1xf32>
    %199 = vector.broadcast %198 : vector<8x2x1xf32> to vector<8x2x16xf32>
    %200 = arith.mulf %195, %199 : vector<8x2x16xf32>
    %201 = arith.truncf %200 : vector<8x2x16xf32> to vector<8x2x16xbf16>
    %cst_78 = arith.constant dense<0.000000e+00> : vector<8x2x8xf32>
    %202 = tpu.matmul %201, %189, %cst_78 {dimension_numbers = #tpu.dot_dimension_numbers<[2], [1], [1], [2], [0, 0, 0, 1, 1, 2], [0], [0]>} : vector<8x2x16xbf16>, vector<8x16x8xbf16>, vector<8x2x8xf32> -> vector<8x2x8xf32>
    %203 = vector.shape_cast %202 : vector<8x2x8xf32> to vector<16x8xf32>
    %204 = arith.truncf %203 : vector<16x8xf32> to vector<16x8xbf16>
    %c3_79 = arith.constant 3 : index
    %c0_80 = arith.constant 0 : index
    %c0_81 = arith.constant 0 : index
    %205 = vector.load %arg11[%c3_79, %c0_80, %c0_81] : memref<4x8x32xbf16, #tpu.memory_space<vmem>>, vector<1x8x32xbf16>
    %206 = vector.shape_cast %205 : vector<1x8x32xbf16> to vector<8x32xbf16>
    %cst_82 = arith.constant dense<0.000000e+00> : vector<16x32xf32>
    %207 = tpu.matmul %204, %206, %cst_82 {dimension_numbers = #tpu.dot_dimension_numbers<[1], [0], [0], [1], [0, 0, 1, 1], [], []>} : vector<16x8xbf16>, vector<8x32xbf16>, vector<16x32xf32> -> vector<16x32xf32>
    %208 = arith.addf %186, %207 : vector<16x32xf32>
    %c0_83 = arith.constant 0 : index
    %c0_84 = arith.constant 0 : index
    %209 = vector.load %arg12[%c0_83, %c0_84] : memref<1x32xf32, #tpu.memory_space<vmem>>, vector<1x32xf32>
    %210 = vector.broadcast %209 : vector<1x32xf32> to vector<16x32xf32>
    %211 = arith.addf %208, %210 : vector<16x32xf32>
    %212 = arith.truncf %211 : vector<16x32xf32> to vector<16x32xbf16>
    %c0_85 = arith.constant 0 : index
    %c0_86 = arith.constant 0 : index
    %213 = vector.load %arg13[%c0_85, %c0_86] : memref<32x16xbf16, #tpu.memory_space<vmem>>, vector<32x16xbf16>
    %cst_87 = arith.constant dense<0.000000e+00> : vector<16x16xf32>
    %214 = tpu.matmul %212, %213, %cst_87 {dimension_numbers = #tpu.dot_dimension_numbers<[1], [0], [0], [1], [0, 0, 1, 1], [], []>} : vector<16x32xbf16>, vector<32x16xbf16>, vector<16x16xf32> -> vector<16x16xf32>
    %c0_88 = arith.constant 0 : index
    %c0_89 = arith.constant 0 : index
    %215 = vector.load %arg14[%c0_88, %c0_89] : memref<1x16xf32, #tpu.memory_space<vmem>>, vector<1x16xf32>
    %216 = vector.broadcast %215 : vector<1x16xf32> to vector<16x16xf32>
    %217 = arith.addf %214, %216 : vector<16x16xf32>
    %cst_90 = arith.constant 0.000000e+00 : f32
    %218 = vector.broadcast %cst_90 : f32 to vector<16x16xf32>
    %219 = arith.maximumf %217, %218 : vector<16x16xf32>
    %220 = arith.truncf %219 : vector<16x16xf32> to vector<16x16xbf16>
    %c0_91 = arith.constant 0 : index
    %c0_92 = arith.constant 0 : index
    %221 = vector.load %arg15[%c0_91, %c0_92] : memref<16x32xbf16, #tpu.memory_space<vmem>>, vector<16x32xbf16>
    %cst_93 = arith.constant dense<0.000000e+00> : vector<16x32xf32>
    %222 = tpu.matmul %220, %221, %cst_93 {dimension_numbers = #tpu.dot_dimension_numbers<[1], [0], [0], [1], [0, 0, 1, 1], [], []>} : vector<16x16xbf16>, vector<16x32xbf16>, vector<16x32xf32> -> vector<16x32xf32>
    %c0_94 = arith.constant 0 : index
    %c0_95 = arith.constant 0 : index
    %223 = vector.load %arg16[%c0_94, %c0_95] : memref<1x32xf32, #tpu.memory_space<vmem>>, vector<1x32xf32>
    %224 = vector.broadcast %223 : vector<1x32xf32> to vector<16x32xf32>
    %225 = arith.addf %222, %224 : vector<16x32xf32>
    %cst_96 = arith.constant dense<0.000000e+00> : vector<16xf32>
    %226 = vector.multi_reduction <add>, %225, %cst_96 [1] : vector<16x32xf32> to vector<16xf32>
    %227 = vector.shape_cast %226 : vector<16xf32> to vector<16x1xf32>
    %cst_97 = arith.constant 3.200000e+01 : f32
    %228 = vector.broadcast %cst_97 : f32 to vector<16x1xf32>
    %229 = arith.divf %227, %228 : vector<16x1xf32>
    %230 = vector.broadcast %229 : vector<16x1xf32> to vector<16x32xf32>
    %231 = arith.subf %225, %230 : vector<16x32xf32>
    %232 = arith.mulf %231, %231 : vector<16x32xf32>
    %cst_98 = arith.constant dense<0.000000e+00> : vector<16xf32>
    %233 = vector.multi_reduction <add>, %232, %cst_98 [1] : vector<16x32xf32> to vector<16xf32>
    %234 = vector.shape_cast %233 : vector<16xf32> to vector<16x1xf32>
    %cst_99 = arith.constant 3.200000e+01 : f32
    %235 = vector.broadcast %cst_99 : f32 to vector<16x1xf32>
    %236 = arith.divf %234, %235 : vector<16x1xf32>
    %237 = vector.broadcast %229 : vector<16x1xf32> to vector<16x32xf32>
    %238 = arith.subf %225, %237 : vector<16x32xf32>
    %cst_100 = arith.constant 9.99999974E-6 : f32
    %239 = vector.broadcast %cst_100 : f32 to vector<16x1xf32>
    %240 = arith.addf %236, %239 : vector<16x1xf32>
    %241 = math.rsqrt %240 : vector<16x1xf32>
    %242 = vector.broadcast %241 : vector<16x1xf32> to vector<16x32xf32>
    %243 = arith.mulf %238, %242 : vector<16x32xf32>
    %c0_101 = arith.constant 0 : index
    %c0_102 = arith.constant 0 : index
    %244 = vector.load %arg17[%c0_101, %c0_102] : memref<16x32xf32, #tpu.memory_space<vmem>>, vector<16x32xf32>
    %245 = arith.mulf %243, %244 : vector<16x32xf32>
    %c0_103 = arith.constant 0 : index
    %c0_104 = arith.constant 0 : index
    %246 = vector.load %arg18[%c0_103, %c0_104] : memref<16x32xf32, #tpu.memory_space<vmem>>, vector<16x32xf32>
    %247 = arith.addf %245, %246 : vector<16x32xf32>
    %c0_105 = arith.constant 0 : index
    %c0_106 = arith.constant 0 : index
    %248 = vector.load %arg19[%c0_105, %c0_106] : memref<16x32xf32, #tpu.memory_space<vmem>>, vector<16x32xf32>
    tpu.vector_store %arg19[%c0_105, %c0_106], %247 {strides = array<i32>} : memref<16x32xf32, #tpu.memory_space<vmem>>, vector<16x32xf32>,
    return
  }
  func.func @transform_0(%arg0: i32) -> (i32, i32, i32) {
    %c0_i32 = arith.constant 0 : i32
    %c0_i32_0 = arith.constant 0 : i32
    %c0_i32_1 = arith.constant 0 : i32
    return %arg0, %c0_i32, %c0_i32_0 : i32, i32, i32
  }
  func.func @transform_1(%arg0: i32) -> (i32, i32) {
    %c0_i32 = arith.constant 0 : i32
    %c0_i32_0 = arith.constant 0 : i32
    return %arg0, %c0_i32 : i32, i32
  }
  func.func @transform_2(%arg0: i32) -> (i32, i32) {
    %c0_i32 = arith.constant 0 : i32
    %c0_i32_0 = arith.constant 0 : i32
    %c0_i32_1 = arith.constant 0 : i32
    return %c0_i32, %c0_i32_0 : i32, i32
  }
  func.func @transform_3(%arg0: i32) -> (i32, i32) {
    %c0_i32 = arith.constant 0 : i32
    %c0_i32_0 = arith.constant 0 : i32
    %c0_i32_1 = arith.constant 0 : i32
    return %c0_i32, %c0_i32_0 : i32, i32
  }
  func.func @transform_4(%arg0: i32) -> (i32, i32, i32) {
    %c0_i32 = arith.constant 0 : i32
    %c0_i32_0 = arith.constant 0 : i32
    %c0_i32_1 = arith.constant 0 : i32
    %c0_i32_2 = arith.constant 0 : i32
    return %c0_i32, %c0_i32_0, %c0_i32_1 : i32, i32, i32
  }
  func.func @transform_5(%arg0: i32) -> (i32, i32) {
    %c0_i32 = arith.constant 0 : i32
    %c0_i32_0 = arith.constant 0 : i32
    %c0_i32_1 = arith.constant 0 : i32
    return %c0_i32, %c0_i32_0 : i32, i32
  }
  func.func @transform_6(%arg0: i32) -> (i32, i32) {
    %c0_i32 = arith.constant 0 : i32
    %c0_i32_0 = arith.constant 0 : i32
    %c0_i32_1 = arith.constant 0 : i32
    return %c0_i32, %c0_i32_0 : i32, i32
  }
  func.func @transform_7(%arg0: i32) -> (i32, i32) {
    %c0_i32 = arith.constant 0 : i32
    %c0_i32_0 = arith.constant 0 : i32
    %c0_i32_1 = arith.constant 0 : i32
    return %c0_i32, %c0_i32_0 : i32, i32
  }
  func.func @transform_8(%arg0: i32) -> (i32, i32) {
    %c0_i32 = arith.constant 0 : i32
    %c0_i32_0 = arith.constant 0 : i32
    %c0_i32_1 = arith.constant 0 : i32
    return %c0_i32, %c0_i32_0 : i32, i32
  }
  func.func @transform_9(%arg0: i32) -> (i32, i32) {
    %c0_i32 = arith.constant 0 : i32
    %c0_i32_0 = arith.constant 0 : i32
    %c0_i32_1 = arith.constant 0 : i32
    return %c0_i32, %c0_i32_0 : i32, i32
  }
  func.func @transform_10(%arg0: i32) -> (i32, i32, i32) {
    %c0_i32 = arith.constant 0 : i32
    %c0_i32_0 = arith.constant 0 : i32
    %c0_i32_1 = arith.constant 0 : i32
    %c0_i32_2 = arith.constant 0 : i32
    return %c0_i32, %c0_i32_0, %c0_i32_1 : i32, i32, i32
  }
  func.func @transform_11(%arg0: i32) -> (i32, i32) {
    %c0_i32 = arith.constant 0 : i32
    %c0_i32_0 = arith.constant 0 : i32
    %c0_i32_1 = arith.constant 0 : i32
    return %c0_i32, %c0_i32_0 : i32, i32
  }
  func.func @transform_12(%arg0: i32) -> (i32, i32) {
    %c0_i32 = arith.constant 0 : i32
    %c0_i32_0 = arith.constant 0 : i32
    %c0_i32_1 = arith.constant 0 : i32
    return %c0_i32, %c0_i32_0 : i32, i32
  }
  func.func @transform_13(%arg0: i32) -> (i32, i32) {
    %c0_i32 = arith.constant 0 : i32
    %c0_i32_0 = arith.constant 0 : i32
    %c0_i32_1 = arith.constant 0 : i32
    return %c0_i32, %c0_i32_0 : i32, i32
  }
  func.func @transform_14(%arg0: i32) -> (i32, i32) {
    %c0_i32 = arith.constant 0 : i32
    %c0_i32_0 = arith.constant 0 : i32
    %c0_i32_1 = arith.constant 0 : i32
    return %c0_i32, %c0_i32_0 : i32, i32
  }
  func.func @transform_15(%arg0: i32) -> (i32, i32) {
    %c0_i32 = arith.constant 0 : i32
    %c0_i32_0 = arith.constant 0 : i32
    %c0_i32_1 = arith.constant 0 : i32
    return %c0_i32, %c0_i32_0 : i32, i32
  }
  func.func @transform_16(%arg0: i32) -> (i32, i32) {
    %c0_i32 = arith.constant 0 : i32
    %c0_i32_0 = arith.constant 0 : i32
    %c0_i32_1 = arith.constant 0 : i32
    return %c0_i32, %c0_i32_0 : i32, i32
  }
  func.func @transform_17(%arg0: i32) -> (i32, i32) {
    %c0_i32 = arith.constant 0 : i32
    %c0_i32_0 = arith.constant 0 : i32
    %c0_i32_1 = arith.constant 0 : i32
    return %c0_i32, %c0_i32_0 : i32, i32
  }
  func.func @transform_18(%arg0: i32) -> (i32, i32) {
    %c0_i32 = arith.constant 0 : i32
    %c0_i32_0 = arith.constant 0 : i32
    return %arg0, %c0_i32 : i32, i32
  }
}

</mosaic_0001>

<llo_original>
// kernel: tpu_custom_call.1
$region0: #{tpu_custom_call.1}
  #allocation0 [shape = 'u32[]', space=smem, size = 0x4, offset = 0x4, fixed_abs, tag = 'smem constant byte address 0x4 - core index']
  #allocation1 [shape = 'u32[144,128]{1,0:T(1,128)}', space=vmem, size = 0x12000, scoped, tag = 'internal scratch']
  %s0 = inlined_call_operand.hbm [shape: f32[8,16,32], index: 0, kind: input, shape index: {}]
  %s1 = inlined_call_operand.vmem [shape: f32[16,32], index: 1, kind: input, shape index: {}]
  %s2 = inlined_call_operand.hbm [shape: bf16[32,96], index: 2, kind: input, shape index: {}]
  %s3 = inlined_call_operand.vmem [shape: f32[1,96], index: 3, kind: input, shape index: {}]
  %s4 = inlined_call_operand.hbm [shape: bf16[4,8,32], index: 4, kind: input, shape index: {}]
  %s5 = inlined_call_operand.hbm [shape: f32[1,32], index: 5, kind: input, shape index: {}]
  %s6 = inlined_call_operand.vmem [shape: bf16[32,32], index: 6, kind: input, shape index: {}]
  %s7 = inlined_call_operand.hbm [shape: f32[1,32], index: 7, kind: input, shape index: {}]
  %s8 = inlined_call_operand.hbm [shape: bf16[32,64], index: 8, kind: input, shape index: {}]
  %s9 = inlined_call_operand.hbm [shape: f32[1,64], index: 9, kind: input, shape index: {}]
  %s10 = inlined_call_operand.hbm [shape: bf16[4,8,32], index: 10, kind: input, shape index: {}]
  %s11 = inlined_call_operand.hbm [shape: f32[1,32], index: 11, kind: input, shape index: {}]
  %s12 = inlined_call_operand.vmem [shape: bf16[32,16], index: 12, kind: input, shape index: {}]
  %s13 = inlined_call_operand.hbm [shape: f32[1,16], index: 13, kind: input, shape index: {}]
  %s14 = inlined_call_operand.hbm [shape: bf16[16,32], index: 14, kind: input, shape index: {}]
  %s15 = inlined_call_operand.vmem [shape: f32[1,32], index: 15, kind: input, shape index: {}]
  %s16 = inlined_call_operand.vmem [shape: f32[16,32], index: 16, kind: input, shape index: {}]
  %s17 = inlined_call_operand.hbm [shape: f32[16,32], index: 17, kind: input, shape index: {}]
  %s18 = inlined_call_operand.hbm [shape: f32[16,32], index: 18, kind: output, shape index: {}]
  %s19 = sld [smem:[#allocation0]]
  $region130: #{tpu_custom_call.1} parent=0
    _
  %s21 = ssub.s32 1, %s19
  %s22 = scalar_select 0, %s21, %s19
  $region1: #{tpu_custom_call.1} parent=0
    #allocation2 [shape = 'u8[65536]{0}', space=vmem, size = 0x10000, scoped, tag = 'input window, operand 0, single buffered']
    #allocation3 [shape = 's32[1]{0}', space=sflag, size = 0x4, scoped, tag = 'scoped memory for tpu_custom_call.1']
    #allocation4 [shape = 's32[1]{0}', space=sflag, size = 0x4, scoped, tag = 'scoped memory for tpu_custom_call.1']
    #allocation5 [shape = 'u8[8192]{0}', space=vmem, size = 0x2000, scoped, tag = 'input window, operand 2, single buffered']
    #allocation6 [shape = 's32[1]{0}', space=sflag, size = 0x4, scoped, tag = 'scoped memory for tpu_custom_call.1']
    #allocation7 [shape = 'u8[8192]{0}', space=vmem, size = 0x2000, scoped, tag = 'input window, operand 4, single buffered']
    #allocation8 [shape = 'u8[512]{0}', space=vmem, size = 0x400, scoped, tag = 'input window, operand 5, single buffered']
    #allocation9 [shape = 's32[1]{0}', space=sflag, size = 0x4, scoped, tag = 'scoped memory for tpu_custom_call.1']
    #allocation10 [shape = 'u8[512]{0}', space=vmem, size = 0x400, scoped, tag = 'input window, operand 7, single buffered']
    #allocation11 [shape = 'u8[8192]{0}', space=vmem, size = 0x2000, scoped, tag = 'input window, operand 8, single buffered']
    #allocation12 [shape = 's32[1]{0}', space=sflag, size = 0x4, scoped, tag = 'scoped memory for tpu_custom_call.1']
    #allocation13 [shape = 'u8[512]{0}', space=vmem, size = 0x400, scoped, tag = 'input window, operand 9, single buffered']
    #allocation14 [shape = 'u8[8192]{0}', space=vmem, size = 0x2000, scoped, tag = 'input window, operand 10, single buffered']
    #allocation15 [shape = 's32[1]{0}', space=sflag, size = 0x4, scoped, tag = 'scoped memory for tpu_custom_call.1']
    #allocation16 [shape = 'u8[512]{0}', space=vmem, size = 0x400, scoped, tag = 'input window, operand 11, single buffered']
    #allocation17 [shape = 'u8[512]{0}', space=vmem, size = 0x400, scoped, tag = 'input window, operand 13, single buffered']
    #allocation18 [shape = 's32[1]{0}', space=sflag, size = 0x4, scoped, tag = 'scoped memory for tpu_custom_call.1']
    #allocation19 [shape = 'u8[4096]{0}', space=vmem, size = 0x1000, scoped, tag = 'input window, operand 14, single buffered']
    #allocation20 [shape = 'u8[8192]{0}', space=vmem, size = 0x2000, scoped, tag = 'input window, operand 17, single buffered']
    #allocation21 [shape = 's32[1]{0}', space=sflag, size = 0x4, scoped, tag = 'scoped memory for tpu_custom_call.1']
    #allocation22 [shape = 'u8[8192]{0}', space=vmem, size = 0x2000, scoped, tag = 'output window, operand 0, single buffered']
    %23 = vsyncpa [#allocation3], 0
    %24 = vsyncpa [#allocation6], 0
    %25 = vsyncpa [#allocation9], 0
    %26 = vsyncpa [#allocation12], 0
    %27 = vsyncpa [#allocation15], 0
    %28 = vsyncpa [#allocation18], 0
    %29 = vsyncpa [#allocation21], 0
    %30 = vsyncpa [#allocation4], 0
    // Predicated region
    $region2: #{tpu_custom_call.1} parent=1 // pred_check
      _
    $region3: #{tpu_custom_call.1} parent=1 // pred_check_branch
      %32 = sbr.rel (0) target = $region5
    $region4: #{tpu_custom_call.1} parent=1 // pred_region
      %s34 = ssub.s32 2048, 2048
      %35 = vsyncadd [#allocation3], %s34
      %s36 = sshll.u32 [#allocation2], 4
      %s37 = int_to_ptr.vmem [resolvable:$true] %s36
      %42 = dma.hbm_to_vmem [thread:$0]  %s0, 2048, %s37, [#allocation3], 128, 128, 8
    $region5: #{tpu_custom_call.1} parent=1 // pred_fallthru
      _
    // Predicated region
    $region6: #{tpu_custom_call.1} parent=1 // pred_check
      _
    $region7: #{tpu_custom_call.1} parent=1 // pred_check_branch
      %44 = sbr.rel (0) target = $region9
    $region8: #{tpu_custom_call.1} parent=1 // pred_region
      _
    $region9: #{tpu_custom_call.1} parent=1 // pred_fallthru
      _
    // Predicated region
    $region10: #{tpu_custom_call.1} parent=1 // pred_check
      _
    $region11: #{tpu_custom_call.1} parent=1 // pred_check_branch
      %46 = sbr.rel (0) target = $region13
    $region12: #{tpu_custom_call.1} parent=1 // pred_region
      %s48 = ssub.s32 256, 256
      %49 = vsyncadd [#allocation6], %s48
      %s50 = sshll.u32 [#allocation5], 4
      %s51 = int_to_ptr.vmem [resolvable:$true] %s50
      %56 = dma.hbm_to_vmem [thread:$0]  %s2, 256, %s51, [#allocation6], 64, 64, 4
    $region13: #{tpu_custom_call.1} parent=1 // pred_fallthru
      _
    // Predicated region
    $region14: #{tpu_custom_call.1} parent=1 // pred_check
      _
    $region15: #{tpu_custom_call.1} parent=1 // pred_check_branch
      %58 = sbr.rel (0) target = $region17
    $region16: #{tpu_custom_call.1} parent=1 // pred_region
      _
    $region17: #{tpu_custom_call.1} parent=1 // pred_fallthru
      _
    // Predicated region
    $region18: #{tpu_custom_call.1} parent=1 // pred_check
      _
    $region19: #{tpu_custom_call.1} parent=1 // pred_check_branch
      %60 = sbr.rel (0) target = $region21
    $region20: #{tpu_custom_call.1} parent=1 // pred_region
      %s62 = ssub.s32 256, 256
      %63 = vsyncadd [#allocation6], %s62
      %s64 = sshll.u32 [#allocation7], 4
      %s65 = int_to_ptr.vmem [resolvable:$true] %s64
      %70 = dma.hbm_to_vmem [thread:$0]  %s4, 256, %s65, [#allocation6], 64, 64, 4
    $region21: #{tpu_custom_call.1} parent=1 // pred_fallthru
      _
    // Predicated region
    $region22: #{tpu_custom_call.1} parent=1 // pred_check
      _
    $region23: #{tpu_custom_call.1} parent=1 // pred_check_branch
      %72 = sbr.rel (0) target = $region25
    $region24: #{tpu_custom_call.1} parent=1 // pred_region
      %s74 = ssub.s32 16, 16
      %75 = vsyncadd [#allocation9], %s74
      %s77 = sshll.u32 [#allocation8], 4
      %s78 = int_to_ptr.vmem [resolvable:$true] %s77
      %80 = dma.hbm_to_vmem [thread:$0]  %s5, 16, %s78, [#allocation9]
    $region25: #{tpu_custom_call.1} parent=1 // pred_fallthru
      _
    // Predicated region
    $region26: #{tpu_custom_call.1} parent=1 // pred_check
      _
    $region27: #{tpu_custom_call.1} parent=1 // pred_check_branch
      %82 = sbr.rel (0) target = $region29
    $region28: #{tpu_custom_call.1} parent=1 // pred_region
      _
    $region29: #{tpu_custom_call.1} parent=1 // pred_fallthru
      _
    // Predicated region
    $region30: #{tpu_custom_call.1} parent=1 // pred_check
      _
    $region31: #{tpu_custom_call.1} parent=1 // pred_check_branch
      %84 = sbr.rel (0) target = $region33
    $region32: #{tpu_custom_call.1} parent=1 // pred_region
      %s86 = ssub.s32 16, 16
      %87 = vsyncadd [#allocation9], %s86
      %s89 = sshll.u32 [#allocation10], 4
      %s90 = int_to_ptr.vmem [resolvable:$true] %s89
      %92 = dma.hbm_to_vmem [thread:$0]  %s7, 16, %s90, [#allocation9]
    $region33: #{tpu_custom_call.1} parent=1 // pred_fallthru
      _
    // Predicated region
    $region34: #{tpu_custom_call.1} parent=1 // pred_check
      _
    $region35: #{tpu_custom_call.1} parent=1 // pred_check_branch
      %94 = sbr.rel (0) target = $region37
    $region36: #{tpu_custom_call.1} parent=1 // pred_region
      %s96 = ssub.s32 256, 256
      %97 = vsyncadd [#allocation12], %s96
      %s98 = sshll.u32 [#allocation11], 4
      %s99 = int_to_ptr.vmem [resolvable:$true] %s98
      %104 = dma.hbm_to_vmem [thread:$0]  %s8, 256, %s99, [#allocation12], 64, 64, 4
    $region37: #{tpu_custom_call.1} parent=1 // pred_fallthru
      _
    // Predicated region
    $region38: #{tpu_custom_call.1} parent=1 // pred_check
      _
    $region39: #{tpu_custom_call.1} parent=1 // pred_check_branch
      %106 = sbr.rel (0) target = $region41
    $region40: #{tpu_custom_call.1} parent=1 // pred_region
      %s108 = ssub.s32 16, 16
      %109 = vsyncadd [#allocation12], %s108
      %s111 = sshll.u32 [#allocation13], 4
      %s112 = int_to_ptr.vmem [resolvable:$true] %s111
      %114 = dma.hbm_to_vmem [thread:$0]  %s9, 16, %s112, [#allocation12]
    $region41: #{tpu_custom_call.1} parent=1 // pred_fallthru
      _
    // Predicated region
    $region42: #{tpu_custom_call.1} parent=1 // pred_check
      _
    $region43: #{tpu_custom_call.1} parent=1 // pred_check_branch
      %116 = sbr.rel (0) target = $region45
    $region44: #{tpu_custom_call.1} parent=1 // pred_region
      %s118 = ssub.s32 256, 256
      %119 = vsyncadd [#allocation15], %s118
      %s120 = sshll.u32 [#allocation14], 4
      %s121 = int_to_ptr.vmem [resolvable:$true] %s120
      %126 = dma.hbm_to_vmem [thread:$0]  %s10, 256, %s121, [#allocation15], 64, 64, 4
    $region45: #{tpu_custom_call.1} parent=1 // pred_fallthru
      _
    // Predicated region
    $region46: #{tpu_custom_call.1} parent=1 // pred_check
      _
    $region47: #{tpu_custom_call.1} parent=1 // pred_check_branch
      %128 = sbr.rel (0) target = $region49
    $region48: #{tpu_custom_call.1} parent=1 // pred_region
      %s130 = ssub.s32 16, 16
      %131 = vsyncadd [#allocation15], %s130
      %s133 = sshll.u32 [#allocation16], 4
      %s134 = int_to_ptr.vmem [resolvable:$true] %s133
      %136 = dma.hbm_to_vmem [thread:$0]  %s11, 16, %s134, [#allocation15]
    $region49: #{tpu_custom_call.1} parent=1 // pred_fallthru
      _
    // Predicated region
    $region50: #{tpu_custom_call.1} parent=1 // pred_check
      _
    $region51: #{tpu_custom_call.1} parent=1 // pred_check_branch
      %138 = sbr.rel (0) target = $region53
    $region52: #{tpu_custom_call.1} parent=1 // pred_region
      _
    $region53: #{tpu_custom_call.1} parent=1 // pred_fallthru
      _
    // Predicated region
    $region54: #{tpu_custom_call.1} parent=1 // pred_check
      _
    $region55: #{tpu_custom_call.1} parent=1 // pred_check_branch
      %140 = sbr.rel (0) target = $region57
    $region56: #{tpu_custom_call.1} parent=1 // pred_region
      %s142 = ssub.s32 16, 16
      %143 = vsyncadd [#allocation18], %s142
      %s145 = sshll.u32 [#allocation17], 4
      %s146 = int_to_ptr.vmem [resolvable:$true] %s145
      %148 = dma.hbm_to_vmem [thread:$0]  %s13, 16, %s146, [#allocation18]
    $region57: #{tpu_custom_call.1} parent=1 // pred_fallthru
      _
    // Predicated region
    $region58: #{tpu_custom_call.1} parent=1 // pred_check
      _
    $region59: #{tpu_custom_call.1} parent=1 // pred_check_branch
      %150 = sbr.rel (0) target = $region61
    $region60: #{tpu_custom_call.1} parent=1 // pred_region
      %s152 = ssub.s32 128, 128
      %153 = vsyncadd [#allocation18], %s152
      %s154 = sshll.u32 [#allocation19], 4
      %s155 = int_to_ptr.vmem [resolvable:$true] %s154
      %160 = dma.hbm_to_vmem [thread:$0]  %s14, 128, %s155, [#allocation18], 64, 64, 4
    $region61: #{tpu_custom_call.1} parent=1 // pred_fallthru
      _
    // Predicated region
    $region62: #{tpu_custom_call.1} parent=1 // pred_check
      _
    $region63: #{tpu_custom_call.1} parent=1 // pred_check_branch
      %162 = sbr.rel (0) target = $region65
    $region64: #{tpu_custom_call.1} parent=1 // pred_region
      _
    $region65: #{tpu_custom_call.1} parent=1 // pred_fallthru
      _
    // Predicated region
    $region66: #{tpu_custom_call.1} parent=1 // pred_check
      _
    $region67: #{tpu_custom_call.1} parent=1 // pred_check_branch
      %164 = sbr.rel (0) target = $region69
    $region68: #{tpu_custom_call.1} parent=1 // pred_region
      _
    $region69: #{tpu_custom_call.1} parent=1 // pred_fallthru
      _
    // Predicated region
    $region70: #{tpu_custom_call.1} parent=1 // pred_check
      _
    $region71: #{tpu_custom_call.1} parent=1 // pred_check_branch
      %166 = sbr.rel (0) target = $region73
    $region72: #{tpu_custom_call.1} parent=1 // pred_region
      %s168 = ssub.s32 256, 256
      %169 = vsyncadd [#allocation21], %s168
      %s170 = sshll.u32 [#allocation20], 4
      %s171 = int_to_ptr.vmem [resolvable:$true] %s170
      %176 = dma.hbm_to_vmem [thread:$0]  %s17, 256, %s171, [#allocation21], 128, 128, 8
    $region73: #{tpu_custom_call.1} parent=1 // pred_fallthru
      _
    // Predicated region
    $region74: #{tpu_custom_call.1} parent=1 // pred_check
      _
    $region75: #{tpu_custom_call.1} parent=1 // pred_check_branch
      %178 = sbr.rel (0) target = $region77
    $region76: #{tpu_custom_call.1} parent=1 // pred_region
      %179 = dma.done [#allocation3], 2048
    $region77: #{tpu_custom_call.1} parent=1 // pred_fallthru
      _
    // Predicated region
    $region78: #{tpu_custom_call.1} parent=1 // pred_check
      _
    $region79: #{tpu_custom_call.1} parent=1 // pred_check_branch
      %181 = sbr.rel (0) target = $region81
    $region80: #{tpu_custom_call.1} parent=1 // pred_region
      %182 = dma.done [#allocation6], 256
    $region81: #{tpu_custom_call.1} parent=1 // pred_fallthru
      _
    // Predicated region
    $region82: #{tpu_custom_call.1} parent=1 // pred_check
      _
    $region83: #{tpu_custom_call.1} parent=1 // pred_check_branch
      %184 = sbr.rel (0) target = $region85
    $region84: #{tpu_custom_call.1} parent=1 // pred_region
      %185 = dma.done [#allocation6], 256
    $region85: #{tpu_custom_call.1} parent=1 // pred_fallthru
      _
    // Predicated region
    $region86: #{tpu_custom_call.1} parent=1 // pred_check
      _
    $region87: #{tpu_custom_call.1} parent=1 // pred_check_branch
      %187 = sbr.rel (0) target = $region89
    $region88: #{tpu_custom_call.1} parent=1 // pred_region
      %188 = dma.done [#allocation9], 16
    $region89: #{tpu_custom_call.1} parent=1 // pred_fallthru
      _
    // Predicated region
    $region90: #{tpu_custom_call.1} parent=1 // pred_check
      _
    $region91: #{tpu_custom_call.1} parent=1 // pred_check_branch
      %190 = sbr.rel (0) target = $region93
    $region92: #{tpu_custom_call.1} parent=1 // pred_region
      %191 = dma.done [#allocation9], 16
    $region93: #{tpu_custom_call.1} parent=1 // pred_fallthru
      _
    // Predicated region
    $region94: #{tpu_custom_call.1} parent=1 // pred_check
      _
    $region95: #{tpu_custom_call.1} parent=1 // pred_check_branch
      %193 = sbr.rel (0) target = $region97
    $region96: #{tpu_custom_call.1} parent=1 // pred_region
      %194 = dma.done [#allocation12], 256
    $region97: #{tpu_custom_call.1} parent=1 // pred_fallthru
      _
    // Predicated region
    $region98: #{tpu_custom_call.1} parent=1 // pred_check
      _
    $region99: #{tpu_custom_call.1} parent=1 // pred_check_branch
      %196 = sbr.rel (0) target = $region101
    $region100: #{tpu_custom_call.1} parent=1 // pred_region
      %197 = dma.done [#allocation12], 16
    $region101: #{tpu_custom_call.1} parent=1 // pred_fallthru
      _
    // Predicated region
    $region102: #{tpu_custom_call.1} parent=1 // pred_check
      _
    $region103: #{tpu_custom_call.1} parent=1 // pred_check_branch
      %199 = sbr.rel (0) target = $region105
    $region104: #{tpu_custom_call.1} parent=1 // pred_region
      %200 = dma.done [#allocation15], 256
    $region105: #{tpu_custom_call.1} parent=1 // pred_fallthru
      _
    // Predicated region
    $region106: #{tpu_custom_call.1} parent=1 // pred_check
      _
    $region107: #{tpu_custom_call.1} parent=1 // pred_check_branch
      %202 = sbr.rel (0) target = $region109
    $region108: #{tpu_custom_call.1} parent=1 // pred_region
      %203 = dma.done [#allocation15], 16
    $region109: #{tpu_custom_call.1} parent=1 // pred_fallthru
      _
    // Predicated region
    $region110: #{tpu_custom_call.1} parent=1 // pred_check
      _
    $region111: #{tpu_custom_call.1} parent=1 // pred_check_branch
      %205 = sbr.rel (0) target = $region113
    $region112: #{tpu_custom_call.1} parent=1 // pred_region
      %206 = dma.done [#allocation18], 16
    $region113: #{tpu_custom_call.1} parent=1 // pred_fallthru
      _
    // Predicated region
    $region114: #{tpu_custom_call.1} parent=1 // pred_check
      _
    $region115: #{tpu_custom_call.1} parent=1 // pred_check_branch
      %208 = sbr.rel (0) target = $region117
    $region116: #{tpu_custom_call.1} parent=1 // pred_region
      %209 = dma.done [#allocation18], 128
    $region117: #{tpu_custom_call.1} parent=1 // pred_fallthru
      _
    // Predicated region
    $region118: #{tpu_custom_call.1} parent=1 // pred_check
      _
    $region119: #{tpu_custom_call.1} parent=1 // pred_check_branch
      %211 = sbr.rel (0) target = $region121
    $region120: #{tpu_custom_call.1} parent=1 // pred_region
      %212 = dma.done [#allocation21], 256
    $region121: #{tpu_custom_call.1} parent=1 // pred_fallthru
      _
    %v214 = vld [vmem:[#allocation2] sm:$0xff]
    %v215 = vld [vmem:[#allocation2 + $0x8] sm:$0xff]
    %v216 = vld [vmem:[#allocation2 + $0x10] sm:$0xff]
    %v217 = vld [vmem:[#allocation2 + $0x18] sm:$0xff]
    %v218 = vld [vmem:[#allocation2 + $0x20] sm:$0xff]
    %v219 = vld [vmem:[#allocation2 + $0x28] sm:$0xff]
    %v220 = vld [vmem:[#allocation2 + $0x30] sm:$0xff]
    %v221 = vld [vmem:[#allocation2 + $0x38] sm:$0xff]
    %v222 = vld [vmem:[#allocation2 + $0x40] sm:$0xff]
    %v223 = vld [vmem:[#allocation2 + $0x48] sm:$0xff]
    %v224 = vld [vmem:[#allocation2 + $0x50] sm:$0xff]
    %v225 = vld [vmem:[#allocation2 + $0x58] sm:$0xff]
    %v226 = vld [vmem:[#allocation2 + $0x60] sm:$0xff]
    %v227 = vld [vmem:[#allocation2 + $0x68] sm:$0xff]
    %v228 = vld [vmem:[#allocation2 + $0x70] sm:$0xff]
    %v229 = vld [vmem:[#allocation2 + $0x78] sm:$0xff]
    %v230 = vpack.c.bf16 %v215, %v214
    %v231 = vpack.c.bf16 %v217, %v216
    %v232 = vpack.c.bf16 %v219, %v218
    %v233 = vpack.c.bf16 %v221, %v220
    %v234 = vpack.c.bf16 %v223, %v222
    %v235 = vpack.c.bf16 %v225, %v224
    %v236 = vpack.c.bf16 %v227, %v226
    %v237 = vpack.c.bf16 %v229, %v228
    %v238 = vld [vmem:[#allocation5] sm:$0xf]
    %v239 = vld [vmem:[#allocation5 + $0x4] sm:$0xf]
    %v240 = vld [vmem:[#allocation5 + $0x8] sm:$0xf]
    %v241 = vld [vmem:[#allocation5 + $0xc] sm:$0xf]
    %v242 = vld [vmem:[%s3] sm:$0x1]
    %v244 = vlaneseq
    %v245 = vshrl.u32 %v244, 7
    %v246 = vsub.s32 0, %v245
    %v247 = vrot.slane %v242, %v246
    %v253 = vunpack.c.l.b16 %v238
    %v254 = vunpack.c.l.b16 %v239
    %v255 = vunpack.c.l.b16 %v240
    %v256 = vunpack.c.l.b16 %v241
    %v257 = vpack.c.b16 %v254, %v253
    %v258 = vpack.c.b16 %v256, %v255
    %vm261 = vcmask 261120
    %v263 = vsel %vm261, %v230, 0
    %v266 = vsel %vm261, %v231, 0
    %v269 = vsel %vm261, %v232, 0
    %v272 = vsel %vm261, %v233, 0
    %v275 = vsel %vm261, %v234, 0
    %v278 = vsel %vm261, %v235, 0
    %v281 = vsel %vm261, %v236, 0
    %v284 = vsel %vm261, %v237, 0
    %286 = vmatprep.subr.bf16.mxu0 0
    %287 = vmatpush1.bf16.msra.mxu0 0
    %288 = vmatprep.subr.bf16.mxu0 0
    %289 = vmatpush1.bf16.msra.mxu0 0
    %290 = vmatprep.subr.bf16.mxu0 0
    %291 = vmatpush1.bf16.msra.mxu0 0
    %292 = vmatprep.subr.bf16.mxu0 0
    %293 = vmatpush1.bf16.msra.mxu0 0
    %294 = vmatprep.subr.bf16.mxu0 0
    %295 = vmatpush1.bf16.msra.mxu0 0
    %296 = vmatprep.subr.bf16.mxu0 0
    %297 = vmatpush1.bf16.msra.mxu0 0
    %298 = vmatprep.subr.bf16.mxu0 0
    %299 = vmatpush1.bf16.msra.mxu0 %v258
    %300 = vmatprep.subr.bf16.mxu0 0
    %301 = vmatpush1.bf16.msra.mxu0 %v257
    %302 = vmatprep.subr.bf16.mxu0 0
    %303 = vmatpush2.bf16.msra.mxu0 0
    %304 = vmatprep.subr.bf16.mxu0 0
    %305 = vmatpush2.bf16.msra.mxu0 0
    %306 = vmatprep.subr.bf16.mxu0 0
    %307 = vmatpush2.bf16.msra.mxu0 0
    %308 = vmatprep.subr.bf16.mxu0 0
    %309 = vmatpush2.bf16.msra.mxu0 0
    %310 = vmatprep.subr.bf16.mxu0 0
    %311 = vmatpush2.bf16.msra.mxu0 0
    %312 = vmatprep.subr.bf16.mxu0 0
    %313 = vmatpush2.bf16.msra.mxu0 0
    %314 = vmatprep.subr.bf16.mxu0 0
    %315 = vmatpush2.bf16.msra.mxu0 0
    %316 = vmatprep.subr.bf16.mxu0 0
    %317 = vmatpush2.bf16.msra.mxu0 0
    %318 = vmatprep.mubr.bf16.mxu0 0
    %319 = vmatmul.mubr.bf16.gmra.mxu0 %v263
    %v320 = vpop.f32.mrf.mxu0
    %v321 = vadd.f32 %v247, %v320
    %v322 = vpop.f32.mrf.mxu0
    %v323 = vpop.f32.mrf.mxu0
    %v324 = vadd.f32 %v247, %v323
    %v325 = vpop.f32.mrf.mxu0
    %326 = vmatprep.mubr.bf16.mxu0 0
    %327 = vmatmul.mubr.bf16.gmra.mxu0 %v266
    %v328 = vpop.f32.mrf.mxu0
    %v329 = vadd.f32 %v247, %v328
    %v330 = vpop.f32.mrf.mxu0
    %v331 = vpop.f32.mrf.mxu0
    %v332 = vadd.f32 %v247, %v331
    %v333 = vpop.f32.mrf.mxu0
    %334 = vmatprep.mubr.bf16.mxu0 0
    %335 = vmatmul.mubr.bf16.gmra.mxu0 %v269
    %v336 = vpop.f32.mrf.mxu0
    %v337 = vadd.f32 %v247, %v336
    %v338 = vpop.f32.mrf.mxu0
    %v339 = vpop.f32.mrf.mxu0
    %v340 = vadd.f32 %v247, %v339
    %v341 = vpop.f32.mrf.mxu0
    %342 = vmatprep.mubr.bf16.mxu0 0
    %343 = vmatmul.mubr.bf16.gmra.mxu0 %v272
    %v344 = vpop.f32.mrf.mxu0
    %v345 = vadd.f32 %v247, %v344
    %v346 = vpop.f32.mrf.mxu0
    %v347 = vpop.f32.mrf.mxu0
    %v348 = vadd.f32 %v247, %v347
    %v349 = vpop.f32.mrf.mxu0
    %350 = vmatprep.mubr.bf16.mxu0 0
    %351 = vmatmul.mubr.bf16.gmra.mxu0 %v275
    %v352 = vpop.f32.mrf.mxu0
    %v353 = vadd.f32 %v247, %v352
    %v354 = vpop.f32.mrf.mxu0
    %v355 = vpop.f32.mrf.mxu0
    %v356 = vadd.f32 %v247, %v355
    %v357 = vpop.f32.mrf.mxu0
    %358 = vmatprep.mubr.bf16.mxu0 0
    %359 = vmatmul.mubr.bf16.gmra.mxu0 %v278
    %v360 = vpop.f32.mrf.mxu0
    %v361 = vadd.f32 %v247, %v360
    %v362 = vpop.f32.mrf.mxu0
    %v363 = vpop.f32.mrf.mxu0
    %v364 = vadd.f32 %v247, %v363
    %v365 = vpop.f32.mrf.mxu0
    %366 = vmatprep.mubr.bf16.mxu0 0
    %367 = vmatmul.mubr.bf16.gmra.mxu0 %v281
    %v368 = vpop.f32.mrf.mxu0
    %v369 = vadd.f32 %v247, %v368
    %v370 = vpop.f32.mrf.mxu0
    %v371 = vpop.f32.mrf.mxu0
    %v372 = vadd.f32 %v247, %v371
    %v373 = vpop.f32.mrf.mxu0
    %374 = vmatprep.mubr.bf16.mxu0 0
    %375 = vmatmul.mubr.bf16.gmra.mxu0 %v284
    %v376 = vpop.f32.mrf.mxu0
    %v377 = vadd.f32 %v247, %v376
    %v378 = vpop.f32.mrf.mxu0
    %v379 = vpop.f32.mrf.mxu0
    %v380 = vadd.f32 %v247, %v379
    %v381 = vpop.f32.mrf.mxu0
    %382 = vdwg.mxu0
    %v383 = vpack.c.bf16 %v324, %v321
    %v384 = vpack.c.bf16 %v332, %v329
    %v385 = vpack.c.bf16 %v340, %v337
    %v386 = vpack.c.bf16 %v348, %v345
    %v387 = vpack.c.bf16 %v356, %v353
    %v388 = vpack.c.bf16 %v364, %v361
    %v389 = vpack.c.bf16 %v372, %v369
    %v390 = vpack.c.bf16 %v380, %v377
    %392 = vrot.lane.b32.xlu0 %v383, 96
    %v393 = vpop.permute.xlu0 %392
    %vm394 = vcmask 64512
    %v396 = vsel %vm394, %v383, 0
    %v399 = vsel %vm394, %v393, 0
    %401 = vmatprep.subr.bf16.mxu0 0
    %402 = vmatpush1.bf16.xpose.msra.mxu0 0
    %403 = vmatprep.subr.bf16.mxu0 0
    %404 = vmatpush1.bf16.xpose.msra.mxu0 0
    %405 = vmatprep.subr.bf16.mxu0 0
    %406 = vmatpush1.bf16.xpose.msra.mxu0 0
    %407 = vmatprep.subr.bf16.mxu0 0
    %408 = vmatpush1.bf16.xpose.msra.mxu0 0
    %409 = vmatprep.subr.bf16.mxu0 0
    %410 = vmatpush1.bf16.xpose.msra.mxu0 0
    %411 = vmatprep.subr.bf16.mxu0 0
    %412 = vmatpush1.bf16.xpose.msra.mxu0 0
    %413 = vmatprep.subr.bf16.mxu0 0
    %414 = vmatpush1.bf16.xpose.msra.mxu0 0
    %415 = vmatprep.subr.bf16.mxu0 0
    %416 = vmatpush1.bf16.xpose.msra.mxu0 %v399
    %417 = vmatprep.subr.bf16.mxu0 0
    %418 = vmatpush2.bf16.xpose.msra.mxu0 0
    %419 = vmatprep.subr.bf16.mxu0 0
    %420 = vmatpush2.bf16.xpose.msra.mxu0 0
    %421 = vmatprep.subr.bf16.mxu0 0
    %422 = vmatpush2.bf16.xpose.msra.mxu0 0
    %423 = vmatprep.subr.bf16.mxu0 0
    %424 = vmatpush2.bf16.xpose.msra.mxu0 0
    %425 = vmatprep.subr.bf16.mxu0 0
    %426 = vmatpush2.bf16.xpose.msra.mxu0 0
    %427 = vmatprep.subr.bf16.mxu0 0
    %428 = vmatpush2.bf16.xpose.msra.mxu0 0
    %429 = vmatprep.subr.bf16.mxu0 0
    %430 = vmatpush2.bf16.xpose.msra.mxu0 0
    %431 = vmatprep.subr.bf16.mxu0 0
    %432 = vmatpush2.bf16.xpose.msra.mxu0 0
    %433 = vmatprep.mubr.bf16.mxu0 0
    %434 = vmatmul.mubr.bf16.gmra.mxu0 %v396
    %v435 = vpop.f32.mrf.mxu0
    %v436 = vadd.f32 0.0, %v435
    %v437 = vpop.f32.mrf.mxu0
    %v438 = vpop.f32.mrf.mxu0
    %v439 = vadd.f32 0.0, %v438
    %v440 = vpop.f32.mrf.mxu0
    %441 = vdwg.mxu0
    %443 = vrot.lane.b32.xlu0 %v384, 96
    %v444 = vpop.permute.xlu0 %443
    %v446 = vsel %vm394, %v384, 0
    %v449 = vsel %vm394, %v444, 0
    %451 = vmatprep.subr.bf16.mxu0 0
    %452 = vmatpush1.bf16.xpose.msra.mxu0 0
    %453 = vmatprep.subr.bf16.mxu0 0
    %454 = vmatpush1.bf16.xpose.msra.mxu0 0
    %455 = vmatprep.subr.bf16.mxu0 0
    %456 = vmatpush1.bf16.xpose.msra.mxu0 0
    %457 = vmatprep.subr.bf16.mxu0 0
    %458 = vmatpush1.bf16.xpose.msra.mxu0 0
    %459 = vmatprep.subr.bf16.mxu0 0
    %460 = vmatpush1.bf16.xpose.msra.mxu0 0
    %461 = vmatprep.subr.bf16.mxu0 0
    %462 = vmatpush1.bf16.xpose.msra.mxu0 0
    %463 = vmatprep.subr.bf16.mxu0 0
    %464 = vmatpush1.bf16.xpose.msra.mxu0 0
    %465 = vmatprep.subr.bf16.mxu0 0
    %466 = vmatpush1.bf16.xpose.msra.mxu0 %v449
    %467 = vmatprep.subr.bf16.mxu0 0
    %468 = vmatpush2.bf16.xpose.msra.mxu0 0
    %469 = vmatprep.subr.bf16.mxu0 0
    %470 = vmatpush2.bf16.xpose.msra.mxu0 0
    %471 = vmatprep.subr.bf16.mxu0 0
    %472 = vmatpush2.bf16.xpose.msra.mxu0 0
    %473 = vmatprep.subr.bf16.mxu0 0
    %474 = vmatpush2.bf16.xpose.msra.mxu0 0
    %475 = vmatprep.subr.bf16.mxu0 0
    %476 = vmatpush2.bf16.xpose.msra.mxu0 0
    %477 = vmatprep.subr.bf16.mxu0 0
    %478 = vmatpush2.bf16.xpose.msra.mxu0 0
    %479 = vmatprep.subr.bf16.mxu0 0
    %480 = vmatpush2.bf16.xpose.msra.mxu0 0
    %481 = vmatprep.subr.bf16.mxu0 0
    %482 = vmatpush2.bf16.xpose.msra.mxu0 0
    %483 = vmatprep.mubr.bf16.mxu0 0
    %484 = vmatmul.mubr.bf16.gmra.mxu0 %v446
    %v485 = vpop.f32.mrf.mxu0
    %v486 = vadd.f32 0.0, %v485
    %v487 = vpop.f32.mrf.mxu0
    %v488 = vpop.f32.mrf.mxu0
    %v489 = vadd.f32 0.0, %v488
    %v490 = vpop.f32.mrf.mxu0
    %491 = vdwg.mxu0
    %493 = vrot.lane.b32.xlu0 %v385, 96
    %v494 = vpop.permute.xlu0 %493
    %v496 = vsel %vm394, %v385, 0
    %v499 = vsel %vm394, %v494, 0
    %501 = vmatprep.subr.bf16.mxu0 0
    %502 = vmatpush1.bf16.xpose.msra.mxu0 0
    %503 = vmatprep.subr.bf16.mxu0 0
    %504 = vmatpush1.bf16.xpose.msra.mxu0 0
    %505 = vmatprep.subr.bf16.mxu0 0
    %506 = vmatpush1.bf16.xpose.msra.mxu0 0
    %507 = vmatprep.subr.bf16.mxu0 0
    %508 = vmatpush1.bf16.xpose.msra.mxu0 0
    %509 = vmatprep.subr.bf16.mxu0 0
    %510 = vmatpush1.bf16.xpose.msra.mxu0 0
    %511 = vmatprep.subr.bf16.mxu0 0
    %512 = vmatpush1.bf16.xpose.msra.mxu0 0
    %513 = vmatprep.subr.bf16.mxu0 0
    %514 = vmatpush1.bf16.xpose.msra.mxu0 0
    %515 = vmatprep.subr.bf16.mxu0 0
    %516 = vmatpush1.bf16.xpose.msra.mxu0 %v499
    %517 = vmatprep.subr.bf16.mxu0 0
    %518 = vmatpush2.bf16.xpose.msra.mxu0 0
    %519 = vmatprep.subr.bf16.mxu0 0
    %520 = vmatpush2.bf16.xpose.msra.mxu0 0
    %521 = vmatprep.subr.bf16.mxu0 0
    %522 = vmatpush2.bf16.xpose.msra.mxu0 0
    %523 = vmatprep.subr.bf16.mxu0 0
    %524 = vmatpush2.bf16.xpose.msra.mxu0 0
    %525 = vmatprep.subr.bf16.mxu0 0
    %526 = vmatpush2.bf16.xpose.msra.mxu0 0
    %527 = vmatprep.subr.bf16.mxu0 0
    %528 = vmatpush2.bf16.xpose.msra.mxu0 0
    %529 = vmatprep.subr.bf16.mxu0 0
    %530 = vmatpush2.bf16.xpose.msra.mxu0 0
    %531 = vmatprep.subr.bf16.mxu0 0
    %532 = vmatpush2.bf16.xpose.msra.mxu0 0
    %533 = vmatprep.mubr.bf16.mxu0 0
    %534 = vmatmul.mubr.bf16.gmra.mxu0 %v496
    %v535 = vpop.f32.mrf.mxu0
    %v536 = vadd.f32 0.0, %v535
    %v537 = vpop.f32.mrf.mxu0
    %v538 = vpop.f32.mrf.mxu0
    %v539 = vadd.f32 0.0, %v538
    %v540 = vpop.f32.mrf.mxu0
    %541 = vdwg.mxu0
    %543 = vrot.lane.b32.xlu0 %v386, 96
    %v544 = vpop.permute.xlu0 %543
    %v546 = vsel %vm394, %v386, 0
    %v549 = vsel %vm394, %v544, 0
    %551 = vmatprep.subr.bf16.mxu0 0
    %552 = vmatpush1.bf16.xpose.msra.mxu0 0
    %553 = vmatprep.subr.bf16.mxu0 0
    %554 = vmatpush1.bf16.xpose.msra.mxu0 0
    %555 = vmatprep.subr.bf16.mxu0 0
    %556 = vmatpush1.bf16.xpose.msra.mxu0 0
    %557 = vmatprep.subr.bf16.mxu0 0
    %558 = vmatpush1.bf16.xpose.msra.mxu0 0
    %559 = vmatprep.subr.bf16.mxu0 0
    %560 = vmatpush1.bf16.xpose.msra.mxu0 0
    %561 = vmatprep.subr.bf16.mxu0 0
    %562 = vmatpush1.bf16.xpose.msra.mxu0 0
    %563 = vmatprep.subr.bf16.mxu0 0
    %564 = vmatpush1.bf16.xpose.msra.mxu0 0
    %565 = vmatprep.subr.bf16.mxu0 0
    %566 = vmatpush1.bf16.xpose.msra.mxu0 %v549
    %567 = vmatprep.subr.bf16.mxu0 0
    %568 = vmatpush2.bf16.xpose.msra.mxu0 0
    %569 = vmatprep.subr.bf16.mxu0 0
    %570 = vmatpush2.bf16.xpose.msra.mxu0 0
    %571 = vmatprep.subr.bf16.mxu0 0
    %572 = vmatpush2.bf16.xpose.msra.mxu0 0
    %573 = vmatprep.subr.bf16.mxu0 0
    %574 = vmatpush2.bf16.xpose.msra.mxu0 0
    %575 = vmatprep.subr.bf16.mxu0 0
    %576 = vmatpush2.bf16.xpose.msra.mxu0 0
    %577 = vmatprep.subr.bf16.mxu0 0
    %578 = vmatpush2.bf16.xpose.msra.mxu0 0
    %579 = vmatprep.subr.bf16.mxu0 0
    %580 = vmatpush2.bf16.xpose.msra.mxu0 0
    %581 = vmatprep.subr.bf16.mxu0 0
    %582 = vmatpush2.bf16.xpose.msra.mxu0 0
    %583 = vmatprep.mubr.bf16.mxu0 0
    %584 = vmatmul.mubr.bf16.gmra.mxu0 %v546
    %v585 = vpop.f32.mrf.mxu0
    %v586 = vadd.f32 0.0, %v585
    %v587 = vpop.f32.mrf.mxu0
    %v588 = vpop.f32.mrf.mxu0
    %v589 = vadd.f32 0.0, %v588
    %v590 = vpop.f32.mrf.mxu0
    %591 = vdwg.mxu0
    %593 = vrot.lane.b32.xlu0 %v387, 96
    %v594 = vpop.permute.xlu0 %593
    %v596 = vsel %vm394, %v387, 0
    %v599 = vsel %vm394, %v594, 0
    %601 = vmatprep.subr.bf16.mxu0 0
    %602 = vmatpush1.bf16.xpose.msra.mxu0 0
    %603 = vmatprep.subr.bf16.mxu0 0
    %604 = vmatpush1.bf16.xpose.msra.mxu0 0
    %605 = vmatprep.subr.bf16.mxu0 0
    %606 = vmatpush1.bf16.xpose.msra.mxu0 0
    %607 = vmatprep.subr.bf16.mxu0 0
    %608 = vmatpush1.bf16.xpose.msra.mxu0 0
    %609 = vmatprep.subr.bf16.mxu0 0
    %610 = vmatpush1.bf16.xpose.msra.mxu0 0
    %611 = vmatprep.subr.bf16.mxu0 0
    %612 = vmatpush1.bf16.xpose.msra.mxu0 0
    %613 = vmatprep.subr.bf16.mxu0 0
    %614 = vmatpush1.bf16.xpose.msra.mxu0 0
    %615 = vmatprep.subr.bf16.mxu0 0
    %616 = vmatpush1.bf16.xpose.msra.mxu0 %v599
    %617 = vmatprep.subr.bf16.mxu0 0
    %618 = vmatpush2.bf16.xpose.msra.mxu0 0
    %619 = vmatprep.subr.bf16.mxu0 0
    %620 = vmatpush2.bf16.xpose.msra.mxu0 0
    %621 = vmatprep.subr.bf16.mxu0 0
    %622 = vmatpush2.bf16.xpose.msra.mxu0 0
    %623 = vmatprep.subr.bf16.mxu0 0
    %624 = vmatpush2.bf16.xpose.msra.mxu0 0
    %625 = vmatprep.subr.bf16.mxu0 0
    %626 = vmatpush2.bf16.xpose.msra.mxu0 0
    %627 = vmatprep.subr.bf16.mxu0 0
    %628 = vmatpush2.bf16.xpose.msra.mxu0 0
    %629 = vmatprep.subr.bf16.mxu0 0
    %630 = vmatpush2.bf16.xpose.msra.mxu0 0
    %631 = vmatprep.subr.bf16.mxu0 0
    %632 = vmatpush2.bf16.xpose.msra.mxu0 0
    %633 = vmatprep.mubr.bf16.mxu0 0
    %634 = vmatmul.mubr.bf16.gmra.mxu0 %v596
    %v635 = vpop.f32.mrf.mxu0
    %v636 = vadd.f32 0.0, %v635
    %v637 = vpop.f32.mrf.mxu0
    %v638 = vpop.f32.mrf.mxu0
    %v639 = vadd.f32 0.0, %v638
    %v640 = vpop.f32.mrf.mxu0
    %641 = vdwg.mxu0
    %643 = vrot.lane.b32.xlu0 %v388, 96
    %v644 = vpop.permute.xlu0 %643
    %v646 = vsel %vm394, %v388, 0
    %v649 = vsel %vm394, %v644, 0
    %651 = vmatprep.subr.bf16.mxu0 0
    %652 = vmatpush1.bf16.xpose.msra.mxu0 0
    %653 = vmatprep.subr.bf16.mxu0 0
    %654 = vmatpush1.bf16.xpose.msra.mxu0 0
    %655 = vmatprep.subr.bf16.mxu0 0
    %656 = vmatpush1.bf16.xpose.msra.mxu0 0
    %657 = vmatprep.subr.bf16.mxu0 0
    %658 = vmatpush1.bf16.xpose.msra.mxu0 0
    %659 = vmatprep.subr.bf16.mxu0 0
    %660 = vmatpush1.bf16.xpose.msra.mxu0 0
    %661 = vmatprep.subr.bf16.mxu0 0
    %662 = vmatpush1.bf16.xpose.msra.mxu0 0
    %663 = vmatprep.subr.bf16.mxu0 0
    %664 = vmatpush1.bf16.xpose.msra.mxu0 0
    %665 = vmatprep.subr.bf16.mxu0 0
    %666 = vmatpush1.bf16.xpose.msra.mxu0 %v649
    %667 = vmatprep.subr.bf16.mxu0 0
    %668 = vmatpush2.bf16.xpose.msra.mxu0 0
    %669 = vmatprep.subr.bf16.mxu0 0
    %670 = vmatpush2.bf16.xpose.msra.mxu0 0
    %671 = vmatprep.subr.bf16.mxu0 0
    %672 = vmatpush2.bf16.xpose.msra.mxu0 0
    %673 = vmatprep.subr.bf16.mxu0 0
    %674 = vmatpush2.bf16.xpose.msra.mxu0 0
    %675 = vmatprep.subr.bf16.mxu0 0
    %676 = vmatpush2.bf16.xpose.msra.mxu0 0
    %677 = vmatprep.subr.bf16.mxu0 0
    %678 = vmatpush2.bf16.xpose.msra.mxu0 0
    %679 = vmatprep.subr.bf16.mxu0 0
    %680 = vmatpush2.bf16.xpose.msra.mxu0 0
    %681 = vmatprep.subr.bf16.mxu0 0
    %682 = vmatpush2.bf16.xpose.msra.mxu0 0
    %683 = vmatprep.mubr.bf16.mxu0 0
    %684 = vmatmul.mubr.bf16.gmra.mxu0 %v646
    %v685 = vpop.f32.mrf.mxu0
    %v686 = vadd.f32 0.0, %v685
    %v687 = vpop.f32.mrf.mxu0
    %v688 = vpop.f32.mrf.mxu0
    %v689 = vadd.f32 0.0, %v688
    %v690 = vpop.f32.mrf.mxu0
    %691 = vdwg.mxu0
    %693 = vrot.lane.b32.xlu0 %v389, 96
    %v694 = vpop.permute.xlu0 %693
    %v696 = vsel %vm394, %v389, 0
    %v699 = vsel %vm394, %v694, 0
    %701 = vmatprep.subr.bf16.mxu0 0
    %702 = vmatpush1.bf16.xpose.msra.mxu0 0
    %703 = vmatprep.subr.bf16.mxu0 0
    %704 = vmatpush1.bf16.xpose.msra.mxu0 0
    %705 = vmatprep.subr.bf16.mxu0 0
    %706 = vmatpush1.bf16.xpose.msra.mxu0 0
    %707 = vmatprep.subr.bf16.mxu0 0
    %708 = vmatpush1.bf16.xpose.msra.mxu0 0
    %709 = vmatprep.subr.bf16.mxu0 0
    %710 = vmatpush1.bf16.xpose.msra.mxu0 0
    %711 = vmatprep.subr.bf16.mxu0 0
    %712 = vmatpush1.bf16.xpose.msra.mxu0 0
    %713 = vmatprep.subr.bf16.mxu0 0
    %714 = vmatpush1.bf16.xpose.msra.mxu0 0
    %715 = vmatprep.subr.bf16.mxu0 0
    %716 = vmatpush1.bf16.xpose.msra.mxu0 %v699
    %717 = vmatprep.subr.bf16.mxu0 0
    %718 = vmatpush2.bf16.xpose.msra.mxu0 0
    %719 = vmatprep.subr.bf16.mxu0 0
    %720 = vmatpush2.bf16.xpose.msra.mxu0 0
    %721 = vmatprep.subr.bf16.mxu0 0
    %722 = vmatpush2.bf16.xpose.msra.mxu0 0
    %723 = vmatprep.subr.bf16.mxu0 0
    %724 = vmatpush2.bf16.xpose.msra.mxu0 0
    %725 = vmatprep.subr.bf16.mxu0 0
    %726 = vmatpush2.bf16.xpose.msra.mxu0 0
    %727 = vmatprep.subr.bf16.mxu0 0
    %728 = vmatpush2.bf16.xpose.msra.mxu0 0
    %729 = vmatprep.subr.bf16.mxu0 0
    %730 = vmatpush2.bf16.xpose.msra.mxu0 0
    %731 = vmatprep.subr.bf16.mxu0 0
    %732 = vmatpush2.bf16.xpose.msra.mxu0 0
    %733 = vmatprep.mubr.bf16.mxu0 0
    %734 = vmatmul.mubr.bf16.gmra.mxu0 %v696
    %v735 = vpop.f32.mrf.mxu0
    %v736 = vadd.f32 0.0, %v735
    %v737 = vpop.f32.mrf.mxu0
    %v738 = vpop.f32.mrf.mxu0
    %v739 = vadd.f32 0.0, %v738
    %v740 = vpop.f32.mrf.mxu0
    %741 = vdwg.mxu0
    %743 = vrot.lane.b32.xlu0 %v390, 96
    %v744 = vpop.permute.xlu0 %743
    %v746 = vsel %vm394, %v390, 0
    %v749 = vsel %vm394, %v744, 0
    %751 = vmatprep.subr.bf16.mxu0 0
    %752 = vmatpush1.bf16.xpose.msra.mxu0 0
    %753 = vmatprep.subr.bf16.mxu0 0
    %754 = vmatpush1.bf16.xpose.msra.mxu0 0
    %755 = vmatprep.subr.bf16.mxu0 0
    %756 = vmatpush1.bf16.xpose.msra.mxu0 0
    %757 = vmatprep.subr.bf16.mxu0 0
    %758 = vmatpush1.bf16.xpose.msra.mxu0 0
    %759 = vmatprep.subr.bf16.mxu0 0
    %760 = vmatpush1.bf16.xpose.msra.mxu0 0
    %761 = vmatprep.subr.bf16.mxu0 0
    %762 = vmatpush1.bf16.xpose.msra.mxu0 0
    %763 = vmatprep.subr.bf16.mxu0 0
    %764 = vmatpush1.bf16.xpose.msra.mxu0 0
    %765 = vmatprep.subr.bf16.mxu0 0
    %766 = vmatpush1.bf16.xpose.msra.mxu0 %v749
    %767 = vmatprep.subr.bf16.mxu0 0
    %768 = vmatpush2.bf16.xpose.msra.mxu0 0
    %769 = vmatprep.subr.bf16.mxu0 0
    %770 = vmatpush2.bf16.xpose.msra.mxu0 0
    %771 = vmatprep.subr.bf16.mxu0 0
    %772 = vmatpush2.bf16.xpose.msra.mxu0 0
    %773 = vmatprep.subr.bf16.mxu0 0
    %774 = vmatpush2.bf16.xpose.msra.mxu0 0
    %775 = vmatprep.subr.bf16.mxu0 0
    %776 = vmatpush2.bf16.xpose.msra.mxu0 0
    %777 = vmatprep.subr.bf16.mxu0 0
    %778 = vmatpush2.bf16.xpose.msra.mxu0 0
    %779 = vmatprep.subr.bf16.mxu0 0
    %780 = vmatpush2.bf16.xpose.msra.mxu0 0
    %781 = vmatprep.subr.bf16.mxu0 0
    %782 = vmatpush2.bf16.xpose.msra.mxu0 0
    %783 = vmatprep.mubr.bf16.mxu0 0
    %784 = vmatmul.mubr.bf16.gmra.mxu0 %v746
    %v785 = vpop.f32.mrf.mxu0
    %v786 = vadd.f32 0.0, %v785
    %v787 = vpop.f32.mrf.mxu0
    %v788 = vpop.f32.mrf.mxu0
    %v789 = vadd.f32 0.0, %v788
    %v790 = vpop.f32.mrf.mxu0
    %791 = vdwg.mxu0
    %vm792 = vcmask 130048
    %v793 = vsel %vm792, %v436, -inf
    %794 = vmax.xlane.f32.xlu0 %v793
    %v795 = vpop.xlane.xlu0 %794
    %v796 = vsel %vm792, %v439, -inf
    %797 = vmax.xlane.f32.xlu0 %v796
    %v798 = vpop.xlane.xlu0 %797
    %v799 = vsel %vm792, %v486, -inf
    %800 = vmax.xlane.f32.xlu0 %v799
    %v801 = vpop.xlane.xlu0 %800
    %v802 = vsel %vm792, %v489, -inf
    %803 = vmax.xlane.f32.xlu0 %v802
    %v804 = vpop.xlane.xlu0 %803
    %v805 = vsel %vm792, %v536, -inf
    %806 = vmax.xlane.f32.xlu0 %v805
    %v807 = vpop.xlane.xlu0 %806
    %v808 = vsel %vm792, %v539, -inf
    %809 = vmax.xlane.f32.xlu0 %v808
    %v810 = vpop.xlane.xlu0 %809
    %v811 = vsel %vm792, %v586, -inf
    %812 = vmax.xlane.f32.xlu0 %v811
    %v813 = vpop.xlane.xlu0 %812
    %v814 = vsel %vm792, %v589, -inf
    %815 = vmax.xlane.f32.xlu0 %v814
    %v816 = vpop.xlane.xlu0 %815
    %v817 = vsel %vm792, %v636, -inf
    %818 = vmax.xlane.f32.xlu0 %v817
    %v819 = vpop.xlane.xlu0 %818
    %v820 = vsel %vm792, %v639, -inf
    %821 = vmax.xlane.f32.xlu0 %v820
    %v822 = vpop.xlane.xlu0 %821
    %v823 = vsel %vm792, %v686, -inf
    %824 = vmax.xlane.f32.xlu0 %v823
    %v825 = vpop.xlane.xlu0 %824
    %v826 = vsel %vm792, %v689, -inf
    %827 = vmax.xlane.f32.xlu0 %v826
    %v828 = vpop.xlane.xlu0 %827
    %v829 = vsel %vm792, %v736, -inf
    %830 = vmax.xlane.f32.xlu0 %v829
    %v831 = vpop.xlane.xlu0 %830
    %v832 = vsel %vm792, %v739, -inf
    %833 = vmax.xlane.f32.xlu0 %v832
    %v834 = vpop.xlane.xlu0 %833
    %v835 = vsel %vm792, %v786, -inf
    %836 = vmax.xlane.f32.xlu0 %v835
    %v837 = vpop.xlane.xlu0 %836
    %v838 = vsel %vm792, %v789, -inf
    %839 = vmax.xlane.f32.xlu0 %v838
    %v840 = vpop.xlane.xlu0 %839
    %v841 = vsub.f32 %v436, %v795
    %v842 = vsub.f32 %v439, %v798
    %v843 = vsub.f32 %v486, %v801
    %v844 = vsub.f32 %v489, %v804
    %v845 = vsub.f32 %v536, %v807
    %v846 = vsub.f32 %v539, %v810
    %v847 = vsub.f32 %v586, %v813
    %v848 = vsub.f32 %v589, %v816
    %v849 = vsub.f32 %v636, %v819
    %v850 = vsub.f32 %v639, %v822
    %v851 = vsub.f32 %v686, %v825
    %v852 = vsub.f32 %v689, %v828
    %v853 = vsub.f32 %v736, %v831
    %v854 = vsub.f32 %v739, %v834
    %v855 = vsub.f32 %v786, %v837
    %v856 = vsub.f32 %v789, %v840
    %v857 = vmul.f32 %v841, 1.442695
    %v858 = vpow.pop %v857
    %v859 = vmul.f32 %v842, 1.442695
    %v860 = vpow.pop %v859
    %v861 = vmul.f32 %v843, 1.442695
    %v862 = vpow.pop %v861
    %v863 = vmul.f32 %v844, 1.442695
    %v864 = vpow.pop %v863
    %v865 = vmul.f32 %v845, 1.442695
    %v866 = vpow.pop %v865
    %v867 = vmul.f32 %v846, 1.442695
    %v868 = vpow.pop %v867
    %v869 = vmul.f32 %v847, 1.442695
    %v870 = vpow.pop %v869
    %v871 = vmul.f32 %v848, 1.442695
    %v872 = vpow.pop %v871
    %v873 = vmul.f32 %v849, 1.442695
    %v874 = vpow.pop %v873
    %v875 = vmul.f32 %v850, 1.442695
    %v876 = vpow.pop %v875
    %v877 = vmul.f32 %v851, 1.442695
    %v878 = vpow.pop %v877
    %v879 = vmul.f32 %v852, 1.442695
    %v880 = vpow.pop %v879
    %v881 = vmul.f32 %v853, 1.442695
    %v882 = vpow.pop %v881
    %v883 = vmul.f32 %v854, 1.442695
    %v884 = vpow.pop %v883
    %v885 = vmul.f32 %v855, 1.442695
    %v886 = vpow.pop %v885
    %v887 = vmul.f32 %v856, 1.442695
    %v888 = vpow.pop %v887
    %v889 = vsel %vm792, %v858, 0.0
    %890 = vadd.xlane.f32.xlu0 %v889
    %v891 = vpop.xlane.xlu0 %890
    %v892 = vsel %vm792, %v860, 0.0
    %893 = vadd.xlane.f32.xlu0 %v892
    %v894 = vpop.xlane.xlu0 %893
    %v895 = vsel %vm792, %v862, 0.0
    %896 = vadd.xlane.f32.xlu0 %v895
    %v897 = vpop.xlane.xlu0 %896
    %v898 = vsel %vm792, %v864, 0.0
    %899 = vadd.xlane.f32.xlu0 %v898
    %v900 = vpop.xlane.xlu0 %899
    %v901 = vsel %vm792, %v866, 0.0
    %902 = vadd.xlane.f32.xlu0 %v901
    %v903 = vpop.xlane.xlu0 %902
    %v904 = vsel %vm792, %v868, 0.0
    %905 = vadd.xlane.f32.xlu0 %v904
    %v906 = vpop.xlane.xlu0 %905
    %v907 = vsel %vm792, %v870, 0.0
    %908 = vadd.xlane.f32.xlu0 %v907
    %v909 = vpop.xlane.xlu0 %908
    %v910 = vsel %vm792, %v872, 0.0
    %911 = vadd.xlane.f32.xlu0 %v910
    %v912 = vpop.xlane.xlu0 %911
    %v913 = vsel %vm792, %v874, 0.0
    %914 = vadd.xlane.f32.xlu0 %v913
    %v915 = vpop.xlane.xlu0 %914
    %v916 = vsel %vm792, %v876, 0.0
    %917 = vadd.xlane.f32.xlu0 %v916
    %v918 = vpop.xlane.xlu0 %917
    %v919 = vsel %vm792, %v878, 0.0
    %920 = vadd.xlane.f32.xlu0 %v919
    %v921 = vpop.xlane.xlu0 %920
    %v922 = vsel %vm792, %v880, 0.0
    %923 = vadd.xlane.f32.xlu0 %v922
    %v924 = vpop.xlane.xlu0 %923
    %v925 = vsel %vm792, %v882, 0.0
    %926 = vadd.xlane.f32.xlu0 %v925
    %v927 = vpop.xlane.xlu0 %926
    %v928 = vsel %vm792, %v884, 0.0
    %929 = vadd.xlane.f32.xlu0 %v928
    %v930 = vpop.xlane.xlu0 %929
    %v931 = vsel %vm792, %v886, 0.0
    %932 = vadd.xlane.f32.xlu0 %v931
    %v933 = vpop.xlane.xlu0 %932
    %v934 = vsel %vm792, %v888, 0.0
    %935 = vadd.xlane.f32.xlu0 %v934
    %v936 = vpop.xlane.xlu0 %935
    %v937 = vrcp.pop %v891
    %v938 = vrcp.pop %v894
    %v939 = vrcp.pop %v897
    %v940 = vrcp.pop %v900
    %v941 = vrcp.pop %v903
    %v942 = vrcp.pop %v906
    %v943 = vrcp.pop %v909
    %v944 = vrcp.pop %v912
    %v945 = vrcp.pop %v915
    %v946 = vrcp.pop %v918
    %v947 = vrcp.pop %v921
    %v948 = vrcp.pop %v924
    %v949 = vrcp.pop %v927
    %v950 = vrcp.pop %v930
    %v951 = vrcp.pop %v933
    %v952 = vrcp.pop %v936
    %v953 = vmul.f32 %v858, %v937
    %v954 = vmul.f32 %v860, %v938
    %v955 = vmul.f32 %v862, %v939
    %v956 = vmul.f32 %v864, %v940
    %v957 = vmul.f32 %v866, %v941
    %v958 = vmul.f32 %v868, %v942
    %v959 = vmul.f32 %v870, %v943
    %v960 = vmul.f32 %v872, %v944
    %v961 = vmul.f32 %v874, %v945
    %v962 = vmul.f32 %v876, %v946
    %v963 = vmul.f32 %v878, %v947
    %v964 = vmul.f32 %v880, %v948
    %v965 = vmul.f32 %v882, %v949
    %v966 = vmul.f32 %v884, %v950
    %v967 = vmul.f32 %v886, %v951
    %v968 = vmul.f32 %v888, %v952
    %v969 = vpack.c.bf16 %v954, %v953
    %v970 = vpack.c.bf16 %v956, %v955
    %v971 = vpack.c.bf16 %v958, %v957
    %v972 = vpack.c.bf16 %v960, %v959
    %v973 = vpack.c.bf16 %v962, %v961
    %v974 = vpack.c.bf16 %v964, %v963
    %v975 = vpack.c.bf16 %v966, %v965
    %v976 = vpack.c.bf16 %v968, %v967
    %977 = vrot.lane.b32.xlu0 %v383, 64
    %v978 = vpop.permute.xlu0 %977
    %v981 = vsel %vm792, %v969, 0
    %983 = vmatprep.subr.bf16.mxu0 0
    %984 = vmatpush1.bf16.msra.mxu0 0
    %985 = vmatprep.subr.bf16.mxu0 0
    %986 = vmatpush1.bf16.msra.mxu0 0
    %987 = vmatprep.subr.bf16.mxu0 0
    %988 = vmatpush1.bf16.msra.mxu0 0
    %989 = vmatprep.subr.bf16.mxu0 0
    %990 = vmatpush1.bf16.msra.mxu0 0
    %991 = vmatprep.subr.bf16.mxu0 0
    %992 = vmatpush1.bf16.msra.mxu0 0
    %993 = vmatprep.subr.bf16.mxu0 0
    %994 = vmatpush1.bf16.msra.mxu0 0
    %995 = vmatprep.subr.bf16.mxu0 0
    %996 = vmatpush1.bf16.msra.mxu0 0
    %997 = vmatprep.subr.bf16.mxu0 0
    %998 = vmatpush1.bf16.msra.mxu0 %v978
    %999 = vmatprep.subr.bf16.mxu0 0
    %1000 = vmatpush2.bf16.msra.mxu0 0
    %1001 = vmatprep.subr.bf16.mxu0 0
    %1002 = vmatpush2.bf16.msra.mxu0 0
    %1003 = vmatprep.subr.bf16.mxu0 0
    %1004 = vmatpush2.bf16.msra.mxu0 0
    %1005 = vmatprep.subr.bf16.mxu0 0
    %1006 = vmatpush2.bf16.msra.mxu0 0
    %1007 = vmatprep.subr.bf16.mxu0 0
    %1008 = vmatpush2.bf16.msra.mxu0 0
    %1009 = vmatprep.subr.bf16.mxu0 0
    %1010 = vmatpush2.bf16.msra.mxu0 0
    %1011 = vmatprep.subr.bf16.mxu0 0
    %1012 = vmatpush2.bf16.msra.mxu0 0
    %1013 = vmatprep.subr.bf16.mxu0 0
    %1014 = vmatpush2.bf16.msra.mxu0 0
    %1015 = vmatprep.mubr.bf16.mxu0 0
    %1016 = vmatmul.mubr.bf16.gmra.mxu0 %v981
    %v1017 = vpop.f32.mrf.mxu0
    %v1018 = vadd.f32 0.0, %v1017
    %v1019 = vpop.f32.mrf.mxu0
    %v1020 = vpop.f32.mrf.mxu0
    %v1021 = vadd.f32 0.0, %v1020
    %v1022 = vpop.f32.mrf.mxu0
    %1023 = vdwg.mxu0
    %1024 = vrot.lane.b32.xlu0 %v384, 64
    %v1025 = vpop.permute.xlu0 %1024
    %v1028 = vsel %vm792, %v970, 0
    %1030 = vmatprep.subr.bf16.mxu0 0
    %1031 = vmatpush1.bf16.msra.mxu0 0
    %1032 = vmatprep.subr.bf16.mxu0 0
    %1033 = vmatpush1.bf16.msra.mxu0 0
    %1034 = vmatprep.subr.bf16.mxu0 0
    %1035 = vmatpush1.bf16.msra.mxu0 0
    %1036 = vmatprep.subr.bf16.mxu0 0
    %1037 = vmatpush1.bf16.msra.mxu0 0
    %1038 = vmatprep.subr.bf16.mxu0 0
    %1039 = vmatpush1.bf16.msra.mxu0 0
    %1040 = vmatprep.subr.bf16.mxu0 0
    %1041 = vmatpush1.bf16.msra.mxu0 0
    %1042 = vmatprep.subr.bf16.mxu0 0
    %1043 = vmatpush1.bf16.msra.mxu0 0
    %1044 = vmatprep.subr.bf16.mxu0 0
    %1045 = vmatpush1.bf16.msra.mxu0 %v1025
    %1046 = vmatprep.subr.bf16.mxu0 0
    %1047 = vmatpush2.bf16.msra.mxu0 0
    %1048 = vmatprep.subr.bf16.mxu0 0
    %1049 = vmatpush2.bf16.msra.mxu0 0
    %1050 = vmatprep.subr.bf16.mxu0 0
    %1051 = vmatpush2.bf16.msra.mxu0 0
    %1052 = vmatprep.subr.bf16.mxu0 0
    %1053 = vmatpush2.bf16.msra.mxu0 0
    %1054 = vmatprep.subr.bf16.mxu0 0
    %1055 = vmatpush2.bf16.msra.mxu0 0
    %1056 = vmatprep.subr.bf16.mxu0 0
    %1057 = vmatpush2.bf16.msra.mxu0 0
    %1058 = vmatprep.subr.bf16.mxu0 0
    %1059 = vmatpush2.bf16.msra.mxu0 0
    %1060 = vmatprep.subr.bf16.mxu0 0
    %1061 = vmatpush2.bf16.msra.mxu0 0
    %1062 = vmatprep.mubr.bf16.mxu0 0
    %1063 = vmatmul.mubr.bf16.gmra.mxu0 %v1028
    %v1064 = vpop.f32.mrf.mxu0
    %v1065 = vadd.f32 0.0, %v1064
    %v1066 = vpop.f32.mrf.mxu0
    %v1067 = vpop.f32.mrf.mxu0
    %v1068 = vadd.f32 0.0, %v1067
    %v1069 = vpop.f32.mrf.mxu0
    %1070 = vdwg.mxu0
    %1071 = vrot.lane.b32.xlu0 %v385, 64
    %v1072 = vpop.permute.xlu0 %1071
    %v1075 = vsel %vm792, %v971, 0
    %1077 = vmatprep.subr.bf16.mxu0 0
    %1078 = vmatpush1.bf16.msra.mxu0 0
    %1079 = vmatprep.subr.bf16.mxu0 0
    %1080 = vmatpush1.bf16.msra.mxu0 0
    %1081 = vmatprep.subr.bf16.mxu0 0
    %1082 = vmatpush1.bf16.msra.mxu0 0
    %1083 = vmatprep.subr.bf16.mxu0 0
    %1084 = vmatpush1.bf16.msra.mxu0 0
    %1085 = vmatprep.subr.bf16.mxu0 0
    %1086 = vmatpush1.bf16.msra.mxu0 0
    %1087 = vmatprep.subr.bf16.mxu0 0
    %1088 = vmatpush1.bf16.msra.mxu0 0
    %1089 = vmatprep.subr.bf16.mxu0 0
    %1090 = vmatpush1.bf16.msra.mxu0 0
    %1091 = vmatprep.subr.bf16.mxu0 0
    %1092 = vmatpush1.bf16.msra.mxu0 %v1072
    %1093 = vmatprep.subr.bf16.mxu0 0
    %1094 = vmatpush2.bf16.msra.mxu0 0
    %1095 = vmatprep.subr.bf16.mxu0 0
    %1096 = vmatpush2.bf16.msra.mxu0 0
    %1097 = vmatprep.subr.bf16.mxu0 0
    %1098 = vmatpush2.bf16.msra.mxu0 0
    %1099 = vmatprep.subr.bf16.mxu0 0
    %1100 = vmatpush2.bf16.msra.mxu0 0
    %1101 = vmatprep.subr.bf16.mxu0 0
    %1102 = vmatpush2.bf16.msra.mxu0 0
    %1103 = vmatprep.subr.bf16.mxu0 0
    %1104 = vmatpush2.bf16.msra.mxu0 0
    %1105 = vmatprep.subr.bf16.mxu0 0
    %1106 = vmatpush2.bf16.msra.mxu0 0
    %1107 = vmatprep.subr.bf16.mxu0 0
    %1108 = vmatpush2.bf16.msra.mxu0 0
    %1109 = vmatprep.mubr.bf16.mxu0 0
    %1110 = vmatmul.mubr.bf16.gmra.mxu0 %v1075
    %v1111 = vpop.f32.mrf.mxu0
    %v1112 = vadd.f32 0.0, %v1111
    %v1113 = vpop.f32.mrf.mxu0
    %v1114 = vpop.f32.mrf.mxu0
    %v1115 = vadd.f32 0.0, %v1114
    %v1116 = vpop.f32.mrf.mxu0
    %1117 = vdwg.mxu0
    %1118 = vrot.lane.b32.xlu0 %v386, 64
    %v1119 = vpop.permute.xlu0 %1118
    %v1122 = vsel %vm792, %v972, 0
    %1124 = vmatprep.subr.bf16.mxu0 0
    %1125 = vmatpush1.bf16.msra.mxu0 0
    %1126 = vmatprep.subr.bf16.mxu0 0
    %1127 = vmatpush1.bf16.msra.mxu0 0
    %1128 = vmatprep.subr.bf16.mxu0 0
    %1129 = vmatpush1.bf16.msra.mxu0 0
    %1130 = vmatprep.subr.bf16.mxu0 0
    %1131 = vmatpush1.bf16.msra.mxu0 0
    %1132 = vmatprep.subr.bf16.mxu0 0
    %1133 = vmatpush1.bf16.msra.mxu0 0
    %1134 = vmatprep.subr.bf16.mxu0 0
    %1135 = vmatpush1.bf16.msra.mxu0 0
    %1136 = vmatprep.subr.bf16.mxu0 0
    %1137 = vmatpush1.bf16.msra.mxu0 0
    %1138 = vmatprep.subr.bf16.mxu0 0
    %1139 = vmatpush1.bf16.msra.mxu0 %v1119
    %1140 = vmatprep.subr.bf16.mxu0 0
    %1141 = vmatpush2.bf16.msra.mxu0 0
    %1142 = vmatprep.subr.bf16.mxu0 0
    %1143 = vmatpush2.bf16.msra.mxu0 0
    %1144 = vmatprep.subr.bf16.mxu0 0
    %1145 = vmatpush2.bf16.msra.mxu0 0
    %1146 = vmatprep.subr.bf16.mxu0 0
    %1147 = vmatpush2.bf16.msra.mxu0 0
    %1148 = vmatprep.subr.bf16.mxu0 0
    %1149 = vmatpush2.bf16.msra.mxu0 0
    %1150 = vmatprep.subr.bf16.mxu0 0
    %1151 = vmatpush2.bf16.msra.mxu0 0
    %1152 = vmatprep.subr.bf16.mxu0 0
    %1153 = vmatpush2.bf16.msra.mxu0 0
    %1154 = vmatprep.subr.bf16.mxu0 0
    %1155 = vmatpush2.bf16.msra.mxu0 0
    %1156 = vmatprep.mubr.bf16.mxu0 0
    %1157 = vmatmul.mubr.bf16.gmra.mxu0 %v1122
    %v1158 = vpop.f32.mrf.mxu0
    %v1159 = vadd.f32 0.0, %v1158
    %v1160 = vpop.f32.mrf.mxu0
    %v1161 = vpop.f32.mrf.mxu0
    %v1162 = vadd.f32 0.0, %v1161
    %v1163 = vpop.f32.mrf.mxu0
    %1164 = vdwg.mxu0
    %1165 = vrot.lane.b32.xlu0 %v387, 64
    %v1166 = vpop.permute.xlu0 %1165
    %v1169 = vsel %vm792, %v973, 0
    %1171 = vmatprep.subr.bf16.mxu0 0
    %1172 = vmatpush1.bf16.msra.mxu0 0
    %1173 = vmatprep.subr.bf16.mxu0 0
    %1174 = vmatpush1.bf16.msra.mxu0 0
    %1175 = vmatprep.subr.bf16.mxu0 0
    %1176 = vmatpush1.bf16.msra.mxu0 0
    %1177 = vmatprep.subr.bf16.mxu0 0
    %1178 = vmatpush1.bf16.msra.mxu0 0
    %1179 = vmatprep.subr.bf16.mxu0 0
    %1180 = vmatpush1.bf16.msra.mxu0 0
    %1181 = vmatprep.subr.bf16.mxu0 0
    %1182 = vmatpush1.bf16.msra.mxu0 0
    %1183 = vmatprep.subr.bf16.mxu0 0
    %1184 = vmatpush1.bf16.msra.mxu0 0
    %1185 = vmatprep.subr.bf16.mxu0 0
    %1186 = vmatpush1.bf16.msra.mxu0 %v1166
    %1187 = vmatprep.subr.bf16.mxu0 0
    %1188 = vmatpush2.bf16.msra.mxu0 0
    %1189 = vmatprep.subr.bf16.mxu0 0
    %1190 = vmatpush2.bf16.msra.mxu0 0
    %1191 = vmatprep.subr.bf16.mxu0 0
    %1192 = vmatpush2.bf16.msra.mxu0 0
    %1193 = vmatprep.subr.bf16.mxu0 0
    %1194 = vmatpush2.bf16.msra.mxu0 0
    %1195 = vmatprep.subr.bf16.mxu0 0
    %1196 = vmatpush2.bf16.msra.mxu0 0
    %1197 = vmatprep.subr.bf16.mxu0 0
    %1198 = vmatpush2.bf16.msra.mxu0 0
    %1199 = vmatprep.subr.bf16.mxu0 0
    %1200 = vmatpush2.bf16.msra.mxu0 0
    %1201 = vmatprep.subr.bf16.mxu0 0
    %1202 = vmatpush2.bf16.msra.mxu0 0
    %1203 = vmatprep.mubr.bf16.mxu0 0
    %1204 = vmatmul.mubr.bf16.gmra.mxu0 %v1169
    %v1205 = vpop.f32.mrf.mxu0
    %v1206 = vadd.f32 0.0, %v1205
    %v1207 = vpop.f32.mrf.mxu0
    %v1208 = vpop.f32.mrf.mxu0
    %v1209 = vadd.f32 0.0, %v1208
    %v1210 = vpop.f32.mrf.mxu0
    %1211 = vdwg.mxu0
    %1212 = vrot.lane.b32.xlu0 %v388, 64
    %v1213 = vpop.permute.xlu0 %1212
    %v1216 = vsel %vm792, %v974, 0
    %1218 = vmatprep.subr.bf16.mxu0 0
    %1219 = vmatpush1.bf16.msra.mxu0 0
    %1220 = vmatprep.subr.bf16.mxu0 0
    %1221 = vmatpush1.bf16.msra.mxu0 0
    %1222 = vmatprep.subr.bf16.mxu0 0
    %1223 = vmatpush1.bf16.msra.mxu0 0
    %1224 = vmatprep.subr.bf16.mxu0 0
    %1225 = vmatpush1.bf16.msra.mxu0 0
    %1226 = vmatprep.subr.bf16.mxu0 0
    %1227 = vmatpush1.bf16.msra.mxu0 0
    %1228 = vmatprep.subr.bf16.mxu0 0
    %1229 = vmatpush1.bf16.msra.mxu0 0
    %1230 = vmatprep.subr.bf16.mxu0 0
    %1231 = vmatpush1.bf16.msra.mxu0 0
    %1232 = vmatprep.subr.bf16.mxu0 0
    %1233 = vmatpush1.bf16.msra.mxu0 %v1213
    %1234 = vmatprep.subr.bf16.mxu0 0
    %1235 = vmatpush2.bf16.msra.mxu0 0
    %1236 = vmatprep.subr.bf16.mxu0 0
    %1237 = vmatpush2.bf16.msra.mxu0 0
    %1238 = vmatprep.subr.bf16.mxu0 0
    %1239 = vmatpush2.bf16.msra.mxu0 0
    %1240 = vmatprep.subr.bf16.mxu0 0
    %1241 = vmatpush2.bf16.msra.mxu0 0
    %1242 = vmatprep.subr.bf16.mxu0 0
    %1243 = vmatpush2.bf16.msra.mxu0 0
    %1244 = vmatprep.subr.bf16.mxu0 0
    %1245 = vmatpush2.bf16.msra.mxu0 0
    %1246 = vmatprep.subr.bf16.mxu0 0
    %1247 = vmatpush2.bf16.msra.mxu0 0
    %1248 = vmatprep.subr.bf16.mxu0 0
    %1249 = vmatpush2.bf16.msra.mxu0 0
    %1250 = vmatprep.mubr.bf16.mxu0 0
    %1251 = vmatmul.mubr.bf16.gmra.mxu0 %v1216
    %v1252 = vpop.f32.mrf.mxu0
    %v1253 = vadd.f32 0.0, %v1252
    %v1254 = vpop.f32.mrf.mxu0
    %v1255 = vpop.f32.mrf.mxu0
    %v1256 = vadd.f32 0.0, %v1255
    %v1257 = vpop.f32.mrf.mxu0
    %1258 = vdwg.mxu0
    %1259 = vrot.lane.b32.xlu0 %v389, 64
    %v1260 = vpop.permute.xlu0 %1259
    %v1263 = vsel %vm792, %v975, 0
    %1265 = vmatprep.subr.bf16.mxu0 0
    %1266 = vmatpush1.bf16.msra.mxu0 0
    %1267 = vmatprep.subr.bf16.mxu0 0
    %1268 = vmatpush1.bf16.msra.mxu0 0
    %1269 = vmatprep.subr.bf16.mxu0 0
    %1270 = vmatpush1.bf16.msra.mxu0 0
    %1271 = vmatprep.subr.bf16.mxu0 0
    %1272 = vmatpush1.bf16.msra.mxu0 0
    %1273 = vmatprep.subr.bf16.mxu0 0
    %1274 = vmatpush1.bf16.msra.mxu0 0
    %1275 = vmatprep.subr.bf16.mxu0 0
    %1276 = vmatpush1.bf16.msra.mxu0 0
    %1277 = vmatprep.subr.bf16.mxu0 0
    %1278 = vmatpush1.bf16.msra.mxu0 0
    %1279 = vmatprep.subr.bf16.mxu0 0
    %1280 = vmatpush1.bf16.msra.mxu0 %v1260
    %1281 = vmatprep.subr.bf16.mxu0 0
    %1282 = vmatpush2.bf16.msra.mxu0 0
    %1283 = vmatprep.subr.bf16.mxu0 0
    %1284 = vmatpush2.bf16.msra.mxu0 0
    %1285 = vmatprep.subr.bf16.mxu0 0
    %1286 = vmatpush2.bf16.msra.mxu0 0
    %1287 = vmatprep.subr.bf16.mxu0 0
    %1288 = vmatpush2.bf16.msra.mxu0 0
    %1289 = vmatprep.subr.bf16.mxu0 0
    %1290 = vmatpush2.bf16.msra.mxu0 0
    %1291 = vmatprep.subr.bf16.mxu0 0
    %1292 = vmatpush2.bf16.msra.mxu0 0
    %1293 = vmatprep.subr.bf16.mxu0 0
    %1294 = vmatpush2.bf16.msra.mxu0 0
    %1295 = vmatprep.subr.bf16.mxu0 0
    %1296 = vmatpush2.bf16.msra.mxu0 0
    %1297 = vmatprep.mubr.bf16.mxu0 0
    %1298 = vmatmul.mubr.bf16.gmra.mxu0 %v1263
    %v1299 = vpop.f32.mrf.mxu0
    %v1300 = vadd.f32 0.0, %v1299
    %v1301 = vpop.f32.mrf.mxu0
    %v1302 = vpop.f32.mrf.mxu0
    %v1303 = vadd.f32 0.0, %v1302
    %v1304 = vpop.f32.mrf.mxu0
    %1305 = vdwg.mxu0
    %1306 = vrot.lane.b32.xlu0 %v390, 64
    %v1307 = vpop.permute.xlu0 %1306
    %v1310 = vsel %vm792, %v976, 0
    %1312 = vmatprep.subr.bf16.mxu0 0
    %1313 = vmatpush1.bf16.msra.mxu0 0
    %1314 = vmatprep.subr.bf16.mxu0 0
    %1315 = vmatpush1.bf16.msra.mxu0 0
    %1316 = vmatprep.subr.bf16.mxu0 0
    %1317 = vmatpush1.bf16.msra.mxu0 0
    %1318 = vmatprep.subr.bf16.mxu0 0
    %1319 = vmatpush1.bf16.msra.mxu0 0
    %1320 = vmatprep.subr.bf16.mxu0 0
    %1321 = vmatpush1.bf16.msra.mxu0 0
    %1322 = vmatprep.subr.bf16.mxu0 0
    %1323 = vmatpush1.bf16.msra.mxu0 0
    %1324 = vmatprep.subr.bf16.mxu0 0
    %1325 = vmatpush1.bf16.msra.mxu0 0
    %1326 = vmatprep.subr.bf16.mxu0 0
    %1327 = vmatpush1.bf16.msra.mxu0 %v1307
    %1328 = vmatprep.subr.bf16.mxu0 0
    %1329 = vmatpush2.bf16.msra.mxu0 0
    %1330 = vmatprep.subr.bf16.mxu0 0
    %1331 = vmatpush2.bf16.msra.mxu0 0
    %1332 = vmatprep.subr.bf16.mxu0 0
    %1333 = vmatpush2.bf16.msra.mxu0 0
    %1334 = vmatprep.subr.bf16.mxu0 0
    %1335 = vmatpush2.bf16.msra.mxu0 0
    %1336 = vmatprep.subr.bf16.mxu0 0
    %1337 = vmatpush2.bf16.msra.mxu0 0
    %1338 = vmatprep.subr.bf16.mxu0 0
    %1339 = vmatpush2.bf16.msra.mxu0 0
    %1340 = vmatprep.subr.bf16.mxu0 0
    %1341 = vmatpush2.bf16.msra.mxu0 0
    %1342 = vmatprep.subr.bf16.mxu0 0
    %1343 = vmatpush2.bf16.msra.mxu0 0
    %1344 = vmatprep.mubr.bf16.mxu0 0
    %1345 = vmatmul.mubr.bf16.gmra.mxu0 %v1310
    %v1346 = vpop.f32.mrf.mxu0
    %v1347 = vadd.f32 0.0, %v1346
    %v1348 = vpop.f32.mrf.mxu0
    %v1349 = vpop.f32.mrf.mxu0
    %v1350 = vadd.f32 0.0, %v1349
    %v1351 = vpop.f32.mrf.mxu0
    %1352 = vdwg.mxu0
    %v1353 = vpack.c.bf16 %v1021, %v1018
    %v1354 = vpack.c.bf16 %v1068, %v1065
    %v1355 = vpack.c.bf16 %v1115, %v1112
    %v1356 = vpack.c.bf16 %v1162, %v1159
    %v1357 = vpack.c.bf16 %v1209, %v1206
    %v1358 = vpack.c.bf16 %v1256, %v1253
    %v1359 = vpack.c.bf16 %v1303, %v1300
    %v1360 = vpack.c.bf16 %v1350, %v1347
    %v1361 = vld [vmem:[#allocation7] sm:$0xf]
    %1362 = vrot.lane.b32.xlu0 %v383, 120
    %v1363 = vpop.permute.xlu0 %1362
    %1364 = vrot.lane.b32.xlu0 %v383, 88
    %v1365 = vpop.permute.xlu0 %1364
    %v1367 = vsel %vm394, %v1363, 0
    %v1370 = vsel %vm394, %v1365, 0
    %1372 = vmatprep.subr.bf16.mxu0 0
    %1373 = vmatpush1.bf16.xpose.msra.mxu0 0
    %1374 = vmatprep.subr.bf16.mxu0 0
    %1375 = vmatpush1.bf16.xpose.msra.mxu0 0
    %1376 = vmatprep.subr.bf16.mxu0 0
    %1377 = vmatpush1.bf16.xpose.msra.mxu0 0
    %1378 = vmatprep.subr.bf16.mxu0 0
    %1379 = vmatpush1.bf16.xpose.msra.mxu0 0
    %1380 = vmatprep.subr.bf16.mxu0 0
    %1381 = vmatpush1.bf16.xpose.msra.mxu0 0
    %1382 = vmatprep.subr.bf16.mxu0 0
    %1383 = vmatpush1.bf16.xpose.msra.mxu0 0
    %1384 = vmatprep.subr.bf16.mxu0 0
    %1385 = vmatpush1.bf16.xpose.msra.mxu0 0
    %1386 = vmatprep.subr.bf16.mxu0 0
    %1387 = vmatpush1.bf16.xpose.msra.mxu0 %v1370
    %1388 = vmatprep.subr.bf16.mxu0 0
    %1389 = vmatpush2.bf16.xpose.msra.mxu0 0
    %1390 = vmatprep.subr.bf16.mxu0 0
    %1391 = vmatpush2.bf16.xpose.msra.mxu0 0
    %1392 = vmatprep.subr.bf16.mxu0 0
    %1393 = vmatpush2.bf16.xpose.msra.mxu0 0
    %1394 = vmatprep.subr.bf16.mxu0 0
    %1395 = vmatpush2.bf16.xpose.msra.mxu0 0
    %1396 = vmatprep.subr.bf16.mxu0 0
    %1397 = vmatpush2.bf16.xpose.msra.mxu0 0
    %1398 = vmatprep.subr.bf16.mxu0 0
    %1399 = vmatpush2.bf16.xpose.msra.mxu0 0
    %1400 = vmatprep.subr.bf16.mxu0 0
    %1401 = vmatpush2.bf16.xpose.msra.mxu0 0
    %1402 = vmatprep.subr.bf16.mxu0 0
    %1403 = vmatpush2.bf16.xpose.msra.mxu0 0
    %1404 = vmatprep.mubr.bf16.mxu0 0
    %1405 = vmatmul.mubr.bf16.gmra.mxu0 %v1367
    %v1406 = vpop.f32.mrf.mxu0
    %v1407 = vadd.f32 0.0, %v1406
    %v1408 = vpop.f32.mrf.mxu0
    %v1409 = vpop.f32.mrf.mxu0
    %v1410 = vadd.f32 0.0, %v1409
    %v1411 = vpop.f32.mrf.mxu0
    %1412 = vdwg.mxu0
    %1413 = vrot.lane.b32.xlu0 %v384, 120
    %v1414 = vpop.permute.xlu0 %1413
    %1415 = vrot.lane.b32.xlu0 %v384, 88
    %v1416 = vpop.permute.xlu0 %1415
    %v1418 = vsel %vm394, %v1414, 0
    %v1421 = vsel %vm394, %v1416, 0
    %1423 = vmatprep.subr.bf16.mxu0 0
    %1424 = vmatpush1.bf16.xpose.msra.mxu0 0
    %1425 = vmatprep.subr.bf16.mxu0 0
    %1426 = vmatpush1.bf16.xpose.msra.mxu0 0
    %1427 = vmatprep.subr.bf16.mxu0 0
    %1428 = vmatpush1.bf16.xpose.msra.mxu0 0
    %1429 = vmatprep.subr.bf16.mxu0 0
    %1430 = vmatpush1.bf16.xpose.msra.mxu0 0
    %1431 = vmatprep.subr.bf16.mxu0 0
    %1432 = vmatpush1.bf16.xpose.msra.mxu0 0
    %1433 = vmatprep.subr.bf16.mxu0 0
    %1434 = vmatpush1.bf16.xpose.msra.mxu0 0
    %1435 = vmatprep.subr.bf16.mxu0 0
    %1436 = vmatpush1.bf16.xpose.msra.mxu0 0
    %1437 = vmatprep.subr.bf16.mxu0 0
    %1438 = vmatpush1.bf16.xpose.msra.mxu0 %v1421
    %1439 = vmatprep.subr.bf16.mxu0 0
    %1440 = vmatpush2.bf16.xpose.msra.mxu0 0
    %1441 = vmatprep.subr.bf16.mxu0 0
    %1442 = vmatpush2.bf16.xpose.msra.mxu0 0
    %1443 = vmatprep.subr.bf16.mxu0 0
    %1444 = vmatpush2.bf16.xpose.msra.mxu0 0
    %1445 = vmatprep.subr.bf16.mxu0 0
    %1446 = vmatpush2.bf16.xpose.msra.mxu0 0
    %1447 = vmatprep.subr.bf16.mxu0 0
    %1448 = vmatpush2.bf16.xpose.msra.mxu0 0
    %1449 = vmatprep.subr.bf16.mxu0 0
    %1450 = vmatpush2.bf16.xpose.msra.mxu0 0
    %1451 = vmatprep.subr.bf16.mxu0 0
    %1452 = vmatpush2.bf16.xpose.msra.mxu0 0
    %1453 = vmatprep.subr.bf16.mxu0 0
    %1454 = vmatpush2.bf16.xpose.msra.mxu0 0
    %1455 = vmatprep.mubr.bf16.mxu0 0
    %1456 = vmatmul.mubr.bf16.gmra.mxu0 %v1418
    %v1457 = vpop.f32.mrf.mxu0
    %v1458 = vadd.f32 0.0, %v1457
    %v1459 = vpop.f32.mrf.mxu0
    %v1460 = vpop.f32.mrf.mxu0
    %v1461 = vadd.f32 0.0, %v1460
    %v1462 = vpop.f32.mrf.mxu0
    %1463 = vdwg.mxu0
    %1464 = vrot.lane.b32.xlu0 %v385, 120
    %v1465 = vpop.permute.xlu0 %1464
    %1466 = vrot.lane.b32.xlu0 %v385, 88
    %v1467 = vpop.permute.xlu0 %1466
    %v1469 = vsel %vm394, %v1465, 0
    %v1472 = vsel %vm394, %v1467, 0
    %1474 = vmatprep.subr.bf16.mxu0 0
    %1475 = vmatpush1.bf16.xpose.msra.mxu0 0
    %1476 = vmatprep.subr.bf16.mxu0 0
    %1477 = vmatpush1.bf16.xpose.msra.mxu0 0
    %1478 = vmatprep.subr.bf16.mxu0 0
    %1479 = vmatpush1.bf16.xpose.msra.mxu0 0
    %1480 = vmatprep.subr.bf16.mxu0 0
    %1481 = vmatpush1.bf16.xpose.msra.mxu0 0
    %1482 = vmatprep.subr.bf16.mxu0 0
    %1483 = vmatpush1.bf16.xpose.msra.mxu0 0
    %1484 = vmatprep.subr.bf16.mxu0 0
    %1485 = vmatpush1.bf16.xpose.msra.mxu0 0
    %1486 = vmatprep.subr.bf16.mxu0 0
    %1487 = vmatpush1.bf16.xpose.msra.mxu0 0
    %1488 = vmatprep.subr.bf16.mxu0 0
    %1489 = vmatpush1.bf16.xpose.msra.mxu0 %v1472
    %1490 = vmatprep.subr.bf16.mxu0 0
    %1491 = vmatpush2.bf16.xpose.msra.mxu0 0
    %1492 = vmatprep.subr.bf16.mxu0 0
    %1493 = vmatpush2.bf16.xpose.msra.mxu0 0
    %1494 = vmatprep.subr.bf16.mxu0 0
    %1495 = vmatpush2.bf16.xpose.msra.mxu0 0
    %1496 = vmatprep.subr.bf16.mxu0 0
    %1497 = vmatpush2.bf16.xpose.msra.mxu0 0
    %1498 = vmatprep.subr.bf16.mxu0 0
    %1499 = vmatpush2.bf16.xpose.msra.mxu0 0
    %1500 = vmatprep.subr.bf16.mxu0 0
    %1501 = vmatpush2.bf16.xpose.msra.mxu0 0
    %1502 = vmatprep.subr.bf16.mxu0 0
    %1503 = vmatpush2.bf16.xpose.msra.mxu0 0
    %1504 = vmatprep.subr.bf16.mxu0 0
    %1505 = vmatpush2.bf16.xpose.msra.mxu0 0
    %1506 = vmatprep.mubr.bf16.mxu0 0
    %1507 = vmatmul.mubr.bf16.gmra.mxu0 %v1469
    %v1508 = vpop.f32.mrf.mxu0
    %v1509 = vadd.f32 0.0, %v1508
    %v1510 = vpop.f32.mrf.mxu0
    %v1511 = vpop.f32.mrf.mxu0
    %v1512 = vadd.f32 0.0, %v1511
    %v1513 = vpop.f32.mrf.mxu0
    %1514 = vdwg.mxu0
    %1515 = vrot.lane.b32.xlu0 %v386, 120
    %v1516 = vpop.permute.xlu0 %1515
    %1517 = vrot.lane.b32.xlu0 %v386, 88
    %v1518 = vpop.permute.xlu0 %1517
    %v1520 = vsel %vm394, %v1516, 0
    %v1523 = vsel %vm394, %v1518, 0
    %1525 = vmatprep.subr.bf16.mxu0 0
    %1526 = vmatpush1.bf16.xpose.msra.mxu0 0
    %1527 = vmatprep.subr.bf16.mxu0 0
    %1528 = vmatpush1.bf16.xpose.msra.mxu0 0
    %1529 = vmatprep.subr.bf16.mxu0 0
    %1530 = vmatpush1.bf16.xpose.msra.mxu0 0
    %1531 = vmatprep.subr.bf16.mxu0 0
    %1532 = vmatpush1.bf16.xpose.msra.mxu0 0
    %1533 = vmatprep.subr.bf16.mxu0 0
    %1534 = vmatpush1.bf16.xpose.msra.mxu0 0
    %1535 = vmatprep.subr.bf16.mxu0 0
    %1536 = vmatpush1.bf16.xpose.msra.mxu0 0
    %1537 = vmatprep.subr.bf16.mxu0 0
    %1538 = vmatpush1.bf16.xpose.msra.mxu0 0
    %1539 = vmatprep.subr.bf16.mxu0 0
    %1540 = vmatpush1.bf16.xpose.msra.mxu0 %v1523
    %1541 = vmatprep.subr.bf16.mxu0 0
    %1542 = vmatpush2.bf16.xpose.msra.mxu0 0
    %1543 = vmatprep.subr.bf16.mxu0 0
    %1544 = vmatpush2.bf16.xpose.msra.mxu0 0
    %1545 = vmatprep.subr.bf16.mxu0 0
    %1546 = vmatpush2.bf16.xpose.msra.mxu0 0
    %1547 = vmatprep.subr.bf16.mxu0 0
    %1548 = vmatpush2.bf16.xpose.msra.mxu0 0
    %1549 = vmatprep.subr.bf16.mxu0 0
    %1550 = vmatpush2.bf16.xpose.msra.mxu0 0
    %1551 = vmatprep.subr.bf16.mxu0 0
    %1552 = vmatpush2.bf16.xpose.msra.mxu0 0
    %1553 = vmatprep.subr.bf16.mxu0 0
    %1554 = vmatpush2.bf16.xpose.msra.mxu0 0
    %1555 = vmatprep.subr.bf16.mxu0 0
    %1556 = vmatpush2.bf16.xpose.msra.mxu0 0
    %1557 = vmatprep.mubr.bf16.mxu0 0
    %1558 = vmatmul.mubr.bf16.gmra.mxu0 %v1520
    %v1559 = vpop.f32.mrf.mxu0
    %v1560 = vadd.f32 0.0, %v1559
    %v1561 = vpop.f32.mrf.mxu0
    %v1562 = vpop.f32.mrf.mxu0
    %v1563 = vadd.f32 0.0, %v1562
    %v1564 = vpop.f32.mrf.mxu0
    %1565 = vdwg.mxu0
    %1566 = vrot.lane.b32.xlu0 %v387, 120
    %v1567 = vpop.permute.xlu0 %1566
    %1568 = vrot.lane.b32.xlu0 %v387, 88
    %v1569 = vpop.permute.xlu0 %1568
    %v1571 = vsel %vm394, %v1567, 0
    %v1574 = vsel %vm394, %v1569, 0
    %1576 = vmatprep.subr.bf16.mxu0 0
    %1577 = vmatpush1.bf16.xpose.msra.mxu0 0
    %1578 = vmatprep.subr.bf16.mxu0 0
    %1579 = vmatpush1.bf16.xpose.msra.mxu0 0
    %1580 = vmatprep.subr.bf16.mxu0 0
    %1581 = vmatpush1.bf16.xpose.msra.mxu0 0
    %1582 = vmatprep.subr.bf16.mxu0 0
    %1583 = vmatpush1.bf16.xpose.msra.mxu0 0
    %1584 = vmatprep.subr.bf16.mxu0 0
    %1585 = vmatpush1.bf16.xpose.msra.mxu0 0
    %1586 = vmatprep.subr.bf16.mxu0 0
    %1587 = vmatpush1.bf16.xpose.msra.mxu0 0
    %1588 = vmatprep.subr.bf16.mxu0 0
    %1589 = vmatpush1.bf16.xpose.msra.mxu0 0
    %1590 = vmatprep.subr.bf16.mxu0 0
    %1591 = vmatpush1.bf16.xpose.msra.mxu0 %v1574
    %1592 = vmatprep.subr.bf16.mxu0 0
    %1593 = vmatpush2.bf16.xpose.msra.mxu0 0
    %1594 = vmatprep.subr.bf16.mxu0 0
    %1595 = vmatpush2.bf16.xpose.msra.mxu0 0
    %1596 = vmatprep.subr.bf16.mxu0 0
    %1597 = vmatpush2.bf16.xpose.msra.mxu0 0
    %1598 = vmatprep.subr.bf16.mxu0 0
    %1599 = vmatpush2.bf16.xpose.msra.mxu0 0
    %1600 = vmatprep.subr.bf16.mxu0 0
    %1601 = vmatpush2.bf16.xpose.msra.mxu0 0
    %1602 = vmatprep.subr.bf16.mxu0 0
    %1603 = vmatpush2.bf16.xpose.msra.mxu0 0
    %1604 = vmatprep.subr.bf16.mxu0 0
    %1605 = vmatpush2.bf16.xpose.msra.mxu0 0
    %1606 = vmatprep.subr.bf16.mxu0 0
    %1607 = vmatpush2.bf16.xpose.msra.mxu0 0
    %1608 = vmatprep.mubr.bf16.mxu0 0
    %1609 = vmatmul.mubr.bf16.gmra.mxu0 %v1571
    %v1610 = vpop.f32.mrf.mxu0
    %v1611 = vadd.f32 0.0, %v1610
    %v1612 = vpop.f32.mrf.mxu0
    %v1613 = vpop.f32.mrf.mxu0
    %v1614 = vadd.f32 0.0, %v1613
    %v1615 = vpop.f32.mrf.mxu0
    %1616 = vdwg.mxu0
    %1617 = vrot.lane.b32.xlu0 %v388, 120
    %v1618 = vpop.permute.xlu0 %1617
    %1619 = vrot.lane.b32.xlu0 %v388, 88
    %v1620 = vpop.permute.xlu0 %1619
    %v1622 = vsel %vm394, %v1618, 0
    %v1625 = vsel %vm394, %v1620, 0
    %1627 = vmatprep.subr.bf16.mxu0 0
    %1628 = vmatpush1.bf16.xpose.msra.mxu0 0
    %1629 = vmatprep.subr.bf16.mxu0 0
    %1630 = vmatpush1.bf16.xpose.msra.mxu0 0
    %1631 = vmatprep.subr.bf16.mxu0 0
    %1632 = vmatpush1.bf16.xpose.msra.mxu0 0
    %1633 = vmatprep.subr.bf16.mxu0 0
    %1634 = vmatpush1.bf16.xpose.msra.mxu0 0
    %1635 = vmatprep.subr.bf16.mxu0 0
    %1636 = vmatpush1.bf16.xpose.msra.mxu0 0
    %1637 = vmatprep.subr.bf16.mxu0 0
    %1638 = vmatpush1.bf16.xpose.msra.mxu0 0
    %1639 = vmatprep.subr.bf16.mxu0 0
    %1640 = vmatpush1.bf16.xpose.msra.mxu0 0
    %1641 = vmatprep.subr.bf16.mxu0 0
    %1642 = vmatpush1.bf16.xpose.msra.mxu0 %v1625
    %1643 = vmatprep.subr.bf16.mxu0 0
    %1644 = vmatpush2.bf16.xpose.msra.mxu0 0
    %1645 = vmatprep.subr.bf16.mxu0 0
    %1646 = vmatpush2.bf16.xpose.msra.mxu0 0
    %1647 = vmatprep.subr.bf16.mxu0 0
    %1648 = vmatpush2.bf16.xpose.msra.mxu0 0
    %1649 = vmatprep.subr.bf16.mxu0 0
    %1650 = vmatpush2.bf16.xpose.msra.mxu0 0
    %1651 = vmatprep.subr.bf16.mxu0 0
    %1652 = vmatpush2.bf16.xpose.msra.mxu0 0
    %1653 = vmatprep.subr.bf16.mxu0 0
    %1654 = vmatpush2.bf16.xpose.msra.mxu0 0
    %1655 = vmatprep.subr.bf16.mxu0 0
    %1656 = vmatpush2.bf16.xpose.msra.mxu0 0
    %1657 = vmatprep.subr.bf16.mxu0 0
    %1658 = vmatpush2.bf16.xpose.msra.mxu0 0
    %1659 = vmatprep.mubr.bf16.mxu0 0
    %1660 = vmatmul.mubr.bf16.gmra.mxu0 %v1622
    %v1661 = vpop.f32.mrf.mxu0
    %v1662 = vadd.f32 0.0, %v1661
    %v1663 = vpop.f32.mrf.mxu0
    %v1664 = vpop.f32.mrf.mxu0
    %v1665 = vadd.f32 0.0, %v1664
    %v1666 = vpop.f32.mrf.mxu0
    %1667 = vdwg.mxu0
    %1668 = vrot.lane.b32.xlu0 %v389, 120
    %v1669 = vpop.permute.xlu0 %1668
    %1670 = vrot.lane.b32.xlu0 %v389, 88
    %v1671 = vpop.permute.xlu0 %1670
    %v1673 = vsel %vm394, %v1669, 0
    %v1676 = vsel %vm394, %v1671, 0
    %1678 = vmatprep.subr.bf16.mxu0 0
    %1679 = vmatpush1.bf16.xpose.msra.mxu0 0
    %1680 = vmatprep.subr.bf16.mxu0 0
    %1681 = vmatpush1.bf16.xpose.msra.mxu0 0
    %1682 = vmatprep.subr.bf16.mxu0 0
    %1683 = vmatpush1.bf16.xpose.msra.mxu0 0
    %1684 = vmatprep.subr.bf16.mxu0 0
    %1685 = vmatpush1.bf16.xpose.msra.mxu0 0
    %1686 = vmatprep.subr.bf16.mxu0 0
    %1687 = vmatpush1.bf16.xpose.msra.mxu0 0
    %1688 = vmatprep.subr.bf16.mxu0 0
    %1689 = vmatpush1.bf16.xpose.msra.mxu0 0
    %1690 = vmatprep.subr.bf16.mxu0 0
    %1691 = vmatpush1.bf16.xpose.msra.mxu0 0
    %1692 = vmatprep.subr.bf16.mxu0 0
    %1693 = vmatpush1.bf16.xpose.msra.mxu0 %v1676
    %1694 = vmatprep.subr.bf16.mxu0 0
    %1695 = vmatpush2.bf16.xpose.msra.mxu0 0
    %1696 = vmatprep.subr.bf16.mxu0 0
    %1697 = vmatpush2.bf16.xpose.msra.mxu0 0
    %1698 = vmatprep.subr.bf16.mxu0 0
    %1699 = vmatpush2.bf16.xpose.msra.mxu0 0
    %1700 = vmatprep.subr.bf16.mxu0 0
    %1701 = vmatpush2.bf16.xpose.msra.mxu0 0
    %1702 = vmatprep.subr.bf16.mxu0 0
    %1703 = vmatpush2.bf16.xpose.msra.mxu0 0
    %1704 = vmatprep.subr.bf16.mxu0 0
    %1705 = vmatpush2.bf16.xpose.msra.mxu0 0
    %1706 = vmatprep.subr.bf16.mxu0 0
    %1707 = vmatpush2.bf16.xpose.msra.mxu0 0
    %1708 = vmatprep.subr.bf16.mxu0 0
    %1709 = vmatpush2.bf16.xpose.msra.mxu0 0
    %1710 = vmatprep.mubr.bf16.mxu0 0
    %1711 = vmatmul.mubr.bf16.gmra.mxu0 %v1673
    %v1712 = vpop.f32.mrf.mxu0
    %v1713 = vadd.f32 0.0, %v1712
    %v1714 = vpop.f32.mrf.mxu0
    %v1715 = vpop.f32.mrf.mxu0
    %v1716 = vadd.f32 0.0, %v1715
    %v1717 = vpop.f32.mrf.mxu0
    %1718 = vdwg.mxu0
    %1719 = vrot.lane.b32.xlu0 %v390, 120
    %v1720 = vpop.permute.xlu0 %1719
    %1721 = vrot.lane.b32.xlu0 %v390, 88
    %v1722 = vpop.permute.xlu0 %1721
    %v1724 = vsel %vm394, %v1720, 0
    %v1727 = vsel %vm394, %v1722, 0
    %1729 = vmatprep.subr.bf16.mxu0 0
    %1730 = vmatpush1.bf16.xpose.msra.mxu0 0
    %1731 = vmatprep.subr.bf16.mxu0 0
    %1732 = vmatpush1.bf16.xpose.msra.mxu0 0
    %1733 = vmatprep.subr.bf16.mxu0 0
    %1734 = vmatpush1.bf16.xpose.msra.mxu0 0
    %1735 = vmatprep.subr.bf16.mxu0 0
    %1736 = vmatpush1.bf16.xpose.msra.mxu0 0
    %1737 = vmatprep.subr.bf16.mxu0 0
    %1738 = vmatpush1.bf16.xpose.msra.mxu0 0
    %1739 = vmatprep.subr.bf16.mxu0 0
    %1740 = vmatpush1.bf16.xpose.msra.mxu0 0
    %1741 = vmatprep.subr.bf16.mxu0 0
    %1742 = vmatpush1.bf16.xpose.msra.mxu0 0
    %1743 = vmatprep.subr.bf16.mxu0 0
    %1744 = vmatpush1.bf16.xpose.msra.mxu0 %v1727
    %1745 = vmatprep.subr.bf16.mxu0 0
    %1746 = vmatpush2.bf16.xpose.msra.mxu0 0
    %1747 = vmatprep.subr.bf16.mxu0 0
    %1748 = vmatpush2.bf16.xpose.msra.mxu0 0
    %1749 = vmatprep.subr.bf16.mxu0 0
    %1750 = vmatpush2.bf16.xpose.msra.mxu0 0
    %1751 = vmatprep.subr.bf16.mxu0 0
    %1752 = vmatpush2.bf16.xpose.msra.mxu0 0
    %1753 = vmatprep.subr.bf16.mxu0 0
    %1754 = vmatpush2.bf16.xpose.msra.mxu0 0
    %1755 = vmatprep.subr.bf16.mxu0 0
    %1756 = vmatpush2.bf16.xpose.msra.mxu0 0
    %1757 = vmatprep.subr.bf16.mxu0 0
    %1758 = vmatpush2.bf16.xpose.msra.mxu0 0
    %1759 = vmatprep.subr.bf16.mxu0 0
    %1760 = vmatpush2.bf16.xpose.msra.mxu0 0
    %1761 = vmatprep.mubr.bf16.mxu0 0
    %1762 = vmatmul.mubr.bf16.gmra.mxu0 %v1724
    %v1763 = vpop.f32.mrf.mxu0
    %v1764 = vadd.f32 0.0, %v1763
    %v1765 = vpop.f32.mrf.mxu0
    %v1766 = vpop.f32.mrf.mxu0
    %v1767 = vadd.f32 0.0, %v1766
    %v1768 = vpop.f32.mrf.mxu0
    %1769 = vdwg.mxu0
    %v1770 = vsel %vm792, %v1407, -inf
    %1771 = vmax.xlane.f32.xlu0 %v1770
    %v1772 = vpop.xlane.xlu0 %1771
    %v1773 = vsel %vm792, %v1410, -inf
    %1774 = vmax.xlane.f32.xlu0 %v1773
    %v1775 = vpop.xlane.xlu0 %1774
    %v1776 = vsel %vm792, %v1458, -inf
    %1777 = vmax.xlane.f32.xlu0 %v1776
    %v1778 = vpop.xlane.xlu0 %1777
    %v1779 = vsel %vm792, %v1461, -inf
    %1780 = vmax.xlane.f32.xlu0 %v1779
    %v1781 = vpop.xlane.xlu0 %1780
    %v1782 = vsel %vm792, %v1509, -inf
    %1783 = vmax.xlane.f32.xlu0 %v1782
    %v1784 = vpop.xlane.xlu0 %1783
    %v1785 = vsel %vm792, %v1512, -inf
    %1786 = vmax.xlane.f32.xlu0 %v1785
    %v1787 = vpop.xlane.xlu0 %1786
    %v1788 = vsel %vm792, %v1560, -inf
    %1789 = vmax.xlane.f32.xlu0 %v1788
    %v1790 = vpop.xlane.xlu0 %1789
    %v1791 = vsel %vm792, %v1563, -inf
    %1792 = vmax.xlane.f32.xlu0 %v1791
    %v1793 = vpop.xlane.xlu0 %1792
    %v1794 = vsel %vm792, %v1611, -inf
    %1795 = vmax.xlane.f32.xlu0 %v1794
    %v1796 = vpop.xlane.xlu0 %1795
    %v1797 = vsel %vm792, %v1614, -inf
    %1798 = vmax.xlane.f32.xlu0 %v1797
    %v1799 = vpop.xlane.xlu0 %1798
    %v1800 = vsel %vm792, %v1662, -inf
    %1801 = vmax.xlane.f32.xlu0 %v1800
    %v1802 = vpop.xlane.xlu0 %1801
    %v1803 = vsel %vm792, %v1665, -inf
    %1804 = vmax.xlane.f32.xlu0 %v1803
    %v1805 = vpop.xlane.xlu0 %1804
    %v1806 = vsel %vm792, %v1713, -inf
    %1807 = vmax.xlane.f32.xlu0 %v1806
    %v1808 = vpop.xlane.xlu0 %1807
    %v1809 = vsel %vm792, %v1716, -inf
    %1810 = vmax.xlane.f32.xlu0 %v1809
    %v1811 = vpop.xlane.xlu0 %1810
    %v1812 = vsel %vm792, %v1764, -inf
    %1813 = vmax.xlane.f32.xlu0 %v1812
    %v1814 = vpop.xlane.xlu0 %1813
    %v1815 = vsel %vm792, %v1767, -inf
    %1816 = vmax.xlane.f32.xlu0 %v1815
    %v1817 = vpop.xlane.xlu0 %1816
    %v1818 = vsub.f32 %v1407, %v1772
    %v1819 = vsub.f32 %v1410, %v1775
    %v1820 = vsub.f32 %v1458, %v1778
    %v1821 = vsub.f32 %v1461, %v1781
    %v1822 = vsub.f32 %v1509, %v1784
    %v1823 = vsub.f32 %v1512, %v1787
    %v1824 = vsub.f32 %v1560, %v1790
    %v1825 = vsub.f32 %v1563, %v1793
    %v1826 = vsub.f32 %v1611, %v1796
    %v1827 = vsub.f32 %v1614, %v1799
    %v1828 = vsub.f32 %v1662, %v1802
    %v1829 = vsub.f32 %v1665, %v1805
    %v1830 = vsub.f32 %v1713, %v1808
    %v1831 = vsub.f32 %v1716, %v1811
    %v1832 = vsub.f32 %v1764, %v1814
    %v1833 = vsub.f32 %v1767, %v1817
    %v1834 = vmul.f32 %v1818, 1.442695
    %v1835 = vpow.pop %v1834
    %v1836 = vmul.f32 %v1819, 1.442695
    %v1837 = vpow.pop %v1836
    %v1838 = vmul.f32 %v1820, 1.442695
    %v1839 = vpow.pop %v1838
    %v1840 = vmul.f32 %v1821, 1.442695
    %v1841 = vpow.pop %v1840
    %v1842 = vmul.f32 %v1822, 1.442695
    %v1843 = vpow.pop %v1842
    %v1844 = vmul.f32 %v1823, 1.442695
    %v1845 = vpow.pop %v1844
    %v1846 = vmul.f32 %v1824, 1.442695
    %v1847 = vpow.pop %v1846
    %v1848 = vmul.f32 %v1825, 1.442695
    %v1849 = vpow.pop %v1848
    %v1850 = vmul.f32 %v1826, 1.442695
    %v1851 = vpow.pop %v1850
    %v1852 = vmul.f32 %v1827, 1.442695
    %v1853 = vpow.pop %v1852
    %v1854 = vmul.f32 %v1828, 1.442695
    %v1855 = vpow.pop %v1854
    %v1856 = vmul.f32 %v1829, 1.442695
    %v1857 = vpow.pop %v1856
    %v1858 = vmul.f32 %v1830, 1.442695
    %v1859 = vpow.pop %v1858
    %v1860 = vmul.f32 %v1831, 1.442695
    %v1861 = vpow.pop %v1860
    %v1862 = vmul.f32 %v1832, 1.442695
    %v1863 = vpow.pop %v1862
    %v1864 = vmul.f32 %v1833, 1.442695
    %v1865 = vpow.pop %v1864
    %v1866 = vsel %vm792, %v1835, 0.0
    %1867 = vadd.xlane.f32.xlu0 %v1866
    %v1868 = vpop.xlane.xlu0 %1867
    %v1869 = vsel %vm792, %v1837, 0.0
    %1870 = vadd.xlane.f32.xlu0 %v1869
    %v1871 = vpop.xlane.xlu0 %1870
    %v1872 = vsel %vm792, %v1839, 0.0
    %1873 = vadd.xlane.f32.xlu0 %v1872
    %v1874 = vpop.xlane.xlu0 %1873
    %v1875 = vsel %vm792, %v1841, 0.0
    %1876 = vadd.xlane.f32.xlu0 %v1875
    %v1877 = vpop.xlane.xlu0 %1876
    %v1878 = vsel %vm792, %v1843, 0.0
    %1879 = vadd.xlane.f32.xlu0 %v1878
    %v1880 = vpop.xlane.xlu0 %1879
    %v1881 = vsel %vm792, %v1845, 0.0
    %1882 = vadd.xlane.f32.xlu0 %v1881
    %v1883 = vpop.xlane.xlu0 %1882
    %v1884 = vsel %vm792, %v1847, 0.0
    %1885 = vadd.xlane.f32.xlu0 %v1884
    %v1886 = vpop.xlane.xlu0 %1885
    %v1887 = vsel %vm792, %v1849, 0.0
    %1888 = vadd.xlane.f32.xlu0 %v1887
    %v1889 = vpop.xlane.xlu0 %1888
    %v1890 = vsel %vm792, %v1851, 0.0
    %1891 = vadd.xlane.f32.xlu0 %v1890
    %v1892 = vpop.xlane.xlu0 %1891
    %v1893 = vsel %vm792, %v1853, 0.0
    %1894 = vadd.xlane.f32.xlu0 %v1893
    %v1895 = vpop.xlane.xlu0 %1894
    %v1896 = vsel %vm792, %v1855, 0.0
    %1897 = vadd.xlane.f32.xlu0 %v1896
    %v1898 = vpop.xlane.xlu0 %1897
    %v1899 = vsel %vm792, %v1857, 0.0
    %1900 = vadd.xlane.f32.xlu0 %v1899
    %v1901 = vpop.xlane.xlu0 %1900
    %v1902 = vsel %vm792, %v1859, 0.0
    %1903 = vadd.xlane.f32.xlu0 %v1902
    %v1904 = vpop.xlane.xlu0 %1903
    %v1905 = vsel %vm792, %v1861, 0.0
    %1906 = vadd.xlane.f32.xlu0 %v1905
    %v1907 = vpop.xlane.xlu0 %1906
    %v1908 = vsel %vm792, %v1863, 0.0
    %1909 = vadd.xlane.f32.xlu0 %v1908
    %v1910 = vpop.xlane.xlu0 %1909
    %v1911 = vsel %vm792, %v1865, 0.0
    %1912 = vadd.xlane.f32.xlu0 %v1911
    %v1913 = vpop.xlane.xlu0 %1912
    %v1914 = vrcp.pop %v1868
    %v1915 = vrcp.pop %v1871
    %v1916 = vrcp.pop %v1874
    %v1917 = vrcp.pop %v1877
    %v1918 = vrcp.pop %v1880
    %v1919 = vrcp.pop %v1883
    %v1920 = vrcp.pop %v1886
    %v1921 = vrcp.pop %v1889
    %v1922 = vrcp.pop %v1892
    %v1923 = vrcp.pop %v1895
    %v1924 = vrcp.pop %v1898
    %v1925 = vrcp.pop %v1901
    %v1926 = vrcp.pop %v1904
    %v1927 = vrcp.pop %v1907
    %v1928 = vrcp.pop %v1910
    %v1929 = vrcp.pop %v1913
    %v1930 = vmul.f32 %v1835, %v1914
    %v1931 = vmul.f32 %v1837, %v1915
    %v1932 = vmul.f32 %v1839, %v1916
    %v1933 = vmul.f32 %v1841, %v1917
    %v1934 = vmul.f32 %v1843, %v1918
    %v1935 = vmul.f32 %v1845, %v1919
    %v1936 = vmul.f32 %v1847, %v1920
    %v1937 = vmul.f32 %v1849, %v1921
    %v1938 = vmul.f32 %v1851, %v1922
    %v1939 = vmul.f32 %v1853, %v1923
    %v1940 = vmul.f32 %v1855, %v1924
    %v1941 = vmul.f32 %v1857, %v1925
    %v1942 = vmul.f32 %v1859, %v1926
    %v1943 = vmul.f32 %v1861, %v1927
    %v1944 = vmul.f32 %v1863, %v1928
    %v1945 = vmul.f32 %v1865, %v1929
    %v1946 = vpack.c.bf16 %v1931, %v1930
    %v1947 = vpack.c.bf16 %v1933, %v1932
    %v1948 = vpack.c.bf16 %v1935, %v1934
    %v1949 = vpack.c.bf16 %v1937, %v1936
    %v1950 = vpack.c.bf16 %v1939, %v1938
    %v1951 = vpack.c.bf16 %v1941, %v1940
    %v1952 = vpack.c.bf16 %v1943, %v1942
    %v1953 = vpack.c.bf16 %v1945, %v1944
    %1954 = vrot.lane.b32.xlu0 %v383, 56
    %v1955 = vpop.permute.xlu0 %1954
    %v1958 = vsel %vm792, %v1946, 0
    %1960 = vmatprep.subr.bf16.mxu0 0
    %1961 = vmatpush1.bf16.msra.mxu0 0
    %1962 = vmatprep.subr.bf16.mxu0 0
    %1963 = vmatpush1.bf16.msra.mxu0 0
    %1964 = vmatprep.subr.bf16.mxu0 0
    %1965 = vmatpush1.bf16.msra.mxu0 0
    %1966 = vmatprep.subr.bf16.mxu0 0
    %1967 = vmatpush1.bf16.msra.mxu0 0
    %1968 = vmatprep.subr.bf16.mxu0 0
    %1969 = vmatpush1.bf16.msra.mxu0 0
    %1970 = vmatprep.subr.bf16.mxu0 0
    %1971 = vmatpush1.bf16.msra.mxu0 0
    %1972 = vmatprep.subr.bf16.mxu0 0
    %1973 = vmatpush1.bf16.msra.mxu0 0
    %1974 = vmatprep.subr.bf16.mxu0 0
    %1975 = vmatpush1.bf16.msra.mxu0 %v1955
    %1976 = vmatprep.subr.bf16.mxu0 0
    %1977 = vmatpush2.bf16.msra.mxu0 0
    %1978 = vmatprep.subr.bf16.mxu0 0
    %1979 = vmatpush2.bf16.msra.mxu0 0
    %1980 = vmatprep.subr.bf16.mxu0 0
    %1981 = vmatpush2.bf16.msra.mxu0 0
    %1982 = vmatprep.subr.bf16.mxu0 0
    %1983 = vmatpush2.bf16.msra.mxu0 0
    %1984 = vmatprep.subr.bf16.mxu0 0
    %1985 = vmatpush2.bf16.msra.mxu0 0
    %1986 = vmatprep.subr.bf16.mxu0 0
    %1987 = vmatpush2.bf16.msra.mxu0 0
    %1988 = vmatprep.subr.bf16.mxu0 0
    %1989 = vmatpush2.bf16.msra.mxu0 0
    %1990 = vmatprep.subr.bf16.mxu0 0
    %1991 = vmatpush2.bf16.msra.mxu0 0
    %1992 = vmatprep.mubr.bf16.mxu0 0
    %1993 = vmatmul.mubr.bf16.gmra.mxu0 %v1958
    %v1994 = vpop.f32.mrf.mxu0
    %v1995 = vadd.f32 0.0, %v1994
    %v1996 = vpop.f32.mrf.mxu0
    %v1997 = vpop.f32.mrf.mxu0
    %v1998 = vadd.f32 0.0, %v1997
    %v1999 = vpop.f32.mrf.mxu0
    %2000 = vdwg.mxu0
    %2001 = vrot.lane.b32.xlu0 %v384, 56
    %v2002 = vpop.permute.xlu0 %2001
    %v2005 = vsel %vm792, %v1947, 0
    %2007 = vmatprep.subr.bf16.mxu0 0
    %2008 = vmatpush1.bf16.msra.mxu0 0
    %2009 = vmatprep.subr.bf16.mxu0 0
    %2010 = vmatpush1.bf16.msra.mxu0 0
    %2011 = vmatprep.subr.bf16.mxu0 0
    %2012 = vmatpush1.bf16.msra.mxu0 0
    %2013 = vmatprep.subr.bf16.mxu0 0
    %2014 = vmatpush1.bf16.msra.mxu0 0
    %2015 = vmatprep.subr.bf16.mxu0 0
    %2016 = vmatpush1.bf16.msra.mxu0 0
    %2017 = vmatprep.subr.bf16.mxu0 0
    %2018 = vmatpush1.bf16.msra.mxu0 0
    %2019 = vmatprep.subr.bf16.mxu0 0
    %2020 = vmatpush1.bf16.msra.mxu0 0
    %2021 = vmatprep.subr.bf16.mxu0 0
    %2022 = vmatpush1.bf16.msra.mxu0 %v2002
    %2023 = vmatprep.subr.bf16.mxu0 0
    %2024 = vmatpush2.bf16.msra.mxu0 0
    %2025 = vmatprep.subr.bf16.mxu0 0
    %2026 = vmatpush2.bf16.msra.mxu0 0
    %2027 = vmatprep.subr.bf16.mxu0 0
    %2028 = vmatpush2.bf16.msra.mxu0 0
    %2029 = vmatprep.subr.bf16.mxu0 0
    %2030 = vmatpush2.bf16.msra.mxu0 0
    %2031 = vmatprep.subr.bf16.mxu0 0
    %2032 = vmatpush2.bf16.msra.mxu0 0
    %2033 = vmatprep.subr.bf16.mxu0 0
    %2034 = vmatpush2.bf16.msra.mxu0 0
    %2035 = vmatprep.subr.bf16.mxu0 0
    %2036 = vmatpush2.bf16.msra.mxu0 0
    %2037 = vmatprep.subr.bf16.mxu0 0
    %2038 = vmatpush2.bf16.msra.mxu0 0
    %2039 = vmatprep.mubr.bf16.mxu0 0
    %2040 = vmatmul.mubr.bf16.gmra.mxu0 %v2005
    %v2041 = vpop.f32.mrf.mxu0
    %v2042 = vadd.f32 0.0, %v2041
    %v2043 = vpop.f32.mrf.mxu0
    %v2044 = vpop.f32.mrf.mxu0
    %v2045 = vadd.f32 0.0, %v2044
    %v2046 = vpop.f32.mrf.mxu0
    %2047 = vdwg.mxu0
    %2048 = vrot.lane.b32.xlu0 %v385, 56
    %v2049 = vpop.permute.xlu0 %2048
    %v2052 = vsel %vm792, %v1948, 0
    %2054 = vmatprep.subr.bf16.mxu0 0
    %2055 = vmatpush1.bf16.msra.mxu0 0
    %2056 = vmatprep.subr.bf16.mxu0 0
    %2057 = vmatpush1.bf16.msra.mxu0 0
    %2058 = vmatprep.subr.bf16.mxu0 0
    %2059 = vmatpush1.bf16.msra.mxu0 0
    %2060 = vmatprep.subr.bf16.mxu0 0
    %2061 = vmatpush1.bf16.msra.mxu0 0
    %2062 = vmatprep.subr.bf16.mxu0 0
    %2063 = vmatpush1.bf16.msra.mxu0 0
    %2064 = vmatprep.subr.bf16.mxu0 0
    %2065 = vmatpush1.bf16.msra.mxu0 0
    %2066 = vmatprep.subr.bf16.mxu0 0
    %2067 = vmatpush1.bf16.msra.mxu0 0
    %2068 = vmatprep.subr.bf16.mxu0 0
    %2069 = vmatpush1.bf16.msra.mxu0 %v2049
    %2070 = vmatprep.subr.bf16.mxu0 0
    %2071 = vmatpush2.bf16.msra.mxu0 0
    %2072 = vmatprep.subr.bf16.mxu0 0
    %2073 = vmatpush2.bf16.msra.mxu0 0
    %2074 = vmatprep.subr.bf16.mxu0 0
    %2075 = vmatpush2.bf16.msra.mxu0 0
    %2076 = vmatprep.subr.bf16.mxu0 0
    %2077 = vmatpush2.bf16.msra.mxu0 0
    %2078 = vmatprep.subr.bf16.mxu0 0
    %2079 = vmatpush2.bf16.msra.mxu0 0
    %2080 = vmatprep.subr.bf16.mxu0 0
    %2081 = vmatpush2.bf16.msra.mxu0 0
    %2082 = vmatprep.subr.bf16.mxu0 0
    %2083 = vmatpush2.bf16.msra.mxu0 0
    %2084 = vmatprep.subr.bf16.mxu0 0
    %2085 = vmatpush2.bf16.msra.mxu0 0
    %2086 = vmatprep.mubr.bf16.mxu0 0
    %2087 = vmatmul.mubr.bf16.gmra.mxu0 %v2052
    %v2088 = vpop.f32.mrf.mxu0
    %v2089 = vadd.f32 0.0, %v2088
    %v2090 = vpop.f32.mrf.mxu0
    %v2091 = vpop.f32.mrf.mxu0
    %v2092 = vadd.f32 0.0, %v2091
    %v2093 = vpop.f32.mrf.mxu0
    %2094 = vdwg.mxu0
    %2095 = vrot.lane.b32.xlu0 %v386, 56
    %v2096 = vpop.permute.xlu0 %2095
    %v2099 = vsel %vm792, %v1949, 0
    %2101 = vmatprep.subr.bf16.mxu0 0
    %2102 = vmatpush1.bf16.msra.mxu0 0
    %2103 = vmatprep.subr.bf16.mxu0 0
    %2104 = vmatpush1.bf16.msra.mxu0 0
    %2105 = vmatprep.subr.bf16.mxu0 0
    %2106 = vmatpush1.bf16.msra.mxu0 0
    %2107 = vmatprep.subr.bf16.mxu0 0
    %2108 = vmatpush1.bf16.msra.mxu0 0
    %2109 = vmatprep.subr.bf16.mxu0 0
    %2110 = vmatpush1.bf16.msra.mxu0 0
    %2111 = vmatprep.subr.bf16.mxu0 0
    %2112 = vmatpush1.bf16.msra.mxu0 0
    %2113 = vmatprep.subr.bf16.mxu0 0
    %2114 = vmatpush1.bf16.msra.mxu0 0
    %2115 = vmatprep.subr.bf16.mxu0 0
    %2116 = vmatpush1.bf16.msra.mxu0 %v2096
    %2117 = vmatprep.subr.bf16.mxu0 0
    %2118 = vmatpush2.bf16.msra.mxu0 0
    %2119 = vmatprep.subr.bf16.mxu0 0
    %2120 = vmatpush2.bf16.msra.mxu0 0
    %2121 = vmatprep.subr.bf16.mxu0 0
    %2122 = vmatpush2.bf16.msra.mxu0 0
    %2123 = vmatprep.subr.bf16.mxu0 0
    %2124 = vmatpush2.bf16.msra.mxu0 0
    %2125 = vmatprep.subr.bf16.mxu0 0
    %2126 = vmatpush2.bf16.msra.mxu0 0
    %2127 = vmatprep.subr.bf16.mxu0 0
    %2128 = vmatpush2.bf16.msra.mxu0 0
    %2129 = vmatprep.subr.bf16.mxu0 0
    %2130 = vmatpush2.bf16.msra.mxu0 0
    %2131 = vmatprep.subr.bf16.mxu0 0
    %2132 = vmatpush2.bf16.msra.mxu0 0
    %2133 = vmatprep.mubr.bf16.mxu0 0
    %2134 = vmatmul.mubr.bf16.gmra.mxu0 %v2099
    %v2135 = vpop.f32.mrf.mxu0
    %v2136 = vadd.f32 0.0, %v2135
    %v2137 = vpop.f32.mrf.mxu0
    %v2138 = vpop.f32.mrf.mxu0
    %v2139 = vadd.f32 0.0, %v2138
    %v2140 = vpop.f32.mrf.mxu0
    %2141 = vdwg.mxu0
    %2142 = vrot.lane.b32.xlu0 %v387, 56
    %v2143 = vpop.permute.xlu0 %2142
    %v2146 = vsel %vm792, %v1950, 0
    %2148 = vmatprep.subr.bf16.mxu0 0
    %2149 = vmatpush1.bf16.msra.mxu0 0
    %2150 = vmatprep.subr.bf16.mxu0 0
    %2151 = vmatpush1.bf16.msra.mxu0 0
    %2152 = vmatprep.subr.bf16.mxu0 0
    %2153 = vmatpush1.bf16.msra.mxu0 0
    %2154 = vmatprep.subr.bf16.mxu0 0
    %2155 = vmatpush1.bf16.msra.mxu0 0
    %2156 = vmatprep.subr.bf16.mxu0 0
    %2157 = vmatpush1.bf16.msra.mxu0 0
    %2158 = vmatprep.subr.bf16.mxu0 0
    %2159 = vmatpush1.bf16.msra.mxu0 0
    %2160 = vmatprep.subr.bf16.mxu0 0
    %2161 = vmatpush1.bf16.msra.mxu0 0
    %2162 = vmatprep.subr.bf16.mxu0 0
    %2163 = vmatpush1.bf16.msra.mxu0 %v2143
    %2164 = vmatprep.subr.bf16.mxu0 0
    %2165 = vmatpush2.bf16.msra.mxu0 0
    %2166 = vmatprep.subr.bf16.mxu0 0
    %2167 = vmatpush2.bf16.msra.mxu0 0
    %2168 = vmatprep.subr.bf16.mxu0 0
    %2169 = vmatpush2.bf16.msra.mxu0 0
    %2170 = vmatprep.subr.bf16.mxu0 0
    %2171 = vmatpush2.bf16.msra.mxu0 0
    %2172 = vmatprep.subr.bf16.mxu0 0
    %2173 = vmatpush2.bf16.msra.mxu0 0
    %2174 = vmatprep.subr.bf16.mxu0 0
    %2175 = vmatpush2.bf16.msra.mxu0 0
    %2176 = vmatprep.subr.bf16.mxu0 0
    %2177 = vmatpush2.bf16.msra.mxu0 0
    %2178 = vmatprep.subr.bf16.mxu0 0
    %2179 = vmatpush2.bf16.msra.mxu0 0
    %2180 = vmatprep.mubr.bf16.mxu0 0
    %2181 = vmatmul.mubr.bf16.gmra.mxu0 %v2146
    %v2182 = vpop.f32.mrf.mxu0
    %v2183 = vadd.f32 0.0, %v2182
    %v2184 = vpop.f32.mrf.mxu0
    %v2185 = vpop.f32.mrf.mxu0
    %v2186 = vadd.f32 0.0, %v2185
    %v2187 = vpop.f32.mrf.mxu0
    %2188 = vdwg.mxu0
    %2189 = vrot.lane.b32.xlu0 %v388, 56
    %v2190 = vpop.permute.xlu0 %2189
    %v2193 = vsel %vm792, %v1951, 0
    %2195 = vmatprep.subr.bf16.mxu0 0
    %2196 = vmatpush1.bf16.msra.mxu0 0
    %2197 = vmatprep.subr.bf16.mxu0 0
    %2198 = vmatpush1.bf16.msra.mxu0 0
    %2199 = vmatprep.subr.bf16.mxu0 0
    %2200 = vmatpush1.bf16.msra.mxu0 0
    %2201 = vmatprep.subr.bf16.mxu0 0
    %2202 = vmatpush1.bf16.msra.mxu0 0
    %2203 = vmatprep.subr.bf16.mxu0 0
    %2204 = vmatpush1.bf16.msra.mxu0 0
    %2205 = vmatprep.subr.bf16.mxu0 0
    %2206 = vmatpush1.bf16.msra.mxu0 0
    %2207 = vmatprep.subr.bf16.mxu0 0
    %2208 = vmatpush1.bf16.msra.mxu0 0
    %2209 = vmatprep.subr.bf16.mxu0 0
    %2210 = vmatpush1.bf16.msra.mxu0 %v2190
    %2211 = vmatprep.subr.bf16.mxu0 0
    %2212 = vmatpush2.bf16.msra.mxu0 0
    %2213 = vmatprep.subr.bf16.mxu0 0
    %2214 = vmatpush2.bf16.msra.mxu0 0
    %2215 = vmatprep.subr.bf16.mxu0 0
    %2216 = vmatpush2.bf16.msra.mxu0 0
    %2217 = vmatprep.subr.bf16.mxu0 0
    %2218 = vmatpush2.bf16.msra.mxu0 0
    %2219 = vmatprep.subr.bf16.mxu0 0
    %2220 = vmatpush2.bf16.msra.mxu0 0
    %2221 = vmatprep.subr.bf16.mxu0 0
    %2222 = vmatpush2.bf16.msra.mxu0 0
    %2223 = vmatprep.subr.bf16.mxu0 0
    %2224 = vmatpush2.bf16.msra.mxu0 0
    %2225 = vmatprep.subr.bf16.mxu0 0
    %2226 = vmatpush2.bf16.msra.mxu0 0
    %2227 = vmatprep.mubr.bf16.mxu0 0
    %2228 = vmatmul.mubr.bf16.gmra.mxu0 %v2193
    %v2229 = vpop.f32.mrf.mxu0
    %v2230 = vadd.f32 0.0, %v2229
    %v2231 = vpop.f32.mrf.mxu0
    %v2232 = vpop.f32.mrf.mxu0
    %v2233 = vadd.f32 0.0, %v2232
    %v2234 = vpop.f32.mrf.mxu0
    %2235 = vdwg.mxu0
    %2236 = vrot.lane.b32.xlu0 %v389, 56
    %v2237 = vpop.permute.xlu0 %2236
    %v2240 = vsel %vm792, %v1952, 0
    %2242 = vmatprep.subr.bf16.mxu0 0
    %2243 = vmatpush1.bf16.msra.mxu0 0
    %2244 = vmatprep.subr.bf16.mxu0 0
    %2245 = vmatpush1.bf16.msra.mxu0 0
    %2246 = vmatprep.subr.bf16.mxu0 0
    %2247 = vmatpush1.bf16.msra.mxu0 0
    %2248 = vmatprep.subr.bf16.mxu0 0
    %2249 = vmatpush1.bf16.msra.mxu0 0
    %2250 = vmatprep.subr.bf16.mxu0 0
    %2251 = vmatpush1.bf16.msra.mxu0 0
    %2252 = vmatprep.subr.bf16.mxu0 0
    %2253 = vmatpush1.bf16.msra.mxu0 0
    %2254 = vmatprep.subr.bf16.mxu0 0
    %2255 = vmatpush1.bf16.msra.mxu0 0
    %2256 = vmatprep.subr.bf16.mxu0 0
    %2257 = vmatpush1.bf16.msra.mxu0 %v2237
    %2258 = vmatprep.subr.bf16.mxu0 0
    %2259 = vmatpush2.bf16.msra.mxu0 0
    %2260 = vmatprep.subr.bf16.mxu0 0
    %2261 = vmatpush2.bf16.msra.mxu0 0
    %2262 = vmatprep.subr.bf16.mxu0 0
    %2263 = vmatpush2.bf16.msra.mxu0 0
    %2264 = vmatprep.subr.bf16.mxu0 0
    %2265 = vmatpush2.bf16.msra.mxu0 0
    %2266 = vmatprep.subr.bf16.mxu0 0
    %2267 = vmatpush2.bf16.msra.mxu0 0
    %2268 = vmatprep.subr.bf16.mxu0 0
    %2269 = vmatpush2.bf16.msra.mxu0 0
    %2270 = vmatprep.subr.bf16.mxu0 0
    %2271 = vmatpush2.bf16.msra.mxu0 0
    %2272 = vmatprep.subr.bf16.mxu0 0
    %2273 = vmatpush2.bf16.msra.mxu0 0
    %2274 = vmatprep.mubr.bf16.mxu0 0
    %2275 = vmatmul.mubr.bf16.gmra.mxu0 %v2240
    %v2276 = vpop.f32.mrf.mxu0
    %v2277 = vadd.f32 0.0, %v2276
    %v2278 = vpop.f32.mrf.mxu0
    %v2279 = vpop.f32.mrf.mxu0
    %v2280 = vadd.f32 0.0, %v2279
    %v2281 = vpop.f32.mrf.mxu0
    %2282 = vdwg.mxu0
    %2283 = vrot.lane.b32.xlu0 %v390, 56
    %v2284 = vpop.permute.xlu0 %2283
    %v2287 = vsel %vm792, %v1953, 0
    %2289 = vmatprep.subr.bf16.mxu0 0
    %2290 = vmatpush1.bf16.msra.mxu0 0
    %2291 = vmatprep.subr.bf16.mxu0 0
    %2292 = vmatpush1.bf16.msra.mxu0 0
    %2293 = vmatprep.subr.bf16.mxu0 0
    %2294 = vmatpush1.bf16.msra.mxu0 0
    %2295 = vmatprep.subr.bf16.mxu0 0
    %2296 = vmatpush1.bf16.msra.mxu0 0
    %2297 = vmatprep.subr.bf16.mxu0 0
    %2298 = vmatpush1.bf16.msra.mxu0 0
    %2299 = vmatprep.subr.bf16.mxu0 0
    %2300 = vmatpush1.bf16.msra.mxu0 0
    %2301 = vmatprep.subr.bf16.mxu0 0
    %2302 = vmatpush1.bf16.msra.mxu0 0
    %2303 = vmatprep.subr.bf16.mxu0 0
    %2304 = vmatpush1.bf16.msra.mxu0 %v2284
    %2305 = vmatprep.subr.bf16.mxu0 0
    %2306 = vmatpush2.bf16.msra.mxu0 0
    %2307 = vmatprep.subr.bf16.mxu0 0
    %2308 = vmatpush2.bf16.msra.mxu0 0
    %2309 = vmatprep.subr.bf16.mxu0 0
    %2310 = vmatpush2.bf16.msra.mxu0 0
    %2311 = vmatprep.subr.bf16.mxu0 0
    %2312 = vmatpush2.bf16.msra.mxu0 0
    %2313 = vmatprep.subr.bf16.mxu0 0
    %2314 = vmatpush2.bf16.msra.mxu0 0
    %2315 = vmatprep.subr.bf16.mxu0 0
    %2316 = vmatpush2.bf16.msra.mxu0 0
    %2317 = vmatprep.subr.bf16.mxu0 0
    %2318 = vmatpush2.bf16.msra.mxu0 0
    %2319 = vmatprep.subr.bf16.mxu0 0
    %2320 = vmatpush2.bf16.msra.mxu0 0
    %2321 = vmatprep.mubr.bf16.mxu0 0
    %2322 = vmatmul.mubr.bf16.gmra.mxu0 %v2287
    %v2323 = vpop.f32.mrf.mxu0
    %v2324 = vadd.f32 0.0, %v2323
    %v2325 = vpop.f32.mrf.mxu0
    %v2326 = vpop.f32.mrf.mxu0
    %v2327 = vadd.f32 0.0, %v2326
    %v2328 = vpop.f32.mrf.mxu0
    %2329 = vdwg.mxu0
    %v2330 = vpack.c.bf16 %v1998, %v1995
    %v2331 = vpack.c.bf16 %v2045, %v2042
    %v2332 = vpack.c.bf16 %v2092, %v2089
    %v2333 = vpack.c.bf16 %v2139, %v2136
    %v2334 = vpack.c.bf16 %v2186, %v2183
    %v2335 = vpack.c.bf16 %v2233, %v2230
    %v2336 = vpack.c.bf16 %v2280, %v2277
    %v2337 = vpack.c.bf16 %v2327, %v2324
    %s2338 = scalar_lea.vmem [#allocation7], 4
    %v2339 = vld [vmem:[%s2338] sm:$0xf]
    %v2341 = vsel %vm394, %v2330, 0
    %v2344 = vsel %vm394, %v2331, 0
    %v2347 = vsel %vm394, %v2332, 0
    %v2350 = vsel %vm394, %v2333, 0
    %v2353 = vsel %vm394, %v2334, 0
    %v2356 = vsel %vm394, %v2335, 0
    %v2359 = vsel %vm394, %v2336, 0
    %v2362 = vsel %vm394, %v2337, 0
    %vm2364 = vcmask 1043456
    %v2366 = vsel %vm2364, %v2339, 0
    %2368 = vmatprep.subr.bf16.mxu0 0
    %2369 = vmatpush1.bf16.msra.mxu0 0
    %2370 = vmatprep.subr.bf16.mxu0 0
    %2371 = vmatpush1.bf16.msra.mxu0 0
    %2372 = vmatprep.subr.bf16.mxu0 0
    %2373 = vmatpush1.bf16.msra.mxu0 0
    %2374 = vmatprep.subr.bf16.mxu0 0
    %2375 = vmatpush1.bf16.msra.mxu0 0
    %2376 = vmatprep.subr.bf16.mxu0 0
    %2377 = vmatpush1.bf16.msra.mxu0 0
    %2378 = vmatprep.subr.bf16.mxu0 0
    %2379 = vmatpush1.bf16.msra.mxu0 0
    %2380 = vmatprep.subr.bf16.mxu0 0
    %2381 = vmatpush1.bf16.msra.mxu0 0
    %2382 = vmatprep.subr.bf16.mxu0 0
    %2383 = vmatpush1.bf16.msra.mxu0 %v2366
    %2384 = vmatprep.subr.bf16.mxu0 0
    %2385 = vmatpush2.bf16.msra.mxu0 0
    %2386 = vmatprep.subr.bf16.mxu0 0
    %2387 = vmatpush2.bf16.msra.mxu0 0
    %2388 = vmatprep.subr.bf16.mxu0 0
    %2389 = vmatpush2.bf16.msra.mxu0 0
    %2390 = vmatprep.subr.bf16.mxu0 0
    %2391 = vmatpush2.bf16.msra.mxu0 0
    %2392 = vmatprep.subr.bf16.mxu0 0
    %2393 = vmatpush2.bf16.msra.mxu0 0
    %2394 = vmatprep.subr.bf16.mxu0 0
    %2395 = vmatpush2.bf16.msra.mxu0 0
    %2396 = vmatprep.subr.bf16.mxu0 0
    %2397 = vmatpush2.bf16.msra.mxu0 0
    %2398 = vmatprep.subr.bf16.mxu0 0
    %2399 = vmatpush2.bf16.msra.mxu0 0
    %2400 = vmatprep.mubr.bf16.mxu0 0
    %2401 = vmatmul.mubr.bf16.gmra.mxu0 %v2341
    %v2402 = vpop.f32.mrf.mxu0
    %v2403 = vadd.f32 0.0, %v2402
    %v2404 = vpop.f32.mrf.mxu0
    %v2405 = vpop.f32.mrf.mxu0
    %v2406 = vadd.f32 0.0, %v2405
    %v2407 = vpop.f32.mrf.mxu0
    %2408 = vmatprep.mubr.bf16.mxu0 0
    %2409 = vmatmul.mubr.bf16.gmra.mxu0 %v2344
    %v2410 = vpop.f32.mrf.mxu0
    %v2411 = vadd.f32 0.0, %v2410
    %v2412 = vpop.f32.mrf.mxu0
    %v2413 = vpop.f32.mrf.mxu0
    %v2414 = vadd.f32 0.0, %v2413
    %v2415 = vpop.f32.mrf.mxu0
    %2416 = vmatprep.mubr.bf16.mxu0 0
    %2417 = vmatmul.mubr.bf16.gmra.mxu0 %v2347
    %v2418 = vpop.f32.mrf.mxu0
    %v2419 = vadd.f32 0.0, %v2418
    %v2420 = vpop.f32.mrf.mxu0
    %v2421 = vpop.f32.mrf.mxu0
    %v2422 = vadd.f32 0.0, %v2421
    %v2423 = vpop.f32.mrf.mxu0
    %2424 = vmatprep.mubr.bf16.mxu0 0
    %2425 = vmatmul.mubr.bf16.gmra.mxu0 %v2350
    %v2426 = vpop.f32.mrf.mxu0
    %v2427 = vadd.f32 0.0, %v2426
    %v2428 = vpop.f32.mrf.mxu0
    %v2429 = vpop.f32.mrf.mxu0
    %v2430 = vadd.f32 0.0, %v2429
    %v2431 = vpop.f32.mrf.mxu0
    %2432 = vmatprep.mubr.bf16.mxu0 0
    %2433 = vmatmul.mubr.bf16.gmra.mxu0 %v2353
    %v2434 = vpop.f32.mrf.mxu0
    %v2435 = vadd.f32 0.0, %v2434
    %v2436 = vpop.f32.mrf.mxu0
    %v2437 = vpop.f32.mrf.mxu0
    %v2438 = vadd.f32 0.0, %v2437
    %v2439 = vpop.f32.mrf.mxu0
    %2440 = vmatprep.mubr.bf16.mxu0 0
    %2441 = vmatmul.mubr.bf16.gmra.mxu0 %v2356
    %v2442 = vpop.f32.mrf.mxu0
    %v2443 = vadd.f32 0.0, %v2442
    %v2444 = vpop.f32.mrf.mxu0
    %v2445 = vpop.f32.mrf.mxu0
    %v2446 = vadd.f32 0.0, %v2445
    %v2447 = vpop.f32.mrf.mxu0
    %2448 = vmatprep.mubr.bf16.mxu0 0
    %2449 = vmatmul.mubr.bf16.gmra.mxu0 %v2359
    %v2450 = vpop.f32.mrf.mxu0
    %v2451 = vadd.f32 0.0, %v2450
    %v2452 = vpop.f32.mrf.mxu0
    %v2453 = vpop.f32.mrf.mxu0
    %v2454 = vadd.f32 0.0, %v2453
    %v2455 = vpop.f32.mrf.mxu0
    %2456 = vmatprep.mubr.bf16.mxu0 0
    %2457 = vmatmul.mubr.bf16.gmra.mxu0 %v2362
    %v2458 = vpop.f32.mrf.mxu0
    %v2459 = vadd.f32 0.0, %v2458
    %v2460 = vpop.f32.mrf.mxu0
    %v2461 = vpop.f32.mrf.mxu0
    %v2462 = vadd.f32 0.0, %v2461
    %v2463 = vpop.f32.mrf.mxu0
    %2464 = vdwg.mxu0
    %v2466 = vsel %vm394, %v1353, 0
    %v2469 = vsel %vm394, %v1354, 0
    %v2472 = vsel %vm394, %v1355, 0
    %v2475 = vsel %vm394, %v1356, 0
    %v2478 = vsel %vm394, %v1357, 0
    %v2481 = vsel %vm394, %v1358, 0
    %v2484 = vsel %vm394, %v1359, 0
    %v2487 = vsel %vm394, %v1360, 0
    %v2490 = vsel %vm2364, %v1361, 0
    %2492 = vmatprep.subr.bf16.mxu0 0
    %2493 = vmatpush1.bf16.msra.mxu0 0
    %2494 = vmatprep.subr.bf16.mxu0 0
    %2495 = vmatpush1.bf16.msra.mxu0 0
    %2496 = vmatprep.subr.bf16.mxu0 0
    %2497 = vmatpush1.bf16.msra.mxu0 0
    %2498 = vmatprep.subr.bf16.mxu0 0
    %2499 = vmatpush1.bf16.msra.mxu0 0
    %2500 = vmatprep.subr.bf16.mxu0 0
    %2501 = vmatpush1.bf16.msra.mxu0 0
    %2502 = vmatprep.subr.bf16.mxu0 0
    %2503 = vmatpush1.bf16.msra.mxu0 0
    %2504 = vmatprep.subr.bf16.mxu0 0
    %2505 = vmatpush1.bf16.msra.mxu0 0
    %2506 = vmatprep.subr.bf16.mxu0 0
    %2507 = vmatpush1.bf16.msra.mxu0 %v2490
    %2508 = vmatprep.subr.bf16.mxu0 0
    %2509 = vmatpush2.bf16.msra.mxu0 0
    %2510 = vmatprep.subr.bf16.mxu0 0
    %2511 = vmatpush2.bf16.msra.mxu0 0
    %2512 = vmatprep.subr.bf16.mxu0 0
    %2513 = vmatpush2.bf16.msra.mxu0 0
    %2514 = vmatprep.subr.bf16.mxu0 0
    %2515 = vmatpush2.bf16.msra.mxu0 0
    %2516 = vmatprep.subr.bf16.mxu0 0
    %2517 = vmatpush2.bf16.msra.mxu0 0
    %2518 = vmatprep.subr.bf16.mxu0 0
    %2519 = vmatpush2.bf16.msra.mxu0 0
    %2520 = vmatprep.subr.bf16.mxu0 0
    %2521 = vmatpush2.bf16.msra.mxu0 0
    %2522 = vmatprep.subr.bf16.mxu0 0
    %2523 = vmatpush2.bf16.msra.mxu0 0
    %2524 = vmatprep.mubr.bf16.mxu0 0
    %2525 = vmatmul.mubr.bf16.gmra.mxu0 %v2466
    %v2526 = vpop.f32.mrf.mxu0
    %v2527 = vadd.f32 %v2403, %v2526
    %v2528 = vpop.f32.mrf.mxu0
    %v2529 = vpop.f32.mrf.mxu0
    %v2530 = vadd.f32 %v2406, %v2529
    %v2531 = vpop.f32.mrf.mxu0
    %2532 = vmatprep.mubr.bf16.mxu0 0
    %2533 = vmatmul.mubr.bf16.gmra.mxu0 %v2469
    %v2534 = vpop.f32.mrf.mxu0
    %v2535 = vadd.f32 %v2411, %v2534
    %v2536 = vpop.f32.mrf.mxu0
    %v2537 = vpop.f32.mrf.mxu0
    %v2538 = vadd.f32 %v2414, %v2537
    %v2539 = vpop.f32.mrf.mxu0
    %2540 = vmatprep.mubr.bf16.mxu0 0
    %2541 = vmatmul.mubr.bf16.gmra.mxu0 %v2472
    %v2542 = vpop.f32.mrf.mxu0
    %v2543 = vadd.f32 %v2419, %v2542
    %v2544 = vpop.f32.mrf.mxu0
    %v2545 = vpop.f32.mrf.mxu0
    %v2546 = vadd.f32 %v2422, %v2545
    %v2547 = vpop.f32.mrf.mxu0
    %2548 = vmatprep.mubr.bf16.mxu0 0
    %2549 = vmatmul.mubr.bf16.gmra.mxu0 %v2475
    %v2550 = vpop.f32.mrf.mxu0
    %v2551 = vadd.f32 %v2427, %v2550
    %v2552 = vpop.f32.mrf.mxu0
    %v2553 = vpop.f32.mrf.mxu0
    %v2554 = vadd.f32 %v2430, %v2553
    %v2555 = vpop.f32.mrf.mxu0
    %2556 = vmatprep.mubr.bf16.mxu0 0
    %2557 = vmatmul.mubr.bf16.gmra.mxu0 %v2478
    %v2558 = vpop.f32.mrf.mxu0
    %v2559 = vadd.f32 %v2435, %v2558
    %v2560 = vpop.f32.mrf.mxu0
    %v2561 = vpop.f32.mrf.mxu0
    %v2562 = vadd.f32 %v2438, %v2561
    %v2563 = vpop.f32.mrf.mxu0
    %2564 = vmatprep.mubr.bf16.mxu0 0
    %2565 = vmatmul.mubr.bf16.gmra.mxu0 %v2481
    %v2566 = vpop.f32.mrf.mxu0
    %v2567 = vadd.f32 %v2443, %v2566
    %v2568 = vpop.f32.mrf.mxu0
    %v2569 = vpop.f32.mrf.mxu0
    %v2570 = vadd.f32 %v2446, %v2569
    %v2571 = vpop.f32.mrf.mxu0
    %2572 = vmatprep.mubr.bf16.mxu0 0
    %2573 = vmatmul.mubr.bf16.gmra.mxu0 %v2484
    %v2574 = vpop.f32.mrf.mxu0
    %v2575 = vadd.f32 %v2451, %v2574
    %v2576 = vpop.f32.mrf.mxu0
    %v2577 = vpop.f32.mrf.mxu0
    %v2578 = vadd.f32 %v2454, %v2577
    %v2579 = vpop.f32.mrf.mxu0
    %2580 = vmatprep.mubr.bf16.mxu0 0
    %2581 = vmatmul.mubr.bf16.gmra.mxu0 %v2487
    %v2582 = vpop.f32.mrf.mxu0
    %v2583 = vadd.f32 %v2459, %v2582
    %v2584 = vpop.f32.mrf.mxu0
    %v2585 = vpop.f32.mrf.mxu0
    %v2586 = vadd.f32 %v2462, %v2585
    %v2587 = vpop.f32.mrf.mxu0
    %2588 = vdwg.mxu0
    %2589 = vrot.lane.b32.xlu0 %v383, 112
    %v2590 = vpop.permute.xlu0 %2589
    %2591 = vrot.lane.b32.xlu0 %v383, 80
    %v2592 = vpop.permute.xlu0 %2591
    %v2594 = vsel %vm394, %v2590, 0
    %v2597 = vsel %vm394, %v2592, 0
    %2599 = vmatprep.subr.bf16.mxu0 0
    %2600 = vmatpush1.bf16.xpose.msra.mxu0 0
    %2601 = vmatprep.subr.bf16.mxu0 0
    %2602 = vmatpush1.bf16.xpose.msra.mxu0 0
    %2603 = vmatprep.subr.bf16.mxu0 0
    %2604 = vmatpush1.bf16.xpose.msra.mxu0 0
    %2605 = vmatprep.subr.bf16.mxu0 0
    %2606 = vmatpush1.bf16.xpose.msra.mxu0 0
    %2607 = vmatprep.subr.bf16.mxu0 0
    %2608 = vmatpush1.bf16.xpose.msra.mxu0 0
    %2609 = vmatprep.subr.bf16.mxu0 0
    %2610 = vmatpush1.bf16.xpose.msra.mxu0 0
    %2611 = vmatprep.subr.bf16.mxu0 0
    %2612 = vmatpush1.bf16.xpose.msra.mxu0 0
    %2613 = vmatprep.subr.bf16.mxu0 0
    %2614 = vmatpush1.bf16.xpose.msra.mxu0 %v2597
    %2615 = vmatprep.subr.bf16.mxu0 0
    %2616 = vmatpush2.bf16.xpose.msra.mxu0 0
    %2617 = vmatprep.subr.bf16.mxu0 0
    %2618 = vmatpush2.bf16.xpose.msra.mxu0 0
    %2619 = vmatprep.subr.bf16.mxu0 0
    %2620 = vmatpush2.bf16.xpose.msra.mxu0 0
    %2621 = vmatprep.subr.bf16.mxu0 0
    %2622 = vmatpush2.bf16.xpose.msra.mxu0 0
    %2623 = vmatprep.subr.bf16.mxu0 0
    %2624 = vmatpush2.bf16.xpose.msra.mxu0 0
    %2625 = vmatprep.subr.bf16.mxu0 0
    %2626 = vmatpush2.bf16.xpose.msra.mxu0 0
    %2627 = vmatprep.subr.bf16.mxu0 0
    %2628 = vmatpush2.bf16.xpose.msra.mxu0 0
    %2629 = vmatprep.subr.bf16.mxu0 0
    %2630 = vmatpush2.bf16.xpose.msra.mxu0 0
    %2631 = vmatprep.mubr.bf16.mxu0 0
    %2632 = vmatmul.mubr.bf16.gmra.mxu0 %v2594
    %v2633 = vpop.f32.mrf.mxu0
    %v2634 = vadd.f32 0.0, %v2633
    %v2635 = vpop.f32.mrf.mxu0
    %v2636 = vpop.f32.mrf.mxu0
    %v2637 = vadd.f32 0.0, %v2636
    %v2638 = vpop.f32.mrf.mxu0
    %2639 = vdwg.mxu0
    %2640 = vrot.lane.b32.xlu0 %v384, 112
    %v2641 = vpop.permute.xlu0 %2640
    %2642 = vrot.lane.b32.xlu0 %v384, 80
    %v2643 = vpop.permute.xlu0 %2642
    %v2645 = vsel %vm394, %v2641, 0
    %v2648 = vsel %vm394, %v2643, 0
    %2650 = vmatprep.subr.bf16.mxu0 0
    %2651 = vmatpush1.bf16.xpose.msra.mxu0 0
    %2652 = vmatprep.subr.bf16.mxu0 0
    %2653 = vmatpush1.bf16.xpose.msra.mxu0 0
    %2654 = vmatprep.subr.bf16.mxu0 0
    %2655 = vmatpush1.bf16.xpose.msra.mxu0 0
    %2656 = vmatprep.subr.bf16.mxu0 0
    %2657 = vmatpush1.bf16.xpose.msra.mxu0 0
    %2658 = vmatprep.subr.bf16.mxu0 0
    %2659 = vmatpush1.bf16.xpose.msra.mxu0 0
    %2660 = vmatprep.subr.bf16.mxu0 0
    %2661 = vmatpush1.bf16.xpose.msra.mxu0 0
    %2662 = vmatprep.subr.bf16.mxu0 0
    %2663 = vmatpush1.bf16.xpose.msra.mxu0 0
    %2664 = vmatprep.subr.bf16.mxu0 0
    %2665 = vmatpush1.bf16.xpose.msra.mxu0 %v2648
    %2666 = vmatprep.subr.bf16.mxu0 0
    %2667 = vmatpush2.bf16.xpose.msra.mxu0 0
    %2668 = vmatprep.subr.bf16.mxu0 0
    %2669 = vmatpush2.bf16.xpose.msra.mxu0 0
    %2670 = vmatprep.subr.bf16.mxu0 0
    %2671 = vmatpush2.bf16.xpose.msra.mxu0 0
    %2672 = vmatprep.subr.bf16.mxu0 0
    %2673 = vmatpush2.bf16.xpose.msra.mxu0 0
    %2674 = vmatprep.subr.bf16.mxu0 0
    %2675 = vmatpush2.bf16.xpose.msra.mxu0 0
    %2676 = vmatprep.subr.bf16.mxu0 0
    %2677 = vmatpush2.bf16.xpose.msra.mxu0 0
    %2678 = vmatprep.subr.bf16.mxu0 0
    %2679 = vmatpush2.bf16.xpose.msra.mxu0 0
    %2680 = vmatprep.subr.bf16.mxu0 0
    %2681 = vmatpush2.bf16.xpose.msra.mxu0 0
    %2682 = vmatprep.mubr.bf16.mxu0 0
    %2683 = vmatmul.mubr.bf16.gmra.mxu0 %v2645
    %v2684 = vpop.f32.mrf.mxu0
    %v2685 = vadd.f32 0.0, %v2684
    %v2686 = vpop.f32.mrf.mxu0
    %v2687 = vpop.f32.mrf.mxu0
    %v2688 = vadd.f32 0.0, %v2687
    %v2689 = vpop.f32.mrf.mxu0
    %2690 = vdwg.mxu0
    %2691 = vrot.lane.b32.xlu0 %v385, 112
    %v2692 = vpop.permute.xlu0 %2691
    %2693 = vrot.lane.b32.xlu0 %v385, 80
    %v2694 = vpop.permute.xlu0 %2693
    %v2696 = vsel %vm394, %v2692, 0
    %v2699 = vsel %vm394, %v2694, 0
    %2701 = vmatprep.subr.bf16.mxu0 0
    %2702 = vmatpush1.bf16.xpose.msra.mxu0 0
    %2703 = vmatprep.subr.bf16.mxu0 0
    %2704 = vmatpush1.bf16.xpose.msra.mxu0 0
    %2705 = vmatprep.subr.bf16.mxu0 0
    %2706 = vmatpush1.bf16.xpose.msra.mxu0 0
    %2707 = vmatprep.subr.bf16.mxu0 0
    %2708 = vmatpush1.bf16.xpose.msra.mxu0 0
    %2709 = vmatprep.subr.bf16.mxu0 0
    %2710 = vmatpush1.bf16.xpose.msra.mxu0 0
    %2711 = vmatprep.subr.bf16.mxu0 0
    %2712 = vmatpush1.bf16.xpose.msra.mxu0 0
    %2713 = vmatprep.subr.bf16.mxu0 0
    %2714 = vmatpush1.bf16.xpose.msra.mxu0 0
    %2715 = vmatprep.subr.bf16.mxu0 0
    %2716 = vmatpush1.bf16.xpose.msra.mxu0 %v2699
    %2717 = vmatprep.subr.bf16.mxu0 0
    %2718 = vmatpush2.bf16.xpose.msra.mxu0 0
    %2719 = vmatprep.subr.bf16.mxu0 0
    %2720 = vmatpush2.bf16.xpose.msra.mxu0 0
    %2721 = vmatprep.subr.bf16.mxu0 0
    %2722 = vmatpush2.bf16.xpose.msra.mxu0 0
    %2723 = vmatprep.subr.bf16.mxu0 0
    %2724 = vmatpush2.bf16.xpose.msra.mxu0 0
    %2725 = vmatprep.subr.bf16.mxu0 0
    %2726 = vmatpush2.bf16.xpose.msra.mxu0 0
    %2727 = vmatprep.subr.bf16.mxu0 0
    %2728 = vmatpush2.bf16.xpose.msra.mxu0 0
    %2729 = vmatprep.subr.bf16.mxu0 0
    %2730 = vmatpush2.bf16.xpose.msra.mxu0 0
    %2731 = vmatprep.subr.bf16.mxu0 0
    %2732 = vmatpush2.bf16.xpose.msra.mxu0 0
    %2733 = vmatprep.mubr.bf16.mxu0 0
    %2734 = vmatmul.mubr.bf16.gmra.mxu0 %v2696
    %v2735 = vpop.f32.mrf.mxu0
    %v2736 = vadd.f32 0.0, %v2735
    %v2737 = vpop.f32.mrf.mxu0
    %v2738 = vpop.f32.mrf.mxu0
    %v2739 = vadd.f32 0.0, %v2738
    %v2740 = vpop.f32.mrf.mxu0
    %2741 = vdwg.mxu0
    %2742 = vrot.lane.b32.xlu0 %v386, 112
    %v2743 = vpop.permute.xlu0 %2742
    %2744 = vrot.lane.b32.xlu0 %v386, 80
    %v2745 = vpop.permute.xlu0 %2744
    %v2747 = vsel %vm394, %v2743, 0
    %v2750 = vsel %vm394, %v2745, 0
    %2752 = vmatprep.subr.bf16.mxu0 0
    %2753 = vmatpush1.bf16.xpose.msra.mxu0 0
    %2754 = vmatprep.subr.bf16.mxu0 0
    %2755 = vmatpush1.bf16.xpose.msra.mxu0 0
    %2756 = vmatprep.subr.bf16.mxu0 0
    %2757 = vmatpush1.bf16.xpose.msra.mxu0 0
    %2758 = vmatprep.subr.bf16.mxu0 0
    %2759 = vmatpush1.bf16.xpose.msra.mxu0 0
    %2760 = vmatprep.subr.bf16.mxu0 0
    %2761 = vmatpush1.bf16.xpose.msra.mxu0 0
    %2762 = vmatprep.subr.bf16.mxu0 0
    %2763 = vmatpush1.bf16.xpose.msra.mxu0 0
    %2764 = vmatprep.subr.bf16.mxu0 0
    %2765 = vmatpush1.bf16.xpose.msra.mxu0 0
    %2766 = vmatprep.subr.bf16.mxu0 0
    %2767 = vmatpush1.bf16.xpose.msra.mxu0 %v2750
    %2768 = vmatprep.subr.bf16.mxu0 0
    %2769 = vmatpush2.bf16.xpose.msra.mxu0 0
    %2770 = vmatprep.subr.bf16.mxu0 0
    %2771 = vmatpush2.bf16.xpose.msra.mxu0 0
    %2772 = vmatprep.subr.bf16.mxu0 0
    %2773 = vmatpush2.bf16.xpose.msra.mxu0 0
    %2774 = vmatprep.subr.bf16.mxu0 0
    %2775 = vmatpush2.bf16.xpose.msra.mxu0 0
    %2776 = vmatprep.subr.bf16.mxu0 0
    %2777 = vmatpush2.bf16.xpose.msra.mxu0 0
    %2778 = vmatprep.subr.bf16.mxu0 0
    %2779 = vmatpush2.bf16.xpose.msra.mxu0 0
    %2780 = vmatprep.subr.bf16.mxu0 0
    %2781 = vmatpush2.bf16.xpose.msra.mxu0 0
    %2782 = vmatprep.subr.bf16.mxu0 0
    %2783 = vmatpush2.bf16.xpose.msra.mxu0 0
    %2784 = vmatprep.mubr.bf16.mxu0 0
    %2785 = vmatmul.mubr.bf16.gmra.mxu0 %v2747
    %v2786 = vpop.f32.mrf.mxu0
    %v2787 = vadd.f32 0.0, %v2786
    %v2788 = vpop.f32.mrf.mxu0
    %v2789 = vpop.f32.mrf.mxu0
    %v2790 = vadd.f32 0.0, %v2789
    %v2791 = vpop.f32.mrf.mxu0
    %2792 = vdwg.mxu0
    %2793 = vrot.lane.b32.xlu0 %v387, 112
    %v2794 = vpop.permute.xlu0 %2793
    %2795 = vrot.lane.b32.xlu0 %v387, 80
    %v2796 = vpop.permute.xlu0 %2795
    %v2798 = vsel %vm394, %v2794, 0
    %v2801 = vsel %vm394, %v2796, 0
    %2803 = vmatprep.subr.bf16.mxu0 0
    %2804 = vmatpush1.bf16.xpose.msra.mxu0 0
    %2805 = vmatprep.subr.bf16.mxu0 0
    %2806 = vmatpush1.bf16.xpose.msra.mxu0 0
    %2807 = vmatprep.subr.bf16.mxu0 0
    %2808 = vmatpush1.bf16.xpose.msra.mxu0 0
    %2809 = vmatprep.subr.bf16.mxu0 0
    %2810 = vmatpush1.bf16.xpose.msra.mxu0 0
    %2811 = vmatprep.subr.bf16.mxu0 0
    %2812 = vmatpush1.bf16.xpose.msra.mxu0 0
    %2813 = vmatprep.subr.bf16.mxu0 0
    %2814 = vmatpush1.bf16.xpose.msra.mxu0 0
    %2815 = vmatprep.subr.bf16.mxu0 0
    %2816 = vmatpush1.bf16.xpose.msra.mxu0 0
    %2817 = vmatprep.subr.bf16.mxu0 0
    %2818 = vmatpush1.bf16.xpose.msra.mxu0 %v2801
    %2819 = vmatprep.subr.bf16.mxu0 0
    %2820 = vmatpush2.bf16.xpose.msra.mxu0 0
    %2821 = vmatprep.subr.bf16.mxu0 0
    %2822 = vmatpush2.bf16.xpose.msra.mxu0 0
    %2823 = vmatprep.subr.bf16.mxu0 0
    %2824 = vmatpush2.bf16.xpose.msra.mxu0 0
    %2825 = vmatprep.subr.bf16.mxu0 0
    %2826 = vmatpush2.bf16.xpose.msra.mxu0 0
    %2827 = vmatprep.subr.bf16.mxu0 0
    %2828 = vmatpush2.bf16.xpose.msra.mxu0 0
    %2829 = vmatprep.subr.bf16.mxu0 0
    %2830 = vmatpush2.bf16.xpose.msra.mxu0 0
    %2831 = vmatprep.subr.bf16.mxu0 0
    %2832 = vmatpush2.bf16.xpose.msra.mxu0 0
    %2833 = vmatprep.subr.bf16.mxu0 0
    %2834 = vmatpush2.bf16.xpose.msra.mxu0 0
    %2835 = vmatprep.mubr.bf16.mxu0 0
    %2836 = vmatmul.mubr.bf16.gmra.mxu0 %v2798
    %v2837 = vpop.f32.mrf.mxu0
    %v2838 = vadd.f32 0.0, %v2837
    %v2839 = vpop.f32.mrf.mxu0
    %v2840 = vpop.f32.mrf.mxu0
    %v2841 = vadd.f32 0.0, %v2840
    %v2842 = vpop.f32.mrf.mxu0
    %2843 = vdwg.mxu0
    %2844 = vrot.lane.b32.xlu0 %v388, 112
    %v2845 = vpop.permute.xlu0 %2844
    %2846 = vrot.lane.b32.xlu0 %v388, 80
    %v2847 = vpop.permute.xlu0 %2846
    %v2849 = vsel %vm394, %v2845, 0
    %v2852 = vsel %vm394, %v2847, 0
    %2854 = vmatprep.subr.bf16.mxu0 0
    %2855 = vmatpush1.bf16.xpose.msra.mxu0 0
    %2856 = vmatprep.subr.bf16.mxu0 0
    %2857 = vmatpush1.bf16.xpose.msra.mxu0 0
    %2858 = vmatprep.subr.bf16.mxu0 0
    %2859 = vmatpush1.bf16.xpose.msra.mxu0 0
    %2860 = vmatprep.subr.bf16.mxu0 0
    %2861 = vmatpush1.bf16.xpose.msra.mxu0 0
    %2862 = vmatprep.subr.bf16.mxu0 0
    %2863 = vmatpush1.bf16.xpose.msra.mxu0 0
    %2864 = vmatprep.subr.bf16.mxu0 0
    %2865 = vmatpush1.bf16.xpose.msra.mxu0 0
    %2866 = vmatprep.subr.bf16.mxu0 0
    %2867 = vmatpush1.bf16.xpose.msra.mxu0 0
    %2868 = vmatprep.subr.bf16.mxu0 0
    %2869 = vmatpush1.bf16.xpose.msra.mxu0 %v2852
    %2870 = vmatprep.subr.bf16.mxu0 0
    %2871 = vmatpush2.bf16.xpose.msra.mxu0 0
    %2872 = vmatprep.subr.bf16.mxu0 0
    %2873 = vmatpush2.bf16.xpose.msra.mxu0 0
    %2874 = vmatprep.subr.bf16.mxu0 0
    %2875 = vmatpush2.bf16.xpose.msra.mxu0 0
    %2876 = vmatprep.subr.bf16.mxu0 0
    %2877 = vmatpush2.bf16.xpose.msra.mxu0 0
    %2878 = vmatprep.subr.bf16.mxu0 0
    %2879 = vmatpush2.bf16.xpose.msra.mxu0 0
    %2880 = vmatprep.subr.bf16.mxu0 0
    %2881 = vmatpush2.bf16.xpose.msra.mxu0 0
    %2882 = vmatprep.subr.bf16.mxu0 0
    %2883 = vmatpush2.bf16.xpose.msra.mxu0 0
    %2884 = vmatprep.subr.bf16.mxu0 0
    %2885 = vmatpush2.bf16.xpose.msra.mxu0 0
    %2886 = vmatprep.mubr.bf16.mxu0 0
    %2887 = vmatmul.mubr.bf16.gmra.mxu0 %v2849
    %v2888 = vpop.f32.mrf.mxu0
    %v2889 = vadd.f32 0.0, %v2888
    %v2890 = vpop.f32.mrf.mxu0
    %v2891 = vpop.f32.mrf.mxu0
    %v2892 = vadd.f32 0.0, %v2891
    %v2893 = vpop.f32.mrf.mxu0
    %2894 = vdwg.mxu0
    %2895 = vrot.lane.b32.xlu0 %v389, 112
    %v2896 = vpop.permute.xlu0 %2895
    %2897 = vrot.lane.b32.xlu0 %v389, 80
    %v2898 = vpop.permute.xlu0 %2897
    %v2900 = vsel %vm394, %v2896, 0
    %v2903 = vsel %vm394, %v2898, 0
    %2905 = vmatprep.subr.bf16.mxu0 0
    %2906 = vmatpush1.bf16.xpose.msra.mxu0 0
    %2907 = vmatprep.subr.bf16.mxu0 0
    %2908 = vmatpush1.bf16.xpose.msra.mxu0 0
    %2909 = vmatprep.subr.bf16.mxu0 0
    %2910 = vmatpush1.bf16.xpose.msra.mxu0 0
    %2911 = vmatprep.subr.bf16.mxu0 0
    %2912 = vmatpush1.bf16.xpose.msra.mxu0 0
    %2913 = vmatprep.subr.bf16.mxu0 0
    %2914 = vmatpush1.bf16.xpose.msra.mxu0 0
    %2915 = vmatprep.subr.bf16.mxu0 0
    %2916 = vmatpush1.bf16.xpose.msra.mxu0 0
    %2917 = vmatprep.subr.bf16.mxu0 0
    %2918 = vmatpush1.bf16.xpose.msra.mxu0 0
    %2919 = vmatprep.subr.bf16.mxu0 0
    %2920 = vmatpush1.bf16.xpose.msra.mxu0 %v2903
    %2921 = vmatprep.subr.bf16.mxu0 0
    %2922 = vmatpush2.bf16.xpose.msra.mxu0 0
    %2923 = vmatprep.subr.bf16.mxu0 0
    %2924 = vmatpush2.bf16.xpose.msra.mxu0 0
    %2925 = vmatprep.subr.bf16.mxu0 0
    %2926 = vmatpush2.bf16.xpose.msra.mxu0 0
    %2927 = vmatprep.subr.bf16.mxu0 0
    %2928 = vmatpush2.bf16.xpose.msra.mxu0 0
    %2929 = vmatprep.subr.bf16.mxu0 0
    %2930 = vmatpush2.bf16.xpose.msra.mxu0 0
    %2931 = vmatprep.subr.bf16.mxu0 0
    %2932 = vmatpush2.bf16.xpose.msra.mxu0 0
    %2933 = vmatprep.subr.bf16.mxu0 0
    %2934 = vmatpush2.bf16.xpose.msra.mxu0 0
    %2935 = vmatprep.subr.bf16.mxu0 0
    %2936 = vmatpush2.bf16.xpose.msra.mxu0 0
    %2937 = vmatprep.mubr.bf16.mxu0 0
    %2938 = vmatmul.mubr.bf16.gmra.mxu0 %v2900
    %v2939 = vpop.f32.mrf.mxu0
    %v2940 = vadd.f32 0.0, %v2939
    %v2941 = vpop.f32.mrf.mxu0
    %v2942 = vpop.f32.mrf.mxu0
    %v2943 = vadd.f32 0.0, %v2942
    %v2944 = vpop.f32.mrf.mxu0
    %2945 = vdwg.mxu0
    %2946 = vrot.lane.b32.xlu0 %v390, 112
    %v2947 = vpop.permute.xlu0 %2946
    %2948 = vrot.lane.b32.xlu0 %v390, 80
    %v2949 = vpop.permute.xlu0 %2948
    %v2951 = vsel %vm394, %v2947, 0
    %v2954 = vsel %vm394, %v2949, 0
    %2956 = vmatprep.subr.bf16.mxu0 0
    %2957 = vmatpush1.bf16.xpose.msra.mxu0 0
    %2958 = vmatprep.subr.bf16.mxu0 0
    %2959 = vmatpush1.bf16.xpose.msra.mxu0 0
    %2960 = vmatprep.subr.bf16.mxu0 0
    %2961 = vmatpush1.bf16.xpose.msra.mxu0 0
    %2962 = vmatprep.subr.bf16.mxu0 0
    %2963 = vmatpush1.bf16.xpose.msra.mxu0 0
    %2964 = vmatprep.subr.bf16.mxu0 0
    %2965 = vmatpush1.bf16.xpose.msra.mxu0 0
    %2966 = vmatprep.subr.bf16.mxu0 0
    %2967 = vmatpush1.bf16.xpose.msra.mxu0 0
    %2968 = vmatprep.subr.bf16.mxu0 0
    %2969 = vmatpush1.bf16.xpose.msra.mxu0 0
    %2970 = vmatprep.subr.bf16.mxu0 0
    %2971 = vmatpush1.bf16.xpose.msra.mxu0 %v2954
    %2972 = vmatprep.subr.bf16.mxu0 0
    %2973 = vmatpush2.bf16.xpose.msra.mxu0 0
    %2974 = vmatprep.subr.bf16.mxu0 0
    %2975 = vmatpush2.bf16.xpose.msra.mxu0 0
    %2976 = vmatprep.subr.bf16.mxu0 0
    %2977 = vmatpush2.bf16.xpose.msra.mxu0 0
    %2978 = vmatprep.subr.bf16.mxu0 0
    %2979 = vmatpush2.bf16.xpose.msra.mxu0 0
    %2980 = vmatprep.subr.bf16.mxu0 0
    %2981 = vmatpush2.bf16.xpose.msra.mxu0 0
    %2982 = vmatprep.subr.bf16.mxu0 0
    %2983 = vmatpush2.bf16.xpose.msra.mxu0 0
    %2984 = vmatprep.subr.bf16.mxu0 0
    %2985 = vmatpush2.bf16.xpose.msra.mxu0 0
    %2986 = vmatprep.subr.bf16.mxu0 0
    %2987 = vmatpush2.bf16.xpose.msra.mxu0 0
    %2988 = vmatprep.mubr.bf16.mxu0 0
    %2989 = vmatmul.mubr.bf16.gmra.mxu0 %v2951
    %v2990 = vpop.f32.mrf.mxu0
    %v2991 = vadd.f32 0.0, %v2990
    %v2992 = vpop.f32.mrf.mxu0
    %v2993 = vpop.f32.mrf.mxu0
    %v2994 = vadd.f32 0.0, %v2993
    %v2995 = vpop.f32.mrf.mxu0
    %2996 = vdwg.mxu0
    %v2997 = vsel %vm792, %v2634, -inf
    %2998 = vmax.xlane.f32.xlu0 %v2997
    %v2999 = vpop.xlane.xlu0 %2998
    %v3000 = vsel %vm792, %v2637, -inf
    %3001 = vmax.xlane.f32.xlu0 %v3000
    %v3002 = vpop.xlane.xlu0 %3001
    %v3003 = vsel %vm792, %v2685, -inf
    %3004 = vmax.xlane.f32.xlu0 %v3003
    %v3005 = vpop.xlane.xlu0 %3004
    %v3006 = vsel %vm792, %v2688, -inf
    %3007 = vmax.xlane.f32.xlu0 %v3006
    %v3008 = vpop.xlane.xlu0 %3007
    %v3009 = vsel %vm792, %v2736, -inf
    %3010 = vmax.xlane.f32.xlu0 %v3009
    %v3011 = vpop.xlane.xlu0 %3010
    %v3012 = vsel %vm792, %v2739, -inf
    %3013 = vmax.xlane.f32.xlu0 %v3012
    %v3014 = vpop.xlane.xlu0 %3013
    %v3015 = vsel %vm792, %v2787, -inf
    %3016 = vmax.xlane.f32.xlu0 %v3015
    %v3017 = vpop.xlane.xlu0 %3016
    %v3018 = vsel %vm792, %v2790, -inf
    %3019 = vmax.xlane.f32.xlu0 %v3018
    %v3020 = vpop.xlane.xlu0 %3019
    %v3021 = vsel %vm792, %v2838, -inf
    %3022 = vmax.xlane.f32.xlu0 %v3021
    %v3023 = vpop.xlane.xlu0 %3022
    %v3024 = vsel %vm792, %v2841, -inf
    %3025 = vmax.xlane.f32.xlu0 %v3024
    %v3026 = vpop.xlane.xlu0 %3025
    %v3027 = vsel %vm792, %v2889, -inf
    %3028 = vmax.xlane.f32.xlu0 %v3027
    %v3029 = vpop.xlane.xlu0 %3028
    %v3030 = vsel %vm792, %v2892, -inf
    %3031 = vmax.xlane.f32.xlu0 %v3030
    %v3032 = vpop.xlane.xlu0 %3031
    %v3033 = vsel %vm792, %v2940, -inf
    %3034 = vmax.xlane.f32.xlu0 %v3033
    %v3035 = vpop.xlane.xlu0 %3034
    %v3036 = vsel %vm792, %v2943, -inf
    %3037 = vmax.xlane.f32.xlu0 %v3036
    %v3038 = vpop.xlane.xlu0 %3037
    %v3039 = vsel %vm792, %v2991, -inf
    %3040 = vmax.xlane.f32.xlu0 %v3039
    %v3041 = vpop.xlane.xlu0 %3040
    %v3042 = vsel %vm792, %v2994, -inf
    %3043 = vmax.xlane.f32.xlu0 %v3042
    %v3044 = vpop.xlane.xlu0 %3043
    %v3045 = vsub.f32 %v2634, %v2999
    %v3046 = vsub.f32 %v2637, %v3002
    %v3047 = vsub.f32 %v2685, %v3005
    %v3048 = vsub.f32 %v2688, %v3008
    %v3049 = vsub.f32 %v2736, %v3011
    %v3050 = vsub.f32 %v2739, %v3014
    %v3051 = vsub.f32 %v2787, %v3017
    %v3052 = vsub.f32 %v2790, %v3020
    %v3053 = vsub.f32 %v2838, %v3023
    %v3054 = vsub.f32 %v2841, %v3026
    %v3055 = vsub.f32 %v2889, %v3029
    %v3056 = vsub.f32 %v2892, %v3032
    %v3057 = vsub.f32 %v2940, %v3035
    %v3058 = vsub.f32 %v2943, %v3038
    %v3059 = vsub.f32 %v2991, %v3041
    %v3060 = vsub.f32 %v2994, %v3044
    %v3061 = vmul.f32 %v3045, 1.442695
    %v3062 = vpow.pop %v3061
    %v3063 = vmul.f32 %v3046, 1.442695
    %v3064 = vpow.pop %v3063
    %v3065 = vmul.f32 %v3047, 1.442695
    %v3066 = vpow.pop %v3065
    %v3067 = vmul.f32 %v3048, 1.442695
    %v3068 = vpow.pop %v3067
    %v3069 = vmul.f32 %v3049, 1.442695
    %v3070 = vpow.pop %v3069
    %v3071 = vmul.f32 %v3050, 1.442695
    %v3072 = vpow.pop %v3071
    %v3073 = vmul.f32 %v3051, 1.442695
    %v3074 = vpow.pop %v3073
    %v3075 = vmul.f32 %v3052, 1.442695
    %v3076 = vpow.pop %v3075
    %v3077 = vmul.f32 %v3053, 1.442695
    %v3078 = vpow.pop %v3077
    %v3079 = vmul.f32 %v3054, 1.442695
    %v3080 = vpow.pop %v3079
    %v3081 = vmul.f32 %v3055, 1.442695
    %v3082 = vpow.pop %v3081
    %v3083 = vmul.f32 %v3056, 1.442695
    %v3084 = vpow.pop %v3083
    %v3085 = vmul.f32 %v3057, 1.442695
    %v3086 = vpow.pop %v3085
    %v3087 = vmul.f32 %v3058, 1.442695
    %v3088 = vpow.pop %v3087
    %v3089 = vmul.f32 %v3059, 1.442695
    %v3090 = vpow.pop %v3089
    %v3091 = vmul.f32 %v3060, 1.442695
    %v3092 = vpow.pop %v3091
    %v3093 = vsel %vm792, %v3062, 0.0
    %3094 = vadd.xlane.f32.xlu0 %v3093
    %v3095 = vpop.xlane.xlu0 %3094
    %v3096 = vsel %vm792, %v3064, 0.0
    %3097 = vadd.xlane.f32.xlu0 %v3096
    %v3098 = vpop.xlane.xlu0 %3097
    %v3099 = vsel %vm792, %v3066, 0.0
    %3100 = vadd.xlane.f32.xlu0 %v3099
    %v3101 = vpop.xlane.xlu0 %3100
    %v3102 = vsel %vm792, %v3068, 0.0
    %3103 = vadd.xlane.f32.xlu0 %v3102
    %v3104 = vpop.xlane.xlu0 %3103
    %v3105 = vsel %vm792, %v3070, 0.0
    %3106 = vadd.xlane.f32.xlu0 %v3105
    %v3107 = vpop.xlane.xlu0 %3106
    %v3108 = vsel %vm792, %v3072, 0.0
    %3109 = vadd.xlane.f32.xlu0 %v3108
    %v3110 = vpop.xlane.xlu0 %3109
    %v3111 = vsel %vm792, %v3074, 0.0
    %3112 = vadd.xlane.f32.xlu0 %v3111
    %v3113 = vpop.xlane.xlu0 %3112
    %v3114 = vsel %vm792, %v3076, 0.0
    %3115 = vadd.xlane.f32.xlu0 %v3114
    %v3116 = vpop.xlane.xlu0 %3115
    %v3117 = vsel %vm792, %v3078, 0.0
    %3118 = vadd.xlane.f32.xlu0 %v3117
    %v3119 = vpop.xlane.xlu0 %3118
    %v3120 = vsel %vm792, %v3080, 0.0
    %3121 = vadd.xlane.f32.xlu0 %v3120
    %v3122 = vpop.xlane.xlu0 %3121
    %v3123 = vsel %vm792, %v3082, 0.0
    %3124 = vadd.xlane.f32.xlu0 %v3123
    %v3125 = vpop.xlane.xlu0 %3124
    %v3126 = vsel %vm792, %v3084, 0.0
    %3127 = vadd.xlane.f32.xlu0 %v3126
    %v3128 = vpop.xlane.xlu0 %3127
    %v3129 = vsel %vm792, %v3086, 0.0
    %3130 = vadd.xlane.f32.xlu0 %v3129
    %v3131 = vpop.xlane.xlu0 %3130
    %v3132 = vsel %vm792, %v3088, 0.0
    %3133 = vadd.xlane.f32.xlu0 %v3132
    %v3134 = vpop.xlane.xlu0 %3133
    %v3135 = vsel %vm792, %v3090, 0.0
    %3136 = vadd.xlane.f32.xlu0 %v3135
    %v3137 = vpop.xlane.xlu0 %3136
    %v3138 = vsel %vm792, %v3092, 0.0
    %3139 = vadd.xlane.f32.xlu0 %v3138
    %v3140 = vpop.xlane.xlu0 %3139
    %v3141 = vrcp.pop %v3095
    %v3142 = vrcp.pop %v3098
    %v3143 = vrcp.pop %v3101
    %v3144 = vrcp.pop %v3104
    %v3145 = vrcp.pop %v3107
    %v3146 = vrcp.pop %v3110
    %v3147 = vrcp.pop %v3113
    %v3148 = vrcp.pop %v3116
    %v3149 = vrcp.pop %v3119
    %v3150 = vrcp.pop %v3122
    %v3151 = vrcp.pop %v3125
    %v3152 = vrcp.pop %v3128
    %v3153 = vrcp.pop %v3131
    %v3154 = vrcp.pop %v3134
    %v3155 = vrcp.pop %v3137
    %v3156 = vrcp.pop %v3140
    %v3157 = vmul.f32 %v3062, %v3141
    %v3158 = vmul.f32 %v3064, %v3142
    %v3159 = vmul.f32 %v3066, %v3143
    %v3160 = vmul.f32 %v3068, %v3144
    %v3161 = vmul.f32 %v3070, %v3145
    %v3162 = vmul.f32 %v3072, %v3146
    %v3163 = vmul.f32 %v3074, %v3147
    %v3164 = vmul.f32 %v3076, %v3148
    %v3165 = vmul.f32 %v3078, %v3149
    %v3166 = vmul.f32 %v3080, %v3150
    %v3167 = vmul.f32 %v3082, %v3151
    %v3168 = vmul.f32 %v3084, %v3152
    %v3169 = vmul.f32 %v3086, %v3153
    %v3170 = vmul.f32 %v3088, %v3154
    %v3171 = vmul.f32 %v3090, %v3155
    %v3172 = vmul.f32 %v3092, %v3156
    %v3173 = vpack.c.bf16 %v3158, %v3157
    %v3174 = vpack.c.bf16 %v3160, %v3159
    %v3175 = vpack.c.bf16 %v3162, %v3161
    %v3176 = vpack.c.bf16 %v3164, %v3163
    %v3177 = vpack.c.bf16 %v3166, %v3165
    %v3178 = vpack.c.bf16 %v3168, %v3167
    %v3179 = vpack.c.bf16 %v3170, %v3169
    %v3180 = vpack.c.bf16 %v3172, %v3171
    %3181 = vrot.lane.b32.xlu0 %v383, 48
    %v3182 = vpop.permute.xlu0 %3181
    %v3185 = vsel %vm792, %v3173, 0
    %3187 = vmatprep.subr.bf16.mxu0 0
    %3188 = vmatpush1.bf16.msra.mxu0 0
    %3189 = vmatprep.subr.bf16.mxu0 0
    %3190 = vmatpush1.bf16.msra.mxu0 0
    %3191 = vmatprep.subr.bf16.mxu0 0
    %3192 = vmatpush1.bf16.msra.mxu0 0
    %3193 = vmatprep.subr.bf16.mxu0 0
    %3194 = vmatpush1.bf16.msra.mxu0 0
    %3195 = vmatprep.subr.bf16.mxu0 0
    %3196 = vmatpush1.bf16.msra.mxu0 0
    %3197 = vmatprep.subr.bf16.mxu0 0
    %3198 = vmatpush1.bf16.msra.mxu0 0
    %3199 = vmatprep.subr.bf16.mxu0 0
    %3200 = vmatpush1.bf16.msra.mxu0 0
    %3201 = vmatprep.subr.bf16.mxu0 0
    %3202 = vmatpush1.bf16.msra.mxu0 %v3182
    %3203 = vmatprep.subr.bf16.mxu0 0
    %3204 = vmatpush2.bf16.msra.mxu0 0
    %3205 = vmatprep.subr.bf16.mxu0 0
    %3206 = vmatpush2.bf16.msra.mxu0 0
    %3207 = vmatprep.subr.bf16.mxu0 0
    %3208 = vmatpush2.bf16.msra.mxu0 0
    %3209 = vmatprep.subr.bf16.mxu0 0
    %3210 = vmatpush2.bf16.msra.mxu0 0
    %3211 = vmatprep.subr.bf16.mxu0 0
    %3212 = vmatpush2.bf16.msra.mxu0 0
    %3213 = vmatprep.subr.bf16.mxu0 0
    %3214 = vmatpush2.bf16.msra.mxu0 0
    %3215 = vmatprep.subr.bf16.mxu0 0
    %3216 = vmatpush2.bf16.msra.mxu0 0
    %3217 = vmatprep.subr.bf16.mxu0 0
    %3218 = vmatpush2.bf16.msra.mxu0 0
    %3219 = vmatprep.mubr.bf16.mxu0 0
    %3220 = vmatmul.mubr.bf16.gmra.mxu0 %v3185
    %v3221 = vpop.f32.mrf.mxu0
    %v3222 = vadd.f32 0.0, %v3221
    %v3223 = vpop.f32.mrf.mxu0
    %v3224 = vpop.f32.mrf.mxu0
    %v3225 = vadd.f32 0.0, %v3224
    %v3226 = vpop.f32.mrf.mxu0
    %3227 = vdwg.mxu0
    %3228 = vrot.lane.b32.xlu0 %v384, 48
    %v3229 = vpop.permute.xlu0 %3228
    %v3232 = vsel %vm792, %v3174, 0
    %3234 = vmatprep.subr.bf16.mxu0 0
    %3235 = vmatpush1.bf16.msra.mxu0 0
    %3236 = vmatprep.subr.bf16.mxu0 0
    %3237 = vmatpush1.bf16.msra.mxu0 0
    %3238 = vmatprep.subr.bf16.mxu0 0
    %3239 = vmatpush1.bf16.msra.mxu0 0
    %3240 = vmatprep.subr.bf16.mxu0 0
    %3241 = vmatpush1.bf16.msra.mxu0 0
    %3242 = vmatprep.subr.bf16.mxu0 0
    %3243 = vmatpush1.bf16.msra.mxu0 0
    %3244 = vmatprep.subr.bf16.mxu0 0
    %3245 = vmatpush1.bf16.msra.mxu0 0
    %3246 = vmatprep.subr.bf16.mxu0 0
    %3247 = vmatpush1.bf16.msra.mxu0 0
    %3248 = vmatprep.subr.bf16.mxu0 0
    %3249 = vmatpush1.bf16.msra.mxu0 %v3229
    %3250 = vmatprep.subr.bf16.mxu0 0
    %3251 = vmatpush2.bf16.msra.mxu0 0
    %3252 = vmatprep.subr.bf16.mxu0 0
    %3253 = vmatpush2.bf16.msra.mxu0 0
    %3254 = vmatprep.subr.bf16.mxu0 0
    %3255 = vmatpush2.bf16.msra.mxu0 0
    %3256 = vmatprep.subr.bf16.mxu0 0
    %3257 = vmatpush2.bf16.msra.mxu0 0
    %3258 = vmatprep.subr.bf16.mxu0 0
    %3259 = vmatpush2.bf16.msra.mxu0 0
    %3260 = vmatprep.subr.bf16.mxu0 0
    %3261 = vmatpush2.bf16.msra.mxu0 0
    %3262 = vmatprep.subr.bf16.mxu0 0
    %3263 = vmatpush2.bf16.msra.mxu0 0
    %3264 = vmatprep.subr.bf16.mxu0 0
    %3265 = vmatpush2.bf16.msra.mxu0 0
    %3266 = vmatprep.mubr.bf16.mxu0 0
    %3267 = vmatmul.mubr.bf16.gmra.mxu0 %v3232
    %v3268 = vpop.f32.mrf.mxu0
    %v3269 = vadd.f32 0.0, %v3268
    %v3270 = vpop.f32.mrf.mxu0
    %v3271 = vpop.f32.mrf.mxu0
    %v3272 = vadd.f32 0.0, %v3271
    %v3273 = vpop.f32.mrf.mxu0
    %3274 = vdwg.mxu0
    %3275 = vrot.lane.b32.xlu0 %v385, 48
    %v3276 = vpop.permute.xlu0 %3275
    %v3279 = vsel %vm792, %v3175, 0
    %3281 = vmatprep.subr.bf16.mxu0 0
    %3282 = vmatpush1.bf16.msra.mxu0 0
    %3283 = vmatprep.subr.bf16.mxu0 0
    %3284 = vmatpush1.bf16.msra.mxu0 0
    %3285 = vmatprep.subr.bf16.mxu0 0
    %3286 = vmatpush1.bf16.msra.mxu0 0
    %3287 = vmatprep.subr.bf16.mxu0 0
    %3288 = vmatpush1.bf16.msra.mxu0 0
    %3289 = vmatprep.subr.bf16.mxu0 0
    %3290 = vmatpush1.bf16.msra.mxu0 0
    %3291 = vmatprep.subr.bf16.mxu0 0
    %3292 = vmatpush1.bf16.msra.mxu0 0
    %3293 = vmatprep.subr.bf16.mxu0 0
    %3294 = vmatpush1.bf16.msra.mxu0 0
    %3295 = vmatprep.subr.bf16.mxu0 0
    %3296 = vmatpush1.bf16.msra.mxu0 %v3276
    %3297 = vmatprep.subr.bf16.mxu0 0
    %3298 = vmatpush2.bf16.msra.mxu0 0
    %3299 = vmatprep.subr.bf16.mxu0 0
    %3300 = vmatpush2.bf16.msra.mxu0 0
    %3301 = vmatprep.subr.bf16.mxu0 0
    %3302 = vmatpush2.bf16.msra.mxu0 0
    %3303 = vmatprep.subr.bf16.mxu0 0
    %3304 = vmatpush2.bf16.msra.mxu0 0
    %3305 = vmatprep.subr.bf16.mxu0 0
    %3306 = vmatpush2.bf16.msra.mxu0 0
    %3307 = vmatprep.subr.bf16.mxu0 0
    %3308 = vmatpush2.bf16.msra.mxu0 0
    %3309 = vmatprep.subr.bf16.mxu0 0
    %3310 = vmatpush2.bf16.msra.mxu0 0
    %3311 = vmatprep.subr.bf16.mxu0 0
    %3312 = vmatpush2.bf16.msra.mxu0 0
    %3313 = vmatprep.mubr.bf16.mxu0 0
    %3314 = vmatmul.mubr.bf16.gmra.mxu0 %v3279
    %v3315 = vpop.f32.mrf.mxu0
    %v3316 = vadd.f32 0.0, %v3315
    %v3317 = vpop.f32.mrf.mxu0
    %v3318 = vpop.f32.mrf.mxu0
    %v3319 = vadd.f32 0.0, %v3318
    %v3320 = vpop.f32.mrf.mxu0
    %3321 = vdwg.mxu0
    %3322 = vrot.lane.b32.xlu0 %v386, 48
    %v3323 = vpop.permute.xlu0 %3322
    %v3326 = vsel %vm792, %v3176, 0
    %3328 = vmatprep.subr.bf16.mxu0 0
    %3329 = vmatpush1.bf16.msra.mxu0 0
    %3330 = vmatprep.subr.bf16.mxu0 0
    %3331 = vmatpush1.bf16.msra.mxu0 0
    %3332 = vmatprep.subr.bf16.mxu0 0
    %3333 = vmatpush1.bf16.msra.mxu0 0
    %3334 = vmatprep.subr.bf16.mxu0 0
    %3335 = vmatpush1.bf16.msra.mxu0 0
    %3336 = vmatprep.subr.bf16.mxu0 0
    %3337 = vmatpush1.bf16.msra.mxu0 0
    %3338 = vmatprep.subr.bf16.mxu0 0
    %3339 = vmatpush1.bf16.msra.mxu0 0
    %3340 = vmatprep.subr.bf16.mxu0 0
    %3341 = vmatpush1.bf16.msra.mxu0 0
    %3342 = vmatprep.subr.bf16.mxu0 0
    %3343 = vmatpush1.bf16.msra.mxu0 %v3323
    %3344 = vmatprep.subr.bf16.mxu0 0
    %3345 = vmatpush2.bf16.msra.mxu0 0
    %3346 = vmatprep.subr.bf16.mxu0 0
    %3347 = vmatpush2.bf16.msra.mxu0 0
    %3348 = vmatprep.subr.bf16.mxu0 0
    %3349 = vmatpush2.bf16.msra.mxu0 0
    %3350 = vmatprep.subr.bf16.mxu0 0
    %3351 = vmatpush2.bf16.msra.mxu0 0
    %3352 = vmatprep.subr.bf16.mxu0 0
    %3353 = vmatpush2.bf16.msra.mxu0 0
    %3354 = vmatprep.subr.bf16.mxu0 0
    %3355 = vmatpush2.bf16.msra.mxu0 0
    %3356 = vmatprep.subr.bf16.mxu0 0
    %3357 = vmatpush2.bf16.msra.mxu0 0
    %3358 = vmatprep.subr.bf16.mxu0 0
    %3359 = vmatpush2.bf16.msra.mxu0 0
    %3360 = vmatprep.mubr.bf16.mxu0 0
    %3361 = vmatmul.mubr.bf16.gmra.mxu0 %v3326
    %v3362 = vpop.f32.mrf.mxu0
    %v3363 = vadd.f32 0.0, %v3362
    %v3364 = vpop.f32.mrf.mxu0
    %v3365 = vpop.f32.mrf.mxu0
    %v3366 = vadd.f32 0.0, %v3365
    %v3367 = vpop.f32.mrf.mxu0
    %3368 = vdwg.mxu0
    %3369 = vrot.lane.b32.xlu0 %v387, 48
    %v3370 = vpop.permute.xlu0 %3369
    %v3373 = vsel %vm792, %v3177, 0
    %3375 = vmatprep.subr.bf16.mxu0 0
    %3376 = vmatpush1.bf16.msra.mxu0 0
    %3377 = vmatprep.subr.bf16.mxu0 0
    %3378 = vmatpush1.bf16.msra.mxu0 0
    %3379 = vmatprep.subr.bf16.mxu0 0
    %3380 = vmatpush1.bf16.msra.mxu0 0
    %3381 = vmatprep.subr.bf16.mxu0 0
    %3382 = vmatpush1.bf16.msra.mxu0 0
    %3383 = vmatprep.subr.bf16.mxu0 0
    %3384 = vmatpush1.bf16.msra.mxu0 0
    %3385 = vmatprep.subr.bf16.mxu0 0
    %3386 = vmatpush1.bf16.msra.mxu0 0
    %3387 = vmatprep.subr.bf16.mxu0 0
    %3388 = vmatpush1.bf16.msra.mxu0 0
    %3389 = vmatprep.subr.bf16.mxu0 0
    %3390 = vmatpush1.bf16.msra.mxu0 %v3370
    %3391 = vmatprep.subr.bf16.mxu0 0
    %3392 = vmatpush2.bf16.msra.mxu0 0
    %3393 = vmatprep.subr.bf16.mxu0 0
    %3394 = vmatpush2.bf16.msra.mxu0 0
    %3395 = vmatprep.subr.bf16.mxu0 0
    %3396 = vmatpush2.bf16.msra.mxu0 0
    %3397 = vmatprep.subr.bf16.mxu0 0
    %3398 = vmatpush2.bf16.msra.mxu0 0
    %3399 = vmatprep.subr.bf16.mxu0 0
    %3400 = vmatpush2.bf16.msra.mxu0 0
    %3401 = vmatprep.subr.bf16.mxu0 0
    %3402 = vmatpush2.bf16.msra.mxu0 0
    %3403 = vmatprep.subr.bf16.mxu0 0
    %3404 = vmatpush2.bf16.msra.mxu0 0
    %3405 = vmatprep.subr.bf16.mxu0 0
    %3406 = vmatpush2.bf16.msra.mxu0 0
    %3407 = vmatprep.mubr.bf16.mxu0 0
    %3408 = vmatmul.mubr.bf16.gmra.mxu0 %v3373
    %v3409 = vpop.f32.mrf.mxu0
    %v3410 = vadd.f32 0.0, %v3409
    %v3411 = vpop.f32.mrf.mxu0
    %v3412 = vpop.f32.mrf.mxu0
    %v3413 = vadd.f32 0.0, %v3412
    %v3414 = vpop.f32.mrf.mxu0
    %3415 = vdwg.mxu0
    %3416 = vrot.lane.b32.xlu0 %v388, 48
    %v3417 = vpop.permute.xlu0 %3416
    %v3420 = vsel %vm792, %v3178, 0
    %3422 = vmatprep.subr.bf16.mxu0 0
    %3423 = vmatpush1.bf16.msra.mxu0 0
    %3424 = vmatprep.subr.bf16.mxu0 0
    %3425 = vmatpush1.bf16.msra.mxu0 0
    %3426 = vmatprep.subr.bf16.mxu0 0
    %3427 = vmatpush1.bf16.msra.mxu0 0
    %3428 = vmatprep.subr.bf16.mxu0 0
    %3429 = vmatpush1.bf16.msra.mxu0 0
    %3430 = vmatprep.subr.bf16.mxu0 0
    %3431 = vmatpush1.bf16.msra.mxu0 0
    %3432 = vmatprep.subr.bf16.mxu0 0
    %3433 = vmatpush1.bf16.msra.mxu0 0
    %3434 = vmatprep.subr.bf16.mxu0 0
    %3435 = vmatpush1.bf16.msra.mxu0 0
    %3436 = vmatprep.subr.bf16.mxu0 0
    %3437 = vmatpush1.bf16.msra.mxu0 %v3417
    %3438 = vmatprep.subr.bf16.mxu0 0
    %3439 = vmatpush2.bf16.msra.mxu0 0
    %3440 = vmatprep.subr.bf16.mxu0 0
    %3441 = vmatpush2.bf16.msra.mxu0 0
    %3442 = vmatprep.subr.bf16.mxu0 0
    %3443 = vmatpush2.bf16.msra.mxu0 0
    %3444 = vmatprep.subr.bf16.mxu0 0
    %3445 = vmatpush2.bf16.msra.mxu0 0
    %3446 = vmatprep.subr.bf16.mxu0 0
    %3447 = vmatpush2.bf16.msra.mxu0 0
    %3448 = vmatprep.subr.bf16.mxu0 0
    %3449 = vmatpush2.bf16.msra.mxu0 0
    %3450 = vmatprep.subr.bf16.mxu0 0
    %3451 = vmatpush2.bf16.msra.mxu0 0
    %3452 = vmatprep.subr.bf16.mxu0 0
    %3453 = vmatpush2.bf16.msra.mxu0 0
    %3454 = vmatprep.mubr.bf16.mxu0 0
    %3455 = vmatmul.mubr.bf16.gmra.mxu0 %v3420
    %v3456 = vpop.f32.mrf.mxu0
    %v3457 = vadd.f32 0.0, %v3456
    %v3458 = vpop.f32.mrf.mxu0
    %v3459 = vpop.f32.mrf.mxu0
    %v3460 = vadd.f32 0.0, %v3459
    %v3461 = vpop.f32.mrf.mxu0
    %3462 = vdwg.mxu0
    %3463 = vrot.lane.b32.xlu0 %v389, 48
    %v3464 = vpop.permute.xlu0 %3463
    %v3467 = vsel %vm792, %v3179, 0
    %3469 = vmatprep.subr.bf16.mxu0 0
    %3470 = vmatpush1.bf16.msra.mxu0 0
    %3471 = vmatprep.subr.bf16.mxu0 0
    %3472 = vmatpush1.bf16.msra.mxu0 0
    %3473 = vmatprep.subr.bf16.mxu0 0
    %3474 = vmatpush1.bf16.msra.mxu0 0
    %3475 = vmatprep.subr.bf16.mxu0 0
    %3476 = vmatpush1.bf16.msra.mxu0 0
    %3477 = vmatprep.subr.bf16.mxu0 0
    %3478 = vmatpush1.bf16.msra.mxu0 0
    %3479 = vmatprep.subr.bf16.mxu0 0
    %3480 = vmatpush1.bf16.msra.mxu0 0
    %3481 = vmatprep.subr.bf16.mxu0 0
    %3482 = vmatpush1.bf16.msra.mxu0 0
    %3483 = vmatprep.subr.bf16.mxu0 0
    %3484 = vmatpush1.bf16.msra.mxu0 %v3464
    %3485 = vmatprep.subr.bf16.mxu0 0
    %3486 = vmatpush2.bf16.msra.mxu0 0
    %3487 = vmatprep.subr.bf16.mxu0 0
    %3488 = vmatpush2.bf16.msra.mxu0 0
    %3489 = vmatprep.subr.bf16.mxu0 0
    %3490 = vmatpush2.bf16.msra.mxu0 0
    %3491 = vmatprep.subr.bf16.mxu0 0
    %3492 = vmatpush2.bf16.msra.mxu0 0
    %3493 = vmatprep.subr.bf16.mxu0 0
    %3494 = vmatpush2.bf16.msra.mxu0 0
    %3495 = vmatprep.subr.bf16.mxu0 0
    %3496 = vmatpush2.bf16.msra.mxu0 0
    %3497 = vmatprep.subr.bf16.mxu0 0
    %3498 = vmatpush2.bf16.msra.mxu0 0
    %3499 = vmatprep.subr.bf16.mxu0 0
    %3500 = vmatpush2.bf16.msra.mxu0 0
    %3501 = vmatprep.mubr.bf16.mxu0 0
    %3502 = vmatmul.mubr.bf16.gmra.mxu0 %v3467
    %v3503 = vpop.f32.mrf.mxu0
    %v3504 = vadd.f32 0.0, %v3503
    %v3505 = vpop.f32.mrf.mxu0
    %v3506 = vpop.f32.mrf.mxu0
    %v3507 = vadd.f32 0.0, %v3506
    %v3508 = vpop.f32.mrf.mxu0
    %3509 = vdwg.mxu0
    %3510 = vrot.lane.b32.xlu0 %v390, 48
    %v3511 = vpop.permute.xlu0 %3510
    %v3514 = vsel %vm792, %v3180, 0
    %3516 = vmatprep.subr.bf16.mxu0 0
    %3517 = vmatpush1.bf16.msra.mxu0 0
    %3518 = vmatprep.subr.bf16.mxu0 0
    %3519 = vmatpush1.bf16.msra.mxu0 0
    %3520 = vmatprep.subr.bf16.mxu0 0
    %3521 = vmatpush1.bf16.msra.mxu0 0
    %3522 = vmatprep.subr.bf16.mxu0 0
    %3523 = vmatpush1.bf16.msra.mxu0 0
    %3524 = vmatprep.subr.bf16.mxu0 0
    %3525 = vmatpush1.bf16.msra.mxu0 0
    %3526 = vmatprep.subr.bf16.mxu0 0
    %3527 = vmatpush1.bf16.msra.mxu0 0
    %3528 = vmatprep.subr.bf16.mxu0 0
    %3529 = vmatpush1.bf16.msra.mxu0 0
    %3530 = vmatprep.subr.bf16.mxu0 0
    %3531 = vmatpush1.bf16.msra.mxu0 %v3511
    %3532 = vmatprep.subr.bf16.mxu0 0
    %3533 = vmatpush2.bf16.msra.mxu0 0
    %3534 = vmatprep.subr.bf16.mxu0 0
    %3535 = vmatpush2.bf16.msra.mxu0 0
    %3536 = vmatprep.subr.bf16.mxu0 0
    %3537 = vmatpush2.bf16.msra.mxu0 0
    %3538 = vmatprep.subr.bf16.mxu0 0
    %3539 = vmatpush2.bf16.msra.mxu0 0
    %3540 = vmatprep.subr.bf16.mxu0 0
    %3541 = vmatpush2.bf16.msra.mxu0 0
    %3542 = vmatprep.subr.bf16.mxu0 0
    %3543 = vmatpush2.bf16.msra.mxu0 0
    %3544 = vmatprep.subr.bf16.mxu0 0
    %3545 = vmatpush2.bf16.msra.mxu0 0
    %3546 = vmatprep.subr.bf16.mxu0 0
    %3547 = vmatpush2.bf16.msra.mxu0 0
    %3548 = vmatprep.mubr.bf16.mxu0 0
    %3549 = vmatmul.mubr.bf16.gmra.mxu0 %v3514
    %v3550 = vpop.f32.mrf.mxu0
    %v3551 = vadd.f32 0.0, %v3550
    %v3552 = vpop.f32.mrf.mxu0
    %v3553 = vpop.f32.mrf.mxu0
    %v3554 = vadd.f32 0.0, %v3553
    %v3555 = vpop.f32.mrf.mxu0
    %3556 = vdwg.mxu0
    %v3557 = vpack.c.bf16 %v3225, %v3222
    %v3558 = vpack.c.bf16 %v3272, %v3269
    %v3559 = vpack.c.bf16 %v3319, %v3316
    %v3560 = vpack.c.bf16 %v3366, %v3363
    %v3561 = vpack.c.bf16 %v3413, %v3410
    %v3562 = vpack.c.bf16 %v3460, %v3457
    %v3563 = vpack.c.bf16 %v3507, %v3504
    %v3564 = vpack.c.bf16 %v3554, %v3551
    %s3565 = scalar_lea.vmem [#allocation7], 8
    %v3566 = vld [vmem:[%s3565] sm:$0xf]
    %v3568 = vsel %vm394, %v3557, 0
    %v3571 = vsel %vm394, %v3558, 0
    %v3574 = vsel %vm394, %v3559, 0
    %v3577 = vsel %vm394, %v3560, 0
    %v3580 = vsel %vm394, %v3561, 0
    %v3583 = vsel %vm394, %v3562, 0
    %v3586 = vsel %vm394, %v3563, 0
    %v3589 = vsel %vm394, %v3564, 0
    %v3592 = vsel %vm2364, %v3566, 0
    %3594 = vmatprep.subr.bf16.mxu0 0
    %3595 = vmatpush1.bf16.msra.mxu0 0
    %3596 = vmatprep.subr.bf16.mxu0 0
    %3597 = vmatpush1.bf16.msra.mxu0 0
    %3598 = vmatprep.subr.bf16.mxu0 0
    %3599 = vmatpush1.bf16.msra.mxu0 0
    %3600 = vmatprep.subr.bf16.mxu0 0
    %3601 = vmatpush1.bf16.msra.mxu0 0
    %3602 = vmatprep.subr.bf16.mxu0 0
    %3603 = vmatpush1.bf16.msra.mxu0 0
    %3604 = vmatprep.subr.bf16.mxu0 0
    %3605 = vmatpush1.bf16.msra.mxu0 0
    %3606 = vmatprep.subr.bf16.mxu0 0
    %3607 = vmatpush1.bf16.msra.mxu0 0
    %3608 = vmatprep.subr.bf16.mxu0 0
    %3609 = vmatpush1.bf16.msra.mxu0 %v3592
    %3610 = vmatprep.subr.bf16.mxu0 0
    %3611 = vmatpush2.bf16.msra.mxu0 0
    %3612 = vmatprep.subr.bf16.mxu0 0
    %3613 = vmatpush2.bf16.msra.mxu0 0
    %3614 = vmatprep.subr.bf16.mxu0 0
    %3615 = vmatpush2.bf16.msra.mxu0 0
    %3616 = vmatprep.subr.bf16.mxu0 0
    %3617 = vmatpush2.bf16.msra.mxu0 0
    %3618 = vmatprep.subr.bf16.mxu0 0
    %3619 = vmatpush2.bf16.msra.mxu0 0
    %3620 = vmatprep.subr.bf16.mxu0 0
    %3621 = vmatpush2.bf16.msra.mxu0 0
    %3622 = vmatprep.subr.bf16.mxu0 0
    %3623 = vmatpush2.bf16.msra.mxu0 0
    %3624 = vmatprep.subr.bf16.mxu0 0
    %3625 = vmatpush2.bf16.msra.mxu0 0
    %3626 = vmatprep.mubr.bf16.mxu0 0
    %3627 = vmatmul.mubr.bf16.gmra.mxu0 %v3568
    %v3628 = vpop.f32.mrf.mxu0
    %v3629 = vadd.f32 0.0, %v3628
    %v3630 = vpop.f32.mrf.mxu0
    %v3631 = vpop.f32.mrf.mxu0
    %v3632 = vadd.f32 0.0, %v3631
    %v3633 = vpop.f32.mrf.mxu0
    %3634 = vmatprep.mubr.bf16.mxu0 0
    %3635 = vmatmul.mubr.bf16.gmra.mxu0 %v3571
    %v3636 = vpop.f32.mrf.mxu0
    %v3637 = vadd.f32 0.0, %v3636
    %v3638 = vpop.f32.mrf.mxu0
    %v3639 = vpop.f32.mrf.mxu0
    %v3640 = vadd.f32 0.0, %v3639
    %v3641 = vpop.f32.mrf.mxu0
    %3642 = vmatprep.mubr.bf16.mxu0 0
    %3643 = vmatmul.mubr.bf16.gmra.mxu0 %v3574
    %v3644 = vpop.f32.mrf.mxu0
    %v3645 = vadd.f32 0.0, %v3644
    %v3646 = vpop.f32.mrf.mxu0
    %v3647 = vpop.f32.mrf.mxu0
    %v3648 = vadd.f32 0.0, %v3647
    %v3649 = vpop.f32.mrf.mxu0
    %3650 = vmatprep.mubr.bf16.mxu0 0
    %3651 = vmatmul.mubr.bf16.gmra.mxu0 %v3577
    %v3652 = vpop.f32.mrf.mxu0
    %v3653 = vadd.f32 0.0, %v3652
    %v3654 = vpop.f32.mrf.mxu0
    %v3655 = vpop.f32.mrf.mxu0
    %v3656 = vadd.f32 0.0, %v3655
    %v3657 = vpop.f32.mrf.mxu0
    %3658 = vmatprep.mubr.bf16.mxu0 0
    %3659 = vmatmul.mubr.bf16.gmra.mxu0 %v3580
    %v3660 = vpop.f32.mrf.mxu0
    %v3661 = vadd.f32 0.0, %v3660
    %v3662 = vpop.f32.mrf.mxu0
    %v3663 = vpop.f32.mrf.mxu0
    %v3664 = vadd.f32 0.0, %v3663
    %v3665 = vpop.f32.mrf.mxu0
    %3666 = vmatprep.mubr.bf16.mxu0 0
    %3667 = vmatmul.mubr.bf16.gmra.mxu0 %v3583
    %v3668 = vpop.f32.mrf.mxu0
    %v3669 = vadd.f32 0.0, %v3668
    %v3670 = vpop.f32.mrf.mxu0
    %v3671 = vpop.f32.mrf.mxu0
    %v3672 = vadd.f32 0.0, %v3671
    %v3673 = vpop.f32.mrf.mxu0
    %3674 = vmatprep.mubr.bf16.mxu0 0
    %3675 = vmatmul.mubr.bf16.gmra.mxu0 %v3586
    %v3676 = vpop.f32.mrf.mxu0
    %v3677 = vadd.f32 0.0, %v3676
    %v3678 = vpop.f32.mrf.mxu0
    %v3679 = vpop.f32.mrf.mxu0
    %v3680 = vadd.f32 0.0, %v3679
    %v3681 = vpop.f32.mrf.mxu0
    %3682 = vmatprep.mubr.bf16.mxu0 0
    %3683 = vmatmul.mubr.bf16.gmra.mxu0 %v3589
    %v3684 = vpop.f32.mrf.mxu0
    %v3685 = vadd.f32 0.0, %v3684
    %v3686 = vpop.f32.mrf.mxu0
    %v3687 = vpop.f32.mrf.mxu0
    %v3688 = vadd.f32 0.0, %v3687
    %v3689 = vpop.f32.mrf.mxu0
    %3690 = vdwg.mxu0
    %v3691 = vadd.f32 %v2527, %v3629
    %v3692 = vadd.f32 %v2530, %v3632
    %v3693 = vadd.f32 %v2535, %v3637
    %v3694 = vadd.f32 %v2538, %v3640
    %v3695 = vadd.f32 %v2543, %v3645
    %v3696 = vadd.f32 %v2546, %v3648
    %v3697 = vadd.f32 %v2551, %v3653
    %v3698 = vadd.f32 %v2554, %v3656
    %v3699 = vadd.f32 %v2559, %v3661
    %v3700 = vadd.f32 %v2562, %v3664
    %v3701 = vadd.f32 %v2567, %v3669
    %v3702 = vadd.f32 %v2570, %v3672
    %v3703 = vadd.f32 %v2575, %v3677
    %v3704 = vadd.f32 %v2578, %v3680
    %v3705 = vadd.f32 %v2583, %v3685
    %v3706 = vadd.f32 %v2586, %v3688
    %3707 = vrot.lane.b32.xlu0 %v383, 104
    %v3708 = vpop.permute.xlu0 %3707
    %3709 = vrot.lane.b32.xlu0 %v383, 72
    %v3710 = vpop.permute.xlu0 %3709
    %v3712 = vsel %vm394, %v3708, 0
    %v3715 = vsel %vm394, %v3710, 0
    %3717 = vmatprep.subr.bf16.mxu0 0
    %3718 = vmatpush1.bf16.xpose.msra.mxu0 0
    %3719 = vmatprep.subr.bf16.mxu0 0
    %3720 = vmatpush1.bf16.xpose.msra.mxu0 0
    %3721 = vmatprep.subr.bf16.mxu0 0
    %3722 = vmatpush1.bf16.xpose.msra.mxu0 0
    %3723 = vmatprep.subr.bf16.mxu0 0
    %3724 = vmatpush1.bf16.xpose.msra.mxu0 0
    %3725 = vmatprep.subr.bf16.mxu0 0
    %3726 = vmatpush1.bf16.xpose.msra.mxu0 0
    %3727 = vmatprep.subr.bf16.mxu0 0
    %3728 = vmatpush1.bf16.xpose.msra.mxu0 0
    %3729 = vmatprep.subr.bf16.mxu0 0
    %3730 = vmatpush1.bf16.xpose.msra.mxu0 0
    %3731 = vmatprep.subr.bf16.mxu0 0
    %3732 = vmatpush1.bf16.xpose.msra.mxu0 %v3715
    %3733 = vmatprep.subr.bf16.mxu0 0
    %3734 = vmatpush2.bf16.xpose.msra.mxu0 0
    %3735 = vmatprep.subr.bf16.mxu0 0
    %3736 = vmatpush2.bf16.xpose.msra.mxu0 0
    %3737 = vmatprep.subr.bf16.mxu0 0
    %3738 = vmatpush2.bf16.xpose.msra.mxu0 0
    %3739 = vmatprep.subr.bf16.mxu0 0
    %3740 = vmatpush2.bf16.xpose.msra.mxu0 0
    %3741 = vmatprep.subr.bf16.mxu0 0
    %3742 = vmatpush2.bf16.xpose.msra.mxu0 0
    %3743 = vmatprep.subr.bf16.mxu0 0
    %3744 = vmatpush2.bf16.xpose.msra.mxu0 0
    %3745 = vmatprep.subr.bf16.mxu0 0
    %3746 = vmatpush2.bf16.xpose.msra.mxu0 0
    %3747 = vmatprep.subr.bf16.mxu0 0
    %3748 = vmatpush2.bf16.xpose.msra.mxu0 0
    %3749 = vmatprep.mubr.bf16.mxu0 0
    %3750 = vmatmul.mubr.bf16.gmra.mxu0 %v3712
    %v3751 = vpop.f32.mrf.mxu0
    %v3752 = vadd.f32 0.0, %v3751
    %v3753 = vpop.f32.mrf.mxu0
    %v3754 = vpop.f32.mrf.mxu0
    %v3755 = vadd.f32 0.0, %v3754
    %v3756 = vpop.f32.mrf.mxu0
    %3757 = vdwg.mxu0
    %3758 = vrot.lane.b32.xlu0 %v384, 104
    %v3759 = vpop.permute.xlu0 %3758
    %3760 = vrot.lane.b32.xlu0 %v384, 72
    %v3761 = vpop.permute.xlu0 %3760
    %v3763 = vsel %vm394, %v3759, 0
    %v3766 = vsel %vm394, %v3761, 0
    %3768 = vmatprep.subr.bf16.mxu0 0
    %3769 = vmatpush1.bf16.xpose.msra.mxu0 0
    %3770 = vmatprep.subr.bf16.mxu0 0
    %3771 = vmatpush1.bf16.xpose.msra.mxu0 0
    %3772 = vmatprep.subr.bf16.mxu0 0
    %3773 = vmatpush1.bf16.xpose.msra.mxu0 0
    %3774 = vmatprep.subr.bf16.mxu0 0
    %3775 = vmatpush1.bf16.xpose.msra.mxu0 0
    %3776 = vmatprep.subr.bf16.mxu0 0
    %3777 = vmatpush1.bf16.xpose.msra.mxu0 0
    %3778 = vmatprep.subr.bf16.mxu0 0
    %3779 = vmatpush1.bf16.xpose.msra.mxu0 0
    %3780 = vmatprep.subr.bf16.mxu0 0
    %3781 = vmatpush1.bf16.xpose.msra.mxu0 0
    %3782 = vmatprep.subr.bf16.mxu0 0
    %3783 = vmatpush1.bf16.xpose.msra.mxu0 %v3766
    %3784 = vmatprep.subr.bf16.mxu0 0
    %3785 = vmatpush2.bf16.xpose.msra.mxu0 0
    %3786 = vmatprep.subr.bf16.mxu0 0
    %3787 = vmatpush2.bf16.xpose.msra.mxu0 0
    %3788 = vmatprep.subr.bf16.mxu0 0
    %3789 = vmatpush2.bf16.xpose.msra.mxu0 0
    %3790 = vmatprep.subr.bf16.mxu0 0
    %3791 = vmatpush2.bf16.xpose.msra.mxu0 0
    %3792 = vmatprep.subr.bf16.mxu0 0
    %3793 = vmatpush2.bf16.xpose.msra.mxu0 0
    %3794 = vmatprep.subr.bf16.mxu0 0
    %3795 = vmatpush2.bf16.xpose.msra.mxu0 0
    %3796 = vmatprep.subr.bf16.mxu0 0
    %3797 = vmatpush2.bf16.xpose.msra.mxu0 0
    %3798 = vmatprep.subr.bf16.mxu0 0
    %3799 = vmatpush2.bf16.xpose.msra.mxu0 0
    %3800 = vmatprep.mubr.bf16.mxu0 0
    %3801 = vmatmul.mubr.bf16.gmra.mxu0 %v3763
    %v3802 = vpop.f32.mrf.mxu0
    %v3803 = vadd.f32 0.0, %v3802
    %v3804 = vpop.f32.mrf.mxu0
    %v3805 = vpop.f32.mrf.mxu0
    %v3806 = vadd.f32 0.0, %v3805
    %v3807 = vpop.f32.mrf.mxu0
    %3808 = vdwg.mxu0
    %3809 = vrot.lane.b32.xlu0 %v385, 104
    %v3810 = vpop.permute.xlu0 %3809
    %3811 = vrot.lane.b32.xlu0 %v385, 72
    %v3812 = vpop.permute.xlu0 %3811
    %v3814 = vsel %vm394, %v3810, 0
    %v3817 = vsel %vm394, %v3812, 0
    %3819 = vmatprep.subr.bf16.mxu0 0
    %3820 = vmatpush1.bf16.xpose.msra.mxu0 0
    %3821 = vmatprep.subr.bf16.mxu0 0
    %3822 = vmatpush1.bf16.xpose.msra.mxu0 0
    %3823 = vmatprep.subr.bf16.mxu0 0
    %3824 = vmatpush1.bf16.xpose.msra.mxu0 0
    %3825 = vmatprep.subr.bf16.mxu0 0
    %3826 = vmatpush1.bf16.xpose.msra.mxu0 0
    %3827 = vmatprep.subr.bf16.mxu0 0
    %3828 = vmatpush1.bf16.xpose.msra.mxu0 0
    %3829 = vmatprep.subr.bf16.mxu0 0
    %3830 = vmatpush1.bf16.xpose.msra.mxu0 0
    %3831 = vmatprep.subr.bf16.mxu0 0
    %3832 = vmatpush1.bf16.xpose.msra.mxu0 0
    %3833 = vmatprep.subr.bf16.mxu0 0
    %3834 = vmatpush1.bf16.xpose.msra.mxu0 %v3817
    %3835 = vmatprep.subr.bf16.mxu0 0
    %3836 = vmatpush2.bf16.xpose.msra.mxu0 0
    %3837 = vmatprep.subr.bf16.mxu0 0
    %3838 = vmatpush2.bf16.xpose.msra.mxu0 0
    %3839 = vmatprep.subr.bf16.mxu0 0
    %3840 = vmatpush2.bf16.xpose.msra.mxu0 0
    %3841 = vmatprep.subr.bf16.mxu0 0
    %3842 = vmatpush2.bf16.xpose.msra.mxu0 0
    %3843 = vmatprep.subr.bf16.mxu0 0
    %3844 = vmatpush2.bf16.xpose.msra.mxu0 0
    %3845 = vmatprep.subr.bf16.mxu0 0
    %3846 = vmatpush2.bf16.xpose.msra.mxu0 0
    %3847 = vmatprep.subr.bf16.mxu0 0
    %3848 = vmatpush2.bf16.xpose.msra.mxu0 0
    %3849 = vmatprep.subr.bf16.mxu0 0
    %3850 = vmatpush2.bf16.xpose.msra.mxu0 0
    %3851 = vmatprep.mubr.bf16.mxu0 0
    %3852 = vmatmul.mubr.bf16.gmra.mxu0 %v3814
    %v3853 = vpop.f32.mrf.mxu0
    %v3854 = vadd.f32 0.0, %v3853
    %v3855 = vpop.f32.mrf.mxu0
    %v3856 = vpop.f32.mrf.mxu0
    %v3857 = vadd.f32 0.0, %v3856
    %v3858 = vpop.f32.mrf.mxu0
    %3859 = vdwg.mxu0
    %3860 = vrot.lane.b32.xlu0 %v386, 104
    %v3861 = vpop.permute.xlu0 %3860
    %3862 = vrot.lane.b32.xlu0 %v386, 72
    %v3863 = vpop.permute.xlu0 %3862
    %v3865 = vsel %vm394, %v3861, 0
    %v3868 = vsel %vm394, %v3863, 0
    %3870 = vmatprep.subr.bf16.mxu0 0
    %3871 = vmatpush1.bf16.xpose.msra.mxu0 0
    %3872 = vmatprep.subr.bf16.mxu0 0
    %3873 = vmatpush1.bf16.xpose.msra.mxu0 0
    %3874 = vmatprep.subr.bf16.mxu0 0
    %3875 = vmatpush1.bf16.xpose.msra.mxu0 0
    %3876 = vmatprep.subr.bf16.mxu0 0
    %3877 = vmatpush1.bf16.xpose.msra.mxu0 0
    %3878 = vmatprep.subr.bf16.mxu0 0
    %3879 = vmatpush1.bf16.xpose.msra.mxu0 0
    %3880 = vmatprep.subr.bf16.mxu0 0
    %3881 = vmatpush1.bf16.xpose.msra.mxu0 0
    %3882 = vmatprep.subr.bf16.mxu0 0
    %3883 = vmatpush1.bf16.xpose.msra.mxu0 0
    %3884 = vmatprep.subr.bf16.mxu0 0
    %3885 = vmatpush1.bf16.xpose.msra.mxu0 %v3868
    %3886 = vmatprep.subr.bf16.mxu0 0
    %3887 = vmatpush2.bf16.xpose.msra.mxu0 0
    %3888 = vmatprep.subr.bf16.mxu0 0
    %3889 = vmatpush2.bf16.xpose.msra.mxu0 0
    %3890 = vmatprep.subr.bf16.mxu0 0
    %3891 = vmatpush2.bf16.xpose.msra.mxu0 0
    %3892 = vmatprep.subr.bf16.mxu0 0
    %3893 = vmatpush2.bf16.xpose.msra.mxu0 0
    %3894 = vmatprep.subr.bf16.mxu0 0
    %3895 = vmatpush2.bf16.xpose.msra.mxu0 0
    %3896 = vmatprep.subr.bf16.mxu0 0
    %3897 = vmatpush2.bf16.xpose.msra.mxu0 0
    %3898 = vmatprep.subr.bf16.mxu0 0
    %3899 = vmatpush2.bf16.xpose.msra.mxu0 0
    %3900 = vmatprep.subr.bf16.mxu0 0
    %3901 = vmatpush2.bf16.xpose.msra.mxu0 0
    %3902 = vmatprep.mubr.bf16.mxu0 0
    %3903 = vmatmul.mubr.bf16.gmra.mxu0 %v3865
    %v3904 = vpop.f32.mrf.mxu0
    %v3905 = vadd.f32 0.0, %v3904
    %v3906 = vpop.f32.mrf.mxu0
    %v3907 = vpop.f32.mrf.mxu0
    %v3908 = vadd.f32 0.0, %v3907
    %v3909 = vpop.f32.mrf.mxu0
    %3910 = vdwg.mxu0
    %3911 = vrot.lane.b32.xlu0 %v387, 104
    %v3912 = vpop.permute.xlu0 %3911
    %3913 = vrot.lane.b32.xlu0 %v387, 72
    %v3914 = vpop.permute.xlu0 %3913
    %v3916 = vsel %vm394, %v3912, 0
    %v3919 = vsel %vm394, %v3914, 0
    %3921 = vmatprep.subr.bf16.mxu0 0
    %3922 = vmatpush1.bf16.xpose.msra.mxu0 0
    %3923 = vmatprep.subr.bf16.mxu0 0
    %3924 = vmatpush1.bf16.xpose.msra.mxu0 0
    %3925 = vmatprep.subr.bf16.mxu0 0
    %3926 = vmatpush1.bf16.xpose.msra.mxu0 0
    %3927 = vmatprep.subr.bf16.mxu0 0
    %3928 = vmatpush1.bf16.xpose.msra.mxu0 0
    %3929 = vmatprep.subr.bf16.mxu0 0
    %3930 = vmatpush1.bf16.xpose.msra.mxu0 0
    %3931 = vmatprep.subr.bf16.mxu0 0
    %3932 = vmatpush1.bf16.xpose.msra.mxu0 0
    %3933 = vmatprep.subr.bf16.mxu0 0
    %3934 = vmatpush1.bf16.xpose.msra.mxu0 0
    %3935 = vmatprep.subr.bf16.mxu0 0
    %3936 = vmatpush1.bf16.xpose.msra.mxu0 %v3919
    %3937 = vmatprep.subr.bf16.mxu0 0
    %3938 = vmatpush2.bf16.xpose.msra.mxu0 0
    %3939 = vmatprep.subr.bf16.mxu0 0
    %3940 = vmatpush2.bf16.xpose.msra.mxu0 0
    %3941 = vmatprep.subr.bf16.mxu0 0
    %3942 = vmatpush2.bf16.xpose.msra.mxu0 0
    %3943 = vmatprep.subr.bf16.mxu0 0
    %3944 = vmatpush2.bf16.xpose.msra.mxu0 0
    %3945 = vmatprep.subr.bf16.mxu0 0
    %3946 = vmatpush2.bf16.xpose.msra.mxu0 0
    %3947 = vmatprep.subr.bf16.mxu0 0
    %3948 = vmatpush2.bf16.xpose.msra.mxu0 0
    %3949 = vmatprep.subr.bf16.mxu0 0
    %3950 = vmatpush2.bf16.xpose.msra.mxu0 0
    %3951 = vmatprep.subr.bf16.mxu0 0
    %3952 = vmatpush2.bf16.xpose.msra.mxu0 0
    %3953 = vmatprep.mubr.bf16.mxu0 0
    %3954 = vmatmul.mubr.bf16.gmra.mxu0 %v3916
    %v3955 = vpop.f32.mrf.mxu0
    %v3956 = vadd.f32 0.0, %v3955
    %v3957 = vpop.f32.mrf.mxu0
    %v3958 = vpop.f32.mrf.mxu0
    %v3959 = vadd.f32 0.0, %v3958
    %v3960 = vpop.f32.mrf.mxu0
    %3961 = vdwg.mxu0
    %3962 = vrot.lane.b32.xlu0 %v388, 104
    %v3963 = vpop.permute.xlu0 %3962
    %3964 = vrot.lane.b32.xlu0 %v388, 72
    %v3965 = vpop.permute.xlu0 %3964
    %v3967 = vsel %vm394, %v3963, 0
    %v3970 = vsel %vm394, %v3965, 0
    %3972 = vmatprep.subr.bf16.mxu0 0
    %3973 = vmatpush1.bf16.xpose.msra.mxu0 0
    %3974 = vmatprep.subr.bf16.mxu0 0
    %3975 = vmatpush1.bf16.xpose.msra.mxu0 0
    %3976 = vmatprep.subr.bf16.mxu0 0
    %3977 = vmatpush1.bf16.xpose.msra.mxu0 0
    %3978 = vmatprep.subr.bf16.mxu0 0
    %3979 = vmatpush1.bf16.xpose.msra.mxu0 0
    %3980 = vmatprep.subr.bf16.mxu0 0
    %3981 = vmatpush1.bf16.xpose.msra.mxu0 0
    %3982 = vmatprep.subr.bf16.mxu0 0
    %3983 = vmatpush1.bf16.xpose.msra.mxu0 0
    %3984 = vmatprep.subr.bf16.mxu0 0
    %3985 = vmatpush1.bf16.xpose.msra.mxu0 0
    %3986 = vmatprep.subr.bf16.mxu0 0
    %3987 = vmatpush1.bf16.xpose.msra.mxu0 %v3970
    %3988 = vmatprep.subr.bf16.mxu0 0
    %3989 = vmatpush2.bf16.xpose.msra.mxu0 0
    %3990 = vmatprep.subr.bf16.mxu0 0
    %3991 = vmatpush2.bf16.xpose.msra.mxu0 0
    %3992 = vmatprep.subr.bf16.mxu0 0
    %3993 = vmatpush2.bf16.xpose.msra.mxu0 0
    %3994 = vmatprep.subr.bf16.mxu0 0
    %3995 = vmatpush2.bf16.xpose.msra.mxu0 0
    %3996 = vmatprep.subr.bf16.mxu0 0
    %3997 = vmatpush2.bf16.xpose.msra.mxu0 0
    %3998 = vmatprep.subr.bf16.mxu0 0
    %3999 = vmatpush2.bf16.xpose.msra.mxu0 0
    %4000 = vmatprep.subr.bf16.mxu0 0
    %4001 = vmatpush2.bf16.xpose.msra.mxu0 0
    %4002 = vmatprep.subr.bf16.mxu0 0
    %4003 = vmatpush2.bf16.xpose.msra.mxu0 0
    %4004 = vmatprep.mubr.bf16.mxu0 0
    %4005 = vmatmul.mubr.bf16.gmra.mxu0 %v3967
    %v4006 = vpop.f32.mrf.mxu0
    %v4007 = vadd.f32 0.0, %v4006
    %v4008 = vpop.f32.mrf.mxu0
    %v4009 = vpop.f32.mrf.mxu0
    %v4010 = vadd.f32 0.0, %v4009
    %v4011 = vpop.f32.mrf.mxu0
    %4012 = vdwg.mxu0
    %4013 = vrot.lane.b32.xlu0 %v389, 104
    %v4014 = vpop.permute.xlu0 %4013
    %4015 = vrot.lane.b32.xlu0 %v389, 72
    %v4016 = vpop.permute.xlu0 %4015
    %v4018 = vsel %vm394, %v4014, 0
    %v4021 = vsel %vm394, %v4016, 0
    %4023 = vmatprep.subr.bf16.mxu0 0
    %4024 = vmatpush1.bf16.xpose.msra.mxu0 0
    %4025 = vmatprep.subr.bf16.mxu0 0
    %4026 = vmatpush1.bf16.xpose.msra.mxu0 0
    %4027 = vmatprep.subr.bf16.mxu0 0
    %4028 = vmatpush1.bf16.xpose.msra.mxu0 0
    %4029 = vmatprep.subr.bf16.mxu0 0
    %4030 = vmatpush1.bf16.xpose.msra.mxu0 0
    %4031 = vmatprep.subr.bf16.mxu0 0
    %4032 = vmatpush1.bf16.xpose.msra.mxu0 0
    %4033 = vmatprep.subr.bf16.mxu0 0
    %4034 = vmatpush1.bf16.xpose.msra.mxu0 0
    %4035 = vmatprep.subr.bf16.mxu0 0
    %4036 = vmatpush1.bf16.xpose.msra.mxu0 0
    %4037 = vmatprep.subr.bf16.mxu0 0
    %4038 = vmatpush1.bf16.xpose.msra.mxu0 %v4021
    %4039 = vmatprep.subr.bf16.mxu0 0
    %4040 = vmatpush2.bf16.xpose.msra.mxu0 0
    %4041 = vmatprep.subr.bf16.mxu0 0
    %4042 = vmatpush2.bf16.xpose.msra.mxu0 0
    %4043 = vmatprep.subr.bf16.mxu0 0
    %4044 = vmatpush2.bf16.xpose.msra.mxu0 0
    %4045 = vmatprep.subr.bf16.mxu0 0
    %4046 = vmatpush2.bf16.xpose.msra.mxu0 0
    %4047 = vmatprep.subr.bf16.mxu0 0
    %4048 = vmatpush2.bf16.xpose.msra.mxu0 0
    %4049 = vmatprep.subr.bf16.mxu0 0
    %4050 = vmatpush2.bf16.xpose.msra.mxu0 0
    %4051 = vmatprep.subr.bf16.mxu0 0
    %4052 = vmatpush2.bf16.xpose.msra.mxu0 0
    %4053 = vmatprep.subr.bf16.mxu0 0
    %4054 = vmatpush2.bf16.xpose.msra.mxu0 0
    %4055 = vmatprep.mubr.bf16.mxu0 0
    %4056 = vmatmul.mubr.bf16.gmra.mxu0 %v4018
    %v4057 = vpop.f32.mrf.mxu0
    %v4058 = vadd.f32 0.0, %v4057
    %v4059 = vpop.f32.mrf.mxu0
    %v4060 = vpop.f32.mrf.mxu0
    %v4061 = vadd.f32 0.0, %v4060
    %v4062 = vpop.f32.mrf.mxu0
    %4063 = vdwg.mxu0
    %4064 = vrot.lane.b32.xlu0 %v390, 104
    %v4065 = vpop.permute.xlu0 %4064
    %4066 = vrot.lane.b32.xlu0 %v390, 72
    %v4067 = vpop.permute.xlu0 %4066
    %v4069 = vsel %vm394, %v4065, 0
    %v4072 = vsel %vm394, %v4067, 0
    %4074 = vmatprep.subr.bf16.mxu0 0
    %4075 = vmatpush1.bf16.xpose.msra.mxu0 0
    %4076 = vmatprep.subr.bf16.mxu0 0
    %4077 = vmatpush1.bf16.xpose.msra.mxu0 0
    %4078 = vmatprep.subr.bf16.mxu0 0
    %4079 = vmatpush1.bf16.xpose.msra.mxu0 0
    %4080 = vmatprep.subr.bf16.mxu0 0
    %4081 = vmatpush1.bf16.xpose.msra.mxu0 0
    %4082 = vmatprep.subr.bf16.mxu0 0
    %4083 = vmatpush1.bf16.xpose.msra.mxu0 0
    %4084 = vmatprep.subr.bf16.mxu0 0
    %4085 = vmatpush1.bf16.xpose.msra.mxu0 0
    %4086 = vmatprep.subr.bf16.mxu0 0
    %4087 = vmatpush1.bf16.xpose.msra.mxu0 0
    %4088 = vmatprep.subr.bf16.mxu0 0
    %4089 = vmatpush1.bf16.xpose.msra.mxu0 %v4072
    %4090 = vmatprep.subr.bf16.mxu0 0
    %4091 = vmatpush2.bf16.xpose.msra.mxu0 0
    %4092 = vmatprep.subr.bf16.mxu0 0
    %4093 = vmatpush2.bf16.xpose.msra.mxu0 0
    %4094 = vmatprep.subr.bf16.mxu0 0
    %4095 = vmatpush2.bf16.xpose.msra.mxu0 0
    %4096 = vmatprep.subr.bf16.mxu0 0
    %4097 = vmatpush2.bf16.xpose.msra.mxu0 0
    %4098 = vmatprep.subr.bf16.mxu0 0
    %4099 = vmatpush2.bf16.xpose.msra.mxu0 0
    %4100 = vmatprep.subr.bf16.mxu0 0
    %4101 = vmatpush2.bf16.xpose.msra.mxu0 0
    %4102 = vmatprep.subr.bf16.mxu0 0
    %4103 = vmatpush2.bf16.xpose.msra.mxu0 0
    %4104 = vmatprep.subr.bf16.mxu0 0
    %4105 = vmatpush2.bf16.xpose.msra.mxu0 0
    %4106 = vmatprep.mubr.bf16.mxu0 0
    %4107 = vmatmul.mubr.bf16.gmra.mxu0 %v4069
    %v4108 = vpop.f32.mrf.mxu0
    %v4109 = vadd.f32 0.0, %v4108
    %v4110 = vpop.f32.mrf.mxu0
    %v4111 = vpop.f32.mrf.mxu0
    %v4112 = vadd.f32 0.0, %v4111
    %v4113 = vpop.f32.mrf.mxu0
    %4114 = vdwg.mxu0
    %v4115 = vsel %vm792, %v3752, -inf
    %4116 = vmax.xlane.f32.xlu0 %v4115
    %v4117 = vpop.xlane.xlu0 %4116
    %v4118 = vsel %vm792, %v3755, -inf
    %4119 = vmax.xlane.f32.xlu0 %v4118
    %v4120 = vpop.xlane.xlu0 %4119
    %v4121 = vsel %vm792, %v3803, -inf
    %4122 = vmax.xlane.f32.xlu0 %v4121
    %v4123 = vpop.xlane.xlu0 %4122
    %v4124 = vsel %vm792, %v3806, -inf
    %4125 = vmax.xlane.f32.xlu0 %v4124
    %v4126 = vpop.xlane.xlu0 %4125
    %v4127 = vsel %vm792, %v3854, -inf
    %4128 = vmax.xlane.f32.xlu0 %v4127
    %v4129 = vpop.xlane.xlu0 %4128
    %v4130 = vsel %vm792, %v3857, -inf
    %4131 = vmax.xlane.f32.xlu0 %v4130
    %v4132 = vpop.xlane.xlu0 %4131
    %v4133 = vsel %vm792, %v3905, -inf
    %4134 = vmax.xlane.f32.xlu0 %v4133
    %v4135 = vpop.xlane.xlu0 %4134
    %v4136 = vsel %vm792, %v3908, -inf
    %4137 = vmax.xlane.f32.xlu0 %v4136
    %v4138 = vpop.xlane.xlu0 %4137
    %v4139 = vsel %vm792, %v3956, -inf
    %4140 = vmax.xlane.f32.xlu0 %v4139
    %v4141 = vpop.xlane.xlu0 %4140
    %v4142 = vsel %vm792, %v3959, -inf
    %4143 = vmax.xlane.f32.xlu0 %v4142
    %v4144 = vpop.xlane.xlu0 %4143
    %v4145 = vsel %vm792, %v4007, -inf
    %4146 = vmax.xlane.f32.xlu0 %v4145
    %v4147 = vpop.xlane.xlu0 %4146
    %v4148 = vsel %vm792, %v4010, -inf
    %4149 = vmax.xlane.f32.xlu0 %v4148
    %v4150 = vpop.xlane.xlu0 %4149
    %v4151 = vsel %vm792, %v4058, -inf
    %4152 = vmax.xlane.f32.xlu0 %v4151
    %v4153 = vpop.xlane.xlu0 %4152
    %v4154 = vsel %vm792, %v4061, -inf
    %4155 = vmax.xlane.f32.xlu0 %v4154
    %v4156 = vpop.xlane.xlu0 %4155
    %v4157 = vsel %vm792, %v4109, -inf
    %4158 = vmax.xlane.f32.xlu0 %v4157
    %v4159 = vpop.xlane.xlu0 %4158
    %v4160 = vsel %vm792, %v4112, -inf
    %4161 = vmax.xlane.f32.xlu0 %v4160
    %v4162 = vpop.xlane.xlu0 %4161
    %v4163 = vsub.f32 %v3752, %v4117
    %v4164 = vsub.f32 %v3755, %v4120
    %v4165 = vsub.f32 %v3803, %v4123
    %v4166 = vsub.f32 %v3806, %v4126
    %v4167 = vsub.f32 %v3854, %v4129
    %v4168 = vsub.f32 %v3857, %v4132
    %v4169 = vsub.f32 %v3905, %v4135
    %v4170 = vsub.f32 %v3908, %v4138
    %v4171 = vsub.f32 %v3956, %v4141
    %v4172 = vsub.f32 %v3959, %v4144
    %v4173 = vsub.f32 %v4007, %v4147
    %v4174 = vsub.f32 %v4010, %v4150
    %v4175 = vsub.f32 %v4058, %v4153
    %v4176 = vsub.f32 %v4061, %v4156
    %v4177 = vsub.f32 %v4109, %v4159
    %v4178 = vsub.f32 %v4112, %v4162
    %v4179 = vmul.f32 %v4163, 1.442695
    %v4180 = vpow.pop %v4179
    %v4181 = vmul.f32 %v4164, 1.442695
    %v4182 = vpow.pop %v4181
    %v4183 = vmul.f32 %v4165, 1.442695
    %v4184 = vpow.pop %v4183
    %v4185 = vmul.f32 %v4166, 1.442695
    %v4186 = vpow.pop %v4185
    %v4187 = vmul.f32 %v4167, 1.442695
    %v4188 = vpow.pop %v4187
    %v4189 = vmul.f32 %v4168, 1.442695
    %v4190 = vpow.pop %v4189
    %v4191 = vmul.f32 %v4169, 1.442695
    %v4192 = vpow.pop %v4191
    %v4193 = vmul.f32 %v4170, 1.442695
    %v4194 = vpow.pop %v4193
    %v4195 = vmul.f32 %v4171, 1.442695
    %v4196 = vpow.pop %v4195
    %v4197 = vmul.f32 %v4172, 1.442695
    %v4198 = vpow.pop %v4197
    %v4199 = vmul.f32 %v4173, 1.442695
    %v4200 = vpow.pop %v4199
    %v4201 = vmul.f32 %v4174, 1.442695
    %v4202 = vpow.pop %v4201
    %v4203 = vmul.f32 %v4175, 1.442695
    %v4204 = vpow.pop %v4203
    %v4205 = vmul.f32 %v4176, 1.442695
    %v4206 = vpow.pop %v4205
    %v4207 = vmul.f32 %v4177, 1.442695
    %v4208 = vpow.pop %v4207
    %v4209 = vmul.f32 %v4178, 1.442695
    %v4210 = vpow.pop %v4209
    %v4211 = vsel %vm792, %v4180, 0.0
    %4212 = vadd.xlane.f32.xlu0 %v4211
    %v4213 = vpop.xlane.xlu0 %4212
    %v4214 = vsel %vm792, %v4182, 0.0
    %4215 = vadd.xlane.f32.xlu0 %v4214
    %v4216 = vpop.xlane.xlu0 %4215
    %v4217 = vsel %vm792, %v4184, 0.0
    %4218 = vadd.xlane.f32.xlu0 %v4217
    %v4219 = vpop.xlane.xlu0 %4218
    %v4220 = vsel %vm792, %v4186, 0.0
    %4221 = vadd.xlane.f32.xlu0 %v4220
    %v4222 = vpop.xlane.xlu0 %4221
    %v4223 = vsel %vm792, %v4188, 0.0
    %4224 = vadd.xlane.f32.xlu0 %v4223
    %v4225 = vpop.xlane.xlu0 %4224
    %v4226 = vsel %vm792, %v4190, 0.0
    %4227 = vadd.xlane.f32.xlu0 %v4226
    %v4228 = vpop.xlane.xlu0 %4227
    %v4229 = vsel %vm792, %v4192, 0.0
    %4230 = vadd.xlane.f32.xlu0 %v4229
    %v4231 = vpop.xlane.xlu0 %4230
    %v4232 = vsel %vm792, %v4194, 0.0
    %4233 = vadd.xlane.f32.xlu0 %v4232
    %v4234 = vpop.xlane.xlu0 %4233
    %v4235 = vsel %vm792, %v4196, 0.0
    %4236 = vadd.xlane.f32.xlu0 %v4235
    %v4237 = vpop.xlane.xlu0 %4236
    %v4238 = vsel %vm792, %v4198, 0.0
    %4239 = vadd.xlane.f32.xlu0 %v4238
    %v4240 = vpop.xlane.xlu0 %4239
    %v4241 = vsel %vm792, %v4200, 0.0
    %4242 = vadd.xlane.f32.xlu0 %v4241
    %v4243 = vpop.xlane.xlu0 %4242
    %v4244 = vsel %vm792, %v4202, 0.0
    %4245 = vadd.xlane.f32.xlu0 %v4244
    %v4246 = vpop.xlane.xlu0 %4245
    %v4247 = vsel %vm792, %v4204, 0.0
    %4248 = vadd.xlane.f32.xlu0 %v4247
    %v4249 = vpop.xlane.xlu0 %4248
    %v4250 = vsel %vm792, %v4206, 0.0
    %4251 = vadd.xlane.f32.xlu0 %v4250
    %v4252 = vpop.xlane.xlu0 %4251
    %v4253 = vsel %vm792, %v4208, 0.0
    %4254 = vadd.xlane.f32.xlu0 %v4253
    %v4255 = vpop.xlane.xlu0 %4254
    %v4256 = vsel %vm792, %v4210, 0.0
    %4257 = vadd.xlane.f32.xlu0 %v4256
    %v4258 = vpop.xlane.xlu0 %4257
    %v4259 = vrcp.pop %v4213
    %v4260 = vrcp.pop %v4216
    %v4261 = vrcp.pop %v4219
    %v4262 = vrcp.pop %v4222
    %v4263 = vrcp.pop %v4225
    %v4264 = vrcp.pop %v4228
    %v4265 = vrcp.pop %v4231
    %v4266 = vrcp.pop %v4234
    %v4267 = vrcp.pop %v4237
    %v4268 = vrcp.pop %v4240
    %v4269 = vrcp.pop %v4243
    %v4270 = vrcp.pop %v4246
    %v4271 = vrcp.pop %v4249
    %v4272 = vrcp.pop %v4252
    %v4273 = vrcp.pop %v4255
    %v4274 = vrcp.pop %v4258
    %v4275 = vmul.f32 %v4180, %v4259
    %v4276 = vmul.f32 %v4182, %v4260
    %v4277 = vmul.f32 %v4184, %v4261
    %v4278 = vmul.f32 %v4186, %v4262
    %v4279 = vmul.f32 %v4188, %v4263
    %v4280 = vmul.f32 %v4190, %v4264
    %v4281 = vmul.f32 %v4192, %v4265
    %v4282 = vmul.f32 %v4194, %v4266
    %v4283 = vmul.f32 %v4196, %v4267
    %v4284 = vmul.f32 %v4198, %v4268
    %v4285 = vmul.f32 %v4200, %v4269
    %v4286 = vmul.f32 %v4202, %v4270
    %v4287 = vmul.f32 %v4204, %v4271
    %v4288 = vmul.f32 %v4206, %v4272
    %v4289 = vmul.f32 %v4208, %v4273
    %v4290 = vmul.f32 %v4210, %v4274
    %v4291 = vpack.c.bf16 %v4276, %v4275
    %v4292 = vpack.c.bf16 %v4278, %v4277
    %v4293 = vpack.c.bf16 %v4280, %v4279
    %v4294 = vpack.c.bf16 %v4282, %v4281
    %v4295 = vpack.c.bf16 %v4284, %v4283
    %v4296 = vpack.c.bf16 %v4286, %v4285
    %v4297 = vpack.c.bf16 %v4288, %v4287
    %v4298 = vpack.c.bf16 %v4290, %v4289
    %4299 = vrot.lane.b32.xlu0 %v383, 40
    %v4300 = vpop.permute.xlu0 %4299
    %v4303 = vsel %vm792, %v4291, 0
    %4305 = vmatprep.subr.bf16.mxu0 0
    %4306 = vmatpush1.bf16.msra.mxu0 0
    %4307 = vmatprep.subr.bf16.mxu0 0
    %4308 = vmatpush1.bf16.msra.mxu0 0
    %4309 = vmatprep.subr.bf16.mxu0 0
    %4310 = vmatpush1.bf16.msra.mxu0 0
    %4311 = vmatprep.subr.bf16.mxu0 0
    %4312 = vmatpush1.bf16.msra.mxu0 0
    %4313 = vmatprep.subr.bf16.mxu0 0
    %4314 = vmatpush1.bf16.msra.mxu0 0
    %4315 = vmatprep.subr.bf16.mxu0 0
    %4316 = vmatpush1.bf16.msra.mxu0 0
    %4317 = vmatprep.subr.bf16.mxu0 0
    %4318 = vmatpush1.bf16.msra.mxu0 0
    %4319 = vmatprep.subr.bf16.mxu0 0
    %4320 = vmatpush1.bf16.msra.mxu0 %v4300
    %4321 = vmatprep.subr.bf16.mxu0 0
    %4322 = vmatpush2.bf16.msra.mxu0 0
    %4323 = vmatprep.subr.bf16.mxu0 0
    %4324 = vmatpush2.bf16.msra.mxu0 0
    %4325 = vmatprep.subr.bf16.mxu0 0
    %4326 = vmatpush2.bf16.msra.mxu0 0
    %4327 = vmatprep.subr.bf16.mxu0 0
    %4328 = vmatpush2.bf16.msra.mxu0 0
    %4329 = vmatprep.subr.bf16.mxu0 0
    %4330 = vmatpush2.bf16.msra.mxu0 0
    %4331 = vmatprep.subr.bf16.mxu0 0
    %4332 = vmatpush2.bf16.msra.mxu0 0
    %4333 = vmatprep.subr.bf16.mxu0 0
    %4334 = vmatpush2.bf16.msra.mxu0 0
    %4335 = vmatprep.subr.bf16.mxu0 0
    %4336 = vmatpush2.bf16.msra.mxu0 0
    %4337 = vmatprep.mubr.bf16.mxu0 0
    %4338 = vmatmul.mubr.bf16.gmra.mxu0 %v4303
    %v4339 = vpop.f32.mrf.mxu0
    %v4340 = vadd.f32 0.0, %v4339
    %v4341 = vpop.f32.mrf.mxu0
    %v4342 = vpop.f32.mrf.mxu0
    %v4343 = vadd.f32 0.0, %v4342
    %v4344 = vpop.f32.mrf.mxu0
    %4345 = vdwg.mxu0
    %4346 = vrot.lane.b32.xlu0 %v384, 40
    %v4347 = vpop.permute.xlu0 %4346
    %v4350 = vsel %vm792, %v4292, 0
    %4352 = vmatprep.subr.bf16.mxu0 0
    %4353 = vmatpush1.bf16.msra.mxu0 0
    %4354 = vmatprep.subr.bf16.mxu0 0
    %4355 = vmatpush1.bf16.msra.mxu0 0
    %4356 = vmatprep.subr.bf16.mxu0 0
    %4357 = vmatpush1.bf16.msra.mxu0 0
    %4358 = vmatprep.subr.bf16.mxu0 0
    %4359 = vmatpush1.bf16.msra.mxu0 0
    %4360 = vmatprep.subr.bf16.mxu0 0
    %4361 = vmatpush1.bf16.msra.mxu0 0
    %4362 = vmatprep.subr.bf16.mxu0 0
    %4363 = vmatpush1.bf16.msra.mxu0 0
    %4364 = vmatprep.subr.bf16.mxu0 0
    %4365 = vmatpush1.bf16.msra.mxu0 0
    %4366 = vmatprep.subr.bf16.mxu0 0
    %4367 = vmatpush1.bf16.msra.mxu0 %v4347
    %4368 = vmatprep.subr.bf16.mxu0 0
    %4369 = vmatpush2.bf16.msra.mxu0 0
    %4370 = vmatprep.subr.bf16.mxu0 0
    %4371 = vmatpush2.bf16.msra.mxu0 0
    %4372 = vmatprep.subr.bf16.mxu0 0
    %4373 = vmatpush2.bf16.msra.mxu0 0
    %4374 = vmatprep.subr.bf16.mxu0 0
    %4375 = vmatpush2.bf16.msra.mxu0 0
    %4376 = vmatprep.subr.bf16.mxu0 0
    %4377 = vmatpush2.bf16.msra.mxu0 0
    %4378 = vmatprep.subr.bf16.mxu0 0
    %4379 = vmatpush2.bf16.msra.mxu0 0
    %4380 = vmatprep.subr.bf16.mxu0 0
    %4381 = vmatpush2.bf16.msra.mxu0 0
    %4382 = vmatprep.subr.bf16.mxu0 0
    %4383 = vmatpush2.bf16.msra.mxu0 0
    %4384 = vmatprep.mubr.bf16.mxu0 0
    %4385 = vmatmul.mubr.bf16.gmra.mxu0 %v4350
    %v4386 = vpop.f32.mrf.mxu0
    %v4387 = vadd.f32 0.0, %v4386
    %v4388 = vpop.f32.mrf.mxu0
    %v4389 = vpop.f32.mrf.mxu0
    %v4390 = vadd.f32 0.0, %v4389
    %v4391 = vpop.f32.mrf.mxu0
    %4392 = vdwg.mxu0
    %4393 = vrot.lane.b32.xlu0 %v385, 40
    %v4394 = vpop.permute.xlu0 %4393
    %v4397 = vsel %vm792, %v4293, 0
    %4399 = vmatprep.subr.bf16.mxu0 0
    %4400 = vmatpush1.bf16.msra.mxu0 0
    %4401 = vmatprep.subr.bf16.mxu0 0
    %4402 = vmatpush1.bf16.msra.mxu0 0
    %4403 = vmatprep.subr.bf16.mxu0 0
    %4404 = vmatpush1.bf16.msra.mxu0 0
    %4405 = vmatprep.subr.bf16.mxu0 0
    %4406 = vmatpush1.bf16.msra.mxu0 0
    %4407 = vmatprep.subr.bf16.mxu0 0
    %4408 = vmatpush1.bf16.msra.mxu0 0
    %4409 = vmatprep.subr.bf16.mxu0 0
    %4410 = vmatpush1.bf16.msra.mxu0 0
    %4411 = vmatprep.subr.bf16.mxu0 0
    %4412 = vmatpush1.bf16.msra.mxu0 0
    %4413 = vmatprep.subr.bf16.mxu0 0
    %4414 = vmatpush1.bf16.msra.mxu0 %v4394
    %4415 = vmatprep.subr.bf16.mxu0 0
    %4416 = vmatpush2.bf16.msra.mxu0 0
    %4417 = vmatprep.subr.bf16.mxu0 0
    %4418 = vmatpush2.bf16.msra.mxu0 0
    %4419 = vmatprep.subr.bf16.mxu0 0
    %4420 = vmatpush2.bf16.msra.mxu0 0
    %4421 = vmatprep.subr.bf16.mxu0 0
    %4422 = vmatpush2.bf16.msra.mxu0 0
    %4423 = vmatprep.subr.bf16.mxu0 0
    %4424 = vmatpush2.bf16.msra.mxu0 0
    %4425 = vmatprep.subr.bf16.mxu0 0
    %4426 = vmatpush2.bf16.msra.mxu0 0
    %4427 = vmatprep.subr.bf16.mxu0 0
    %4428 = vmatpush2.bf16.msra.mxu0 0
    %4429 = vmatprep.subr.bf16.mxu0 0
    %4430 = vmatpush2.bf16.msra.mxu0 0
    %4431 = vmatprep.mubr.bf16.mxu0 0
    %4432 = vmatmul.mubr.bf16.gmra.mxu0 %v4397
    %v4433 = vpop.f32.mrf.mxu0
    %v4434 = vadd.f32 0.0, %v4433
    %v4435 = vpop.f32.mrf.mxu0
    %v4436 = vpop.f32.mrf.mxu0
    %v4437 = vadd.f32 0.0, %v4436
    %v4438 = vpop.f32.mrf.mxu0
    %4439 = vdwg.mxu0
    %4440 = vrot.lane.b32.xlu0 %v386, 40
    %v4441 = vpop.permute.xlu0 %4440
    %v4444 = vsel %vm792, %v4294, 0
    %4446 = vmatprep.subr.bf16.mxu0 0
    %4447 = vmatpush1.bf16.msra.mxu0 0
    %4448 = vmatprep.subr.bf16.mxu0 0
    %4449 = vmatpush1.bf16.msra.mxu0 0
    %4450 = vmatprep.subr.bf16.mxu0 0
    %4451 = vmatpush1.bf16.msra.mxu0 0
    %4452 = vmatprep.subr.bf16.mxu0 0
    %4453 = vmatpush1.bf16.msra.mxu0 0
    %4454 = vmatprep.subr.bf16.mxu0 0
    %4455 = vmatpush1.bf16.msra.mxu0 0
    %4456 = vmatprep.subr.bf16.mxu0 0
    %4457 = vmatpush1.bf16.msra.mxu0 0
    %4458 = vmatprep.subr.bf16.mxu0 0
    %4459 = vmatpush1.bf16.msra.mxu0 0
    %4460 = vmatprep.subr.bf16.mxu0 0
    %4461 = vmatpush1.bf16.msra.mxu0 %v4441
    %4462 = vmatprep.subr.bf16.mxu0 0
    %4463 = vmatpush2.bf16.msra.mxu0 0
    %4464 = vmatprep.subr.bf16.mxu0 0
    %4465 = vmatpush2.bf16.msra.mxu0 0
    %4466 = vmatprep.subr.bf16.mxu0 0
    %4467 = vmatpush2.bf16.msra.mxu0 0
    %4468 = vmatprep.subr.bf16.mxu0 0
    %4469 = vmatpush2.bf16.msra.mxu0 0
    %4470 = vmatprep.subr.bf16.mxu0 0
    %4471 = vmatpush2.bf16.msra.mxu0 0
    %4472 = vmatprep.subr.bf16.mxu0 0
    %4473 = vmatpush2.bf16.msra.mxu0 0
    %4474 = vmatprep.subr.bf16.mxu0 0
    %4475 = vmatpush2.bf16.msra.mxu0 0
    %4476 = vmatprep.subr.bf16.mxu0 0
    %4477 = vmatpush2.bf16.msra.mxu0 0
    %4478 = vmatprep.mubr.bf16.mxu0 0
    %4479 = vmatmul.mubr.bf16.gmra.mxu0 %v4444
    %v4480 = vpop.f32.mrf.mxu0
    %v4481 = vadd.f32 0.0, %v4480
    %v4482 = vpop.f32.mrf.mxu0
    %v4483 = vpop.f32.mrf.mxu0
    %v4484 = vadd.f32 0.0, %v4483
    %v4485 = vpop.f32.mrf.mxu0
    %4486 = vdwg.mxu0
    %4487 = vrot.lane.b32.xlu0 %v387, 40
    %v4488 = vpop.permute.xlu0 %4487
    %v4491 = vsel %vm792, %v4295, 0
    %4493 = vmatprep.subr.bf16.mxu0 0
    %4494 = vmatpush1.bf16.msra.mxu0 0
    %4495 = vmatprep.subr.bf16.mxu0 0
    %4496 = vmatpush1.bf16.msra.mxu0 0
    %4497 = vmatprep.subr.bf16.mxu0 0
    %4498 = vmatpush1.bf16.msra.mxu0 0
    %4499 = vmatprep.subr.bf16.mxu0 0
    %4500 = vmatpush1.bf16.msra.mxu0 0
    %4501 = vmatprep.subr.bf16.mxu0 0
    %4502 = vmatpush1.bf16.msra.mxu0 0
    %4503 = vmatprep.subr.bf16.mxu0 0
    %4504 = vmatpush1.bf16.msra.mxu0 0
    %4505 = vmatprep.subr.bf16.mxu0 0
    %4506 = vmatpush1.bf16.msra.mxu0 0
    %4507 = vmatprep.subr.bf16.mxu0 0
    %4508 = vmatpush1.bf16.msra.mxu0 %v4488
    %4509 = vmatprep.subr.bf16.mxu0 0
    %4510 = vmatpush2.bf16.msra.mxu0 0
    %4511 = vmatprep.subr.bf16.mxu0 0
    %4512 = vmatpush2.bf16.msra.mxu0 0
    %4513 = vmatprep.subr.bf16.mxu0 0
    %4514 = vmatpush2.bf16.msra.mxu0 0
    %4515 = vmatprep.subr.bf16.mxu0 0
    %4516 = vmatpush2.bf16.msra.mxu0 0
    %4517 = vmatprep.subr.bf16.mxu0 0
    %4518 = vmatpush2.bf16.msra.mxu0 0
    %4519 = vmatprep.subr.bf16.mxu0 0
    %4520 = vmatpush2.bf16.msra.mxu0 0
    %4521 = vmatprep.subr.bf16.mxu0 0
    %4522 = vmatpush2.bf16.msra.mxu0 0
    %4523 = vmatprep.subr.bf16.mxu0 0
    %4524 = vmatpush2.bf16.msra.mxu0 0
    %4525 = vmatprep.mubr.bf16.mxu0 0
    %4526 = vmatmul.mubr.bf16.gmra.mxu0 %v4491
    %v4527 = vpop.f32.mrf.mxu0
    %v4528 = vadd.f32 0.0, %v4527
    %v4529 = vpop.f32.mrf.mxu0
    %v4530 = vpop.f32.mrf.mxu0
    %v4531 = vadd.f32 0.0, %v4530
    %v4532 = vpop.f32.mrf.mxu0
    %4533 = vdwg.mxu0
    %4534 = vrot.lane.b32.xlu0 %v388, 40
    %v4535 = vpop.permute.xlu0 %4534
    %v4538 = vsel %vm792, %v4296, 0
    %4540 = vmatprep.subr.bf16.mxu0 0
    %4541 = vmatpush1.bf16.msra.mxu0 0
    %4542 = vmatprep.subr.bf16.mxu0 0
    %4543 = vmatpush1.bf16.msra.mxu0 0
    %4544 = vmatprep.subr.bf16.mxu0 0
    %4545 = vmatpush1.bf16.msra.mxu0 0
    %4546 = vmatprep.subr.bf16.mxu0 0
    %4547 = vmatpush1.bf16.msra.mxu0 0
    %4548 = vmatprep.subr.bf16.mxu0 0
    %4549 = vmatpush1.bf16.msra.mxu0 0
    %4550 = vmatprep.subr.bf16.mxu0 0
    %4551 = vmatpush1.bf16.msra.mxu0 0
    %4552 = vmatprep.subr.bf16.mxu0 0
    %4553 = vmatpush1.bf16.msra.mxu0 0
    %4554 = vmatprep.subr.bf16.mxu0 0
    %4555 = vmatpush1.bf16.msra.mxu0 %v4535
    %4556 = vmatprep.subr.bf16.mxu0 0
    %4557 = vmatpush2.bf16.msra.mxu0 0
    %4558 = vmatprep.subr.bf16.mxu0 0
    %4559 = vmatpush2.bf16.msra.mxu0 0
    %4560 = vmatprep.subr.bf16.mxu0 0
    %4561 = vmatpush2.bf16.msra.mxu0 0
    %4562 = vmatprep.subr.bf16.mxu0 0
    %4563 = vmatpush2.bf16.msra.mxu0 0
    %4564 = vmatprep.subr.bf16.mxu0 0
    %4565 = vmatpush2.bf16.msra.mxu0 0
    %4566 = vmatprep.subr.bf16.mxu0 0
    %4567 = vmatpush2.bf16.msra.mxu0 0
    %4568 = vmatprep.subr.bf16.mxu0 0
    %4569 = vmatpush2.bf16.msra.mxu0 0
    %4570 = vmatprep.subr.bf16.mxu0 0
    %4571 = vmatpush2.bf16.msra.mxu0 0
    %4572 = vmatprep.mubr.bf16.mxu0 0
    %4573 = vmatmul.mubr.bf16.gmra.mxu0 %v4538
    %v4574 = vpop.f32.mrf.mxu0
    %v4575 = vadd.f32 0.0, %v4574
    %v4576 = vpop.f32.mrf.mxu0
    %v4577 = vpop.f32.mrf.mxu0
    %v4578 = vadd.f32 0.0, %v4577
    %v4579 = vpop.f32.mrf.mxu0
    %4580 = vdwg.mxu0
    %4581 = vrot.lane.b32.xlu0 %v389, 40
    %v4582 = vpop.permute.xlu0 %4581
    %v4585 = vsel %vm792, %v4297, 0
    %4587 = vmatprep.subr.bf16.mxu0 0
    %4588 = vmatpush1.bf16.msra.mxu0 0
    %4589 = vmatprep.subr.bf16.mxu0 0
    %4590 = vmatpush1.bf16.msra.mxu0 0
    %4591 = vmatprep.subr.bf16.mxu0 0
    %4592 = vmatpush1.bf16.msra.mxu0 0
    %4593 = vmatprep.subr.bf16.mxu0 0
    %4594 = vmatpush1.bf16.msra.mxu0 0
    %4595 = vmatprep.subr.bf16.mxu0 0
    %4596 = vmatpush1.bf16.msra.mxu0 0
    %4597 = vmatprep.subr.bf16.mxu0 0
    %4598 = vmatpush1.bf16.msra.mxu0 0
    %4599 = vmatprep.subr.bf16.mxu0 0
    %4600 = vmatpush1.bf16.msra.mxu0 0
    %4601 = vmatprep.subr.bf16.mxu0 0
    %4602 = vmatpush1.bf16.msra.mxu0 %v4582
    %4603 = vmatprep.subr.bf16.mxu0 0
    %4604 = vmatpush2.bf16.msra.mxu0 0
    %4605 = vmatprep.subr.bf16.mxu0 0
    %4606 = vmatpush2.bf16.msra.mxu0 0
    %4607 = vmatprep.subr.bf16.mxu0 0
    %4608 = vmatpush2.bf16.msra.mxu0 0
    %4609 = vmatprep.subr.bf16.mxu0 0
    %4610 = vmatpush2.bf16.msra.mxu0 0
    %4611 = vmatprep.subr.bf16.mxu0 0
    %4612 = vmatpush2.bf16.msra.mxu0 0
    %4613 = vmatprep.subr.bf16.mxu0 0
    %4614 = vmatpush2.bf16.msra.mxu0 0
    %4615 = vmatprep.subr.bf16.mxu0 0
    %4616 = vmatpush2.bf16.msra.mxu0 0
    %4617 = vmatprep.subr.bf16.mxu0 0
    %4618 = vmatpush2.bf16.msra.mxu0 0
    %4619 = vmatprep.mubr.bf16.mxu0 0
    %4620 = vmatmul.mubr.bf16.gmra.mxu0 %v4585
    %v4621 = vpop.f32.mrf.mxu0
    %v4622 = vadd.f32 0.0, %v4621
    %v4623 = vpop.f32.mrf.mxu0
    %v4624 = vpop.f32.mrf.mxu0
    %v4625 = vadd.f32 0.0, %v4624
    %v4626 = vpop.f32.mrf.mxu0
    %4627 = vdwg.mxu0
    %4628 = vrot.lane.b32.xlu0 %v390, 40
    %v4629 = vpop.permute.xlu0 %4628
    %v4632 = vsel %vm792, %v4298, 0
    %4634 = vmatprep.subr.bf16.mxu0 0
    %4635 = vmatpush1.bf16.msra.mxu0 0
    %4636 = vmatprep.subr.bf16.mxu0 0
    %4637 = vmatpush1.bf16.msra.mxu0 0
    %4638 = vmatprep.subr.bf16.mxu0 0
    %4639 = vmatpush1.bf16.msra.mxu0 0
    %4640 = vmatprep.subr.bf16.mxu0 0
    %4641 = vmatpush1.bf16.msra.mxu0 0
    %4642 = vmatprep.subr.bf16.mxu0 0
    %4643 = vmatpush1.bf16.msra.mxu0 0
    %4644 = vmatprep.subr.bf16.mxu0 0
    %4645 = vmatpush1.bf16.msra.mxu0 0
    %4646 = vmatprep.subr.bf16.mxu0 0
    %4647 = vmatpush1.bf16.msra.mxu0 0
    %4648 = vmatprep.subr.bf16.mxu0 0
    %4649 = vmatpush1.bf16.msra.mxu0 %v4629
    %4650 = vmatprep.subr.bf16.mxu0 0
    %4651 = vmatpush2.bf16.msra.mxu0 0
    %4652 = vmatprep.subr.bf16.mxu0 0
    %4653 = vmatpush2.bf16.msra.mxu0 0
    %4654 = vmatprep.subr.bf16.mxu0 0
    %4655 = vmatpush2.bf16.msra.mxu0 0
    %4656 = vmatprep.subr.bf16.mxu0 0
    %4657 = vmatpush2.bf16.msra.mxu0 0
    %4658 = vmatprep.subr.bf16.mxu0 0
    %4659 = vmatpush2.bf16.msra.mxu0 0
    %4660 = vmatprep.subr.bf16.mxu0 0
    %4661 = vmatpush2.bf16.msra.mxu0 0
    %4662 = vmatprep.subr.bf16.mxu0 0
    %4663 = vmatpush2.bf16.msra.mxu0 0
    %4664 = vmatprep.subr.bf16.mxu0 0
    %4665 = vmatpush2.bf16.msra.mxu0 0
    %4666 = vmatprep.mubr.bf16.mxu0 0
    %4667 = vmatmul.mubr.bf16.gmra.mxu0 %v4632
    %v4668 = vpop.f32.mrf.mxu0
    %v4669 = vadd.f32 0.0, %v4668
    %v4670 = vpop.f32.mrf.mxu0
    %v4671 = vpop.f32.mrf.mxu0
    %v4672 = vadd.f32 0.0, %v4671
    %v4673 = vpop.f32.mrf.mxu0
    %4674 = vdwg.mxu0
    %v4675 = vpack.c.bf16 %v4343, %v4340
    %v4676 = vpack.c.bf16 %v4390, %v4387
    %v4677 = vpack.c.bf16 %v4437, %v4434
    %v4678 = vpack.c.bf16 %v4484, %v4481
    %v4679 = vpack.c.bf16 %v4531, %v4528
    %v4680 = vpack.c.bf16 %v4578, %v4575
    %v4681 = vpack.c.bf16 %v4625, %v4622
    %v4682 = vpack.c.bf16 %v4672, %v4669
    %s4683 = scalar_lea.vmem [#allocation7], 12
    %v4684 = vld [vmem:[%s4683] sm:$0xf]
    %v4686 = vsel %vm394, %v4675, 0
    %v4689 = vsel %vm394, %v4676, 0
    %v4692 = vsel %vm394, %v4677, 0
    %v4695 = vsel %vm394, %v4678, 0
    %v4698 = vsel %vm394, %v4679, 0
    %v4701 = vsel %vm394, %v4680, 0
    %v4704 = vsel %vm394, %v4681, 0
    %v4707 = vsel %vm394, %v4682, 0
    %v4710 = vsel %vm2364, %v4684, 0
    %4712 = vmatprep.subr.bf16.mxu0 0
    %4713 = vmatpush1.bf16.msra.mxu0 0
    %4714 = vmatprep.subr.bf16.mxu0 0
    %4715 = vmatpush1.bf16.msra.mxu0 0
    %4716 = vmatprep.subr.bf16.mxu0 0
    %4717 = vmatpush1.bf16.msra.mxu0 0
    %4718 = vmatprep.subr.bf16.mxu0 0
    %4719 = vmatpush1.bf16.msra.mxu0 0
    %4720 = vmatprep.subr.bf16.mxu0 0
    %4721 = vmatpush1.bf16.msra.mxu0 0
    %4722 = vmatprep.subr.bf16.mxu0 0
    %4723 = vmatpush1.bf16.msra.mxu0 0
    %4724 = vmatprep.subr.bf16.mxu0 0
    %4725 = vmatpush1.bf16.msra.mxu0 0
    %4726 = vmatprep.subr.bf16.mxu0 0
    %4727 = vmatpush1.bf16.msra.mxu0 %v4710
    %4728 = vmatprep.subr.bf16.mxu0 0
    %4729 = vmatpush2.bf16.msra.mxu0 0
    %4730 = vmatprep.subr.bf16.mxu0 0
    %4731 = vmatpush2.bf16.msra.mxu0 0
    %4732 = vmatprep.subr.bf16.mxu0 0
    %4733 = vmatpush2.bf16.msra.mxu0 0
    %4734 = vmatprep.subr.bf16.mxu0 0
    %4735 = vmatpush2.bf16.msra.mxu0 0
    %4736 = vmatprep.subr.bf16.mxu0 0
    %4737 = vmatpush2.bf16.msra.mxu0 0
    %4738 = vmatprep.subr.bf16.mxu0 0
    %4739 = vmatpush2.bf16.msra.mxu0 0
    %4740 = vmatprep.subr.bf16.mxu0 0
    %4741 = vmatpush2.bf16.msra.mxu0 0
    %4742 = vmatprep.subr.bf16.mxu0 0
    %4743 = vmatpush2.bf16.msra.mxu0 0
    %4744 = vmatprep.mubr.bf16.mxu0 0
    %4745 = vmatmul.mubr.bf16.gmra.mxu0 %v4686
    %v4746 = vpop.f32.mrf.mxu0
    %v4747 = vadd.f32 0.0, %v4746
    %v4748 = vpop.f32.mrf.mxu0
    %v4749 = vpop.f32.mrf.mxu0
    %v4750 = vadd.f32 0.0, %v4749
    %v4751 = vpop.f32.mrf.mxu0
    %4752 = vmatprep.mubr.bf16.mxu0 0
    %4753 = vmatmul.mubr.bf16.gmra.mxu0 %v4689
    %v4754 = vpop.f32.mrf.mxu0
    %v4755 = vadd.f32 0.0, %v4754
    %v4756 = vpop.f32.mrf.mxu0
    %v4757 = vpop.f32.mrf.mxu0
    %v4758 = vadd.f32 0.0, %v4757
    %v4759 = vpop.f32.mrf.mxu0
    %4760 = vmatprep.mubr.bf16.mxu0 0
    %4761 = vmatmul.mubr.bf16.gmra.mxu0 %v4692
    %v4762 = vpop.f32.mrf.mxu0
    %v4763 = vadd.f32 0.0, %v4762
    %v4764 = vpop.f32.mrf.mxu0
    %v4765 = vpop.f32.mrf.mxu0
    %v4766 = vadd.f32 0.0, %v4765
    %v4767 = vpop.f32.mrf.mxu0
    %4768 = vmatprep.mubr.bf16.mxu0 0
    %4769 = vmatmul.mubr.bf16.gmra.mxu0 %v4695
    %v4770 = vpop.f32.mrf.mxu0
    %v4771 = vadd.f32 0.0, %v4770
    %v4772 = vpop.f32.mrf.mxu0
    %v4773 = vpop.f32.mrf.mxu0
    %v4774 = vadd.f32 0.0, %v4773
    %v4775 = vpop.f32.mrf.mxu0
    %4776 = vmatprep.mubr.bf16.mxu0 0
    %4777 = vmatmul.mubr.bf16.gmra.mxu0 %v4698
    %v4778 = vpop.f32.mrf.mxu0
    %v4779 = vadd.f32 0.0, %v4778
    %v4780 = vpop.f32.mrf.mxu0
    %v4781 = vpop.f32.mrf.mxu0
    %v4782 = vadd.f32 0.0, %v4781
    %v4783 = vpop.f32.mrf.mxu0
    %4784 = vmatprep.mubr.bf16.mxu0 0
    %4785 = vmatmul.mubr.bf16.gmra.mxu0 %v4701
    %v4786 = vpop.f32.mrf.mxu0
    %v4787 = vadd.f32 0.0, %v4786
    %v4788 = vpop.f32.mrf.mxu0
    %v4789 = vpop.f32.mrf.mxu0
    %v4790 = vadd.f32 0.0, %v4789
    %v4791 = vpop.f32.mrf.mxu0
    %4792 = vmatprep.mubr.bf16.mxu0 0
    %4793 = vmatmul.mubr.bf16.gmra.mxu0 %v4704
    %v4794 = vpop.f32.mrf.mxu0
    %v4795 = vadd.f32 0.0, %v4794
    %v4796 = vpop.f32.mrf.mxu0
    %v4797 = vpop.f32.mrf.mxu0
    %v4798 = vadd.f32 0.0, %v4797
    %v4799 = vpop.f32.mrf.mxu0
    %4800 = vmatprep.mubr.bf16.mxu0 0
    %4801 = vmatmul.mubr.bf16.gmra.mxu0 %v4707
    %v4802 = vpop.f32.mrf.mxu0
    %v4803 = vadd.f32 0.0, %v4802
    %v4804 = vpop.f32.mrf.mxu0
    %v4805 = vpop.f32.mrf.mxu0
    %v4806 = vadd.f32 0.0, %v4805
    %v4807 = vpop.f32.mrf.mxu0
    %4808 = vdwg.mxu0
    %v4809 = vadd.f32 %v3691, %v4747
    %v4810 = vadd.f32 %v3692, %v4750
    %v4811 = vadd.f32 %v3693, %v4755
    %v4812 = vadd.f32 %v3694, %v4758
    %v4813 = vadd.f32 %v3695, %v4763
    %v4814 = vadd.f32 %v3696, %v4766
    %v4815 = vadd.f32 %v3697, %v4771
    %v4816 = vadd.f32 %v3698, %v4774
    %v4817 = vadd.f32 %v3699, %v4779
    %v4818 = vadd.f32 %v3700, %v4782
    %v4819 = vadd.f32 %v3701, %v4787
    %v4820 = vadd.f32 %v3702, %v4790
    %v4821 = vadd.f32 %v3703, %v4795
    %v4822 = vadd.f32 %v3704, %v4798
    %v4823 = vadd.f32 %v3705, %v4803
    %v4824 = vadd.f32 %v3706, %v4806
    %v4825 = vadd.f32 %v214, %v4809
    %v4826 = vadd.f32 %v215, %v4810
    %v4827 = vadd.f32 %v216, %v4811
    %v4828 = vadd.f32 %v217, %v4812
    %v4829 = vadd.f32 %v218, %v4813
    %v4830 = vadd.f32 %v219, %v4814
    %v4831 = vadd.f32 %v220, %v4815
    %v4832 = vadd.f32 %v221, %v4816
    %v4833 = vadd.f32 %v222, %v4817
    %v4834 = vadd.f32 %v223, %v4818
    %v4835 = vadd.f32 %v224, %v4819
    %v4836 = vadd.f32 %v225, %v4820
    %v4837 = vadd.f32 %v226, %v4821
    %v4838 = vadd.f32 %v227, %v4822
    %v4839 = vadd.f32 %v228, %v4823
    %v4840 = vadd.f32 %v229, %v4824
    %v4841 = vld [vmem:[#allocation8] sm:$0x1]
    %v4843 = vlaneseq
    %v4844 = vshrl.u32 %v4843, 7
    %v4845 = vsub.s32 0, %v4844
    %v4846 = vrot.slane %v4841, %v4845
    %v4848 = vadd.f32 %v4825, %v4846
    %v4849 = vadd.f32 %v4826, %v4846
    %v4850 = vadd.f32 %v4827, %v4846
    %v4851 = vadd.f32 %v4828, %v4846
    %v4852 = vadd.f32 %v4829, %v4846
    %v4853 = vadd.f32 %v4830, %v4846
    %v4854 = vadd.f32 %v4831, %v4846
    %v4855 = vadd.f32 %v4832, %v4846
    %v4856 = vadd.f32 %v4833, %v4846
    %v4857 = vadd.f32 %v4834, %v4846
    %v4858 = vadd.f32 %v4835, %v4846
    %v4859 = vadd.f32 %v4836, %v4846
    %v4860 = vadd.f32 %v4837, %v4846
    %v4861 = vadd.f32 %v4838, %v4846
    %v4862 = vadd.f32 %v4839, %v4846
    %v4863 = vadd.f32 %v4840, %v4846
    %v4864 = vpack.c.bf16 %v4849, %v4848
    %v4865 = vpack.c.bf16 %v4851, %v4850
    %v4866 = vpack.c.bf16 %v4853, %v4852
    %v4867 = vpack.c.bf16 %v4855, %v4854
    %v4868 = vpack.c.bf16 %v4857, %v4856
    %v4869 = vpack.c.bf16 %v4859, %v4858
    %v4870 = vpack.c.bf16 %v4861, %v4860
    %v4871 = vpack.c.bf16 %v4863, %v4862
    %v4872 = vld [vmem:[%s1] sm:$0xff]
    %v4873 = vld [vmem:[%s1 + $0x8] sm:$0xff]
    %v4874 = vpack.c.bf16 %v4873, %v4872
    %v4875 = vld [vmem:[%s6] sm:$0xf]
    %v4876 = vld [vmem:[%s6 + $0x4] sm:$0xf]
    %v4877 = vld [vmem:[%s6 + $0x8] sm:$0xf]
    %v4878 = vld [vmem:[%s6 + $0xc] sm:$0xf]
    %v4879 = vld [vmem:[#allocation10] sm:$0x1]
    %v4881 = vlaneseq
    %v4882 = vshrl.u32 %v4881, 7
    %v4883 = vsub.s32 0, %v4882
    %v4884 = vrot.slane %v4879, %v4883
    %v4890 = vunpack.c.l.b16 %v4875
    %v4891 = vunpack.c.l.b16 %v4876
    %v4892 = vunpack.c.l.b16 %v4877
    %v4893 = vunpack.c.l.b16 %v4878
    %v4894 = vpack.c.b16 %v4891, %v4890
    %v4895 = vpack.c.b16 %v4893, %v4892
    %v4899 = vsel %vm261, %v4874, 0
    %4901 = vmatprep.subr.bf16.mxu0 0
    %4902 = vmatpush1.bf16.msra.mxu0 0
    %4903 = vmatprep.subr.bf16.mxu0 0
    %4904 = vmatpush1.bf16.msra.mxu0 0
    %4905 = vmatprep.subr.bf16.mxu0 0
    %4906 = vmatpush1.bf16.msra.mxu0 0
    %4907 = vmatprep.subr.bf16.mxu0 0
    %4908 = vmatpush1.bf16.msra.mxu0 0
    %4909 = vmatprep.subr.bf16.mxu0 0
    %4910 = vmatpush1.bf16.msra.mxu0 0
    %4911 = vmatprep.subr.bf16.mxu0 0
    %4912 = vmatpush1.bf16.msra.mxu0 0
    %4913 = vmatprep.subr.bf16.mxu0 0
    %4914 = vmatpush1.bf16.msra.mxu0 %v4895
    %4915 = vmatprep.subr.bf16.mxu0 0
    %4916 = vmatpush1.bf16.msra.mxu0 %v4894
    %4917 = vmatprep.subr.bf16.mxu0 0
    %4918 = vmatpush2.bf16.msra.mxu0 0
    %4919 = vmatprep.subr.bf16.mxu0 0
    %4920 = vmatpush2.bf16.msra.mxu0 0
    %4921 = vmatprep.subr.bf16.mxu0 0
    %4922 = vmatpush2.bf16.msra.mxu0 0
    %4923 = vmatprep.subr.bf16.mxu0 0
    %4924 = vmatpush2.bf16.msra.mxu0 0
    %4925 = vmatprep.subr.bf16.mxu0 0
    %4926 = vmatpush2.bf16.msra.mxu0 0
    %4927 = vmatprep.subr.bf16.mxu0 0
    %4928 = vmatpush2.bf16.msra.mxu0 0
    %4929 = vmatprep.subr.bf16.mxu0 0
    %4930 = vmatpush2.bf16.msra.mxu0 0
    %4931 = vmatprep.subr.bf16.mxu0 0
    %4932 = vmatpush2.bf16.msra.mxu0 0
    %4933 = vmatprep.mubr.bf16.mxu0 0
    %4934 = vmatmul.mubr.bf16.gmra.mxu0 %v4899
    %v4935 = vpop.f32.mrf.mxu0
    %v4936 = vadd.f32 %v4884, %v4935
    %v4937 = vpop.f32.mrf.mxu0
    %v4938 = vpop.f32.mrf.mxu0
    %v4939 = vadd.f32 %v4884, %v4938
    %v4940 = vpop.f32.mrf.mxu0
    %4941 = vdwg.mxu0
    %v4942 = vpack.c.bf16 %v4939, %v4936
    %v4944 = vcombine.high %v4942, %v4942
    %v4946 = vunpack.c.l.s4 1966171168
    %v4947 = vunpack.c.0.s8 %v4946
    %v4948 = vlaneseq
    %v4949 = vshrl.u32 %v4948, 7
    %v4950 = vsub.s32 %v4947, %v4949
    %v4951 = vrot.slane %v4942, %v4950
    %v4953 = vunpack.c.l.s4 1966171168
    %v4954 = vunpack.c.0.s8 %v4953
    %v4955 = vlaneseq
    %v4956 = vshrl.u32 %v4955, 7
    %v4957 = vsub.s32 %v4954, %v4956
    %v4958 = vrot.slane %v4944, %v4957
    %v4959 = vcombine.high %v4951, %v4951
    %v4960 = vcombine.high %v4958, %v4958
    %v4962 = vunpack.c.l.s4 1966171168
    %v4963 = vunpack.c.0.s8 %v4962
    %v4964 = vlaneseq
    %v4965 = vshrl.u32 %v4964, 7
    %v4966 = vsub.s32 %v4963, %v4965
    %v4967 = vrot.slane %v4951, %v4966
    %v4969 = vunpack.c.l.s4 1966171168
    %v4970 = vunpack.c.0.s8 %v4969
    %v4971 = vlaneseq
    %v4972 = vshrl.u32 %v4971, 7
    %v4973 = vsub.s32 %v4970, %v4972
    %v4974 = vrot.slane %v4958, %v4973
    %v4976 = vunpack.c.l.s4 1966171168
    %v4977 = vunpack.c.0.s8 %v4976
    %v4978 = vlaneseq
    %v4979 = vshrl.u32 %v4978, 7
    %v4980 = vsub.s32 %v4977, %v4979
    %v4981 = vrot.slane %v4959, %v4980
    %v4983 = vunpack.c.l.s4 1966171168
    %v4984 = vunpack.c.0.s8 %v4983
    %v4985 = vlaneseq
    %v4986 = vshrl.u32 %v4985, 7
    %v4987 = vsub.s32 %v4984, %v4986
    %v4988 = vrot.slane %v4960, %v4987
    %v4989 = vcombine.high %v4967, %v4967
    %v4990 = vcombine.high %v4974, %v4974
    %v4991 = vcombine.high %v4981, %v4981
    %v4992 = vcombine.high %v4988, %v4988
    %v4993 = vld [vmem:[#allocation11] sm:$0xf]
    %v4994 = vld [vmem:[#allocation11 + $0x4] sm:$0xf]
    %v4995 = vld [vmem:[#allocation11 + $0x8] sm:$0xf]
    %v4996 = vld [vmem:[#allocation11 + $0xc] sm:$0xf]
    %v4997 = vld [vmem:[#allocation13] sm:$0x1]
    %v4999 = vlaneseq
    %v5000 = vshrl.u32 %v4999, 7
    %v5001 = vsub.s32 0, %v5000
    %v5002 = vrot.slane %v4997, %v5001
    %v5008 = vunpack.c.l.b16 %v4993
    %v5009 = vunpack.c.l.b16 %v4994
    %v5010 = vunpack.c.l.b16 %v4995
    %v5011 = vunpack.c.l.b16 %v4996
    %v5012 = vpack.c.b16 %v5009, %v5008
    %v5013 = vpack.c.b16 %v5011, %v5010
    %v5017 = vsel %vm261, %v4864, 0
    %v5020 = vsel %vm261, %v4865, 0
    %v5023 = vsel %vm261, %v4866, 0
    %v5026 = vsel %vm261, %v4867, 0
    %v5029 = vsel %vm261, %v4868, 0
    %v5032 = vsel %vm261, %v4869, 0
    %v5035 = vsel %vm261, %v4870, 0
    %v5038 = vsel %vm261, %v4871, 0
    %5040 = vmatprep.subr.bf16.mxu0 0
    %5041 = vmatpush1.bf16.msra.mxu0 0
    %5042 = vmatprep.subr.bf16.mxu0 0
    %5043 = vmatpush1.bf16.msra.mxu0 0
    %5044 = vmatprep.subr.bf16.mxu0 0
    %5045 = vmatpush1.bf16.msra.mxu0 0
    %5046 = vmatprep.subr.bf16.mxu0 0
    %5047 = vmatpush1.bf16.msra.mxu0 0
    %5048 = vmatprep.subr.bf16.mxu0 0
    %5049 = vmatpush1.bf16.msra.mxu0 0
    %5050 = vmatprep.subr.bf16.mxu0 0
    %5051 = vmatpush1.bf16.msra.mxu0 0
    %5052 = vmatprep.subr.bf16.mxu0 0
    %5053 = vmatpush1.bf16.msra.mxu0 %v5013
    %5054 = vmatprep.subr.bf16.mxu0 0
    %5055 = vmatpush1.bf16.msra.mxu0 %v5012
    %5056 = vmatprep.subr.bf16.mxu0 0
    %5057 = vmatpush2.bf16.msra.mxu0 0
    %5058 = vmatprep.subr.bf16.mxu0 0
    %5059 = vmatpush2.bf16.msra.mxu0 0
    %5060 = vmatprep.subr.bf16.mxu0 0
    %5061 = vmatpush2.bf16.msra.mxu0 0
    %5062 = vmatprep.subr.bf16.mxu0 0
    %5063 = vmatpush2.bf16.msra.mxu0 0
    %5064 = vmatprep.subr.bf16.mxu0 0
    %5065 = vmatpush2.bf16.msra.mxu0 0
    %5066 = vmatprep.subr.bf16.mxu0 0
    %5067 = vmatpush2.bf16.msra.mxu0 0
    %5068 = vmatprep.subr.bf16.mxu0 0
    %5069 = vmatpush2.bf16.msra.mxu0 0
    %5070 = vmatprep.subr.bf16.mxu0 0
    %5071 = vmatpush2.bf16.msra.mxu0 0
    %5072 = vmatprep.mubr.bf16.mxu0 0
    %5073 = vmatmul.mubr.bf16.gmra.mxu0 %v5017
    %v5074 = vpop.f32.mrf.mxu0
    %v5075 = vadd.f32 %v5002, %v5074
    %v5076 = vpop.f32.mrf.mxu0
    %v5077 = vpop.f32.mrf.mxu0
    %v5078 = vadd.f32 %v5002, %v5077
    %v5079 = vpop.f32.mrf.mxu0
    %5080 = vmatprep.mubr.bf16.mxu0 0
    %5081 = vmatmul.mubr.bf16.gmra.mxu0 %v5020
    %v5082 = vpop.f32.mrf.mxu0
    %v5083 = vadd.f32 %v5002, %v5082
    %v5084 = vpop.f32.mrf.mxu0
    %v5085 = vpop.f32.mrf.mxu0
    %v5086 = vadd.f32 %v5002, %v5085
    %v5087 = vpop.f32.mrf.mxu0
    %5088 = vmatprep.mubr.bf16.mxu0 0
    %5089 = vmatmul.mubr.bf16.gmra.mxu0 %v5023
    %v5090 = vpop.f32.mrf.mxu0
    %v5091 = vadd.f32 %v5002, %v5090
    %v5092 = vpop.f32.mrf.mxu0
    %v5093 = vpop.f32.mrf.mxu0
    %v5094 = vadd.f32 %v5002, %v5093
    %v5095 = vpop.f32.mrf.mxu0
    %5096 = vmatprep.mubr.bf16.mxu0 0
    %5097 = vmatmul.mubr.bf16.gmra.mxu0 %v5026
    %v5098 = vpop.f32.mrf.mxu0
    %v5099 = vadd.f32 %v5002, %v5098
    %v5100 = vpop.f32.mrf.mxu0
    %v5101 = vpop.f32.mrf.mxu0
    %v5102 = vadd.f32 %v5002, %v5101
    %v5103 = vpop.f32.mrf.mxu0
    %5104 = vmatprep.mubr.bf16.mxu0 0
    %5105 = vmatmul.mubr.bf16.gmra.mxu0 %v5029
    %v5106 = vpop.f32.mrf.mxu0
    %v5107 = vadd.f32 %v5002, %v5106
    %v5108 = vpop.f32.mrf.mxu0
    %v5109 = vpop.f32.mrf.mxu0
    %v5110 = vadd.f32 %v5002, %v5109
    %v5111 = vpop.f32.mrf.mxu0
    %5112 = vmatprep.mubr.bf16.mxu0 0
    %5113 = vmatmul.mubr.bf16.gmra.mxu0 %v5032
    %v5114 = vpop.f32.mrf.mxu0
    %v5115 = vadd.f32 %v5002, %v5114
    %v5116 = vpop.f32.mrf.mxu0
    %v5117 = vpop.f32.mrf.mxu0
    %v5118 = vadd.f32 %v5002, %v5117
    %v5119 = vpop.f32.mrf.mxu0
    %5120 = vmatprep.mubr.bf16.mxu0 0
    %5121 = vmatmul.mubr.bf16.gmra.mxu0 %v5035
    %v5122 = vpop.f32.mrf.mxu0
    %v5123 = vadd.f32 %v5002, %v5122
    %v5124 = vpop.f32.mrf.mxu0
    %v5125 = vpop.f32.mrf.mxu0
    %v5126 = vadd.f32 %v5002, %v5125
    %v5127 = vpop.f32.mrf.mxu0
    %5128 = vmatprep.mubr.bf16.mxu0 0
    %5129 = vmatmul.mubr.bf16.gmra.mxu0 %v5038
    %v5130 = vpop.f32.mrf.mxu0
    %v5131 = vadd.f32 %v5002, %v5130
    %v5132 = vpop.f32.mrf.mxu0
    %v5133 = vpop.f32.mrf.mxu0
    %v5134 = vadd.f32 %v5002, %v5133
    %v5135 = vpop.f32.mrf.mxu0
    %5136 = vdwg.mxu0
    %v5137 = vpack.c.bf16 %v5078, %v5075
    %v5138 = vpack.c.bf16 %v5086, %v5083
    %v5139 = vpack.c.bf16 %v5094, %v5091
    %v5140 = vpack.c.bf16 %v5102, %v5099
    %v5141 = vpack.c.bf16 %v5110, %v5107
    %v5142 = vpack.c.bf16 %v5118, %v5115
    %v5143 = vpack.c.bf16 %v5126, %v5123
    %v5144 = vpack.c.bf16 %v5134, %v5131
    %v5146 = vsel %vm394, %v4967, 0
    %v5149 = vsel %vm394, %v5137, 0
    %5151 = vmatprep.subr.bf16.mxu0 0
    %5152 = vmatpush1.bf16.xpose.msra.mxu0 0
    %5153 = vmatprep.subr.bf16.mxu0 0
    %5154 = vmatpush1.bf16.xpose.msra.mxu0 0
    %5155 = vmatprep.subr.bf16.mxu0 0
    %5156 = vmatpush1.bf16.xpose.msra.mxu0 0
    %5157 = vmatprep.subr.bf16.mxu0 0
    %5158 = vmatpush1.bf16.xpose.msra.mxu0 0
    %5159 = vmatprep.subr.bf16.mxu0 0
    %5160 = vmatpush1.bf16.xpose.msra.mxu0 0
    %5161 = vmatprep.subr.bf16.mxu0 0
    %5162 = vmatpush1.bf16.xpose.msra.mxu0 0
    %5163 = vmatprep.subr.bf16.mxu0 0
    %5164 = vmatpush1.bf16.xpose.msra.mxu0 0
    %5165 = vmatprep.subr.bf16.mxu0 0
    %5166 = vmatpush1.bf16.xpose.msra.mxu0 %v5149
    %5167 = vmatprep.subr.bf16.mxu0 0
    %5168 = vmatpush2.bf16.xpose.msra.mxu0 0
    %5169 = vmatprep.subr.bf16.mxu0 0
    %5170 = vmatpush2.bf16.xpose.msra.mxu0 0
    %5171 = vmatprep.subr.bf16.mxu0 0
    %5172 = vmatpush2.bf16.xpose.msra.mxu0 0
    %5173 = vmatprep.subr.bf16.mxu0 0
    %5174 = vmatpush2.bf16.xpose.msra.mxu0 0
    %5175 = vmatprep.subr.bf16.mxu0 0
    %5176 = vmatpush2.bf16.xpose.msra.mxu0 0
    %5177 = vmatprep.subr.bf16.mxu0 0
    %5178 = vmatpush2.bf16.xpose.msra.mxu0 0
    %5179 = vmatprep.subr.bf16.mxu0 0
    %5180 = vmatpush2.bf16.xpose.msra.mxu0 0
    %5181 = vmatprep.subr.bf16.mxu0 0
    %5182 = vmatpush2.bf16.xpose.msra.mxu0 0
    %5183 = vmatprep.mubr.bf16.mxu0 0
    %5184 = vmatmul.mubr.bf16.gmra.mxu0 %v5146
    %v5185 = vpop.f32.mrf.mxu0
    %v5186 = vadd.f32 0.0, %v5185
    %v5187 = vpop.f32.mrf.mxu0
    %v5188 = vpop.f32.mrf.mxu0
    %v5189 = vpop.f32.mrf.mxu0
    %5190 = vdwg.mxu0
    %v5192 = vsel %vm394, %v4981, 0
    %v5195 = vsel %vm394, %v5138, 0
    %5197 = vmatprep.subr.bf16.mxu0 0
    %5198 = vmatpush1.bf16.xpose.msra.mxu0 0
    %5199 = vmatprep.subr.bf16.mxu0 0
    %5200 = vmatpush1.bf16.xpose.msra.mxu0 0
    %5201 = vmatprep.subr.bf16.mxu0 0
    %5202 = vmatpush1.bf16.xpose.msra.mxu0 0
    %5203 = vmatprep.subr.bf16.mxu0 0
    %5204 = vmatpush1.bf16.xpose.msra.mxu0 0
    %5205 = vmatprep.subr.bf16.mxu0 0
    %5206 = vmatpush1.bf16.xpose.msra.mxu0 0
    %5207 = vmatprep.subr.bf16.mxu0 0
    %5208 = vmatpush1.bf16.xpose.msra.mxu0 0
    %5209 = vmatprep.subr.bf16.mxu0 0
    %5210 = vmatpush1.bf16.xpose.msra.mxu0 0
    %5211 = vmatprep.subr.bf16.mxu0 0
    %5212 = vmatpush1.bf16.xpose.msra.mxu0 %v5195
    %5213 = vmatprep.subr.bf16.mxu0 0
    %5214 = vmatpush2.bf16.xpose.msra.mxu0 0
    %5215 = vmatprep.subr.bf16.mxu0 0
    %5216 = vmatpush2.bf16.xpose.msra.mxu0 0
    %5217 = vmatprep.subr.bf16.mxu0 0
    %5218 = vmatpush2.bf16.xpose.msra.mxu0 0
    %5219 = vmatprep.subr.bf16.mxu0 0
    %5220 = vmatpush2.bf16.xpose.msra.mxu0 0
    %5221 = vmatprep.subr.bf16.mxu0 0
    %5222 = vmatpush2.bf16.xpose.msra.mxu0 0
    %5223 = vmatprep.subr.bf16.mxu0 0
    %5224 = vmatpush2.bf16.xpose.msra.mxu0 0
    %5225 = vmatprep.subr.bf16.mxu0 0
    %5226 = vmatpush2.bf16.xpose.msra.mxu0 0
    %5227 = vmatprep.subr.bf16.mxu0 0
    %5228 = vmatpush2.bf16.xpose.msra.mxu0 0
    %5229 = vmatprep.mubr.bf16.mxu0 0
    %5230 = vmatmul.mubr.bf16.gmra.mxu0 %v5192
    %v5231 = vpop.f32.mrf.mxu0
    %v5232 = vadd.f32 0.0, %v5231
    %v5233 = vpop.f32.mrf.mxu0
    %v5234 = vpop.f32.mrf.mxu0
    %v5235 = vpop.f32.mrf.mxu0
    %5236 = vdwg.mxu0
    %v5238 = vsel %vm394, %v4989, 0
    %v5241 = vsel %vm394, %v5139, 0
    %5243 = vmatprep.subr.bf16.mxu0 0
    %5244 = vmatpush1.bf16.xpose.msra.mxu0 0
    %5245 = vmatprep.subr.bf16.mxu0 0
    %5246 = vmatpush1.bf16.xpose.msra.mxu0 0
    %5247 = vmatprep.subr.bf16.mxu0 0
    %5248 = vmatpush1.bf16.xpose.msra.mxu0 0
    %5249 = vmatprep.subr.bf16.mxu0 0
    %5250 = vmatpush1.bf16.xpose.msra.mxu0 0
    %5251 = vmatprep.subr.bf16.mxu0 0
    %5252 = vmatpush1.bf16.xpose.msra.mxu0 0
    %5253 = vmatprep.subr.bf16.mxu0 0
    %5254 = vmatpush1.bf16.xpose.msra.mxu0 0
    %5255 = vmatprep.subr.bf16.mxu0 0
    %5256 = vmatpush1.bf16.xpose.msra.mxu0 0
    %5257 = vmatprep.subr.bf16.mxu0 0
    %5258 = vmatpush1.bf16.xpose.msra.mxu0 %v5241
    %5259 = vmatprep.subr.bf16.mxu0 0
    %5260 = vmatpush2.bf16.xpose.msra.mxu0 0
    %5261 = vmatprep.subr.bf16.mxu0 0
    %5262 = vmatpush2.bf16.xpose.msra.mxu0 0
    %5263 = vmatprep.subr.bf16.mxu0 0
    %5264 = vmatpush2.bf16.xpose.msra.mxu0 0
    %5265 = vmatprep.subr.bf16.mxu0 0
    %5266 = vmatpush2.bf16.xpose.msra.mxu0 0
    %5267 = vmatprep.subr.bf16.mxu0 0
    %5268 = vmatpush2.bf16.xpose.msra.mxu0 0
    %5269 = vmatprep.subr.bf16.mxu0 0
    %5270 = vmatpush2.bf16.xpose.msra.mxu0 0
    %5271 = vmatprep.subr.bf16.mxu0 0
    %5272 = vmatpush2.bf16.xpose.msra.mxu0 0
    %5273 = vmatprep.subr.bf16.mxu0 0
    %5274 = vmatpush2.bf16.xpose.msra.mxu0 0
    %5275 = vmatprep.mubr.bf16.mxu0 0
    %5276 = vmatmul.mubr.bf16.gmra.mxu0 %v5238
    %v5277 = vpop.f32.mrf.mxu0
    %v5278 = vadd.f32 0.0, %v5277
    %v5279 = vpop.f32.mrf.mxu0
    %v5280 = vpop.f32.mrf.mxu0
    %v5281 = vpop.f32.mrf.mxu0
    %5282 = vdwg.mxu0
    %v5284 = vsel %vm394, %v4991, 0
    %v5287 = vsel %vm394, %v5140, 0
    %5289 = vmatprep.subr.bf16.mxu0 0
    %5290 = vmatpush1.bf16.xpose.msra.mxu0 0
    %5291 = vmatprep.subr.bf16.mxu0 0
    %5292 = vmatpush1.bf16.xpose.msra.mxu0 0
    %5293 = vmatprep.subr.bf16.mxu0 0
    %5294 = vmatpush1.bf16.xpose.msra.mxu0 0
    %5295 = vmatprep.subr.bf16.mxu0 0
    %5296 = vmatpush1.bf16.xpose.msra.mxu0 0
    %5297 = vmatprep.subr.bf16.mxu0 0
    %5298 = vmatpush1.bf16.xpose.msra.mxu0 0
    %5299 = vmatprep.subr.bf16.mxu0 0
    %5300 = vmatpush1.bf16.xpose.msra.mxu0 0
    %5301 = vmatprep.subr.bf16.mxu0 0
    %5302 = vmatpush1.bf16.xpose.msra.mxu0 0
    %5303 = vmatprep.subr.bf16.mxu0 0
    %5304 = vmatpush1.bf16.xpose.msra.mxu0 %v5287
    %5305 = vmatprep.subr.bf16.mxu0 0
    %5306 = vmatpush2.bf16.xpose.msra.mxu0 0
    %5307 = vmatprep.subr.bf16.mxu0 0
    %5308 = vmatpush2.bf16.xpose.msra.mxu0 0
    %5309 = vmatprep.subr.bf16.mxu0 0
    %5310 = vmatpush2.bf16.xpose.msra.mxu0 0
    %5311 = vmatprep.subr.bf16.mxu0 0
    %5312 = vmatpush2.bf16.xpose.msra.mxu0 0
    %5313 = vmatprep.subr.bf16.mxu0 0
    %5314 = vmatpush2.bf16.xpose.msra.mxu0 0
    %5315 = vmatprep.subr.bf16.mxu0 0
    %5316 = vmatpush2.bf16.xpose.msra.mxu0 0
    %5317 = vmatprep.subr.bf16.mxu0 0
    %5318 = vmatpush2.bf16.xpose.msra.mxu0 0
    %5319 = vmatprep.subr.bf16.mxu0 0
    %5320 = vmatpush2.bf16.xpose.msra.mxu0 0
    %5321 = vmatprep.mubr.bf16.mxu0 0
    %5322 = vmatmul.mubr.bf16.gmra.mxu0 %v5284
    %v5323 = vpop.f32.mrf.mxu0
    %v5324 = vadd.f32 0.0, %v5323
    %v5325 = vpop.f32.mrf.mxu0
    %v5326 = vpop.f32.mrf.mxu0
    %v5327 = vpop.f32.mrf.mxu0
    %5328 = vdwg.mxu0
    %v5330 = vsel %vm394, %v4974, 0
    %v5333 = vsel %vm394, %v5141, 0
    %5335 = vmatprep.subr.bf16.mxu0 0
    %5336 = vmatpush1.bf16.xpose.msra.mxu0 0
    %5337 = vmatprep.subr.bf16.mxu0 0
    %5338 = vmatpush1.bf16.xpose.msra.mxu0 0
    %5339 = vmatprep.subr.bf16.mxu0 0
    %5340 = vmatpush1.bf16.xpose.msra.mxu0 0
    %5341 = vmatprep.subr.bf16.mxu0 0
    %5342 = vmatpush1.bf16.xpose.msra.mxu0 0
    %5343 = vmatprep.subr.bf16.mxu0 0
    %5344 = vmatpush1.bf16.xpose.msra.mxu0 0
    %5345 = vmatprep.subr.bf16.mxu0 0
    %5346 = vmatpush1.bf16.xpose.msra.mxu0 0
    %5347 = vmatprep.subr.bf16.mxu0 0
    %5348 = vmatpush1.bf16.xpose.msra.mxu0 0
    %5349 = vmatprep.subr.bf16.mxu0 0
    %5350 = vmatpush1.bf16.xpose.msra.mxu0 %v5333
    %5351 = vmatprep.subr.bf16.mxu0 0
    %5352 = vmatpush2.bf16.xpose.msra.mxu0 0
    %5353 = vmatprep.subr.bf16.mxu0 0
    %5354 = vmatpush2.bf16.xpose.msra.mxu0 0
    %5355 = vmatprep.subr.bf16.mxu0 0
    %5356 = vmatpush2.bf16.xpose.msra.mxu0 0
    %5357 = vmatprep.subr.bf16.mxu0 0
    %5358 = vmatpush2.bf16.xpose.msra.mxu0 0
    %5359 = vmatprep.subr.bf16.mxu0 0
    %5360 = vmatpush2.bf16.xpose.msra.mxu0 0
    %5361 = vmatprep.subr.bf16.mxu0 0
    %5362 = vmatpush2.bf16.xpose.msra.mxu0 0
    %5363 = vmatprep.subr.bf16.mxu0 0
    %5364 = vmatpush2.bf16.xpose.msra.mxu0 0
    %5365 = vmatprep.subr.bf16.mxu0 0
    %5366 = vmatpush2.bf16.xpose.msra.mxu0 0
    %5367 = vmatprep.mubr.bf16.mxu0 0
    %5368 = vmatmul.mubr.bf16.gmra.mxu0 %v5330
    %v5369 = vpop.f32.mrf.mxu0
    %v5370 = vadd.f32 0.0, %v5369
    %v5371 = vpop.f32.mrf.mxu0
    %v5372 = vpop.f32.mrf.mxu0
    %v5373 = vpop.f32.mrf.mxu0
    %5374 = vdwg.mxu0
    %v5376 = vsel %vm394, %v4988, 0
    %v5379 = vsel %vm394, %v5142, 0
    %5381 = vmatprep.subr.bf16.mxu0 0
    %5382 = vmatpush1.bf16.xpose.msra.mxu0 0
    %5383 = vmatprep.subr.bf16.mxu0 0
    %5384 = vmatpush1.bf16.xpose.msra.mxu0 0
    %5385 = vmatprep.subr.bf16.mxu0 0
    %5386 = vmatpush1.bf16.xpose.msra.mxu0 0
    %5387 = vmatprep.subr.bf16.mxu0 0
    %5388 = vmatpush1.bf16.xpose.msra.mxu0 0
    %5389 = vmatprep.subr.bf16.mxu0 0
    %5390 = vmatpush1.bf16.xpose.msra.mxu0 0
    %5391 = vmatprep.subr.bf16.mxu0 0
    %5392 = vmatpush1.bf16.xpose.msra.mxu0 0
    %5393 = vmatprep.subr.bf16.mxu0 0
    %5394 = vmatpush1.bf16.xpose.msra.mxu0 0
    %5395 = vmatprep.subr.bf16.mxu0 0
    %5396 = vmatpush1.bf16.xpose.msra.mxu0 %v5379
    %5397 = vmatprep.subr.bf16.mxu0 0
    %5398 = vmatpush2.bf16.xpose.msra.mxu0 0
    %5399 = vmatprep.subr.bf16.mxu0 0
    %5400 = vmatpush2.bf16.xpose.msra.mxu0 0
    %5401 = vmatprep.subr.bf16.mxu0 0
    %5402 = vmatpush2.bf16.xpose.msra.mxu0 0
    %5403 = vmatprep.subr.bf16.mxu0 0
    %5404 = vmatpush2.bf16.xpose.msra.mxu0 0
    %5405 = vmatprep.subr.bf16.mxu0 0
    %5406 = vmatpush2.bf16.xpose.msra.mxu0 0
    %5407 = vmatprep.subr.bf16.mxu0 0
    %5408 = vmatpush2.bf16.xpose.msra.mxu0 0
    %5409 = vmatprep.subr.bf16.mxu0 0
    %5410 = vmatpush2.bf16.xpose.msra.mxu0 0
    %5411 = vmatprep.subr.bf16.mxu0 0
    %5412 = vmatpush2.bf16.xpose.msra.mxu0 0
    %5413 = vmatprep.mubr.bf16.mxu0 0
    %5414 = vmatmul.mubr.bf16.gmra.mxu0 %v5376
    %v5415 = vpop.f32.mrf.mxu0
    %v5416 = vadd.f32 0.0, %v5415
    %v5417 = vpop.f32.mrf.mxu0
    %v5418 = vpop.f32.mrf.mxu0
    %v5419 = vpop.f32.mrf.mxu0
    %5420 = vdwg.mxu0
    %v5422 = vsel %vm394, %v4990, 0
    %v5425 = vsel %vm394, %v5143, 0
    %5427 = vmatprep.subr.bf16.mxu0 0
    %5428 = vmatpush1.bf16.xpose.msra.mxu0 0
    %5429 = vmatprep.subr.bf16.mxu0 0
    %5430 = vmatpush1.bf16.xpose.msra.mxu0 0
    %5431 = vmatprep.subr.bf16.mxu0 0
    %5432 = vmatpush1.bf16.xpose.msra.mxu0 0
    %5433 = vmatprep.subr.bf16.mxu0 0
    %5434 = vmatpush1.bf16.xpose.msra.mxu0 0
    %5435 = vmatprep.subr.bf16.mxu0 0
    %5436 = vmatpush1.bf16.xpose.msra.mxu0 0
    %5437 = vmatprep.subr.bf16.mxu0 0
    %5438 = vmatpush1.bf16.xpose.msra.mxu0 0
    %5439 = vmatprep.subr.bf16.mxu0 0
    %5440 = vmatpush1.bf16.xpose.msra.mxu0 0
    %5441 = vmatprep.subr.bf16.mxu0 0
    %5442 = vmatpush1.bf16.xpose.msra.mxu0 %v5425
    %5443 = vmatprep.subr.bf16.mxu0 0
    %5444 = vmatpush2.bf16.xpose.msra.mxu0 0
    %5445 = vmatprep.subr.bf16.mxu0 0
    %5446 = vmatpush2.bf16.xpose.msra.mxu0 0
    %5447 = vmatprep.subr.bf16.mxu0 0
    %5448 = vmatpush2.bf16.xpose.msra.mxu0 0
    %5449 = vmatprep.subr.bf16.mxu0 0
    %5450 = vmatpush2.bf16.xpose.msra.mxu0 0
    %5451 = vmatprep.subr.bf16.mxu0 0
    %5452 = vmatpush2.bf16.xpose.msra.mxu0 0
    %5453 = vmatprep.subr.bf16.mxu0 0
    %5454 = vmatpush2.bf16.xpose.msra.mxu0 0
    %5455 = vmatprep.subr.bf16.mxu0 0
    %5456 = vmatpush2.bf16.xpose.msra.mxu0 0
    %5457 = vmatprep.subr.bf16.mxu0 0
    %5458 = vmatpush2.bf16.xpose.msra.mxu0 0
    %5459 = vmatprep.mubr.bf16.mxu0 0
    %5460 = vmatmul.mubr.bf16.gmra.mxu0 %v5422
    %v5461 = vpop.f32.mrf.mxu0
    %v5462 = vadd.f32 0.0, %v5461
    %v5463 = vpop.f32.mrf.mxu0
    %v5464 = vpop.f32.mrf.mxu0
    %v5465 = vpop.f32.mrf.mxu0
    %5466 = vdwg.mxu0
    %v5468 = vsel %vm394, %v4992, 0
    %v5471 = vsel %vm394, %v5144, 0
    %5473 = vmatprep.subr.bf16.mxu0 0
    %5474 = vmatpush1.bf16.xpose.msra.mxu0 0
    %5475 = vmatprep.subr.bf16.mxu0 0
    %5476 = vmatpush1.bf16.xpose.msra.mxu0 0
    %5477 = vmatprep.subr.bf16.mxu0 0
    %5478 = vmatpush1.bf16.xpose.msra.mxu0 0
    %5479 = vmatprep.subr.bf16.mxu0 0
    %5480 = vmatpush1.bf16.xpose.msra.mxu0 0
    %5481 = vmatprep.subr.bf16.mxu0 0
    %5482 = vmatpush1.bf16.xpose.msra.mxu0 0
    %5483 = vmatprep.subr.bf16.mxu0 0
    %5484 = vmatpush1.bf16.xpose.msra.mxu0 0
    %5485 = vmatprep.subr.bf16.mxu0 0
    %5486 = vmatpush1.bf16.xpose.msra.mxu0 0
    %5487 = vmatprep.subr.bf16.mxu0 0
    %5488 = vmatpush1.bf16.xpose.msra.mxu0 %v5471
    %5489 = vmatprep.subr.bf16.mxu0 0
    %5490 = vmatpush2.bf16.xpose.msra.mxu0 0
    %5491 = vmatprep.subr.bf16.mxu0 0
    %5492 = vmatpush2.bf16.xpose.msra.mxu0 0
    %5493 = vmatprep.subr.bf16.mxu0 0
    %5494 = vmatpush2.bf16.xpose.msra.mxu0 0
    %5495 = vmatprep.subr.bf16.mxu0 0
    %5496 = vmatpush2.bf16.xpose.msra.mxu0 0
    %5497 = vmatprep.subr.bf16.mxu0 0
    %5498 = vmatpush2.bf16.xpose.msra.mxu0 0
    %5499 = vmatprep.subr.bf16.mxu0 0
    %5500 = vmatpush2.bf16.xpose.msra.mxu0 0
    %5501 = vmatprep.subr.bf16.mxu0 0
    %5502 = vmatpush2.bf16.xpose.msra.mxu0 0
    %5503 = vmatprep.subr.bf16.mxu0 0
    %5504 = vmatpush2.bf16.xpose.msra.mxu0 0
    %5505 = vmatprep.mubr.bf16.mxu0 0
    %5506 = vmatmul.mubr.bf16.gmra.mxu0 %v5468
    %v5507 = vpop.f32.mrf.mxu0
    %v5508 = vadd.f32 0.0, %v5507
    %v5509 = vpop.f32.mrf.mxu0
    %v5510 = vpop.f32.mrf.mxu0
    %v5511 = vpop.f32.mrf.mxu0
    %5512 = vdwg.mxu0
    %vm5513 = vcmask 123904
    %v5514 = vsel %vm5513, %v5186, -inf
    %5515 = vmax.xlane.f32.xlu0 %v5514
    %v5516 = vpop.xlane.xlu0 %5515
    %v5517 = vsel %vm5513, %v5232, -inf
    %5518 = vmax.xlane.f32.xlu0 %v5517
    %v5519 = vpop.xlane.xlu0 %5518
    %v5520 = vsel %vm5513, %v5278, -inf
    %5521 = vmax.xlane.f32.xlu0 %v5520
    %v5522 = vpop.xlane.xlu0 %5521
    %v5523 = vsel %vm5513, %v5324, -inf
    %5524 = vmax.xlane.f32.xlu0 %v5523
    %v5525 = vpop.xlane.xlu0 %5524
    %v5526 = vsel %vm5513, %v5370, -inf
    %5527 = vmax.xlane.f32.xlu0 %v5526
    %v5528 = vpop.xlane.xlu0 %5527
    %v5529 = vsel %vm5513, %v5416, -inf
    %5530 = vmax.xlane.f32.xlu0 %v5529
    %v5531 = vpop.xlane.xlu0 %5530
    %v5532 = vsel %vm5513, %v5462, -inf
    %5533 = vmax.xlane.f32.xlu0 %v5532
    %v5534 = vpop.xlane.xlu0 %5533
    %v5535 = vsel %vm5513, %v5508, -inf
    %5536 = vmax.xlane.f32.xlu0 %v5535
    %v5537 = vpop.xlane.xlu0 %5536
    %v5538 = vsub.f32 %v5186, %v5516
    %v5539 = vsub.f32 %v5232, %v5519
    %v5540 = vsub.f32 %v5278, %v5522
    %v5541 = vsub.f32 %v5324, %v5525
    %v5542 = vsub.f32 %v5370, %v5528
    %v5543 = vsub.f32 %v5416, %v5531
    %v5544 = vsub.f32 %v5462, %v5534
    %v5545 = vsub.f32 %v5508, %v5537
    %v5546 = vmul.f32 %v5538, 1.442695
    %v5547 = vpow.pop %v5546
    %v5548 = vmul.f32 %v5539, 1.442695
    %v5549 = vpow.pop %v5548
    %v5550 = vmul.f32 %v5540, 1.442695
    %v5551 = vpow.pop %v5550
    %v5552 = vmul.f32 %v5541, 1.442695
    %v5553 = vpow.pop %v5552
    %v5554 = vmul.f32 %v5542, 1.442695
    %v5555 = vpow.pop %v5554
    %v5556 = vmul.f32 %v5543, 1.442695
    %v5557 = vpow.pop %v5556
    %v5558 = vmul.f32 %v5544, 1.442695
    %v5559 = vpow.pop %v5558
    %v5560 = vmul.f32 %v5545, 1.442695
    %v5561 = vpow.pop %v5560
    %v5562 = vsel %vm5513, %v5547, 0.0
    %5563 = vadd.xlane.f32.xlu0 %v5562
    %v5564 = vpop.xlane.xlu0 %5563
    %v5565 = vsel %vm5513, %v5549, 0.0
    %5566 = vadd.xlane.f32.xlu0 %v5565
    %v5567 = vpop.xlane.xlu0 %5566
    %v5568 = vsel %vm5513, %v5551, 0.0
    %5569 = vadd.xlane.f32.xlu0 %v5568
    %v5570 = vpop.xlane.xlu0 %5569
    %v5571 = vsel %vm5513, %v5553, 0.0
    %5572 = vadd.xlane.f32.xlu0 %v5571
    %v5573 = vpop.xlane.xlu0 %5572
    %v5574 = vsel %vm5513, %v5555, 0.0
    %5575 = vadd.xlane.f32.xlu0 %v5574
    %v5576 = vpop.xlane.xlu0 %5575
    %v5577 = vsel %vm5513, %v5557, 0.0
    %5578 = vadd.xlane.f32.xlu0 %v5577
    %v5579 = vpop.xlane.xlu0 %5578
    %v5580 = vsel %vm5513, %v5559, 0.0
    %5581 = vadd.xlane.f32.xlu0 %v5580
    %v5582 = vpop.xlane.xlu0 %5581
    %v5583 = vsel %vm5513, %v5561, 0.0
    %5584 = vadd.xlane.f32.xlu0 %v5583
    %v5585 = vpop.xlane.xlu0 %5584
    %v5586 = vrcp.pop %v5564
    %v5587 = vrcp.pop %v5567
    %v5588 = vrcp.pop %v5570
    %v5589 = vrcp.pop %v5573
    %v5590 = vrcp.pop %v5576
    %v5591 = vrcp.pop %v5579
    %v5592 = vrcp.pop %v5582
    %v5593 = vrcp.pop %v5585
    %v5594 = vmul.f32 %v5547, %v5586
    %v5595 = vmul.f32 %v5549, %v5587
    %v5596 = vmul.f32 %v5551, %v5588
    %v5597 = vmul.f32 %v5553, %v5589
    %v5598 = vmul.f32 %v5555, %v5590
    %v5599 = vmul.f32 %v5557, %v5591
    %v5600 = vmul.f32 %v5559, %v5592
    %v5601 = vmul.f32 %v5561, %v5593
    %v5602 = vpack.c.bf16 %v5594, %v5594
    %v5603 = vpack.c.bf16 %v5595, %v5595
    %v5604 = vpack.c.bf16 %v5596, %v5596
    %v5605 = vpack.c.bf16 %v5597, %v5597
    %v5606 = vpack.c.bf16 %v5598, %v5598
    %v5607 = vpack.c.bf16 %v5599, %v5599
    %v5608 = vpack.c.bf16 %v5600, %v5600
    %v5609 = vpack.c.bf16 %v5601, %v5601
    %5611 = vrot.lane.b32.xlu0 %v5137, 96
    %v5612 = vpop.permute.xlu0 %5611
    %v5615 = vsel %vm792, %v5602, 0
    %5617 = vmatprep.subr.bf16.mxu0 0
    %5618 = vmatpush1.bf16.msra.mxu0 0
    %5619 = vmatprep.subr.bf16.mxu0 0
    %5620 = vmatpush1.bf16.msra.mxu0 0
    %5621 = vmatprep.subr.bf16.mxu0 0
    %5622 = vmatpush1.bf16.msra.mxu0 0
    %5623 = vmatprep.subr.bf16.mxu0 0
    %5624 = vmatpush1.bf16.msra.mxu0 0
    %5625 = vmatprep.subr.bf16.mxu0 0
    %5626 = vmatpush1.bf16.msra.mxu0 0
    %5627 = vmatprep.subr.bf16.mxu0 0
    %5628 = vmatpush1.bf16.msra.mxu0 0
    %5629 = vmatprep.subr.bf16.mxu0 0
    %5630 = vmatpush1.bf16.msra.mxu0 0
    %5631 = vmatprep.subr.bf16.mxu0 0
    %5632 = vmatpush1.bf16.msra.mxu0 %v5612
    %5633 = vmatprep.subr.bf16.mxu0 0
    %5634 = vmatpush2.bf16.msra.mxu0 0
    %5635 = vmatprep.subr.bf16.mxu0 0
    %5636 = vmatpush2.bf16.msra.mxu0 0
    %5637 = vmatprep.subr.bf16.mxu0 0
    %5638 = vmatpush2.bf16.msra.mxu0 0
    %5639 = vmatprep.subr.bf16.mxu0 0
    %5640 = vmatpush2.bf16.msra.mxu0 0
    %5641 = vmatprep.subr.bf16.mxu0 0
    %5642 = vmatpush2.bf16.msra.mxu0 0
    %5643 = vmatprep.subr.bf16.mxu0 0
    %5644 = vmatpush2.bf16.msra.mxu0 0
    %5645 = vmatprep.subr.bf16.mxu0 0
    %5646 = vmatpush2.bf16.msra.mxu0 0
    %5647 = vmatprep.subr.bf16.mxu0 0
    %5648 = vmatpush2.bf16.msra.mxu0 0
    %5649 = vmatprep.mubr.bf16.mxu0 0
    %5650 = vmatmul.mubr.bf16.gmra.mxu0 %v5615
    %v5651 = vpop.f32.mrf.mxu0
    %v5652 = vadd.f32 0.0, %v5651
    %v5653 = vpop.f32.mrf.mxu0
    %v5654 = vpop.f32.mrf.mxu0
    %v5655 = vpop.f32.mrf.mxu0
    %5656 = vdwg.mxu0
    %5658 = vrot.lane.b32.xlu0 %v5138, 96
    %v5659 = vpop.permute.xlu0 %5658
    %v5662 = vsel %vm792, %v5603, 0
    %5664 = vmatprep.subr.bf16.mxu0 0
    %5665 = vmatpush1.bf16.msra.mxu0 0
    %5666 = vmatprep.subr.bf16.mxu0 0
    %5667 = vmatpush1.bf16.msra.mxu0 0
    %5668 = vmatprep.subr.bf16.mxu0 0
    %5669 = vmatpush1.bf16.msra.mxu0 0
    %5670 = vmatprep.subr.bf16.mxu0 0
    %5671 = vmatpush1.bf16.msra.mxu0 0
    %5672 = vmatprep.subr.bf16.mxu0 0
    %5673 = vmatpush1.bf16.msra.mxu0 0
    %5674 = vmatprep.subr.bf16.mxu0 0
    %5675 = vmatpush1.bf16.msra.mxu0 0
    %5676 = vmatprep.subr.bf16.mxu0 0
    %5677 = vmatpush1.bf16.msra.mxu0 0
    %5678 = vmatprep.subr.bf16.mxu0 0
    %5679 = vmatpush1.bf16.msra.mxu0 %v5659
    %5680 = vmatprep.subr.bf16.mxu0 0
    %5681 = vmatpush2.bf16.msra.mxu0 0
    %5682 = vmatprep.subr.bf16.mxu0 0
    %5683 = vmatpush2.bf16.msra.mxu0 0
    %5684 = vmatprep.subr.bf16.mxu0 0
    %5685 = vmatpush2.bf16.msra.mxu0 0
    %5686 = vmatprep.subr.bf16.mxu0 0
    %5687 = vmatpush2.bf16.msra.mxu0 0
    %5688 = vmatprep.subr.bf16.mxu0 0
    %5689 = vmatpush2.bf16.msra.mxu0 0
    %5690 = vmatprep.subr.bf16.mxu0 0
    %5691 = vmatpush2.bf16.msra.mxu0 0
    %5692 = vmatprep.subr.bf16.mxu0 0
    %5693 = vmatpush2.bf16.msra.mxu0 0
    %5694 = vmatprep.subr.bf16.mxu0 0
    %5695 = vmatpush2.bf16.msra.mxu0 0
    %5696 = vmatprep.mubr.bf16.mxu0 0
    %5697 = vmatmul.mubr.bf16.gmra.mxu0 %v5662
    %v5698 = vpop.f32.mrf.mxu0
    %v5699 = vadd.f32 0.0, %v5698
    %v5700 = vpop.f32.mrf.mxu0
    %v5701 = vpop.f32.mrf.mxu0
    %v5702 = vpop.f32.mrf.mxu0
    %5703 = vdwg.mxu0
    %5705 = vrot.lane.b32.xlu0 %v5139, 96
    %v5706 = vpop.permute.xlu0 %5705
    %v5709 = vsel %vm792, %v5604, 0
    %5711 = vmatprep.subr.bf16.mxu0 0
    %5712 = vmatpush1.bf16.msra.mxu0 0
    %5713 = vmatprep.subr.bf16.mxu0 0
    %5714 = vmatpush1.bf16.msra.mxu0 0
    %5715 = vmatprep.subr.bf16.mxu0 0
    %5716 = vmatpush1.bf16.msra.mxu0 0
    %5717 = vmatprep.subr.bf16.mxu0 0
    %5718 = vmatpush1.bf16.msra.mxu0 0
    %5719 = vmatprep.subr.bf16.mxu0 0
    %5720 = vmatpush1.bf16.msra.mxu0 0
    %5721 = vmatprep.subr.bf16.mxu0 0
    %5722 = vmatpush1.bf16.msra.mxu0 0
    %5723 = vmatprep.subr.bf16.mxu0 0
    %5724 = vmatpush1.bf16.msra.mxu0 0
    %5725 = vmatprep.subr.bf16.mxu0 0
    %5726 = vmatpush1.bf16.msra.mxu0 %v5706
    %5727 = vmatprep.subr.bf16.mxu0 0
    %5728 = vmatpush2.bf16.msra.mxu0 0
    %5729 = vmatprep.subr.bf16.mxu0 0
    %5730 = vmatpush2.bf16.msra.mxu0 0
    %5731 = vmatprep.subr.bf16.mxu0 0
    %5732 = vmatpush2.bf16.msra.mxu0 0
    %5733 = vmatprep.subr.bf16.mxu0 0
    %5734 = vmatpush2.bf16.msra.mxu0 0
    %5735 = vmatprep.subr.bf16.mxu0 0
    %5736 = vmatpush2.bf16.msra.mxu0 0
    %5737 = vmatprep.subr.bf16.mxu0 0
    %5738 = vmatpush2.bf16.msra.mxu0 0
    %5739 = vmatprep.subr.bf16.mxu0 0
    %5740 = vmatpush2.bf16.msra.mxu0 0
    %5741 = vmatprep.subr.bf16.mxu0 0
    %5742 = vmatpush2.bf16.msra.mxu0 0
    %5743 = vmatprep.mubr.bf16.mxu0 0
    %5744 = vmatmul.mubr.bf16.gmra.mxu0 %v5709
    %v5745 = vpop.f32.mrf.mxu0
    %v5746 = vadd.f32 0.0, %v5745
    %v5747 = vpop.f32.mrf.mxu0
    %v5748 = vpop.f32.mrf.mxu0
    %v5749 = vpop.f32.mrf.mxu0
    %5750 = vdwg.mxu0
    %5752 = vrot.lane.b32.xlu0 %v5140, 96
    %v5753 = vpop.permute.xlu0 %5752
    %v5756 = vsel %vm792, %v5605, 0
    %5758 = vmatprep.subr.bf16.mxu0 0
    %5759 = vmatpush1.bf16.msra.mxu0 0
    %5760 = vmatprep.subr.bf16.mxu0 0
    %5761 = vmatpush1.bf16.msra.mxu0 0
    %5762 = vmatprep.subr.bf16.mxu0 0
    %5763 = vmatpush1.bf16.msra.mxu0 0
    %5764 = vmatprep.subr.bf16.mxu0 0
    %5765 = vmatpush1.bf16.msra.mxu0 0
    %5766 = vmatprep.subr.bf16.mxu0 0
    %5767 = vmatpush1.bf16.msra.mxu0 0
    %5768 = vmatprep.subr.bf16.mxu0 0
    %5769 = vmatpush1.bf16.msra.mxu0 0
    %5770 = vmatprep.subr.bf16.mxu0 0
    %5771 = vmatpush1.bf16.msra.mxu0 0
    %5772 = vmatprep.subr.bf16.mxu0 0
    %5773 = vmatpush1.bf16.msra.mxu0 %v5753
    %5774 = vmatprep.subr.bf16.mxu0 0
    %5775 = vmatpush2.bf16.msra.mxu0 0
    %5776 = vmatprep.subr.bf16.mxu0 0
    %5777 = vmatpush2.bf16.msra.mxu0 0
    %5778 = vmatprep.subr.bf16.mxu0 0
    %5779 = vmatpush2.bf16.msra.mxu0 0
    %5780 = vmatprep.subr.bf16.mxu0 0
    %5781 = vmatpush2.bf16.msra.mxu0 0
    %5782 = vmatprep.subr.bf16.mxu0 0
    %5783 = vmatpush2.bf16.msra.mxu0 0
    %5784 = vmatprep.subr.bf16.mxu0 0
    %5785 = vmatpush2.bf16.msra.mxu0 0
    %5786 = vmatprep.subr.bf16.mxu0 0
    %5787 = vmatpush2.bf16.msra.mxu0 0
    %5788 = vmatprep.subr.bf16.mxu0 0
    %5789 = vmatpush2.bf16.msra.mxu0 0
    %5790 = vmatprep.mubr.bf16.mxu0 0
    %5791 = vmatmul.mubr.bf16.gmra.mxu0 %v5756
    %v5792 = vpop.f32.mrf.mxu0
    %v5793 = vadd.f32 0.0, %v5792
    %v5794 = vpop.f32.mrf.mxu0
    %v5795 = vpop.f32.mrf.mxu0
    %v5796 = vpop.f32.mrf.mxu0
    %5797 = vdwg.mxu0
    %5799 = vrot.lane.b32.xlu0 %v5141, 96
    %v5800 = vpop.permute.xlu0 %5799
    %v5803 = vsel %vm792, %v5606, 0
    %5805 = vmatprep.subr.bf16.mxu0 0
    %5806 = vmatpush1.bf16.msra.mxu0 0
    %5807 = vmatprep.subr.bf16.mxu0 0
    %5808 = vmatpush1.bf16.msra.mxu0 0
    %5809 = vmatprep.subr.bf16.mxu0 0
    %5810 = vmatpush1.bf16.msra.mxu0 0
    %5811 = vmatprep.subr.bf16.mxu0 0
    %5812 = vmatpush1.bf16.msra.mxu0 0
    %5813 = vmatprep.subr.bf16.mxu0 0
    %5814 = vmatpush1.bf16.msra.mxu0 0
    %5815 = vmatprep.subr.bf16.mxu0 0
    %5816 = vmatpush1.bf16.msra.mxu0 0
    %5817 = vmatprep.subr.bf16.mxu0 0
    %5818 = vmatpush1.bf16.msra.mxu0 0
    %5819 = vmatprep.subr.bf16.mxu0 0
    %5820 = vmatpush1.bf16.msra.mxu0 %v5800
    %5821 = vmatprep.subr.bf16.mxu0 0
    %5822 = vmatpush2.bf16.msra.mxu0 0
    %5823 = vmatprep.subr.bf16.mxu0 0
    %5824 = vmatpush2.bf16.msra.mxu0 0
    %5825 = vmatprep.subr.bf16.mxu0 0
    %5826 = vmatpush2.bf16.msra.mxu0 0
    %5827 = vmatprep.subr.bf16.mxu0 0
    %5828 = vmatpush2.bf16.msra.mxu0 0
    %5829 = vmatprep.subr.bf16.mxu0 0
    %5830 = vmatpush2.bf16.msra.mxu0 0
    %5831 = vmatprep.subr.bf16.mxu0 0
    %5832 = vmatpush2.bf16.msra.mxu0 0
    %5833 = vmatprep.subr.bf16.mxu0 0
    %5834 = vmatpush2.bf16.msra.mxu0 0
    %5835 = vmatprep.subr.bf16.mxu0 0
    %5836 = vmatpush2.bf16.msra.mxu0 0
    %5837 = vmatprep.mubr.bf16.mxu0 0
    %5838 = vmatmul.mubr.bf16.gmra.mxu0 %v5803
    %v5839 = vpop.f32.mrf.mxu0
    %v5840 = vadd.f32 0.0, %v5839
    %v5841 = vpop.f32.mrf.mxu0
    %v5842 = vpop.f32.mrf.mxu0
    %v5843 = vpop.f32.mrf.mxu0
    %5844 = vdwg.mxu0
    %5846 = vrot.lane.b32.xlu0 %v5142, 96
    %v5847 = vpop.permute.xlu0 %5846
    %v5850 = vsel %vm792, %v5607, 0
    %5852 = vmatprep.subr.bf16.mxu0 0
    %5853 = vmatpush1.bf16.msra.mxu0 0
    %5854 = vmatprep.subr.bf16.mxu0 0
    %5855 = vmatpush1.bf16.msra.mxu0 0
    %5856 = vmatprep.subr.bf16.mxu0 0
    %5857 = vmatpush1.bf16.msra.mxu0 0
    %5858 = vmatprep.subr.bf16.mxu0 0
    %5859 = vmatpush1.bf16.msra.mxu0 0
    %5860 = vmatprep.subr.bf16.mxu0 0
    %5861 = vmatpush1.bf16.msra.mxu0 0
    %5862 = vmatprep.subr.bf16.mxu0 0
    %5863 = vmatpush1.bf16.msra.mxu0 0
    %5864 = vmatprep.subr.bf16.mxu0 0
    %5865 = vmatpush1.bf16.msra.mxu0 0
    %5866 = vmatprep.subr.bf16.mxu0 0
    %5867 = vmatpush1.bf16.msra.mxu0 %v5847
    %5868 = vmatprep.subr.bf16.mxu0 0
    %5869 = vmatpush2.bf16.msra.mxu0 0
    %5870 = vmatprep.subr.bf16.mxu0 0
    %5871 = vmatpush2.bf16.msra.mxu0 0
    %5872 = vmatprep.subr.bf16.mxu0 0
    %5873 = vmatpush2.bf16.msra.mxu0 0
    %5874 = vmatprep.subr.bf16.mxu0 0
    %5875 = vmatpush2.bf16.msra.mxu0 0
    %5876 = vmatprep.subr.bf16.mxu0 0
    %5877 = vmatpush2.bf16.msra.mxu0 0
    %5878 = vmatprep.subr.bf16.mxu0 0
    %5879 = vmatpush2.bf16.msra.mxu0 0
    %5880 = vmatprep.subr.bf16.mxu0 0
    %5881 = vmatpush2.bf16.msra.mxu0 0
    %5882 = vmatprep.subr.bf16.mxu0 0
    %5883 = vmatpush2.bf16.msra.mxu0 0
    %5884 = vmatprep.mubr.bf16.mxu0 0
    %5885 = vmatmul.mubr.bf16.gmra.mxu0 %v5850
    %v5886 = vpop.f32.mrf.mxu0
    %v5887 = vadd.f32 0.0, %v5886
    %v5888 = vpop.f32.mrf.mxu0
    %v5889 = vpop.f32.mrf.mxu0
    %v5890 = vpop.f32.mrf.mxu0
    %5891 = vdwg.mxu0
    %5893 = vrot.lane.b32.xlu0 %v5143, 96
    %v5894 = vpop.permute.xlu0 %5893
    %v5897 = vsel %vm792, %v5608, 0
    %5899 = vmatprep.subr.bf16.mxu0 0
    %5900 = vmatpush1.bf16.msra.mxu0 0
    %5901 = vmatprep.subr.bf16.mxu0 0
    %5902 = vmatpush1.bf16.msra.mxu0 0
    %5903 = vmatprep.subr.bf16.mxu0 0
    %5904 = vmatpush1.bf16.msra.mxu0 0
    %5905 = vmatprep.subr.bf16.mxu0 0
    %5906 = vmatpush1.bf16.msra.mxu0 0
    %5907 = vmatprep.subr.bf16.mxu0 0
    %5908 = vmatpush1.bf16.msra.mxu0 0
    %5909 = vmatprep.subr.bf16.mxu0 0
    %5910 = vmatpush1.bf16.msra.mxu0 0
    %5911 = vmatprep.subr.bf16.mxu0 0
    %5912 = vmatpush1.bf16.msra.mxu0 0
    %5913 = vmatprep.subr.bf16.mxu0 0
    %5914 = vmatpush1.bf16.msra.mxu0 %v5894
    %5915 = vmatprep.subr.bf16.mxu0 0
    %5916 = vmatpush2.bf16.msra.mxu0 0
    %5917 = vmatprep.subr.bf16.mxu0 0
    %5918 = vmatpush2.bf16.msra.mxu0 0
    %5919 = vmatprep.subr.bf16.mxu0 0
    %5920 = vmatpush2.bf16.msra.mxu0 0
    %5921 = vmatprep.subr.bf16.mxu0 0
    %5922 = vmatpush2.bf16.msra.mxu0 0
    %5923 = vmatprep.subr.bf16.mxu0 0
    %5924 = vmatpush2.bf16.msra.mxu0 0
    %5925 = vmatprep.subr.bf16.mxu0 0
    %5926 = vmatpush2.bf16.msra.mxu0 0
    %5927 = vmatprep.subr.bf16.mxu0 0
    %5928 = vmatpush2.bf16.msra.mxu0 0
    %5929 = vmatprep.subr.bf16.mxu0 0
    %5930 = vmatpush2.bf16.msra.mxu0 0
    %5931 = vmatprep.mubr.bf16.mxu0 0
    %5932 = vmatmul.mubr.bf16.gmra.mxu0 %v5897
    %v5933 = vpop.f32.mrf.mxu0
    %v5934 = vadd.f32 0.0, %v5933
    %v5935 = vpop.f32.mrf.mxu0
    %v5936 = vpop.f32.mrf.mxu0
    %v5937 = vpop.f32.mrf.mxu0
    %5938 = vdwg.mxu0
    %5940 = vrot.lane.b32.xlu0 %v5144, 96
    %v5941 = vpop.permute.xlu0 %5940
    %v5944 = vsel %vm792, %v5609, 0
    %5946 = vmatprep.subr.bf16.mxu0 0
    %5947 = vmatpush1.bf16.msra.mxu0 0
    %5948 = vmatprep.subr.bf16.mxu0 0
    %5949 = vmatpush1.bf16.msra.mxu0 0
    %5950 = vmatprep.subr.bf16.mxu0 0
    %5951 = vmatpush1.bf16.msra.mxu0 0
    %5952 = vmatprep.subr.bf16.mxu0 0
    %5953 = vmatpush1.bf16.msra.mxu0 0
    %5954 = vmatprep.subr.bf16.mxu0 0
    %5955 = vmatpush1.bf16.msra.mxu0 0
    %5956 = vmatprep.subr.bf16.mxu0 0
    %5957 = vmatpush1.bf16.msra.mxu0 0
    %5958 = vmatprep.subr.bf16.mxu0 0
    %5959 = vmatpush1.bf16.msra.mxu0 0
    %5960 = vmatprep.subr.bf16.mxu0 0
    %5961 = vmatpush1.bf16.msra.mxu0 %v5941
    %5962 = vmatprep.subr.bf16.mxu0 0
    %5963 = vmatpush2.bf16.msra.mxu0 0
    %5964 = vmatprep.subr.bf16.mxu0 0
    %5965 = vmatpush2.bf16.msra.mxu0 0
    %5966 = vmatprep.subr.bf16.mxu0 0
    %5967 = vmatpush2.bf16.msra.mxu0 0
    %5968 = vmatprep.subr.bf16.mxu0 0
    %5969 = vmatpush2.bf16.msra.mxu0 0
    %5970 = vmatprep.subr.bf16.mxu0 0
    %5971 = vmatpush2.bf16.msra.mxu0 0
    %5972 = vmatprep.subr.bf16.mxu0 0
    %5973 = vmatpush2.bf16.msra.mxu0 0
    %5974 = vmatprep.subr.bf16.mxu0 0
    %5975 = vmatpush2.bf16.msra.mxu0 0
    %5976 = vmatprep.subr.bf16.mxu0 0
    %5977 = vmatpush2.bf16.msra.mxu0 0
    %5978 = vmatprep.mubr.bf16.mxu0 0
    %5979 = vmatmul.mubr.bf16.gmra.mxu0 %v5944
    %v5980 = vpop.f32.mrf.mxu0
    %v5981 = vadd.f32 0.0, %v5980
    %v5982 = vpop.f32.mrf.mxu0
    %v5983 = vpop.f32.mrf.mxu0
    %v5984 = vpop.f32.mrf.mxu0
    %5985 = vdwg.mxu0
    %v5994 = vcombine.low %v5652, %v5699
    %v5995 = vcombine.low %v5746, %v5793
    %v5997 = vunpack.c.l.s4 1983009808
    %v5998 = vunpack.c.0.s8 %v5997
    %v5999 = vlaneseq
    %v6000 = vshrl.u32 %v5999, 7
    %v6001 = vsub.s32 %v5998, %v6000
    %v6002 = vrot.slane %v5994, %v6001
    %v6004 = vunpack.c.l.s4 1983009808
    %v6005 = vunpack.c.0.s8 %v6004
    %v6006 = vlaneseq
    %v6007 = vshrl.u32 %v6006, 7
    %v6008 = vsub.s32 %v6005, %v6007
    %v6009 = vrot.slane %v5995, %v6008
    %v6010 = vcombine.low %v6002, %v6009
    %v6011 = vcombine.low %v5840, %v5887
    %v6012 = vcombine.low %v5934, %v5981
    %v6014 = vunpack.c.l.s4 1983009808
    %v6015 = vunpack.c.0.s8 %v6014
    %v6016 = vlaneseq
    %v6017 = vshrl.u32 %v6016, 7
    %v6018 = vsub.s32 %v6015, %v6017
    %v6019 = vrot.slane %v6011, %v6018
    %v6021 = vunpack.c.l.s4 1983009808
    %v6022 = vunpack.c.0.s8 %v6021
    %v6023 = vlaneseq
    %v6024 = vshrl.u32 %v6023, 7
    %v6025 = vsub.s32 %v6022, %v6024
    %v6026 = vrot.slane %v6012, %v6025
    %v6027 = vcombine.low %v6019, %v6026
    %v6030 = vpack.c.bf16 %v6027, %v6010
    %v6031 = vld [vmem:[#allocation14] sm:$0xf]
    %v6033 = vunpack.c.l.s4 1966171168
    %v6034 = vunpack.c.0.s8 %v6033
    %v6035 = vlaneseq
    %v6036 = vshrl.u32 %v6035, 7
    %v6037 = vsub.s32 %v6034, %v6036
    %v6038 = vrot.slane %v4967, %v6037
    %v6040 = vunpack.c.l.s4 1966171168
    %v6041 = vunpack.c.0.s8 %v6040
    %v6042 = vlaneseq
    %v6043 = vshrl.u32 %v6042, 7
    %v6044 = vsub.s32 %v6041, %v6043
    %v6045 = vrot.slane %v6038, %v6044
    %6046 = vrot.lane.b32.xlu0 %v6045, 120
    %v6047 = vpop.permute.xlu0 %6046
    %6048 = vrot.lane.b32.xlu0 %v5137, 120
    %v6049 = vpop.permute.xlu0 %6048
    %v6051 = vsel %vm394, %v6047, 0
    %v6054 = vsel %vm394, %v6049, 0
    %6056 = vmatprep.subr.bf16.mxu0 0
    %6057 = vmatpush1.bf16.xpose.msra.mxu0 0
    %6058 = vmatprep.subr.bf16.mxu0 0
    %6059 = vmatpush1.bf16.xpose.msra.mxu0 0
    %6060 = vmatprep.subr.bf16.mxu0 0
    %6061 = vmatpush1.bf16.xpose.msra.mxu0 0
    %6062 = vmatprep.subr.bf16.mxu0 0
    %6063 = vmatpush1.bf16.xpose.msra.mxu0 0
    %6064 = vmatprep.subr.bf16.mxu0 0
    %6065 = vmatpush1.bf16.xpose.msra.mxu0 0
    %6066 = vmatprep.subr.bf16.mxu0 0
    %6067 = vmatpush1.bf16.xpose.msra.mxu0 0
    %6068 = vmatprep.subr.bf16.mxu0 0
    %6069 = vmatpush1.bf16.xpose.msra.mxu0 0
    %6070 = vmatprep.subr.bf16.mxu0 0
    %6071 = vmatpush1.bf16.xpose.msra.mxu0 %v6054
    %6072 = vmatprep.subr.bf16.mxu0 0
    %6073 = vmatpush2.bf16.xpose.msra.mxu0 0
    %6074 = vmatprep.subr.bf16.mxu0 0
    %6075 = vmatpush2.bf16.xpose.msra.mxu0 0
    %6076 = vmatprep.subr.bf16.mxu0 0
    %6077 = vmatpush2.bf16.xpose.msra.mxu0 0
    %6078 = vmatprep.subr.bf16.mxu0 0
    %6079 = vmatpush2.bf16.xpose.msra.mxu0 0
    %6080 = vmatprep.subr.bf16.mxu0 0
    %6081 = vmatpush2.bf16.xpose.msra.mxu0 0
    %6082 = vmatprep.subr.bf16.mxu0 0
    %6083 = vmatpush2.bf16.xpose.msra.mxu0 0
    %6084 = vmatprep.subr.bf16.mxu0 0
    %6085 = vmatpush2.bf16.xpose.msra.mxu0 0
    %6086 = vmatprep.subr.bf16.mxu0 0
    %6087 = vmatpush2.bf16.xpose.msra.mxu0 0
    %6088 = vmatprep.mubr.bf16.mxu0 0
    %6089 = vmatmul.mubr.bf16.gmra.mxu0 %v6051
    %v6090 = vpop.f32.mrf.mxu0
    %v6091 = vadd.f32 0.0, %v6090
    %v6092 = vpop.f32.mrf.mxu0
    %v6093 = vpop.f32.mrf.mxu0
    %v6094 = vpop.f32.mrf.mxu0
    %6095 = vdwg.mxu0
    %v6097 = vunpack.c.l.s4 1966171168
    %v6098 = vunpack.c.0.s8 %v6097
    %v6099 = vlaneseq
    %v6100 = vshrl.u32 %v6099, 7
    %v6101 = vsub.s32 %v6098, %v6100
    %v6102 = vrot.slane %v4981, %v6101
    %v6104 = vunpack.c.l.s4 1966171168
    %v6105 = vunpack.c.0.s8 %v6104
    %v6106 = vlaneseq
    %v6107 = vshrl.u32 %v6106, 7
    %v6108 = vsub.s32 %v6105, %v6107
    %v6109 = vrot.slane %v6102, %v6108
    %6110 = vrot.lane.b32.xlu0 %v6109, 120
    %v6111 = vpop.permute.xlu0 %6110
    %6112 = vrot.lane.b32.xlu0 %v5138, 120
    %v6113 = vpop.permute.xlu0 %6112
    %v6115 = vsel %vm394, %v6111, 0
    %v6118 = vsel %vm394, %v6113, 0
    %6120 = vmatprep.subr.bf16.mxu0 0
    %6121 = vmatpush1.bf16.xpose.msra.mxu0 0
    %6122 = vmatprep.subr.bf16.mxu0 0
    %6123 = vmatpush1.bf16.xpose.msra.mxu0 0
    %6124 = vmatprep.subr.bf16.mxu0 0
    %6125 = vmatpush1.bf16.xpose.msra.mxu0 0
    %6126 = vmatprep.subr.bf16.mxu0 0
    %6127 = vmatpush1.bf16.xpose.msra.mxu0 0
    %6128 = vmatprep.subr.bf16.mxu0 0
    %6129 = vmatpush1.bf16.xpose.msra.mxu0 0
    %6130 = vmatprep.subr.bf16.mxu0 0
    %6131 = vmatpush1.bf16.xpose.msra.mxu0 0
    %6132 = vmatprep.subr.bf16.mxu0 0
    %6133 = vmatpush1.bf16.xpose.msra.mxu0 0
    %6134 = vmatprep.subr.bf16.mxu0 0
    %6135 = vmatpush1.bf16.xpose.msra.mxu0 %v6118
    %6136 = vmatprep.subr.bf16.mxu0 0
    %6137 = vmatpush2.bf16.xpose.msra.mxu0 0
    %6138 = vmatprep.subr.bf16.mxu0 0
    %6139 = vmatpush2.bf16.xpose.msra.mxu0 0
    %6140 = vmatprep.subr.bf16.mxu0 0
    %6141 = vmatpush2.bf16.xpose.msra.mxu0 0
    %6142 = vmatprep.subr.bf16.mxu0 0
    %6143 = vmatpush2.bf16.xpose.msra.mxu0 0
    %6144 = vmatprep.subr.bf16.mxu0 0
    %6145 = vmatpush2.bf16.xpose.msra.mxu0 0
    %6146 = vmatprep.subr.bf16.mxu0 0
    %6147 = vmatpush2.bf16.xpose.msra.mxu0 0
    %6148 = vmatprep.subr.bf16.mxu0 0
    %6149 = vmatpush2.bf16.xpose.msra.mxu0 0
    %6150 = vmatprep.subr.bf16.mxu0 0
    %6151 = vmatpush2.bf16.xpose.msra.mxu0 0
    %6152 = vmatprep.mubr.bf16.mxu0 0
    %6153 = vmatmul.mubr.bf16.gmra.mxu0 %v6115
    %v6154 = vpop.f32.mrf.mxu0
    %v6155 = vadd.f32 0.0, %v6154
    %v6156 = vpop.f32.mrf.mxu0
    %v6157 = vpop.f32.mrf.mxu0
    %v6158 = vpop.f32.mrf.mxu0
    %6159 = vdwg.mxu0
    %v6161 = vunpack.c.l.s4 1966171168
    %v6162 = vunpack.c.0.s8 %v6161
    %v6163 = vlaneseq
    %v6164 = vshrl.u32 %v6163, 7
    %v6165 = vsub.s32 %v6162, %v6164
    %v6166 = vrot.slane %v4989, %v6165
    %v6168 = vunpack.c.l.s4 1966171168
    %v6169 = vunpack.c.0.s8 %v6168
    %v6170 = vlaneseq
    %v6171 = vshrl.u32 %v6170, 7
    %v6172 = vsub.s32 %v6169, %v6171
    %v6173 = vrot.slane %v6166, %v6172
    %6174 = vrot.lane.b32.xlu0 %v6173, 120
    %v6175 = vpop.permute.xlu0 %6174
    %6176 = vrot.lane.b32.xlu0 %v5139, 120
    %v6177 = vpop.permute.xlu0 %6176
    %v6179 = vsel %vm394, %v6175, 0
    %v6182 = vsel %vm394, %v6177, 0
    %6184 = vmatprep.subr.bf16.mxu0 0
    %6185 = vmatpush1.bf16.xpose.msra.mxu0 0
    %6186 = vmatprep.subr.bf16.mxu0 0
    %6187 = vmatpush1.bf16.xpose.msra.mxu0 0
    %6188 = vmatprep.subr.bf16.mxu0 0
    %6189 = vmatpush1.bf16.xpose.msra.mxu0 0
    %6190 = vmatprep.subr.bf16.mxu0 0
    %6191 = vmatpush1.bf16.xpose.msra.mxu0 0
    %6192 = vmatprep.subr.bf16.mxu0 0
    %6193 = vmatpush1.bf16.xpose.msra.mxu0 0
    %6194 = vmatprep.subr.bf16.mxu0 0
    %6195 = vmatpush1.bf16.xpose.msra.mxu0 0
    %6196 = vmatprep.subr.bf16.mxu0 0
    %6197 = vmatpush1.bf16.xpose.msra.mxu0 0
    %6198 = vmatprep.subr.bf16.mxu0 0
    %6199 = vmatpush1.bf16.xpose.msra.mxu0 %v6182
    %6200 = vmatprep.subr.bf16.mxu0 0
    %6201 = vmatpush2.bf16.xpose.msra.mxu0 0
    %6202 = vmatprep.subr.bf16.mxu0 0
    %6203 = vmatpush2.bf16.xpose.msra.mxu0 0
    %6204 = vmatprep.subr.bf16.mxu0 0
    %6205 = vmatpush2.bf16.xpose.msra.mxu0 0
    %6206 = vmatprep.subr.bf16.mxu0 0
    %6207 = vmatpush2.bf16.xpose.msra.mxu0 0
    %6208 = vmatprep.subr.bf16.mxu0 0
    %6209 = vmatpush2.bf16.xpose.msra.mxu0 0
    %6210 = vmatprep.subr.bf16.mxu0 0
    %6211 = vmatpush2.bf16.xpose.msra.mxu0 0
    %6212 = vmatprep.subr.bf16.mxu0 0
    %6213 = vmatpush2.bf16.xpose.msra.mxu0 0
    %6214 = vmatprep.subr.bf16.mxu0 0
    %6215 = vmatpush2.bf16.xpose.msra.mxu0 0
    %6216 = vmatprep.mubr.bf16.mxu0 0
    %6217 = vmatmul.mubr.bf16.gmra.mxu0 %v6179
    %v6218 = vpop.f32.mrf.mxu0
    %v6219 = vadd.f32 0.0, %v6218
    %v6220 = vpop.f32.mrf.mxu0
    %v6221 = vpop.f32.mrf.mxu0
    %v6222 = vpop.f32.mrf.mxu0
    %6223 = vdwg.mxu0
    %v6225 = vunpack.c.l.s4 1966171168
    %v6226 = vunpack.c.0.s8 %v6225
    %v6227 = vlaneseq
    %v6228 = vshrl.u32 %v6227, 7
    %v6229 = vsub.s32 %v6226, %v6228
    %v6230 = vrot.slane %v4991, %v6229
    %v6232 = vunpack.c.l.s4 1966171168
    %v6233 = vunpack.c.0.s8 %v6232
    %v6234 = vlaneseq
    %v6235 = vshrl.u32 %v6234, 7
    %v6236 = vsub.s32 %v6233, %v6235
    %v6237 = vrot.slane %v6230, %v6236
    %6238 = vrot.lane.b32.xlu0 %v6237, 120
    %v6239 = vpop.permute.xlu0 %6238
    %6240 = vrot.lane.b32.xlu0 %v5140, 120
    %v6241 = vpop.permute.xlu0 %6240
    %v6243 = vsel %vm394, %v6239, 0
    %v6246 = vsel %vm394, %v6241, 0
    %6248 = vmatprep.subr.bf16.mxu0 0
    %6249 = vmatpush1.bf16.xpose.msra.mxu0 0
    %6250 = vmatprep.subr.bf16.mxu0 0
    %6251 = vmatpush1.bf16.xpose.msra.mxu0 0
    %6252 = vmatprep.subr.bf16.mxu0 0
    %6253 = vmatpush1.bf16.xpose.msra.mxu0 0
    %6254 = vmatprep.subr.bf16.mxu0 0
    %6255 = vmatpush1.bf16.xpose.msra.mxu0 0
    %6256 = vmatprep.subr.bf16.mxu0 0
    %6257 = vmatpush1.bf16.xpose.msra.mxu0 0
    %6258 = vmatprep.subr.bf16.mxu0 0
    %6259 = vmatpush1.bf16.xpose.msra.mxu0 0
    %6260 = vmatprep.subr.bf16.mxu0 0
    %6261 = vmatpush1.bf16.xpose.msra.mxu0 0
    %6262 = vmatprep.subr.bf16.mxu0 0
    %6263 = vmatpush1.bf16.xpose.msra.mxu0 %v6246
    %6264 = vmatprep.subr.bf16.mxu0 0
    %6265 = vmatpush2.bf16.xpose.msra.mxu0 0
    %6266 = vmatprep.subr.bf16.mxu0 0
    %6267 = vmatpush2.bf16.xpose.msra.mxu0 0
    %6268 = vmatprep.subr.bf16.mxu0 0
    %6269 = vmatpush2.bf16.xpose.msra.mxu0 0
    %6270 = vmatprep.subr.bf16.mxu0 0
    %6271 = vmatpush2.bf16.xpose.msra.mxu0 0
    %6272 = vmatprep.subr.bf16.mxu0 0
    %6273 = vmatpush2.bf16.xpose.msra.mxu0 0
    %6274 = vmatprep.subr.bf16.mxu0 0
    %6275 = vmatpush2.bf16.xpose.msra.mxu0 0
    %6276 = vmatprep.subr.bf16.mxu0 0
    %6277 = vmatpush2.bf16.xpose.msra.mxu0 0
    %6278 = vmatprep.subr.bf16.mxu0 0
    %6279 = vmatpush2.bf16.xpose.msra.mxu0 0
    %6280 = vmatprep.mubr.bf16.mxu0 0
    %6281 = vmatmul.mubr.bf16.gmra.mxu0 %v6243
    %v6282 = vpop.f32.mrf.mxu0
    %v6283 = vadd.f32 0.0, %v6282
    %v6284 = vpop.f32.mrf.mxu0
    %v6285 = vpop.f32.mrf.mxu0
    %v6286 = vpop.f32.mrf.mxu0
    %6287 = vdwg.mxu0
    %v6289 = vunpack.c.l.s4 1966171168
    %v6290 = vunpack.c.0.s8 %v6289
    %v6291 = vlaneseq
    %v6292 = vshrl.u32 %v6291, 7
    %v6293 = vsub.s32 %v6290, %v6292
    %v6294 = vrot.slane %v4974, %v6293
    %v6296 = vunpack.c.l.s4 1966171168
    %v6297 = vunpack.c.0.s8 %v6296
    %v6298 = vlaneseq
    %v6299 = vshrl.u32 %v6298, 7
    %v6300 = vsub.s32 %v6297, %v6299
    %v6301 = vrot.slane %v6294, %v6300
    %6302 = vrot.lane.b32.xlu0 %v6301, 120
    %v6303 = vpop.permute.xlu0 %6302
    %6304 = vrot.lane.b32.xlu0 %v5141, 120
    %v6305 = vpop.permute.xlu0 %6304
    %v6307 = vsel %vm394, %v6303, 0
    %v6310 = vsel %vm394, %v6305, 0
    %6312 = vmatprep.subr.bf16.mxu0 0
    %6313 = vmatpush1.bf16.xpose.msra.mxu0 0
    %6314 = vmatprep.subr.bf16.mxu0 0
    %6315 = vmatpush1.bf16.xpose.msra.mxu0 0
    %6316 = vmatprep.subr.bf16.mxu0 0
    %6317 = vmatpush1.bf16.xpose.msra.mxu0 0
    %6318 = vmatprep.subr.bf16.mxu0 0
    %6319 = vmatpush1.bf16.xpose.msra.mxu0 0
    %6320 = vmatprep.subr.bf16.mxu0 0
    %6321 = vmatpush1.bf16.xpose.msra.mxu0 0
    %6322 = vmatprep.subr.bf16.mxu0 0
    %6323 = vmatpush1.bf16.xpose.msra.mxu0 0
    %6324 = vmatprep.subr.bf16.mxu0 0
    %6325 = vmatpush1.bf16.xpose.msra.mxu0 0
    %6326 = vmatprep.subr.bf16.mxu0 0
    %6327 = vmatpush1.bf16.xpose.msra.mxu0 %v6310
    %6328 = vmatprep.subr.bf16.mxu0 0
    %6329 = vmatpush2.bf16.xpose.msra.mxu0 0
    %6330 = vmatprep.subr.bf16.mxu0 0
    %6331 = vmatpush2.bf16.xpose.msra.mxu0 0
    %6332 = vmatprep.subr.bf16.mxu0 0
    %6333 = vmatpush2.bf16.xpose.msra.mxu0 0
    %6334 = vmatprep.subr.bf16.mxu0 0
    %6335 = vmatpush2.bf16.xpose.msra.mxu0 0
    %6336 = vmatprep.subr.bf16.mxu0 0
    %6337 = vmatpush2.bf16.xpose.msra.mxu0 0
    %6338 = vmatprep.subr.bf16.mxu0 0
    %6339 = vmatpush2.bf16.xpose.msra.mxu0 0
    %6340 = vmatprep.subr.bf16.mxu0 0
    %6341 = vmatpush2.bf16.xpose.msra.mxu0 0
    %6342 = vmatprep.subr.bf16.mxu0 0
    %6343 = vmatpush2.bf16.xpose.msra.mxu0 0
    %6344 = vmatprep.mubr.bf16.mxu0 0
    %6345 = vmatmul.mubr.bf16.gmra.mxu0 %v6307
    %v6346 = vpop.f32.mrf.mxu0
    %v6347 = vadd.f32 0.0, %v6346
    %v6348 = vpop.f32.mrf.mxu0
    %v6349 = vpop.f32.mrf.mxu0
    %v6350 = vpop.f32.mrf.mxu0
    %6351 = vdwg.mxu0
    %v6353 = vunpack.c.l.s4 1966171168
    %v6354 = vunpack.c.0.s8 %v6353
    %v6355 = vlaneseq
    %v6356 = vshrl.u32 %v6355, 7
    %v6357 = vsub.s32 %v6354, %v6356
    %v6358 = vrot.slane %v4988, %v6357
    %v6360 = vunpack.c.l.s4 1966171168
    %v6361 = vunpack.c.0.s8 %v6360
    %v6362 = vlaneseq
    %v6363 = vshrl.u32 %v6362, 7
    %v6364 = vsub.s32 %v6361, %v6363
    %v6365 = vrot.slane %v6358, %v6364
    %6366 = vrot.lane.b32.xlu0 %v6365, 120
    %v6367 = vpop.permute.xlu0 %6366
    %6368 = vrot.lane.b32.xlu0 %v5142, 120
    %v6369 = vpop.permute.xlu0 %6368
    %v6371 = vsel %vm394, %v6367, 0
    %v6374 = vsel %vm394, %v6369, 0
    %6376 = vmatprep.subr.bf16.mxu0 0
    %6377 = vmatpush1.bf16.xpose.msra.mxu0 0
    %6378 = vmatprep.subr.bf16.mxu0 0
    %6379 = vmatpush1.bf16.xpose.msra.mxu0 0
    %6380 = vmatprep.subr.bf16.mxu0 0
    %6381 = vmatpush1.bf16.xpose.msra.mxu0 0
    %6382 = vmatprep.subr.bf16.mxu0 0
    %6383 = vmatpush1.bf16.xpose.msra.mxu0 0
    %6384 = vmatprep.subr.bf16.mxu0 0
    %6385 = vmatpush1.bf16.xpose.msra.mxu0 0
    %6386 = vmatprep.subr.bf16.mxu0 0
    %6387 = vmatpush1.bf16.xpose.msra.mxu0 0
    %6388 = vmatprep.subr.bf16.mxu0 0
    %6389 = vmatpush1.bf16.xpose.msra.mxu0 0
    %6390 = vmatprep.subr.bf16.mxu0 0
    %6391 = vmatpush1.bf16.xpose.msra.mxu0 %v6374
    %6392 = vmatprep.subr.bf16.mxu0 0
    %6393 = vmatpush2.bf16.xpose.msra.mxu0 0
    %6394 = vmatprep.subr.bf16.mxu0 0
    %6395 = vmatpush2.bf16.xpose.msra.mxu0 0
    %6396 = vmatprep.subr.bf16.mxu0 0
    %6397 = vmatpush2.bf16.xpose.msra.mxu0 0
    %6398 = vmatprep.subr.bf16.mxu0 0
    %6399 = vmatpush2.bf16.xpose.msra.mxu0 0
    %6400 = vmatprep.subr.bf16.mxu0 0
    %6401 = vmatpush2.bf16.xpose.msra.mxu0 0
    %6402 = vmatprep.subr.bf16.mxu0 0
    %6403 = vmatpush2.bf16.xpose.msra.mxu0 0
    %6404 = vmatprep.subr.bf16.mxu0 0
    %6405 = vmatpush2.bf16.xpose.msra.mxu0 0
    %6406 = vmatprep.subr.bf16.mxu0 0
    %6407 = vmatpush2.bf16.xpose.msra.mxu0 0
    %6408 = vmatprep.mubr.bf16.mxu0 0
    %6409 = vmatmul.mubr.bf16.gmra.mxu0 %v6371
    %v6410 = vpop.f32.mrf.mxu0
    %v6411 = vadd.f32 0.0, %v6410
    %v6412 = vpop.f32.mrf.mxu0
    %v6413 = vpop.f32.mrf.mxu0
    %v6414 = vpop.f32.mrf.mxu0
    %6415 = vdwg.mxu0
    %v6417 = vunpack.c.l.s4 1966171168
    %v6418 = vunpack.c.0.s8 %v6417
    %v6419 = vlaneseq
    %v6420 = vshrl.u32 %v6419, 7
    %v6421 = vsub.s32 %v6418, %v6420
    %v6422 = vrot.slane %v4990, %v6421
    %v6424 = vunpack.c.l.s4 1966171168
    %v6425 = vunpack.c.0.s8 %v6424
    %v6426 = vlaneseq
    %v6427 = vshrl.u32 %v6426, 7
    %v6428 = vsub.s32 %v6425, %v6427
    %v6429 = vrot.slane %v6422, %v6428
    %6430 = vrot.lane.b32.xlu0 %v6429, 120
    %v6431 = vpop.permute.xlu0 %6430
    %6432 = vrot.lane.b32.xlu0 %v5143, 120
    %v6433 = vpop.permute.xlu0 %6432
    %v6435 = vsel %vm394, %v6431, 0
    %v6438 = vsel %vm394, %v6433, 0
    %6440 = vmatprep.subr.bf16.mxu0 0
    %6441 = vmatpush1.bf16.xpose.msra.mxu0 0
    %6442 = vmatprep.subr.bf16.mxu0 0
    %6443 = vmatpush1.bf16.xpose.msra.mxu0 0
    %6444 = vmatprep.subr.bf16.mxu0 0
    %6445 = vmatpush1.bf16.xpose.msra.mxu0 0
    %6446 = vmatprep.subr.bf16.mxu0 0
    %6447 = vmatpush1.bf16.xpose.msra.mxu0 0
    %6448 = vmatprep.subr.bf16.mxu0 0
    %6449 = vmatpush1.bf16.xpose.msra.mxu0 0
    %6450 = vmatprep.subr.bf16.mxu0 0
    %6451 = vmatpush1.bf16.xpose.msra.mxu0 0
    %6452 = vmatprep.subr.bf16.mxu0 0
    %6453 = vmatpush1.bf16.xpose.msra.mxu0 0
    %6454 = vmatprep.subr.bf16.mxu0 0
    %6455 = vmatpush1.bf16.xpose.msra.mxu0 %v6438
    %6456 = vmatprep.subr.bf16.mxu0 0
    %6457 = vmatpush2.bf16.xpose.msra.mxu0 0
    %6458 = vmatprep.subr.bf16.mxu0 0
    %6459 = vmatpush2.bf16.xpose.msra.mxu0 0
    %6460 = vmatprep.subr.bf16.mxu0 0
    %6461 = vmatpush2.bf16.xpose.msra.mxu0 0
    %6462 = vmatprep.subr.bf16.mxu0 0
    %6463 = vmatpush2.bf16.xpose.msra.mxu0 0
    %6464 = vmatprep.subr.bf16.mxu0 0
    %6465 = vmatpush2.bf16.xpose.msra.mxu0 0
    %6466 = vmatprep.subr.bf16.mxu0 0
    %6467 = vmatpush2.bf16.xpose.msra.mxu0 0
    %6468 = vmatprep.subr.bf16.mxu0 0
    %6469 = vmatpush2.bf16.xpose.msra.mxu0 0
    %6470 = vmatprep.subr.bf16.mxu0 0
    %6471 = vmatpush2.bf16.xpose.msra.mxu0 0
    %6472 = vmatprep.mubr.bf16.mxu0 0
    %6473 = vmatmul.mubr.bf16.gmra.mxu0 %v6435
    %v6474 = vpop.f32.mrf.mxu0
    %v6475 = vadd.f32 0.0, %v6474
    %v6476 = vpop.f32.mrf.mxu0
    %v6477 = vpop.f32.mrf.mxu0
    %v6478 = vpop.f32.mrf.mxu0
    %6479 = vdwg.mxu0
    %v6481 = vunpack.c.l.s4 1966171168
    %v6482 = vunpack.c.0.s8 %v6481
    %v6483 = vlaneseq
    %v6484 = vshrl.u32 %v6483, 7
    %v6485 = vsub.s32 %v6482, %v6484
    %v6486 = vrot.slane %v4992, %v6485
    %v6488 = vunpack.c.l.s4 1966171168
    %v6489 = vunpack.c.0.s8 %v6488
    %v6490 = vlaneseq
    %v6491 = vshrl.u32 %v6490, 7
    %v6492 = vsub.s32 %v6489, %v6491
    %v6493 = vrot.slane %v6486, %v6492
    %6494 = vrot.lane.b32.xlu0 %v6493, 120
    %v6495 = vpop.permute.xlu0 %6494
    %6496 = vrot.lane.b32.xlu0 %v5144, 120
    %v6497 = vpop.permute.xlu0 %6496
    %v6499 = vsel %vm394, %v6495, 0
    %v6502 = vsel %vm394, %v6497, 0
    %6504 = vmatprep.subr.bf16.mxu0 0
    %6505 = vmatpush1.bf16.xpose.msra.mxu0 0
    %6506 = vmatprep.subr.bf16.mxu0 0
    %6507 = vmatpush1.bf16.xpose.msra.mxu0 0
    %6508 = vmatprep.subr.bf16.mxu0 0
    %6509 = vmatpush1.bf16.xpose.msra.mxu0 0
    %6510 = vmatprep.subr.bf16.mxu0 0
    %6511 = vmatpush1.bf16.xpose.msra.mxu0 0
    %6512 = vmatprep.subr.bf16.mxu0 0
    %6513 = vmatpush1.bf16.xpose.msra.mxu0 0
    %6514 = vmatprep.subr.bf16.mxu0 0
    %6515 = vmatpush1.bf16.xpose.msra.mxu0 0
    %6516 = vmatprep.subr.bf16.mxu0 0
    %6517 = vmatpush1.bf16.xpose.msra.mxu0 0
    %6518 = vmatprep.subr.bf16.mxu0 0
    %6519 = vmatpush1.bf16.xpose.msra.mxu0 %v6502
    %6520 = vmatprep.subr.bf16.mxu0 0
    %6521 = vmatpush2.bf16.xpose.msra.mxu0 0
    %6522 = vmatprep.subr.bf16.mxu0 0
    %6523 = vmatpush2.bf16.xpose.msra.mxu0 0
    %6524 = vmatprep.subr.bf16.mxu0 0
    %6525 = vmatpush2.bf16.xpose.msra.mxu0 0
    %6526 = vmatprep.subr.bf16.mxu0 0
    %6527 = vmatpush2.bf16.xpose.msra.mxu0 0
    %6528 = vmatprep.subr.bf16.mxu0 0
    %6529 = vmatpush2.bf16.xpose.msra.mxu0 0
    %6530 = vmatprep.subr.bf16.mxu0 0
    %6531 = vmatpush2.bf16.xpose.msra.mxu0 0
    %6532 = vmatprep.subr.bf16.mxu0 0
    %6533 = vmatpush2.bf16.xpose.msra.mxu0 0
    %6534 = vmatprep.subr.bf16.mxu0 0
    %6535 = vmatpush2.bf16.xpose.msra.mxu0 0
    %6536 = vmatprep.mubr.bf16.mxu0 0
    %6537 = vmatmul.mubr.bf16.gmra.mxu0 %v6499
    %v6538 = vpop.f32.mrf.mxu0
    %v6539 = vadd.f32 0.0, %v6538
    %v6540 = vpop.f32.mrf.mxu0
    %v6541 = vpop.f32.mrf.mxu0
    %v6542 = vpop.f32.mrf.mxu0
    %6543 = vdwg.mxu0
    %v6544 = vsel %vm5513, %v6091, -inf
    %6545 = vmax.xlane.f32.xlu0 %v6544
    %v6546 = vpop.xlane.xlu0 %6545
    %v6547 = vsel %vm5513, %v6155, -inf
    %6548 = vmax.xlane.f32.xlu0 %v6547
    %v6549 = vpop.xlane.xlu0 %6548
    %v6550 = vsel %vm5513, %v6219, -inf
    %6551 = vmax.xlane.f32.xlu0 %v6550
    %v6552 = vpop.xlane.xlu0 %6551
    %v6553 = vsel %vm5513, %v6283, -inf
    %6554 = vmax.xlane.f32.xlu0 %v6553
    %v6555 = vpop.xlane.xlu0 %6554
    %v6556 = vsel %vm5513, %v6347, -inf
    %6557 = vmax.xlane.f32.xlu0 %v6556
    %v6558 = vpop.xlane.xlu0 %6557
    %v6559 = vsel %vm5513, %v6411, -inf
    %6560 = vmax.xlane.f32.xlu0 %v6559
    %v6561 = vpop.xlane.xlu0 %6560
    %v6562 = vsel %vm5513, %v6475, -inf
    %6563 = vmax.xlane.f32.xlu0 %v6562
    %v6564 = vpop.xlane.xlu0 %6563
    %v6565 = vsel %vm5513, %v6539, -inf
    %6566 = vmax.xlane.f32.xlu0 %v6565
    %v6567 = vpop.xlane.xlu0 %6566
    %v6568 = vsub.f32 %v6091, %v6546
    %v6569 = vsub.f32 %v6155, %v6549
    %v6570 = vsub.f32 %v6219, %v6552
    %v6571 = vsub.f32 %v6283, %v6555
    %v6572 = vsub.f32 %v6347, %v6558
    %v6573 = vsub.f32 %v6411, %v6561
    %v6574 = vsub.f32 %v6475, %v6564
    %v6575 = vsub.f32 %v6539, %v6567
    %v6576 = vmul.f32 %v6568, 1.442695
    %v6577 = vpow.pop %v6576
    %v6578 = vmul.f32 %v6569, 1.442695
    %v6579 = vpow.pop %v6578
    %v6580 = vmul.f32 %v6570, 1.442695
    %v6581 = vpow.pop %v6580
    %v6582 = vmul.f32 %v6571, 1.442695
    %v6583 = vpow.pop %v6582
    %v6584 = vmul.f32 %v6572, 1.442695
    %v6585 = vpow.pop %v6584
    %v6586 = vmul.f32 %v6573, 1.442695
    %v6587 = vpow.pop %v6586
    %v6588 = vmul.f32 %v6574, 1.442695
    %v6589 = vpow.pop %v6588
    %v6590 = vmul.f32 %v6575, 1.442695
    %v6591 = vpow.pop %v6590
    %v6592 = vsel %vm5513, %v6577, 0.0
    %6593 = vadd.xlane.f32.xlu0 %v6592
    %v6594 = vpop.xlane.xlu0 %6593
    %v6595 = vsel %vm5513, %v6579, 0.0
    %6596 = vadd.xlane.f32.xlu0 %v6595
    %v6597 = vpop.xlane.xlu0 %6596
    %v6598 = vsel %vm5513, %v6581, 0.0
    %6599 = vadd.xlane.f32.xlu0 %v6598
    %v6600 = vpop.xlane.xlu0 %6599
    %v6601 = vsel %vm5513, %v6583, 0.0
    %6602 = vadd.xlane.f32.xlu0 %v6601
    %v6603 = vpop.xlane.xlu0 %6602
    %v6604 = vsel %vm5513, %v6585, 0.0
    %6605 = vadd.xlane.f32.xlu0 %v6604
    %v6606 = vpop.xlane.xlu0 %6605
    %v6607 = vsel %vm5513, %v6587, 0.0
    %6608 = vadd.xlane.f32.xlu0 %v6607
    %v6609 = vpop.xlane.xlu0 %6608
    %v6610 = vsel %vm5513, %v6589, 0.0
    %6611 = vadd.xlane.f32.xlu0 %v6610
    %v6612 = vpop.xlane.xlu0 %6611
    %v6613 = vsel %vm5513, %v6591, 0.0
    %6614 = vadd.xlane.f32.xlu0 %v6613
    %v6615 = vpop.xlane.xlu0 %6614
    %v6616 = vrcp.pop %v6594
    %v6617 = vrcp.pop %v6597
    %v6618 = vrcp.pop %v6600
    %v6619 = vrcp.pop %v6603
    %v6620 = vrcp.pop %v6606
    %v6621 = vrcp.pop %v6609
    %v6622 = vrcp.pop %v6612
    %v6623 = vrcp.pop %v6615
    %v6624 = vmul.f32 %v6577, %v6616
    %v6625 = vmul.f32 %v6579, %v6617
    %v6626 = vmul.f32 %v6581, %v6618
    %v6627 = vmul.f32 %v6583, %v6619
    %v6628 = vmul.f32 %v6585, %v6620
    %v6629 = vmul.f32 %v6587, %v6621
    %v6630 = vmul.f32 %v6589, %v6622
    %v6631 = vmul.f32 %v6591, %v6623
    %v6632 = vpack.c.bf16 %v6624, %v6624
    %v6633 = vpack.c.bf16 %v6625, %v6625
    %v6634 = vpack.c.bf16 %v6626, %v6626
    %v6635 = vpack.c.bf16 %v6627, %v6627
    %v6636 = vpack.c.bf16 %v6628, %v6628
    %v6637 = vpack.c.bf16 %v6629, %v6629
    %v6638 = vpack.c.bf16 %v6630, %v6630
    %v6639 = vpack.c.bf16 %v6631, %v6631
    %6640 = vrot.lane.b32.xlu0 %v5137, 88
    %v6641 = vpop.permute.xlu0 %6640
    %v6644 = vsel %vm792, %v6632, 0
    %6646 = vmatprep.subr.bf16.mxu0 0
    %6647 = vmatpush1.bf16.msra.mxu0 0
    %6648 = vmatprep.subr.bf16.mxu0 0
    %6649 = vmatpush1.bf16.msra.mxu0 0
    %6650 = vmatprep.subr.bf16.mxu0 0
    %6651 = vmatpush1.bf16.msra.mxu0 0
    %6652 = vmatprep.subr.bf16.mxu0 0
    %6653 = vmatpush1.bf16.msra.mxu0 0
    %6654 = vmatprep.subr.bf16.mxu0 0
    %6655 = vmatpush1.bf16.msra.mxu0 0
    %6656 = vmatprep.subr.bf16.mxu0 0
    %6657 = vmatpush1.bf16.msra.mxu0 0
    %6658 = vmatprep.subr.bf16.mxu0 0
    %6659 = vmatpush1.bf16.msra.mxu0 0
    %6660 = vmatprep.subr.bf16.mxu0 0
    %6661 = vmatpush1.bf16.msra.mxu0 %v6641
    %6662 = vmatprep.subr.bf16.mxu0 0
    %6663 = vmatpush2.bf16.msra.mxu0 0
    %6664 = vmatprep.subr.bf16.mxu0 0
    %6665 = vmatpush2.bf16.msra.mxu0 0
    %6666 = vmatprep.subr.bf16.mxu0 0
    %6667 = vmatpush2.bf16.msra.mxu0 0
    %6668 = vmatprep.subr.bf16.mxu0 0
    %6669 = vmatpush2.bf16.msra.mxu0 0
    %6670 = vmatprep.subr.bf16.mxu0 0
    %6671 = vmatpush2.bf16.msra.mxu0 0
    %6672 = vmatprep.subr.bf16.mxu0 0
    %6673 = vmatpush2.bf16.msra.mxu0 0
    %6674 = vmatprep.subr.bf16.mxu0 0
    %6675 = vmatpush2.bf16.msra.mxu0 0
    %6676 = vmatprep.subr.bf16.mxu0 0
    %6677 = vmatpush2.bf16.msra.mxu0 0
    %6678 = vmatprep.mubr.bf16.mxu0 0
    %6679 = vmatmul.mubr.bf16.gmra.mxu0 %v6644
    %v6680 = vpop.f32.mrf.mxu0
    %v6681 = vadd.f32 0.0, %v6680
    %v6682 = vpop.f32.mrf.mxu0
    %v6683 = vpop.f32.mrf.mxu0
    %v6684 = vpop.f32.mrf.mxu0
    %6685 = vdwg.mxu0
    %6686 = vrot.lane.b32.xlu0 %v5138, 88
    %v6687 = vpop.permute.xlu0 %6686
    %v6690 = vsel %vm792, %v6633, 0
    %6692 = vmatprep.subr.bf16.mxu0 0
    %6693 = vmatpush1.bf16.msra.mxu0 0
    %6694 = vmatprep.subr.bf16.mxu0 0
    %6695 = vmatpush1.bf16.msra.mxu0 0
    %6696 = vmatprep.subr.bf16.mxu0 0
    %6697 = vmatpush1.bf16.msra.mxu0 0
    %6698 = vmatprep.subr.bf16.mxu0 0
    %6699 = vmatpush1.bf16.msra.mxu0 0
    %6700 = vmatprep.subr.bf16.mxu0 0
    %6701 = vmatpush1.bf16.msra.mxu0 0
    %6702 = vmatprep.subr.bf16.mxu0 0
    %6703 = vmatpush1.bf16.msra.mxu0 0
    %6704 = vmatprep.subr.bf16.mxu0 0
    %6705 = vmatpush1.bf16.msra.mxu0 0
    %6706 = vmatprep.subr.bf16.mxu0 0
    %6707 = vmatpush1.bf16.msra.mxu0 %v6687
    %6708 = vmatprep.subr.bf16.mxu0 0
    %6709 = vmatpush2.bf16.msra.mxu0 0
    %6710 = vmatprep.subr.bf16.mxu0 0
    %6711 = vmatpush2.bf16.msra.mxu0 0
    %6712 = vmatprep.subr.bf16.mxu0 0
    %6713 = vmatpush2.bf16.msra.mxu0 0
    %6714 = vmatprep.subr.bf16.mxu0 0
    %6715 = vmatpush2.bf16.msra.mxu0 0
    %6716 = vmatprep.subr.bf16.mxu0 0
    %6717 = vmatpush2.bf16.msra.mxu0 0
    %6718 = vmatprep.subr.bf16.mxu0 0
    %6719 = vmatpush2.bf16.msra.mxu0 0
    %6720 = vmatprep.subr.bf16.mxu0 0
    %6721 = vmatpush2.bf16.msra.mxu0 0
    %6722 = vmatprep.subr.bf16.mxu0 0
    %6723 = vmatpush2.bf16.msra.mxu0 0
    %6724 = vmatprep.mubr.bf16.mxu0 0
    %6725 = vmatmul.mubr.bf16.gmra.mxu0 %v6690
    %v6726 = vpop.f32.mrf.mxu0
    %v6727 = vadd.f32 0.0, %v6726
    %v6728 = vpop.f32.mrf.mxu0
    %v6729 = vpop.f32.mrf.mxu0
    %v6730 = vpop.f32.mrf.mxu0
    %6731 = vdwg.mxu0
    %6732 = vrot.lane.b32.xlu0 %v5139, 88
    %v6733 = vpop.permute.xlu0 %6732
    %v6736 = vsel %vm792, %v6634, 0
    %6738 = vmatprep.subr.bf16.mxu0 0
    %6739 = vmatpush1.bf16.msra.mxu0 0
    %6740 = vmatprep.subr.bf16.mxu0 0
    %6741 = vmatpush1.bf16.msra.mxu0 0
    %6742 = vmatprep.subr.bf16.mxu0 0
    %6743 = vmatpush1.bf16.msra.mxu0 0
    %6744 = vmatprep.subr.bf16.mxu0 0
    %6745 = vmatpush1.bf16.msra.mxu0 0
    %6746 = vmatprep.subr.bf16.mxu0 0
    %6747 = vmatpush1.bf16.msra.mxu0 0
    %6748 = vmatprep.subr.bf16.mxu0 0
    %6749 = vmatpush1.bf16.msra.mxu0 0
    %6750 = vmatprep.subr.bf16.mxu0 0
    %6751 = vmatpush1.bf16.msra.mxu0 0
    %6752 = vmatprep.subr.bf16.mxu0 0
    %6753 = vmatpush1.bf16.msra.mxu0 %v6733
    %6754 = vmatprep.subr.bf16.mxu0 0
    %6755 = vmatpush2.bf16.msra.mxu0 0
    %6756 = vmatprep.subr.bf16.mxu0 0
    %6757 = vmatpush2.bf16.msra.mxu0 0
    %6758 = vmatprep.subr.bf16.mxu0 0
    %6759 = vmatpush2.bf16.msra.mxu0 0
    %6760 = vmatprep.subr.bf16.mxu0 0
    %6761 = vmatpush2.bf16.msra.mxu0 0
    %6762 = vmatprep.subr.bf16.mxu0 0
    %6763 = vmatpush2.bf16.msra.mxu0 0
    %6764 = vmatprep.subr.bf16.mxu0 0
    %6765 = vmatpush2.bf16.msra.mxu0 0
    %6766 = vmatprep.subr.bf16.mxu0 0
    %6767 = vmatpush2.bf16.msra.mxu0 0
    %6768 = vmatprep.subr.bf16.mxu0 0
    %6769 = vmatpush2.bf16.msra.mxu0 0
    %6770 = vmatprep.mubr.bf16.mxu0 0
    %6771 = vmatmul.mubr.bf16.gmra.mxu0 %v6736
    %v6772 = vpop.f32.mrf.mxu0
    %v6773 = vadd.f32 0.0, %v6772
    %v6774 = vpop.f32.mrf.mxu0
    %v6775 = vpop.f32.mrf.mxu0
    %v6776 = vpop.f32.mrf.mxu0
    %6777 = vdwg.mxu0
    %6778 = vrot.lane.b32.xlu0 %v5140, 88
    %v6779 = vpop.permute.xlu0 %6778
    %v6782 = vsel %vm792, %v6635, 0
    %6784 = vmatprep.subr.bf16.mxu0 0
    %6785 = vmatpush1.bf16.msra.mxu0 0
    %6786 = vmatprep.subr.bf16.mxu0 0
    %6787 = vmatpush1.bf16.msra.mxu0 0
    %6788 = vmatprep.subr.bf16.mxu0 0
    %6789 = vmatpush1.bf16.msra.mxu0 0
    %6790 = vmatprep.subr.bf16.mxu0 0
    %6791 = vmatpush1.bf16.msra.mxu0 0
    %6792 = vmatprep.subr.bf16.mxu0 0
    %6793 = vmatpush1.bf16.msra.mxu0 0
    %6794 = vmatprep.subr.bf16.mxu0 0
    %6795 = vmatpush1.bf16.msra.mxu0 0
    %6796 = vmatprep.subr.bf16.mxu0 0
    %6797 = vmatpush1.bf16.msra.mxu0 0
    %6798 = vmatprep.subr.bf16.mxu0 0
    %6799 = vmatpush1.bf16.msra.mxu0 %v6779
    %6800 = vmatprep.subr.bf16.mxu0 0
    %6801 = vmatpush2.bf16.msra.mxu0 0
    %6802 = vmatprep.subr.bf16.mxu0 0
    %6803 = vmatpush2.bf16.msra.mxu0 0
    %6804 = vmatprep.subr.bf16.mxu0 0
    %6805 = vmatpush2.bf16.msra.mxu0 0
    %6806 = vmatprep.subr.bf16.mxu0 0
    %6807 = vmatpush2.bf16.msra.mxu0 0
    %6808 = vmatprep.subr.bf16.mxu0 0
    %6809 = vmatpush2.bf16.msra.mxu0 0
    %6810 = vmatprep.subr.bf16.mxu0 0
    %6811 = vmatpush2.bf16.msra.mxu0 0
    %6812 = vmatprep.subr.bf16.mxu0 0
    %6813 = vmatpush2.bf16.msra.mxu0 0
    %6814 = vmatprep.subr.bf16.mxu0 0
    %6815 = vmatpush2.bf16.msra.mxu0 0
    %6816 = vmatprep.mubr.bf16.mxu0 0
    %6817 = vmatmul.mubr.bf16.gmra.mxu0 %v6782
    %v6818 = vpop.f32.mrf.mxu0
    %v6819 = vadd.f32 0.0, %v6818
    %v6820 = vpop.f32.mrf.mxu0
    %v6821 = vpop.f32.mrf.mxu0
    %v6822 = vpop.f32.mrf.mxu0
    %6823 = vdwg.mxu0
    %6824 = vrot.lane.b32.xlu0 %v5141, 88
    %v6825 = vpop.permute.xlu0 %6824
    %v6828 = vsel %vm792, %v6636, 0
    %6830 = vmatprep.subr.bf16.mxu0 0
    %6831 = vmatpush1.bf16.msra.mxu0 0
    %6832 = vmatprep.subr.bf16.mxu0 0
    %6833 = vmatpush1.bf16.msra.mxu0 0
    %6834 = vmatprep.subr.bf16.mxu0 0
    %6835 = vmatpush1.bf16.msra.mxu0 0
    %6836 = vmatprep.subr.bf16.mxu0 0
    %6837 = vmatpush1.bf16.msra.mxu0 0
    %6838 = vmatprep.subr.bf16.mxu0 0
    %6839 = vmatpush1.bf16.msra.mxu0 0
    %6840 = vmatprep.subr.bf16.mxu0 0
    %6841 = vmatpush1.bf16.msra.mxu0 0
    %6842 = vmatprep.subr.bf16.mxu0 0
    %6843 = vmatpush1.bf16.msra.mxu0 0
    %6844 = vmatprep.subr.bf16.mxu0 0
    %6845 = vmatpush1.bf16.msra.mxu0 %v6825
    %6846 = vmatprep.subr.bf16.mxu0 0
    %6847 = vmatpush2.bf16.msra.mxu0 0
    %6848 = vmatprep.subr.bf16.mxu0 0
    %6849 = vmatpush2.bf16.msra.mxu0 0
    %6850 = vmatprep.subr.bf16.mxu0 0
    %6851 = vmatpush2.bf16.msra.mxu0 0
    %6852 = vmatprep.subr.bf16.mxu0 0
    %6853 = vmatpush2.bf16.msra.mxu0 0
    %6854 = vmatprep.subr.bf16.mxu0 0
    %6855 = vmatpush2.bf16.msra.mxu0 0
    %6856 = vmatprep.subr.bf16.mxu0 0
    %6857 = vmatpush2.bf16.msra.mxu0 0
    %6858 = vmatprep.subr.bf16.mxu0 0
    %6859 = vmatpush2.bf16.msra.mxu0 0
    %6860 = vmatprep.subr.bf16.mxu0 0
    %6861 = vmatpush2.bf16.msra.mxu0 0
    %6862 = vmatprep.mubr.bf16.mxu0 0
    %6863 = vmatmul.mubr.bf16.gmra.mxu0 %v6828
    %v6864 = vpop.f32.mrf.mxu0
    %v6865 = vadd.f32 0.0, %v6864
    %v6866 = vpop.f32.mrf.mxu0
    %v6867 = vpop.f32.mrf.mxu0
    %v6868 = vpop.f32.mrf.mxu0
    %6869 = vdwg.mxu0
    %6870 = vrot.lane.b32.xlu0 %v5142, 88
    %v6871 = vpop.permute.xlu0 %6870
    %v6874 = vsel %vm792, %v6637, 0
    %6876 = vmatprep.subr.bf16.mxu0 0
    %6877 = vmatpush1.bf16.msra.mxu0 0
    %6878 = vmatprep.subr.bf16.mxu0 0
    %6879 = vmatpush1.bf16.msra.mxu0 0
    %6880 = vmatprep.subr.bf16.mxu0 0
    %6881 = vmatpush1.bf16.msra.mxu0 0
    %6882 = vmatprep.subr.bf16.mxu0 0
    %6883 = vmatpush1.bf16.msra.mxu0 0
    %6884 = vmatprep.subr.bf16.mxu0 0
    %6885 = vmatpush1.bf16.msra.mxu0 0
    %6886 = vmatprep.subr.bf16.mxu0 0
    %6887 = vmatpush1.bf16.msra.mxu0 0
    %6888 = vmatprep.subr.bf16.mxu0 0
    %6889 = vmatpush1.bf16.msra.mxu0 0
    %6890 = vmatprep.subr.bf16.mxu0 0
    %6891 = vmatpush1.bf16.msra.mxu0 %v6871
    %6892 = vmatprep.subr.bf16.mxu0 0
    %6893 = vmatpush2.bf16.msra.mxu0 0
    %6894 = vmatprep.subr.bf16.mxu0 0
    %6895 = vmatpush2.bf16.msra.mxu0 0
    %6896 = vmatprep.subr.bf16.mxu0 0
    %6897 = vmatpush2.bf16.msra.mxu0 0
    %6898 = vmatprep.subr.bf16.mxu0 0
    %6899 = vmatpush2.bf16.msra.mxu0 0
    %6900 = vmatprep.subr.bf16.mxu0 0
    %6901 = vmatpush2.bf16.msra.mxu0 0
    %6902 = vmatprep.subr.bf16.mxu0 0
    %6903 = vmatpush2.bf16.msra.mxu0 0
    %6904 = vmatprep.subr.bf16.mxu0 0
    %6905 = vmatpush2.bf16.msra.mxu0 0
    %6906 = vmatprep.subr.bf16.mxu0 0
    %6907 = vmatpush2.bf16.msra.mxu0 0
    %6908 = vmatprep.mubr.bf16.mxu0 0
    %6909 = vmatmul.mubr.bf16.gmra.mxu0 %v6874
    %v6910 = vpop.f32.mrf.mxu0
    %v6911 = vadd.f32 0.0, %v6910
    %v6912 = vpop.f32.mrf.mxu0
    %v6913 = vpop.f32.mrf.mxu0
    %v6914 = vpop.f32.mrf.mxu0
    %6915 = vdwg.mxu0
    %6916 = vrot.lane.b32.xlu0 %v5143, 88
    %v6917 = vpop.permute.xlu0 %6916
    %v6920 = vsel %vm792, %v6638, 0
    %6922 = vmatprep.subr.bf16.mxu0 0
    %6923 = vmatpush1.bf16.msra.mxu0 0
    %6924 = vmatprep.subr.bf16.mxu0 0
    %6925 = vmatpush1.bf16.msra.mxu0 0
    %6926 = vmatprep.subr.bf16.mxu0 0
    %6927 = vmatpush1.bf16.msra.mxu0 0
    %6928 = vmatprep.subr.bf16.mxu0 0
    %6929 = vmatpush1.bf16.msra.mxu0 0
    %6930 = vmatprep.subr.bf16.mxu0 0
    %6931 = vmatpush1.bf16.msra.mxu0 0
    %6932 = vmatprep.subr.bf16.mxu0 0
    %6933 = vmatpush1.bf16.msra.mxu0 0
    %6934 = vmatprep.subr.bf16.mxu0 0
    %6935 = vmatpush1.bf16.msra.mxu0 0
    %6936 = vmatprep.subr.bf16.mxu0 0
    %6937 = vmatpush1.bf16.msra.mxu0 %v6917
    %6938 = vmatprep.subr.bf16.mxu0 0
    %6939 = vmatpush2.bf16.msra.mxu0 0
    %6940 = vmatprep.subr.bf16.mxu0 0
    %6941 = vmatpush2.bf16.msra.mxu0 0
    %6942 = vmatprep.subr.bf16.mxu0 0
    %6943 = vmatpush2.bf16.msra.mxu0 0
    %6944 = vmatprep.subr.bf16.mxu0 0
    %6945 = vmatpush2.bf16.msra.mxu0 0
    %6946 = vmatprep.subr.bf16.mxu0 0
    %6947 = vmatpush2.bf16.msra.mxu0 0
    %6948 = vmatprep.subr.bf16.mxu0 0
    %6949 = vmatpush2.bf16.msra.mxu0 0
    %6950 = vmatprep.subr.bf16.mxu0 0
    %6951 = vmatpush2.bf16.msra.mxu0 0
    %6952 = vmatprep.subr.bf16.mxu0 0
    %6953 = vmatpush2.bf16.msra.mxu0 0
    %6954 = vmatprep.mubr.bf16.mxu0 0
    %6955 = vmatmul.mubr.bf16.gmra.mxu0 %v6920
    %v6956 = vpop.f32.mrf.mxu0
    %v6957 = vadd.f32 0.0, %v6956
    %v6958 = vpop.f32.mrf.mxu0
    %v6959 = vpop.f32.mrf.mxu0
    %v6960 = vpop.f32.mrf.mxu0
    %6961 = vdwg.mxu0
    %6962 = vrot.lane.b32.xlu0 %v5144, 88
    %v6963 = vpop.permute.xlu0 %6962
    %v6966 = vsel %vm792, %v6639, 0
    %6968 = vmatprep.subr.bf16.mxu0 0
    %6969 = vmatpush1.bf16.msra.mxu0 0
    %6970 = vmatprep.subr.bf16.mxu0 0
    %6971 = vmatpush1.bf16.msra.mxu0 0
    %6972 = vmatprep.subr.bf16.mxu0 0
    %6973 = vmatpush1.bf16.msra.mxu0 0
    %6974 = vmatprep.subr.bf16.mxu0 0
    %6975 = vmatpush1.bf16.msra.mxu0 0
    %6976 = vmatprep.subr.bf16.mxu0 0
    %6977 = vmatpush1.bf16.msra.mxu0 0
    %6978 = vmatprep.subr.bf16.mxu0 0
    %6979 = vmatpush1.bf16.msra.mxu0 0
    %6980 = vmatprep.subr.bf16.mxu0 0
    %6981 = vmatpush1.bf16.msra.mxu0 0
    %6982 = vmatprep.subr.bf16.mxu0 0
    %6983 = vmatpush1.bf16.msra.mxu0 %v6963
    %6984 = vmatprep.subr.bf16.mxu0 0
    %6985 = vmatpush2.bf16.msra.mxu0 0
    %6986 = vmatprep.subr.bf16.mxu0 0
    %6987 = vmatpush2.bf16.msra.mxu0 0
    %6988 = vmatprep.subr.bf16.mxu0 0
    %6989 = vmatpush2.bf16.msra.mxu0 0
    %6990 = vmatprep.subr.bf16.mxu0 0
    %6991 = vmatpush2.bf16.msra.mxu0 0
    %6992 = vmatprep.subr.bf16.mxu0 0
    %6993 = vmatpush2.bf16.msra.mxu0 0
    %6994 = vmatprep.subr.bf16.mxu0 0
    %6995 = vmatpush2.bf16.msra.mxu0 0
    %6996 = vmatprep.subr.bf16.mxu0 0
    %6997 = vmatpush2.bf16.msra.mxu0 0
    %6998 = vmatprep.subr.bf16.mxu0 0
    %6999 = vmatpush2.bf16.msra.mxu0 0
    %7000 = vmatprep.mubr.bf16.mxu0 0
    %7001 = vmatmul.mubr.bf16.gmra.mxu0 %v6966
    %v7002 = vpop.f32.mrf.mxu0
    %v7003 = vadd.f32 0.0, %v7002
    %v7004 = vpop.f32.mrf.mxu0
    %v7005 = vpop.f32.mrf.mxu0
    %v7006 = vpop.f32.mrf.mxu0
    %7007 = vdwg.mxu0
    %v7016 = vcombine.low %v6681, %v6727
    %v7017 = vcombine.low %v6773, %v6819
    %v7019 = vunpack.c.l.s4 1983009808
    %v7020 = vunpack.c.0.s8 %v7019
    %v7021 = vlaneseq
    %v7022 = vshrl.u32 %v7021, 7
    %v7023 = vsub.s32 %v7020, %v7022
    %v7024 = vrot.slane %v7016, %v7023
    %v7026 = vunpack.c.l.s4 1983009808
    %v7027 = vunpack.c.0.s8 %v7026
    %v7028 = vlaneseq
    %v7029 = vshrl.u32 %v7028, 7
    %v7030 = vsub.s32 %v7027, %v7029
    %v7031 = vrot.slane %v7017, %v7030
    %v7032 = vcombine.low %v7024, %v7031
    %v7033 = vcombine.low %v6865, %v6911
    %v7034 = vcombine.low %v6957, %v7003
    %v7036 = vunpack.c.l.s4 1983009808
    %v7037 = vunpack.c.0.s8 %v7036
    %v7038 = vlaneseq
    %v7039 = vshrl.u32 %v7038, 7
    %v7040 = vsub.s32 %v7037, %v7039
    %v7041 = vrot.slane %v7033, %v7040
    %v7043 = vunpack.c.l.s4 1983009808
    %v7044 = vunpack.c.0.s8 %v7043
    %v7045 = vlaneseq
    %v7046 = vshrl.u32 %v7045, 7
    %v7047 = vsub.s32 %v7044, %v7046
    %v7048 = vrot.slane %v7034, %v7047
    %v7049 = vcombine.low %v7041, %v7048
    %v7052 = vpack.c.bf16 %v7049, %v7032
    %s7053 = scalar_lea.vmem [#allocation14], 4
    %v7054 = vld [vmem:[%s7053] sm:$0xf]
    %v7056 = vsel %vm394, %v7052, 0
    %v7059 = vsel %vm2364, %v7054, 0
    %7061 = vmatprep.subr.bf16.mxu0 0
    %7062 = vmatpush1.bf16.msra.mxu0 0
    %7063 = vmatprep.subr.bf16.mxu0 0
    %7064 = vmatpush1.bf16.msra.mxu0 0
    %7065 = vmatprep.subr.bf16.mxu0 0
    %7066 = vmatpush1.bf16.msra.mxu0 0
    %7067 = vmatprep.subr.bf16.mxu0 0
    %7068 = vmatpush1.bf16.msra.mxu0 0
    %7069 = vmatprep.subr.bf16.mxu0 0
    %7070 = vmatpush1.bf16.msra.mxu0 0
    %7071 = vmatprep.subr.bf16.mxu0 0
    %7072 = vmatpush1.bf16.msra.mxu0 0
    %7073 = vmatprep.subr.bf16.mxu0 0
    %7074 = vmatpush1.bf16.msra.mxu0 0
    %7075 = vmatprep.subr.bf16.mxu0 0
    %7076 = vmatpush1.bf16.msra.mxu0 %v7059
    %7077 = vmatprep.subr.bf16.mxu0 0
    %7078 = vmatpush2.bf16.msra.mxu0 0
    %7079 = vmatprep.subr.bf16.mxu0 0
    %7080 = vmatpush2.bf16.msra.mxu0 0
    %7081 = vmatprep.subr.bf16.mxu0 0
    %7082 = vmatpush2.bf16.msra.mxu0 0
    %7083 = vmatprep.subr.bf16.mxu0 0
    %7084 = vmatpush2.bf16.msra.mxu0 0
    %7085 = vmatprep.subr.bf16.mxu0 0
    %7086 = vmatpush2.bf16.msra.mxu0 0
    %7087 = vmatprep.subr.bf16.mxu0 0
    %7088 = vmatpush2.bf16.msra.mxu0 0
    %7089 = vmatprep.subr.bf16.mxu0 0
    %7090 = vmatpush2.bf16.msra.mxu0 0
    %7091 = vmatprep.subr.bf16.mxu0 0
    %7092 = vmatpush2.bf16.msra.mxu0 0
    %7093 = vmatprep.mubr.bf16.mxu0 0
    %7094 = vmatmul.mubr.bf16.gmra.mxu0 %v7056
    %v7095 = vpop.f32.mrf.mxu0
    %v7096 = vadd.f32 0.0, %v7095
    %v7097 = vpop.f32.mrf.mxu0
    %v7098 = vpop.f32.mrf.mxu0
    %v7099 = vadd.f32 0.0, %v7098
    %v7100 = vpop.f32.mrf.mxu0
    %7101 = vdwg.mxu0
    %v7103 = vsel %vm394, %v6030, 0
    %v7106 = vsel %vm2364, %v6031, 0
    %7108 = vmatprep.subr.bf16.mxu0 0
    %7109 = vmatpush1.bf16.msra.mxu0 0
    %7110 = vmatprep.subr.bf16.mxu0 0
    %7111 = vmatpush1.bf16.msra.mxu0 0
    %7112 = vmatprep.subr.bf16.mxu0 0
    %7113 = vmatpush1.bf16.msra.mxu0 0
    %7114 = vmatprep.subr.bf16.mxu0 0
    %7115 = vmatpush1.bf16.msra.mxu0 0
    %7116 = vmatprep.subr.bf16.mxu0 0
    %7117 = vmatpush1.bf16.msra.mxu0 0
    %7118 = vmatprep.subr.bf16.mxu0 0
    %7119 = vmatpush1.bf16.msra.mxu0 0
    %7120 = vmatprep.subr.bf16.mxu0 0
    %7121 = vmatpush1.bf16.msra.mxu0 0
    %7122 = vmatprep.subr.bf16.mxu0 0
    %7123 = vmatpush1.bf16.msra.mxu0 %v7106
    %7124 = vmatprep.subr.bf16.mxu0 0
    %7125 = vmatpush2.bf16.msra.mxu0 0
    %7126 = vmatprep.subr.bf16.mxu0 0
    %7127 = vmatpush2.bf16.msra.mxu0 0
    %7128 = vmatprep.subr.bf16.mxu0 0
    %7129 = vmatpush2.bf16.msra.mxu0 0
    %7130 = vmatprep.subr.bf16.mxu0 0
    %7131 = vmatpush2.bf16.msra.mxu0 0
    %7132 = vmatprep.subr.bf16.mxu0 0
    %7133 = vmatpush2.bf16.msra.mxu0 0
    %7134 = vmatprep.subr.bf16.mxu0 0
    %7135 = vmatpush2.bf16.msra.mxu0 0
    %7136 = vmatprep.subr.bf16.mxu0 0
    %7137 = vmatpush2.bf16.msra.mxu0 0
    %7138 = vmatprep.subr.bf16.mxu0 0
    %7139 = vmatpush2.bf16.msra.mxu0 0
    %7140 = vmatprep.mubr.bf16.mxu0 0
    %7141 = vmatmul.mubr.bf16.gmra.mxu0 %v7103
    %v7142 = vpop.f32.mrf.mxu0
    %v7143 = vadd.f32 %v7096, %v7142
    %v7144 = vpop.f32.mrf.mxu0
    %v7145 = vpop.f32.mrf.mxu0
    %v7146 = vadd.f32 %v7099, %v7145
    %v7147 = vpop.f32.mrf.mxu0
    %7148 = vdwg.mxu0
    %7149 = vrot.lane.b32.xlu0 %v6045, 112
    %v7150 = vpop.permute.xlu0 %7149
    %7151 = vrot.lane.b32.xlu0 %v5137, 112
    %v7152 = vpop.permute.xlu0 %7151
    %v7154 = vsel %vm394, %v7150, 0
    %v7157 = vsel %vm394, %v7152, 0
    %7159 = vmatprep.subr.bf16.mxu0 0
    %7160 = vmatpush1.bf16.xpose.msra.mxu0 0
    %7161 = vmatprep.subr.bf16.mxu0 0
    %7162 = vmatpush1.bf16.xpose.msra.mxu0 0
    %7163 = vmatprep.subr.bf16.mxu0 0
    %7164 = vmatpush1.bf16.xpose.msra.mxu0 0
    %7165 = vmatprep.subr.bf16.mxu0 0
    %7166 = vmatpush1.bf16.xpose.msra.mxu0 0
    %7167 = vmatprep.subr.bf16.mxu0 0
    %7168 = vmatpush1.bf16.xpose.msra.mxu0 0
    %7169 = vmatprep.subr.bf16.mxu0 0
    %7170 = vmatpush1.bf16.xpose.msra.mxu0 0
    %7171 = vmatprep.subr.bf16.mxu0 0
    %7172 = vmatpush1.bf16.xpose.msra.mxu0 0
    %7173 = vmatprep.subr.bf16.mxu0 0
    %7174 = vmatpush1.bf16.xpose.msra.mxu0 %v7157
    %7175 = vmatprep.subr.bf16.mxu0 0
    %7176 = vmatpush2.bf16.xpose.msra.mxu0 0
    %7177 = vmatprep.subr.bf16.mxu0 0
    %7178 = vmatpush2.bf16.xpose.msra.mxu0 0
    %7179 = vmatprep.subr.bf16.mxu0 0
    %7180 = vmatpush2.bf16.xpose.msra.mxu0 0
    %7181 = vmatprep.subr.bf16.mxu0 0
    %7182 = vmatpush2.bf16.xpose.msra.mxu0 0
    %7183 = vmatprep.subr.bf16.mxu0 0
    %7184 = vmatpush2.bf16.xpose.msra.mxu0 0
    %7185 = vmatprep.subr.bf16.mxu0 0
    %7186 = vmatpush2.bf16.xpose.msra.mxu0 0
    %7187 = vmatprep.subr.bf16.mxu0 0
    %7188 = vmatpush2.bf16.xpose.msra.mxu0 0
    %7189 = vmatprep.subr.bf16.mxu0 0
    %7190 = vmatpush2.bf16.xpose.msra.mxu0 0
    %7191 = vmatprep.mubr.bf16.mxu0 0
    %7192 = vmatmul.mubr.bf16.gmra.mxu0 %v7154
    %v7193 = vpop.f32.mrf.mxu0
    %v7194 = vadd.f32 0.0, %v7193
    %v7195 = vpop.f32.mrf.mxu0
    %v7196 = vpop.f32.mrf.mxu0
    %v7197 = vpop.f32.mrf.mxu0
    %7198 = vdwg.mxu0
    %7199 = vrot.lane.b32.xlu0 %v6109, 112
    %v7200 = vpop.permute.xlu0 %7199
    %7201 = vrot.lane.b32.xlu0 %v5138, 112
    %v7202 = vpop.permute.xlu0 %7201
    %v7204 = vsel %vm394, %v7200, 0
    %v7207 = vsel %vm394, %v7202, 0
    %7209 = vmatprep.subr.bf16.mxu0 0
    %7210 = vmatpush1.bf16.xpose.msra.mxu0 0
    %7211 = vmatprep.subr.bf16.mxu0 0
    %7212 = vmatpush1.bf16.xpose.msra.mxu0 0
    %7213 = vmatprep.subr.bf16.mxu0 0
    %7214 = vmatpush1.bf16.xpose.msra.mxu0 0
    %7215 = vmatprep.subr.bf16.mxu0 0
    %7216 = vmatpush1.bf16.xpose.msra.mxu0 0
    %7217 = vmatprep.subr.bf16.mxu0 0
    %7218 = vmatpush1.bf16.xpose.msra.mxu0 0
    %7219 = vmatprep.subr.bf16.mxu0 0
    %7220 = vmatpush1.bf16.xpose.msra.mxu0 0
    %7221 = vmatprep.subr.bf16.mxu0 0
    %7222 = vmatpush1.bf16.xpose.msra.mxu0 0
    %7223 = vmatprep.subr.bf16.mxu0 0
    %7224 = vmatpush1.bf16.xpose.msra.mxu0 %v7207
    %7225 = vmatprep.subr.bf16.mxu0 0
    %7226 = vmatpush2.bf16.xpose.msra.mxu0 0
    %7227 = vmatprep.subr.bf16.mxu0 0
    %7228 = vmatpush2.bf16.xpose.msra.mxu0 0
    %7229 = vmatprep.subr.bf16.mxu0 0
    %7230 = vmatpush2.bf16.xpose.msra.mxu0 0
    %7231 = vmatprep.subr.bf16.mxu0 0
    %7232 = vmatpush2.bf16.xpose.msra.mxu0 0
    %7233 = vmatprep.subr.bf16.mxu0 0
    %7234 = vmatpush2.bf16.xpose.msra.mxu0 0
    %7235 = vmatprep.subr.bf16.mxu0 0
    %7236 = vmatpush2.bf16.xpose.msra.mxu0 0
    %7237 = vmatprep.subr.bf16.mxu0 0
    %7238 = vmatpush2.bf16.xpose.msra.mxu0 0
    %7239 = vmatprep.subr.bf16.mxu0 0
    %7240 = vmatpush2.bf16.xpose.msra.mxu0 0
    %7241 = vmatprep.mubr.bf16.mxu0 0
    %7242 = vmatmul.mubr.bf16.gmra.mxu0 %v7204
    %v7243 = vpop.f32.mrf.mxu0
    %v7244 = vadd.f32 0.0, %v7243
    %v7245 = vpop.f32.mrf.mxu0
    %v7246 = vpop.f32.mrf.mxu0
    %v7247 = vpop.f32.mrf.mxu0
    %7248 = vdwg.mxu0
    %7249 = vrot.lane.b32.xlu0 %v6173, 112
    %v7250 = vpop.permute.xlu0 %7249
    %7251 = vrot.lane.b32.xlu0 %v5139, 112
    %v7252 = vpop.permute.xlu0 %7251
    %v7254 = vsel %vm394, %v7250, 0
    %v7257 = vsel %vm394, %v7252, 0
    %7259 = vmatprep.subr.bf16.mxu0 0
    %7260 = vmatpush1.bf16.xpose.msra.mxu0 0
    %7261 = vmatprep.subr.bf16.mxu0 0
    %7262 = vmatpush1.bf16.xpose.msra.mxu0 0
    %7263 = vmatprep.subr.bf16.mxu0 0
    %7264 = vmatpush1.bf16.xpose.msra.mxu0 0
    %7265 = vmatprep.subr.bf16.mxu0 0
    %7266 = vmatpush1.bf16.xpose.msra.mxu0 0
    %7267 = vmatprep.subr.bf16.mxu0 0
    %7268 = vmatpush1.bf16.xpose.msra.mxu0 0
    %7269 = vmatprep.subr.bf16.mxu0 0
    %7270 = vmatpush1.bf16.xpose.msra.mxu0 0
    %7271 = vmatprep.subr.bf16.mxu0 0
    %7272 = vmatpush1.bf16.xpose.msra.mxu0 0
    %7273 = vmatprep.subr.bf16.mxu0 0
    %7274 = vmatpush1.bf16.xpose.msra.mxu0 %v7257
    %7275 = vmatprep.subr.bf16.mxu0 0
    %7276 = vmatpush2.bf16.xpose.msra.mxu0 0
    %7277 = vmatprep.subr.bf16.mxu0 0
    %7278 = vmatpush2.bf16.xpose.msra.mxu0 0
    %7279 = vmatprep.subr.bf16.mxu0 0
    %7280 = vmatpush2.bf16.xpose.msra.mxu0 0
    %7281 = vmatprep.subr.bf16.mxu0 0
    %7282 = vmatpush2.bf16.xpose.msra.mxu0 0
    %7283 = vmatprep.subr.bf16.mxu0 0
    %7284 = vmatpush2.bf16.xpose.msra.mxu0 0
    %7285 = vmatprep.subr.bf16.mxu0 0
    %7286 = vmatpush2.bf16.xpose.msra.mxu0 0
    %7287 = vmatprep.subr.bf16.mxu0 0
    %7288 = vmatpush2.bf16.xpose.msra.mxu0 0
    %7289 = vmatprep.subr.bf16.mxu0 0
    %7290 = vmatpush2.bf16.xpose.msra.mxu0 0
    %7291 = vmatprep.mubr.bf16.mxu0 0
    %7292 = vmatmul.mubr.bf16.gmra.mxu0 %v7254
    %v7293 = vpop.f32.mrf.mxu0
    %v7294 = vadd.f32 0.0, %v7293
    %v7295 = vpop.f32.mrf.mxu0
    %v7296 = vpop.f32.mrf.mxu0
    %v7297 = vpop.f32.mrf.mxu0
    %7298 = vdwg.mxu0
    %7299 = vrot.lane.b32.xlu0 %v6237, 112
    %v7300 = vpop.permute.xlu0 %7299
    %7301 = vrot.lane.b32.xlu0 %v5140, 112
    %v7302 = vpop.permute.xlu0 %7301
    %v7304 = vsel %vm394, %v7300, 0
    %v7307 = vsel %vm394, %v7302, 0
    %7309 = vmatprep.subr.bf16.mxu0 0
    %7310 = vmatpush1.bf16.xpose.msra.mxu0 0
    %7311 = vmatprep.subr.bf16.mxu0 0
    %7312 = vmatpush1.bf16.xpose.msra.mxu0 0
    %7313 = vmatprep.subr.bf16.mxu0 0
    %7314 = vmatpush1.bf16.xpose.msra.mxu0 0
    %7315 = vmatprep.subr.bf16.mxu0 0
    %7316 = vmatpush1.bf16.xpose.msra.mxu0 0
    %7317 = vmatprep.subr.bf16.mxu0 0
    %7318 = vmatpush1.bf16.xpose.msra.mxu0 0
    %7319 = vmatprep.subr.bf16.mxu0 0
    %7320 = vmatpush1.bf16.xpose.msra.mxu0 0
    %7321 = vmatprep.subr.bf16.mxu0 0
    %7322 = vmatpush1.bf16.xpose.msra.mxu0 0
    %7323 = vmatprep.subr.bf16.mxu0 0
    %7324 = vmatpush1.bf16.xpose.msra.mxu0 %v7307
    %7325 = vmatprep.subr.bf16.mxu0 0
    %7326 = vmatpush2.bf16.xpose.msra.mxu0 0
    %7327 = vmatprep.subr.bf16.mxu0 0
    %7328 = vmatpush2.bf16.xpose.msra.mxu0 0
    %7329 = vmatprep.subr.bf16.mxu0 0
    %7330 = vmatpush2.bf16.xpose.msra.mxu0 0
    %7331 = vmatprep.subr.bf16.mxu0 0
    %7332 = vmatpush2.bf16.xpose.msra.mxu0 0
    %7333 = vmatprep.subr.bf16.mxu0 0
    %7334 = vmatpush2.bf16.xpose.msra.mxu0 0
    %7335 = vmatprep.subr.bf16.mxu0 0
    %7336 = vmatpush2.bf16.xpose.msra.mxu0 0
    %7337 = vmatprep.subr.bf16.mxu0 0
    %7338 = vmatpush2.bf16.xpose.msra.mxu0 0
    %7339 = vmatprep.subr.bf16.mxu0 0
    %7340 = vmatpush2.bf16.xpose.msra.mxu0 0
    %7341 = vmatprep.mubr.bf16.mxu0 0
    %7342 = vmatmul.mubr.bf16.gmra.mxu0 %v7304
    %v7343 = vpop.f32.mrf.mxu0
    %v7344 = vadd.f32 0.0, %v7343
    %v7345 = vpop.f32.mrf.mxu0
    %v7346 = vpop.f32.mrf.mxu0
    %v7347 = vpop.f32.mrf.mxu0
    %7348 = vdwg.mxu0
    %7349 = vrot.lane.b32.xlu0 %v6301, 112
    %v7350 = vpop.permute.xlu0 %7349
    %7351 = vrot.lane.b32.xlu0 %v5141, 112
    %v7352 = vpop.permute.xlu0 %7351
    %v7354 = vsel %vm394, %v7350, 0
    %v7357 = vsel %vm394, %v7352, 0
    %7359 = vmatprep.subr.bf16.mxu0 0
    %7360 = vmatpush1.bf16.xpose.msra.mxu0 0
    %7361 = vmatprep.subr.bf16.mxu0 0
    %7362 = vmatpush1.bf16.xpose.msra.mxu0 0
    %7363 = vmatprep.subr.bf16.mxu0 0
    %7364 = vmatpush1.bf16.xpose.msra.mxu0 0
    %7365 = vmatprep.subr.bf16.mxu0 0
    %7366 = vmatpush1.bf16.xpose.msra.mxu0 0
    %7367 = vmatprep.subr.bf16.mxu0 0
    %7368 = vmatpush1.bf16.xpose.msra.mxu0 0
    %7369 = vmatprep.subr.bf16.mxu0 0
    %7370 = vmatpush1.bf16.xpose.msra.mxu0 0
    %7371 = vmatprep.subr.bf16.mxu0 0
    %7372 = vmatpush1.bf16.xpose.msra.mxu0 0
    %7373 = vmatprep.subr.bf16.mxu0 0
    %7374 = vmatpush1.bf16.xpose.msra.mxu0 %v7357
    %7375 = vmatprep.subr.bf16.mxu0 0
    %7376 = vmatpush2.bf16.xpose.msra.mxu0 0
    %7377 = vmatprep.subr.bf16.mxu0 0
    %7378 = vmatpush2.bf16.xpose.msra.mxu0 0
    %7379 = vmatprep.subr.bf16.mxu0 0
    %7380 = vmatpush2.bf16.xpose.msra.mxu0 0
    %7381 = vmatprep.subr.bf16.mxu0 0
    %7382 = vmatpush2.bf16.xpose.msra.mxu0 0
    %7383 = vmatprep.subr.bf16.mxu0 0
    %7384 = vmatpush2.bf16.xpose.msra.mxu0 0
    %7385 = vmatprep.subr.bf16.mxu0 0
    %7386 = vmatpush2.bf16.xpose.msra.mxu0 0
    %7387 = vmatprep.subr.bf16.mxu0 0
    %7388 = vmatpush2.bf16.xpose.msra.mxu0 0
    %7389 = vmatprep.subr.bf16.mxu0 0
    %7390 = vmatpush2.bf16.xpose.msra.mxu0 0
    %7391 = vmatprep.mubr.bf16.mxu0 0
    %7392 = vmatmul.mubr.bf16.gmra.mxu0 %v7354
    %v7393 = vpop.f32.mrf.mxu0
    %v7394 = vadd.f32 0.0, %v7393
    %v7395 = vpop.f32.mrf.mxu0
    %v7396 = vpop.f32.mrf.mxu0
    %v7397 = vpop.f32.mrf.mxu0
    %7398 = vdwg.mxu0
    %7399 = vrot.lane.b32.xlu0 %v6365, 112
    %v7400 = vpop.permute.xlu0 %7399
    %7401 = vrot.lane.b32.xlu0 %v5142, 112
    %v7402 = vpop.permute.xlu0 %7401
    %v7404 = vsel %vm394, %v7400, 0
    %v7407 = vsel %vm394, %v7402, 0
    %7409 = vmatprep.subr.bf16.mxu0 0
    %7410 = vmatpush1.bf16.xpose.msra.mxu0 0
    %7411 = vmatprep.subr.bf16.mxu0 0
    %7412 = vmatpush1.bf16.xpose.msra.mxu0 0
    %7413 = vmatprep.subr.bf16.mxu0 0
    %7414 = vmatpush1.bf16.xpose.msra.mxu0 0
    %7415 = vmatprep.subr.bf16.mxu0 0
    %7416 = vmatpush1.bf16.xpose.msra.mxu0 0
    %7417 = vmatprep.subr.bf16.mxu0 0
    %7418 = vmatpush1.bf16.xpose.msra.mxu0 0
    %7419 = vmatprep.subr.bf16.mxu0 0
    %7420 = vmatpush1.bf16.xpose.msra.mxu0 0
    %7421 = vmatprep.subr.bf16.mxu0 0
    %7422 = vmatpush1.bf16.xpose.msra.mxu0 0
    %7423 = vmatprep.subr.bf16.mxu0 0
    %7424 = vmatpush1.bf16.xpose.msra.mxu0 %v7407
    %7425 = vmatprep.subr.bf16.mxu0 0
    %7426 = vmatpush2.bf16.xpose.msra.mxu0 0
    %7427 = vmatprep.subr.bf16.mxu0 0
    %7428 = vmatpush2.bf16.xpose.msra.mxu0 0
    %7429 = vmatprep.subr.bf16.mxu0 0
    %7430 = vmatpush2.bf16.xpose.msra.mxu0 0
    %7431 = vmatprep.subr.bf16.mxu0 0
    %7432 = vmatpush2.bf16.xpose.msra.mxu0 0
    %7433 = vmatprep.subr.bf16.mxu0 0
    %7434 = vmatpush2.bf16.xpose.msra.mxu0 0
    %7435 = vmatprep.subr.bf16.mxu0 0
    %7436 = vmatpush2.bf16.xpose.msra.mxu0 0
    %7437 = vmatprep.subr.bf16.mxu0 0
    %7438 = vmatpush2.bf16.xpose.msra.mxu0 0
    %7439 = vmatprep.subr.bf16.mxu0 0
    %7440 = vmatpush2.bf16.xpose.msra.mxu0 0
    %7441 = vmatprep.mubr.bf16.mxu0 0
    %7442 = vmatmul.mubr.bf16.gmra.mxu0 %v7404
    %v7443 = vpop.f32.mrf.mxu0
    %v7444 = vadd.f32 0.0, %v7443
    %v7445 = vpop.f32.mrf.mxu0
    %v7446 = vpop.f32.mrf.mxu0
    %v7447 = vpop.f32.mrf.mxu0
    %7448 = vdwg.mxu0
    %7449 = vrot.lane.b32.xlu0 %v6429, 112
    %v7450 = vpop.permute.xlu0 %7449
    %7451 = vrot.lane.b32.xlu0 %v5143, 112
    %v7452 = vpop.permute.xlu0 %7451
    %v7454 = vsel %vm394, %v7450, 0
    %v7457 = vsel %vm394, %v7452, 0
    %7459 = vmatprep.subr.bf16.mxu0 0
    %7460 = vmatpush1.bf16.xpose.msra.mxu0 0
    %7461 = vmatprep.subr.bf16.mxu0 0
    %7462 = vmatpush1.bf16.xpose.msra.mxu0 0
    %7463 = vmatprep.subr.bf16.mxu0 0
    %7464 = vmatpush1.bf16.xpose.msra.mxu0 0
    %7465 = vmatprep.subr.bf16.mxu0 0
    %7466 = vmatpush1.bf16.xpose.msra.mxu0 0
    %7467 = vmatprep.subr.bf16.mxu0 0
    %7468 = vmatpush1.bf16.xpose.msra.mxu0 0
    %7469 = vmatprep.subr.bf16.mxu0 0
    %7470 = vmatpush1.bf16.xpose.msra.mxu0 0
    %7471 = vmatprep.subr.bf16.mxu0 0
    %7472 = vmatpush1.bf16.xpose.msra.mxu0 0
    %7473 = vmatprep.subr.bf16.mxu0 0
    %7474 = vmatpush1.bf16.xpose.msra.mxu0 %v7457
    %7475 = vmatprep.subr.bf16.mxu0 0
    %7476 = vmatpush2.bf16.xpose.msra.mxu0 0
    %7477 = vmatprep.subr.bf16.mxu0 0
    %7478 = vmatpush2.bf16.xpose.msra.mxu0 0
    %7479 = vmatprep.subr.bf16.mxu0 0
    %7480 = vmatpush2.bf16.xpose.msra.mxu0 0
    %7481 = vmatprep.subr.bf16.mxu0 0
    %7482 = vmatpush2.bf16.xpose.msra.mxu0 0
    %7483 = vmatprep.subr.bf16.mxu0 0
    %7484 = vmatpush2.bf16.xpose.msra.mxu0 0
    %7485 = vmatprep.subr.bf16.mxu0 0
    %7486 = vmatpush2.bf16.xpose.msra.mxu0 0
    %7487 = vmatprep.subr.bf16.mxu0 0
    %7488 = vmatpush2.bf16.xpose.msra.mxu0 0
    %7489 = vmatprep.subr.bf16.mxu0 0
    %7490 = vmatpush2.bf16.xpose.msra.mxu0 0
    %7491 = vmatprep.mubr.bf16.mxu0 0
    %7492 = vmatmul.mubr.bf16.gmra.mxu0 %v7454
    %v7493 = vpop.f32.mrf.mxu0
    %v7494 = vadd.f32 0.0, %v7493
    %v7495 = vpop.f32.mrf.mxu0
    %v7496 = vpop.f32.mrf.mxu0
    %v7497 = vpop.f32.mrf.mxu0
    %7498 = vdwg.mxu0
    %7499 = vrot.lane.b32.xlu0 %v6493, 112
    %v7500 = vpop.permute.xlu0 %7499
    %7501 = vrot.lane.b32.xlu0 %v5144, 112
    %v7502 = vpop.permute.xlu0 %7501
    %v7504 = vsel %vm394, %v7500, 0
    %v7507 = vsel %vm394, %v7502, 0
    %7509 = vmatprep.subr.bf16.mxu0 0
    %7510 = vmatpush1.bf16.xpose.msra.mxu0 0
    %7511 = vmatprep.subr.bf16.mxu0 0
    %7512 = vmatpush1.bf16.xpose.msra.mxu0 0
    %7513 = vmatprep.subr.bf16.mxu0 0
    %7514 = vmatpush1.bf16.xpose.msra.mxu0 0
    %7515 = vmatprep.subr.bf16.mxu0 0
    %7516 = vmatpush1.bf16.xpose.msra.mxu0 0
    %7517 = vmatprep.subr.bf16.mxu0 0
    %7518 = vmatpush1.bf16.xpose.msra.mxu0 0
    %7519 = vmatprep.subr.bf16.mxu0 0
    %7520 = vmatpush1.bf16.xpose.msra.mxu0 0
    %7521 = vmatprep.subr.bf16.mxu0 0
    %7522 = vmatpush1.bf16.xpose.msra.mxu0 0
    %7523 = vmatprep.subr.bf16.mxu0 0
    %7524 = vmatpush1.bf16.xpose.msra.mxu0 %v7507
    %7525 = vmatprep.subr.bf16.mxu0 0
    %7526 = vmatpush2.bf16.xpose.msra.mxu0 0
    %7527 = vmatprep.subr.bf16.mxu0 0
    %7528 = vmatpush2.bf16.xpose.msra.mxu0 0
    %7529 = vmatprep.subr.bf16.mxu0 0
    %7530 = vmatpush2.bf16.xpose.msra.mxu0 0
    %7531 = vmatprep.subr.bf16.mxu0 0
    %7532 = vmatpush2.bf16.xpose.msra.mxu0 0
    %7533 = vmatprep.subr.bf16.mxu0 0
    %7534 = vmatpush2.bf16.xpose.msra.mxu0 0
    %7535 = vmatprep.subr.bf16.mxu0 0
    %7536 = vmatpush2.bf16.xpose.msra.mxu0 0
    %7537 = vmatprep.subr.bf16.mxu0 0
    %7538 = vmatpush2.bf16.xpose.msra.mxu0 0
    %7539 = vmatprep.subr.bf16.mxu0 0
    %7540 = vmatpush2.bf16.xpose.msra.mxu0 0
    %7541 = vmatprep.mubr.bf16.mxu0 0
    %7542 = vmatmul.mubr.bf16.gmra.mxu0 %v7504
    %v7543 = vpop.f32.mrf.mxu0
    %v7544 = vadd.f32 0.0, %v7543
    %v7545 = vpop.f32.mrf.mxu0
    %v7546 = vpop.f32.mrf.mxu0
    %v7547 = vpop.f32.mrf.mxu0
    %7548 = vdwg.mxu0
    %v7549 = vsel %vm5513, %v7194, -inf
    %7550 = vmax.xlane.f32.xlu0 %v7549
    %v7551 = vpop.xlane.xlu0 %7550
    %v7552 = vsel %vm5513, %v7244, -inf
    %7553 = vmax.xlane.f32.xlu0 %v7552
    %v7554 = vpop.xlane.xlu0 %7553
    %v7555 = vsel %vm5513, %v7294, -inf
    %7556 = vmax.xlane.f32.xlu0 %v7555
    %v7557 = vpop.xlane.xlu0 %7556
    %v7558 = vsel %vm5513, %v7344, -inf
    %7559 = vmax.xlane.f32.xlu0 %v7558
    %v7560 = vpop.xlane.xlu0 %7559
    %v7561 = vsel %vm5513, %v7394, -inf
    %7562 = vmax.xlane.f32.xlu0 %v7561
    %v7563 = vpop.xlane.xlu0 %7562
    %v7564 = vsel %vm5513, %v7444, -inf
    %7565 = vmax.xlane.f32.xlu0 %v7564
    %v7566 = vpop.xlane.xlu0 %7565
    %v7567 = vsel %vm5513, %v7494, -inf
    %7568 = vmax.xlane.f32.xlu0 %v7567
    %v7569 = vpop.xlane.xlu0 %7568
    %v7570 = vsel %vm5513, %v7544, -inf
    %7571 = vmax.xlane.f32.xlu0 %v7570
    %v7572 = vpop.xlane.xlu0 %7571
    %v7573 = vsub.f32 %v7194, %v7551
    %v7574 = vsub.f32 %v7244, %v7554
    %v7575 = vsub.f32 %v7294, %v7557
    %v7576 = vsub.f32 %v7344, %v7560
    %v7577 = vsub.f32 %v7394, %v7563
    %v7578 = vsub.f32 %v7444, %v7566
    %v7579 = vsub.f32 %v7494, %v7569
    %v7580 = vsub.f32 %v7544, %v7572
    %v7581 = vmul.f32 %v7573, 1.442695
    %v7582 = vpow.pop %v7581
    %v7583 = vmul.f32 %v7574, 1.442695
    %v7584 = vpow.pop %v7583
    %v7585 = vmul.f32 %v7575, 1.442695
    %v7586 = vpow.pop %v7585
    %v7587 = vmul.f32 %v7576, 1.442695
    %v7588 = vpow.pop %v7587
    %v7589 = vmul.f32 %v7577, 1.442695
    %v7590 = vpow.pop %v7589
    %v7591 = vmul.f32 %v7578, 1.442695
    %v7592 = vpow.pop %v7591
    %v7593 = vmul.f32 %v7579, 1.442695
    %v7594 = vpow.pop %v7593
    %v7595 = vmul.f32 %v7580, 1.442695
    %v7596 = vpow.pop %v7595
    %v7597 = vsel %vm5513, %v7582, 0.0
    %7598 = vadd.xlane.f32.xlu0 %v7597
    %v7599 = vpop.xlane.xlu0 %7598
    %v7600 = vsel %vm5513, %v7584, 0.0
    %7601 = vadd.xlane.f32.xlu0 %v7600
    %v7602 = vpop.xlane.xlu0 %7601
    %v7603 = vsel %vm5513, %v7586, 0.0
    %7604 = vadd.xlane.f32.xlu0 %v7603
    %v7605 = vpop.xlane.xlu0 %7604
    %v7606 = vsel %vm5513, %v7588, 0.0
    %7607 = vadd.xlane.f32.xlu0 %v7606
    %v7608 = vpop.xlane.xlu0 %7607
    %v7609 = vsel %vm5513, %v7590, 0.0
    %7610 = vadd.xlane.f32.xlu0 %v7609
    %v7611 = vpop.xlane.xlu0 %7610
    %v7612 = vsel %vm5513, %v7592, 0.0
    %7613 = vadd.xlane.f32.xlu0 %v7612
    %v7614 = vpop.xlane.xlu0 %7613
    %v7615 = vsel %vm5513, %v7594, 0.0
    %7616 = vadd.xlane.f32.xlu0 %v7615
    %v7617 = vpop.xlane.xlu0 %7616
    %v7618 = vsel %vm5513, %v7596, 0.0
    %7619 = vadd.xlane.f32.xlu0 %v7618
    %v7620 = vpop.xlane.xlu0 %7619
    %v7621 = vrcp.pop %v7599
    %v7622 = vrcp.pop %v7602
    %v7623 = vrcp.pop %v7605
    %v7624 = vrcp.pop %v7608
    %v7625 = vrcp.pop %v7611
    %v7626 = vrcp.pop %v7614
    %v7627 = vrcp.pop %v7617
    %v7628 = vrcp.pop %v7620
    %v7629 = vmul.f32 %v7582, %v7621
    %v7630 = vmul.f32 %v7584, %v7622
    %v7631 = vmul.f32 %v7586, %v7623
    %v7632 = vmul.f32 %v7588, %v7624
    %v7633 = vmul.f32 %v7590, %v7625
    %v7634 = vmul.f32 %v7592, %v7626
    %v7635 = vmul.f32 %v7594, %v7627
    %v7636 = vmul.f32 %v7596, %v7628
    %v7637 = vpack.c.bf16 %v7629, %v7629
    %v7638 = vpack.c.bf16 %v7630, %v7630
    %v7639 = vpack.c.bf16 %v7631, %v7631
    %v7640 = vpack.c.bf16 %v7632, %v7632
    %v7641 = vpack.c.bf16 %v7633, %v7633
    %v7642 = vpack.c.bf16 %v7634, %v7634
    %v7643 = vpack.c.bf16 %v7635, %v7635
    %v7644 = vpack.c.bf16 %v7636, %v7636
    %7645 = vrot.lane.b32.xlu0 %v5137, 80
    %v7646 = vpop.permute.xlu0 %7645
    %v7649 = vsel %vm792, %v7637, 0
    %7651 = vmatprep.subr.bf16.mxu0 0
    %7652 = vmatpush1.bf16.msra.mxu0 0
    %7653 = vmatprep.subr.bf16.mxu0 0
    %7654 = vmatpush1.bf16.msra.mxu0 0
    %7655 = vmatprep.subr.bf16.mxu0 0
    %7656 = vmatpush1.bf16.msra.mxu0 0
    %7657 = vmatprep.subr.bf16.mxu0 0
    %7658 = vmatpush1.bf16.msra.mxu0 0
    %7659 = vmatprep.subr.bf16.mxu0 0
    %7660 = vmatpush1.bf16.msra.mxu0 0
    %7661 = vmatprep.subr.bf16.mxu0 0
    %7662 = vmatpush1.bf16.msra.mxu0 0
    %7663 = vmatprep.subr.bf16.mxu0 0
    %7664 = vmatpush1.bf16.msra.mxu0 0
    %7665 = vmatprep.subr.bf16.mxu0 0
    %7666 = vmatpush1.bf16.msra.mxu0 %v7646
    %7667 = vmatprep.subr.bf16.mxu0 0
    %7668 = vmatpush2.bf16.msra.mxu0 0
    %7669 = vmatprep.subr.bf16.mxu0 0
    %7670 = vmatpush2.bf16.msra.mxu0 0
    %7671 = vmatprep.subr.bf16.mxu0 0
    %7672 = vmatpush2.bf16.msra.mxu0 0
    %7673 = vmatprep.subr.bf16.mxu0 0
    %7674 = vmatpush2.bf16.msra.mxu0 0
    %7675 = vmatprep.subr.bf16.mxu0 0
    %7676 = vmatpush2.bf16.msra.mxu0 0
    %7677 = vmatprep.subr.bf16.mxu0 0
    %7678 = vmatpush2.bf16.msra.mxu0 0
    %7679 = vmatprep.subr.bf16.mxu0 0
    %7680 = vmatpush2.bf16.msra.mxu0 0
    %7681 = vmatprep.subr.bf16.mxu0 0
    %7682 = vmatpush2.bf16.msra.mxu0 0
    %7683 = vmatprep.mubr.bf16.mxu0 0
    %7684 = vmatmul.mubr.bf16.gmra.mxu0 %v7649
    %v7685 = vpop.f32.mrf.mxu0
    %v7686 = vadd.f32 0.0, %v7685
    %v7687 = vpop.f32.mrf.mxu0
    %v7688 = vpop.f32.mrf.mxu0
    %v7689 = vpop.f32.mrf.mxu0
    %7690 = vdwg.mxu0
    %7691 = vrot.lane.b32.xlu0 %v5138, 80
    %v7692 = vpop.permute.xlu0 %7691
    %v7695 = vsel %vm792, %v7638, 0
    %7697 = vmatprep.subr.bf16.mxu0 0
    %7698 = vmatpush1.bf16.msra.mxu0 0
    %7699 = vmatprep.subr.bf16.mxu0 0
    %7700 = vmatpush1.bf16.msra.mxu0 0
    %7701 = vmatprep.subr.bf16.mxu0 0
    %7702 = vmatpush1.bf16.msra.mxu0 0
    %7703 = vmatprep.subr.bf16.mxu0 0
    %7704 = vmatpush1.bf16.msra.mxu0 0
    %7705 = vmatprep.subr.bf16.mxu0 0
    %7706 = vmatpush1.bf16.msra.mxu0 0
    %7707 = vmatprep.subr.bf16.mxu0 0
    %7708 = vmatpush1.bf16.msra.mxu0 0
    %7709 = vmatprep.subr.bf16.mxu0 0
    %7710 = vmatpush1.bf16.msra.mxu0 0
    %7711 = vmatprep.subr.bf16.mxu0 0
    %7712 = vmatpush1.bf16.msra.mxu0 %v7692
    %7713 = vmatprep.subr.bf16.mxu0 0
    %7714 = vmatpush2.bf16.msra.mxu0 0
    %7715 = vmatprep.subr.bf16.mxu0 0
    %7716 = vmatpush2.bf16.msra.mxu0 0
    %7717 = vmatprep.subr.bf16.mxu0 0
    %7718 = vmatpush2.bf16.msra.mxu0 0
    %7719 = vmatprep.subr.bf16.mxu0 0
    %7720 = vmatpush2.bf16.msra.mxu0 0
    %7721 = vmatprep.subr.bf16.mxu0 0
    %7722 = vmatpush2.bf16.msra.mxu0 0
    %7723 = vmatprep.subr.bf16.mxu0 0
    %7724 = vmatpush2.bf16.msra.mxu0 0
    %7725 = vmatprep.subr.bf16.mxu0 0
    %7726 = vmatpush2.bf16.msra.mxu0 0
    %7727 = vmatprep.subr.bf16.mxu0 0
    %7728 = vmatpush2.bf16.msra.mxu0 0
    %7729 = vmatprep.mubr.bf16.mxu0 0
    %7730 = vmatmul.mubr.bf16.gmra.mxu0 %v7695
    %v7731 = vpop.f32.mrf.mxu0
    %v7732 = vadd.f32 0.0, %v7731
    %v7733 = vpop.f32.mrf.mxu0
    %v7734 = vpop.f32.mrf.mxu0
    %v7735 = vpop.f32.mrf.mxu0
    %7736 = vdwg.mxu0
    %7737 = vrot.lane.b32.xlu0 %v5139, 80
    %v7738 = vpop.permute.xlu0 %7737
    %v7741 = vsel %vm792, %v7639, 0
    %7743 = vmatprep.subr.bf16.mxu0 0
    %7744 = vmatpush1.bf16.msra.mxu0 0
    %7745 = vmatprep.subr.bf16.mxu0 0
    %7746 = vmatpush1.bf16.msra.mxu0 0
    %7747 = vmatprep.subr.bf16.mxu0 0
    %7748 = vmatpush1.bf16.msra.mxu0 0
    %7749 = vmatprep.subr.bf16.mxu0 0
    %7750 = vmatpush1.bf16.msra.mxu0 0
    %7751 = vmatprep.subr.bf16.mxu0 0
    %7752 = vmatpush1.bf16.msra.mxu0 0
    %7753 = vmatprep.subr.bf16.mxu0 0
    %7754 = vmatpush1.bf16.msra.mxu0 0
    %7755 = vmatprep.subr.bf16.mxu0 0
    %7756 = vmatpush1.bf16.msra.mxu0 0
    %7757 = vmatprep.subr.bf16.mxu0 0
    %7758 = vmatpush1.bf16.msra.mxu0 %v7738
    %7759 = vmatprep.subr.bf16.mxu0 0
    %7760 = vmatpush2.bf16.msra.mxu0 0
    %7761 = vmatprep.subr.bf16.mxu0 0
    %7762 = vmatpush2.bf16.msra.mxu0 0
    %7763 = vmatprep.subr.bf16.mxu0 0
    %7764 = vmatpush2.bf16.msra.mxu0 0
    %7765 = vmatprep.subr.bf16.mxu0 0
    %7766 = vmatpush2.bf16.msra.mxu0 0
    %7767 = vmatprep.subr.bf16.mxu0 0
    %7768 = vmatpush2.bf16.msra.mxu0 0
    %7769 = vmatprep.subr.bf16.mxu0 0
    %7770 = vmatpush2.bf16.msra.mxu0 0
    %7771 = vmatprep.subr.bf16.mxu0 0
    %7772 = vmatpush2.bf16.msra.mxu0 0
    %7773 = vmatprep.subr.bf16.mxu0 0
    %7774 = vmatpush2.bf16.msra.mxu0 0
    %7775 = vmatprep.mubr.bf16.mxu0 0
    %7776 = vmatmul.mubr.bf16.gmra.mxu0 %v7741
    %v7777 = vpop.f32.mrf.mxu0
    %v7778 = vadd.f32 0.0, %v7777
    %v7779 = vpop.f32.mrf.mxu0
    %v7780 = vpop.f32.mrf.mxu0
    %v7781 = vpop.f32.mrf.mxu0
    %7782 = vdwg.mxu0
    %7783 = vrot.lane.b32.xlu0 %v5140, 80
    %v7784 = vpop.permute.xlu0 %7783
    %v7787 = vsel %vm792, %v7640, 0
    %7789 = vmatprep.subr.bf16.mxu0 0
    %7790 = vmatpush1.bf16.msra.mxu0 0
    %7791 = vmatprep.subr.bf16.mxu0 0
    %7792 = vmatpush1.bf16.msra.mxu0 0
    %7793 = vmatprep.subr.bf16.mxu0 0
    %7794 = vmatpush1.bf16.msra.mxu0 0
    %7795 = vmatprep.subr.bf16.mxu0 0
    %7796 = vmatpush1.bf16.msra.mxu0 0
    %7797 = vmatprep.subr.bf16.mxu0 0
    %7798 = vmatpush1.bf16.msra.mxu0 0
    %7799 = vmatprep.subr.bf16.mxu0 0
    %7800 = vmatpush1.bf16.msra.mxu0 0
    %7801 = vmatprep.subr.bf16.mxu0 0
    %7802 = vmatpush1.bf16.msra.mxu0 0
    %7803 = vmatprep.subr.bf16.mxu0 0
    %7804 = vmatpush1.bf16.msra.mxu0 %v7784
    %7805 = vmatprep.subr.bf16.mxu0 0
    %7806 = vmatpush2.bf16.msra.mxu0 0
    %7807 = vmatprep.subr.bf16.mxu0 0
    %7808 = vmatpush2.bf16.msra.mxu0 0
    %7809 = vmatprep.subr.bf16.mxu0 0
    %7810 = vmatpush2.bf16.msra.mxu0 0
    %7811 = vmatprep.subr.bf16.mxu0 0
    %7812 = vmatpush2.bf16.msra.mxu0 0
    %7813 = vmatprep.subr.bf16.mxu0 0
    %7814 = vmatpush2.bf16.msra.mxu0 0
    %7815 = vmatprep.subr.bf16.mxu0 0
    %7816 = vmatpush2.bf16.msra.mxu0 0
    %7817 = vmatprep.subr.bf16.mxu0 0
    %7818 = vmatpush2.bf16.msra.mxu0 0
    %7819 = vmatprep.subr.bf16.mxu0 0
    %7820 = vmatpush2.bf16.msra.mxu0 0
    %7821 = vmatprep.mubr.bf16.mxu0 0
    %7822 = vmatmul.mubr.bf16.gmra.mxu0 %v7787
    %v7823 = vpop.f32.mrf.mxu0
    %v7824 = vadd.f32 0.0, %v7823
    %v7825 = vpop.f32.mrf.mxu0
    %v7826 = vpop.f32.mrf.mxu0
    %v7827 = vpop.f32.mrf.mxu0
    %7828 = vdwg.mxu0
    %7829 = vrot.lane.b32.xlu0 %v5141, 80
    %v7830 = vpop.permute.xlu0 %7829
    %v7833 = vsel %vm792, %v7641, 0
    %7835 = vmatprep.subr.bf16.mxu0 0
    %7836 = vmatpush1.bf16.msra.mxu0 0
    %7837 = vmatprep.subr.bf16.mxu0 0
    %7838 = vmatpush1.bf16.msra.mxu0 0
    %7839 = vmatprep.subr.bf16.mxu0 0
    %7840 = vmatpush1.bf16.msra.mxu0 0
    %7841 = vmatprep.subr.bf16.mxu0 0
    %7842 = vmatpush1.bf16.msra.mxu0 0
    %7843 = vmatprep.subr.bf16.mxu0 0
    %7844 = vmatpush1.bf16.msra.mxu0 0
    %7845 = vmatprep.subr.bf16.mxu0 0
    %7846 = vmatpush1.bf16.msra.mxu0 0
    %7847 = vmatprep.subr.bf16.mxu0 0
    %7848 = vmatpush1.bf16.msra.mxu0 0
    %7849 = vmatprep.subr.bf16.mxu0 0
    %7850 = vmatpush1.bf16.msra.mxu0 %v7830
    %7851 = vmatprep.subr.bf16.mxu0 0
    %7852 = vmatpush2.bf16.msra.mxu0 0
    %7853 = vmatprep.subr.bf16.mxu0 0
    %7854 = vmatpush2.bf16.msra.mxu0 0
    %7855 = vmatprep.subr.bf16.mxu0 0
    %7856 = vmatpush2.bf16.msra.mxu0 0
    %7857 = vmatprep.subr.bf16.mxu0 0
    %7858 = vmatpush2.bf16.msra.mxu0 0
    %7859 = vmatprep.subr.bf16.mxu0 0
    %7860 = vmatpush2.bf16.msra.mxu0 0
    %7861 = vmatprep.subr.bf16.mxu0 0
    %7862 = vmatpush2.bf16.msra.mxu0 0
    %7863 = vmatprep.subr.bf16.mxu0 0
    %7864 = vmatpush2.bf16.msra.mxu0 0
    %7865 = vmatprep.subr.bf16.mxu0 0
    %7866 = vmatpush2.bf16.msra.mxu0 0
    %7867 = vmatprep.mubr.bf16.mxu0 0
    %7868 = vmatmul.mubr.bf16.gmra.mxu0 %v7833
    %v7869 = vpop.f32.mrf.mxu0
    %v7870 = vadd.f32 0.0, %v7869
    %v7871 = vpop.f32.mrf.mxu0
    %v7872 = vpop.f32.mrf.mxu0
    %v7873 = vpop.f32.mrf.mxu0
    %7874 = vdwg.mxu0
    %7875 = vrot.lane.b32.xlu0 %v5142, 80
    %v7876 = vpop.permute.xlu0 %7875
    %v7879 = vsel %vm792, %v7642, 0
    %7881 = vmatprep.subr.bf16.mxu0 0
    %7882 = vmatpush1.bf16.msra.mxu0 0
    %7883 = vmatprep.subr.bf16.mxu0 0
    %7884 = vmatpush1.bf16.msra.mxu0 0
    %7885 = vmatprep.subr.bf16.mxu0 0
    %7886 = vmatpush1.bf16.msra.mxu0 0
    %7887 = vmatprep.subr.bf16.mxu0 0
    %7888 = vmatpush1.bf16.msra.mxu0 0
    %7889 = vmatprep.subr.bf16.mxu0 0
    %7890 = vmatpush1.bf16.msra.mxu0 0
    %7891 = vmatprep.subr.bf16.mxu0 0
    %7892 = vmatpush1.bf16.msra.mxu0 0
    %7893 = vmatprep.subr.bf16.mxu0 0
    %7894 = vmatpush1.bf16.msra.mxu0 0
    %7895 = vmatprep.subr.bf16.mxu0 0
    %7896 = vmatpush1.bf16.msra.mxu0 %v7876
    %7897 = vmatprep.subr.bf16.mxu0 0
    %7898 = vmatpush2.bf16.msra.mxu0 0
    %7899 = vmatprep.subr.bf16.mxu0 0
    %7900 = vmatpush2.bf16.msra.mxu0 0
    %7901 = vmatprep.subr.bf16.mxu0 0
    %7902 = vmatpush2.bf16.msra.mxu0 0
    %7903 = vmatprep.subr.bf16.mxu0 0
    %7904 = vmatpush2.bf16.msra.mxu0 0
    %7905 = vmatprep.subr.bf16.mxu0 0
    %7906 = vmatpush2.bf16.msra.mxu0 0
    %7907 = vmatprep.subr.bf16.mxu0 0
    %7908 = vmatpush2.bf16.msra.mxu0 0
    %7909 = vmatprep.subr.bf16.mxu0 0
    %7910 = vmatpush2.bf16.msra.mxu0 0
    %7911 = vmatprep.subr.bf16.mxu0 0
    %7912 = vmatpush2.bf16.msra.mxu0 0
    %7913 = vmatprep.mubr.bf16.mxu0 0
    %7914 = vmatmul.mubr.bf16.gmra.mxu0 %v7879
    %v7915 = vpop.f32.mrf.mxu0
    %v7916 = vadd.f32 0.0, %v7915
    %v7917 = vpop.f32.mrf.mxu0
    %v7918 = vpop.f32.mrf.mxu0
    %v7919 = vpop.f32.mrf.mxu0
    %7920 = vdwg.mxu0
    %7921 = vrot.lane.b32.xlu0 %v5143, 80
    %v7922 = vpop.permute.xlu0 %7921
    %v7925 = vsel %vm792, %v7643, 0
    %7927 = vmatprep.subr.bf16.mxu0 0
    %7928 = vmatpush1.bf16.msra.mxu0 0
    %7929 = vmatprep.subr.bf16.mxu0 0
    %7930 = vmatpush1.bf16.msra.mxu0 0
    %7931 = vmatprep.subr.bf16.mxu0 0
    %7932 = vmatpush1.bf16.msra.mxu0 0
    %7933 = vmatprep.subr.bf16.mxu0 0
    %7934 = vmatpush1.bf16.msra.mxu0 0
    %7935 = vmatprep.subr.bf16.mxu0 0
    %7936 = vmatpush1.bf16.msra.mxu0 0
    %7937 = vmatprep.subr.bf16.mxu0 0
    %7938 = vmatpush1.bf16.msra.mxu0 0
    %7939 = vmatprep.subr.bf16.mxu0 0
    %7940 = vmatpush1.bf16.msra.mxu0 0
    %7941 = vmatprep.subr.bf16.mxu0 0
    %7942 = vmatpush1.bf16.msra.mxu0 %v7922
    %7943 = vmatprep.subr.bf16.mxu0 0
    %7944 = vmatpush2.bf16.msra.mxu0 0
    %7945 = vmatprep.subr.bf16.mxu0 0
    %7946 = vmatpush2.bf16.msra.mxu0 0
    %7947 = vmatprep.subr.bf16.mxu0 0
    %7948 = vmatpush2.bf16.msra.mxu0 0
    %7949 = vmatprep.subr.bf16.mxu0 0
    %7950 = vmatpush2.bf16.msra.mxu0 0
    %7951 = vmatprep.subr.bf16.mxu0 0
    %7952 = vmatpush2.bf16.msra.mxu0 0
    %7953 = vmatprep.subr.bf16.mxu0 0
    %7954 = vmatpush2.bf16.msra.mxu0 0
    %7955 = vmatprep.subr.bf16.mxu0 0
    %7956 = vmatpush2.bf16.msra.mxu0 0
    %7957 = vmatprep.subr.bf16.mxu0 0
    %7958 = vmatpush2.bf16.msra.mxu0 0
    %7959 = vmatprep.mubr.bf16.mxu0 0
    %7960 = vmatmul.mubr.bf16.gmra.mxu0 %v7925
    %v7961 = vpop.f32.mrf.mxu0
    %v7962 = vadd.f32 0.0, %v7961
    %v7963 = vpop.f32.mrf.mxu0
    %v7964 = vpop.f32.mrf.mxu0
    %v7965 = vpop.f32.mrf.mxu0
    %7966 = vdwg.mxu0
    %7967 = vrot.lane.b32.xlu0 %v5144, 80
    %v7968 = vpop.permute.xlu0 %7967
    %v7971 = vsel %vm792, %v7644, 0
    %7973 = vmatprep.subr.bf16.mxu0 0
    %7974 = vmatpush1.bf16.msra.mxu0 0
    %7975 = vmatprep.subr.bf16.mxu0 0
    %7976 = vmatpush1.bf16.msra.mxu0 0
    %7977 = vmatprep.subr.bf16.mxu0 0
    %7978 = vmatpush1.bf16.msra.mxu0 0
    %7979 = vmatprep.subr.bf16.mxu0 0
    %7980 = vmatpush1.bf16.msra.mxu0 0
    %7981 = vmatprep.subr.bf16.mxu0 0
    %7982 = vmatpush1.bf16.msra.mxu0 0
    %7983 = vmatprep.subr.bf16.mxu0 0
    %7984 = vmatpush1.bf16.msra.mxu0 0
    %7985 = vmatprep.subr.bf16.mxu0 0
    %7986 = vmatpush1.bf16.msra.mxu0 0
    %7987 = vmatprep.subr.bf16.mxu0 0
    %7988 = vmatpush1.bf16.msra.mxu0 %v7968
    %7989 = vmatprep.subr.bf16.mxu0 0
    %7990 = vmatpush2.bf16.msra.mxu0 0
    %7991 = vmatprep.subr.bf16.mxu0 0
    %7992 = vmatpush2.bf16.msra.mxu0 0
    %7993 = vmatprep.subr.bf16.mxu0 0
    %7994 = vmatpush2.bf16.msra.mxu0 0
    %7995 = vmatprep.subr.bf16.mxu0 0
    %7996 = vmatpush2.bf16.msra.mxu0 0
    %7997 = vmatprep.subr.bf16.mxu0 0
    %7998 = vmatpush2.bf16.msra.mxu0 0
    %7999 = vmatprep.subr.bf16.mxu0 0
    %8000 = vmatpush2.bf16.msra.mxu0 0
    %8001 = vmatprep.subr.bf16.mxu0 0
    %8002 = vmatpush2.bf16.msra.mxu0 0
    %8003 = vmatprep.subr.bf16.mxu0 0
    %8004 = vmatpush2.bf16.msra.mxu0 0
    %8005 = vmatprep.mubr.bf16.mxu0 0
    %8006 = vmatmul.mubr.bf16.gmra.mxu0 %v7971
    %v8007 = vpop.f32.mrf.mxu0
    %v8008 = vadd.f32 0.0, %v8007
    %v8009 = vpop.f32.mrf.mxu0
    %v8010 = vpop.f32.mrf.mxu0
    %v8011 = vpop.f32.mrf.mxu0
    %8012 = vdwg.mxu0
    %v8021 = vcombine.low %v7686, %v7732
    %v8022 = vcombine.low %v7778, %v7824
    %v8024 = vunpack.c.l.s4 1983009808
    %v8025 = vunpack.c.0.s8 %v8024
    %v8026 = vlaneseq
    %v8027 = vshrl.u32 %v8026, 7
    %v8028 = vsub.s32 %v8025, %v8027
    %v8029 = vrot.slane %v8021, %v8028
    %v8031 = vunpack.c.l.s4 1983009808
    %v8032 = vunpack.c.0.s8 %v8031
    %v8033 = vlaneseq
    %v8034 = vshrl.u32 %v8033, 7
    %v8035 = vsub.s32 %v8032, %v8034
    %v8036 = vrot.slane %v8022, %v8035
    %v8037 = vcombine.low %v8029, %v8036
    %v8038 = vcombine.low %v7870, %v7916
    %v8039 = vcombine.low %v7962, %v8008
    %v8041 = vunpack.c.l.s4 1983009808
    %v8042 = vunpack.c.0.s8 %v8041
    %v8043 = vlaneseq
    %v8044 = vshrl.u32 %v8043, 7
    %v8045 = vsub.s32 %v8042, %v8044
    %v8046 = vrot.slane %v8038, %v8045
    %v8048 = vunpack.c.l.s4 1983009808
    %v8049 = vunpack.c.0.s8 %v8048
    %v8050 = vlaneseq
    %v8051 = vshrl.u32 %v8050, 7
    %v8052 = vsub.s32 %v8049, %v8051
    %v8053 = vrot.slane %v8039, %v8052
    %v8054 = vcombine.low %v8046, %v8053
    %v8057 = vpack.c.bf16 %v8054, %v8037
    %s8058 = scalar_lea.vmem [#allocation14], 8
    %v8059 = vld [vmem:[%s8058] sm:$0xf]
    %v8061 = vsel %vm394, %v8057, 0
    %v8064 = vsel %vm2364, %v8059, 0
    %8066 = vmatprep.subr.bf16.mxu0 0
    %8067 = vmatpush1.bf16.msra.mxu0 0
    %8068 = vmatprep.subr.bf16.mxu0 0
    %8069 = vmatpush1.bf16.msra.mxu0 0
    %8070 = vmatprep.subr.bf16.mxu0 0
    %8071 = vmatpush1.bf16.msra.mxu0 0
    %8072 = vmatprep.subr.bf16.mxu0 0
    %8073 = vmatpush1.bf16.msra.mxu0 0
    %8074 = vmatprep.subr.bf16.mxu0 0
    %8075 = vmatpush1.bf16.msra.mxu0 0
    %8076 = vmatprep.subr.bf16.mxu0 0
    %8077 = vmatpush1.bf16.msra.mxu0 0
    %8078 = vmatprep.subr.bf16.mxu0 0
    %8079 = vmatpush1.bf16.msra.mxu0 0
    %8080 = vmatprep.subr.bf16.mxu0 0
    %8081 = vmatpush1.bf16.msra.mxu0 %v8064
    %8082 = vmatprep.subr.bf16.mxu0 0
    %8083 = vmatpush2.bf16.msra.mxu0 0
    %8084 = vmatprep.subr.bf16.mxu0 0
    %8085 = vmatpush2.bf16.msra.mxu0 0
    %8086 = vmatprep.subr.bf16.mxu0 0
    %8087 = vmatpush2.bf16.msra.mxu0 0
    %8088 = vmatprep.subr.bf16.mxu0 0
    %8089 = vmatpush2.bf16.msra.mxu0 0
    %8090 = vmatprep.subr.bf16.mxu0 0
    %8091 = vmatpush2.bf16.msra.mxu0 0
    %8092 = vmatprep.subr.bf16.mxu0 0
    %8093 = vmatpush2.bf16.msra.mxu0 0
    %8094 = vmatprep.subr.bf16.mxu0 0
    %8095 = vmatpush2.bf16.msra.mxu0 0
    %8096 = vmatprep.subr.bf16.mxu0 0
    %8097 = vmatpush2.bf16.msra.mxu0 0
    %8098 = vmatprep.mubr.bf16.mxu0 0
    %8099 = vmatmul.mubr.bf16.gmra.mxu0 %v8061
    %v8100 = vpop.f32.mrf.mxu0
    %v8101 = vadd.f32 0.0, %v8100
    %v8102 = vpop.f32.mrf.mxu0
    %v8103 = vpop.f32.mrf.mxu0
    %v8104 = vadd.f32 0.0, %v8103
    %v8105 = vpop.f32.mrf.mxu0
    %8106 = vdwg.mxu0
    %v8107 = vadd.f32 %v7143, %v8101
    %v8108 = vadd.f32 %v7146, %v8104
    %8109 = vrot.lane.b32.xlu0 %v6045, 104
    %v8110 = vpop.permute.xlu0 %8109
    %8111 = vrot.lane.b32.xlu0 %v5137, 104
    %v8112 = vpop.permute.xlu0 %8111
    %v8114 = vsel %vm394, %v8110, 0
    %v8117 = vsel %vm394, %v8112, 0
    %8119 = vmatprep.subr.bf16.mxu0 0
    %8120 = vmatpush1.bf16.xpose.msra.mxu0 0
    %8121 = vmatprep.subr.bf16.mxu0 0
    %8122 = vmatpush1.bf16.xpose.msra.mxu0 0
    %8123 = vmatprep.subr.bf16.mxu0 0
    %8124 = vmatpush1.bf16.xpose.msra.mxu0 0
    %8125 = vmatprep.subr.bf16.mxu0 0
    %8126 = vmatpush1.bf16.xpose.msra.mxu0 0
    %8127 = vmatprep.subr.bf16.mxu0 0
    %8128 = vmatpush1.bf16.xpose.msra.mxu0 0
    %8129 = vmatprep.subr.bf16.mxu0 0
    %8130 = vmatpush1.bf16.xpose.msra.mxu0 0
    %8131 = vmatprep.subr.bf16.mxu0 0
    %8132 = vmatpush1.bf16.xpose.msra.mxu0 0
    %8133 = vmatprep.subr.bf16.mxu0 0
    %8134 = vmatpush1.bf16.xpose.msra.mxu0 %v8117
    %8135 = vmatprep.subr.bf16.mxu0 0
    %8136 = vmatpush2.bf16.xpose.msra.mxu0 0
    %8137 = vmatprep.subr.bf16.mxu0 0
    %8138 = vmatpush2.bf16.xpose.msra.mxu0 0
    %8139 = vmatprep.subr.bf16.mxu0 0
    %8140 = vmatpush2.bf16.xpose.msra.mxu0 0
    %8141 = vmatprep.subr.bf16.mxu0 0
    %8142 = vmatpush2.bf16.xpose.msra.mxu0 0
    %8143 = vmatprep.subr.bf16.mxu0 0
    %8144 = vmatpush2.bf16.xpose.msra.mxu0 0
    %8145 = vmatprep.subr.bf16.mxu0 0
    %8146 = vmatpush2.bf16.xpose.msra.mxu0 0
    %8147 = vmatprep.subr.bf16.mxu0 0
    %8148 = vmatpush2.bf16.xpose.msra.mxu0 0
    %8149 = vmatprep.subr.bf16.mxu0 0
    %8150 = vmatpush2.bf16.xpose.msra.mxu0 0
    %8151 = vmatprep.mubr.bf16.mxu0 0
    %8152 = vmatmul.mubr.bf16.gmra.mxu0 %v8114
    %v8153 = vpop.f32.mrf.mxu0
    %v8154 = vadd.f32 0.0, %v8153
    %v8155 = vpop.f32.mrf.mxu0
    %v8156 = vpop.f32.mrf.mxu0
    %v8157 = vpop.f32.mrf.mxu0
    %8158 = vdwg.mxu0
    %8159 = vrot.lane.b32.xlu0 %v6109, 104
    %v8160 = vpop.permute.xlu0 %8159
    %8161 = vrot.lane.b32.xlu0 %v5138, 104
    %v8162 = vpop.permute.xlu0 %8161
    %v8164 = vsel %vm394, %v8160, 0
    %v8167 = vsel %vm394, %v8162, 0
    %8169 = vmatprep.subr.bf16.mxu0 0
    %8170 = vmatpush1.bf16.xpose.msra.mxu0 0
    %8171 = vmatprep.subr.bf16.mxu0 0
    %8172 = vmatpush1.bf16.xpose.msra.mxu0 0
    %8173 = vmatprep.subr.bf16.mxu0 0
    %8174 = vmatpush1.bf16.xpose.msra.mxu0 0
    %8175 = vmatprep.subr.bf16.mxu0 0
    %8176 = vmatpush1.bf16.xpose.msra.mxu0 0
    %8177 = vmatprep.subr.bf16.mxu0 0
    %8178 = vmatpush1.bf16.xpose.msra.mxu0 0
    %8179 = vmatprep.subr.bf16.mxu0 0
    %8180 = vmatpush1.bf16.xpose.msra.mxu0 0
    %8181 = vmatprep.subr.bf16.mxu0 0
    %8182 = vmatpush1.bf16.xpose.msra.mxu0 0
    %8183 = vmatprep.subr.bf16.mxu0 0
    %8184 = vmatpush1.bf16.xpose.msra.mxu0 %v8167
    %8185 = vmatprep.subr.bf16.mxu0 0
    %8186 = vmatpush2.bf16.xpose.msra.mxu0 0
    %8187 = vmatprep.subr.bf16.mxu0 0
    %8188 = vmatpush2.bf16.xpose.msra.mxu0 0
    %8189 = vmatprep.subr.bf16.mxu0 0
    %8190 = vmatpush2.bf16.xpose.msra.mxu0 0
    %8191 = vmatprep.subr.bf16.mxu0 0
    %8192 = vmatpush2.bf16.xpose.msra.mxu0 0
    %8193 = vmatprep.subr.bf16.mxu0 0
    %8194 = vmatpush2.bf16.xpose.msra.mxu0 0
    %8195 = vmatprep.subr.bf16.mxu0 0
    %8196 = vmatpush2.bf16.xpose.msra.mxu0 0
    %8197 = vmatprep.subr.bf16.mxu0 0
    %8198 = vmatpush2.bf16.xpose.msra.mxu0 0
    %8199 = vmatprep.subr.bf16.mxu0 0
    %8200 = vmatpush2.bf16.xpose.msra.mxu0 0
    %8201 = vmatprep.mubr.bf16.mxu0 0
    %8202 = vmatmul.mubr.bf16.gmra.mxu0 %v8164
    %v8203 = vpop.f32.mrf.mxu0
    %v8204 = vadd.f32 0.0, %v8203
    %v8205 = vpop.f32.mrf.mxu0
    %v8206 = vpop.f32.mrf.mxu0
    %v8207 = vpop.f32.mrf.mxu0
    %8208 = vdwg.mxu0
    %8209 = vrot.lane.b32.xlu0 %v6173, 104
    %v8210 = vpop.permute.xlu0 %8209
    %8211 = vrot.lane.b32.xlu0 %v5139, 104
    %v8212 = vpop.permute.xlu0 %8211
    %v8214 = vsel %vm394, %v8210, 0
    %v8217 = vsel %vm394, %v8212, 0
    %8219 = vmatprep.subr.bf16.mxu0 0
    %8220 = vmatpush1.bf16.xpose.msra.mxu0 0
    %8221 = vmatprep.subr.bf16.mxu0 0
    %8222 = vmatpush1.bf16.xpose.msra.mxu0 0
    %8223 = vmatprep.subr.bf16.mxu0 0
    %8224 = vmatpush1.bf16.xpose.msra.mxu0 0
    %8225 = vmatprep.subr.bf16.mxu0 0
    %8226 = vmatpush1.bf16.xpose.msra.mxu0 0
    %8227 = vmatprep.subr.bf16.mxu0 0
    %8228 = vmatpush1.bf16.xpose.msra.mxu0 0
    %8229 = vmatprep.subr.bf16.mxu0 0
    %8230 = vmatpush1.bf16.xpose.msra.mxu0 0
    %8231 = vmatprep.subr.bf16.mxu0 0
    %8232 = vmatpush1.bf16.xpose.msra.mxu0 0
    %8233 = vmatprep.subr.bf16.mxu0 0
    %8234 = vmatpush1.bf16.xpose.msra.mxu0 %v8217
    %8235 = vmatprep.subr.bf16.mxu0 0
    %8236 = vmatpush2.bf16.xpose.msra.mxu0 0
    %8237 = vmatprep.subr.bf16.mxu0 0
    %8238 = vmatpush2.bf16.xpose.msra.mxu0 0
    %8239 = vmatprep.subr.bf16.mxu0 0
    %8240 = vmatpush2.bf16.xpose.msra.mxu0 0
    %8241 = vmatprep.subr.bf16.mxu0 0
    %8242 = vmatpush2.bf16.xpose.msra.mxu0 0
    %8243 = vmatprep.subr.bf16.mxu0 0
    %8244 = vmatpush2.bf16.xpose.msra.mxu0 0
    %8245 = vmatprep.subr.bf16.mxu0 0
    %8246 = vmatpush2.bf16.xpose.msra.mxu0 0
    %8247 = vmatprep.subr.bf16.mxu0 0
    %8248 = vmatpush2.bf16.xpose.msra.mxu0 0
    %8249 = vmatprep.subr.bf16.mxu0 0
    %8250 = vmatpush2.bf16.xpose.msra.mxu0 0
    %8251 = vmatprep.mubr.bf16.mxu0 0
    %8252 = vmatmul.mubr.bf16.gmra.mxu0 %v8214
    %v8253 = vpop.f32.mrf.mxu0
    %v8254 = vadd.f32 0.0, %v8253
    %v8255 = vpop.f32.mrf.mxu0
    %v8256 = vpop.f32.mrf.mxu0
    %v8257 = vpop.f32.mrf.mxu0
    %8258 = vdwg.mxu0
    %8259 = vrot.lane.b32.xlu0 %v6237, 104
    %v8260 = vpop.permute.xlu0 %8259
    %8261 = vrot.lane.b32.xlu0 %v5140, 104
    %v8262 = vpop.permute.xlu0 %8261
    %v8264 = vsel %vm394, %v8260, 0
    %v8267 = vsel %vm394, %v8262, 0
    %8269 = vmatprep.subr.bf16.mxu0 0
    %8270 = vmatpush1.bf16.xpose.msra.mxu0 0
    %8271 = vmatprep.subr.bf16.mxu0 0
    %8272 = vmatpush1.bf16.xpose.msra.mxu0 0
    %8273 = vmatprep.subr.bf16.mxu0 0
    %8274 = vmatpush1.bf16.xpose.msra.mxu0 0
    %8275 = vmatprep.subr.bf16.mxu0 0
    %8276 = vmatpush1.bf16.xpose.msra.mxu0 0
    %8277 = vmatprep.subr.bf16.mxu0 0
    %8278 = vmatpush1.bf16.xpose.msra.mxu0 0
    %8279 = vmatprep.subr.bf16.mxu0 0
    %8280 = vmatpush1.bf16.xpose.msra.mxu0 0
    %8281 = vmatprep.subr.bf16.mxu0 0
    %8282 = vmatpush1.bf16.xpose.msra.mxu0 0
    %8283 = vmatprep.subr.bf16.mxu0 0
    %8284 = vmatpush1.bf16.xpose.msra.mxu0 %v8267
    %8285 = vmatprep.subr.bf16.mxu0 0
    %8286 = vmatpush2.bf16.xpose.msra.mxu0 0
    %8287 = vmatprep.subr.bf16.mxu0 0
    %8288 = vmatpush2.bf16.xpose.msra.mxu0 0
    %8289 = vmatprep.subr.bf16.mxu0 0
    %8290 = vmatpush2.bf16.xpose.msra.mxu0 0
    %8291 = vmatprep.subr.bf16.mxu0 0
    %8292 = vmatpush2.bf16.xpose.msra.mxu0 0
    %8293 = vmatprep.subr.bf16.mxu0 0
    %8294 = vmatpush2.bf16.xpose.msra.mxu0 0
    %8295 = vmatprep.subr.bf16.mxu0 0
    %8296 = vmatpush2.bf16.xpose.msra.mxu0 0
    %8297 = vmatprep.subr.bf16.mxu0 0
    %8298 = vmatpush2.bf16.xpose.msra.mxu0 0
    %8299 = vmatprep.subr.bf16.mxu0 0
    %8300 = vmatpush2.bf16.xpose.msra.mxu0 0
    %8301 = vmatprep.mubr.bf16.mxu0 0
    %8302 = vmatmul.mubr.bf16.gmra.mxu0 %v8264
    %v8303 = vpop.f32.mrf.mxu0
    %v8304 = vadd.f32 0.0, %v8303
    %v8305 = vpop.f32.mrf.mxu0
    %v8306 = vpop.f32.mrf.mxu0
    %v8307 = vpop.f32.mrf.mxu0
    %8308 = vdwg.mxu0
    %8309 = vrot.lane.b32.xlu0 %v6301, 104
    %v8310 = vpop.permute.xlu0 %8309
    %8311 = vrot.lane.b32.xlu0 %v5141, 104
    %v8312 = vpop.permute.xlu0 %8311
    %v8314 = vsel %vm394, %v8310, 0
    %v8317 = vsel %vm394, %v8312, 0
    %8319 = vmatprep.subr.bf16.mxu0 0
    %8320 = vmatpush1.bf16.xpose.msra.mxu0 0
    %8321 = vmatprep.subr.bf16.mxu0 0
    %8322 = vmatpush1.bf16.xpose.msra.mxu0 0
    %8323 = vmatprep.subr.bf16.mxu0 0
    %8324 = vmatpush1.bf16.xpose.msra.mxu0 0
    %8325 = vmatprep.subr.bf16.mxu0 0
    %8326 = vmatpush1.bf16.xpose.msra.mxu0 0
    %8327 = vmatprep.subr.bf16.mxu0 0
    %8328 = vmatpush1.bf16.xpose.msra.mxu0 0
    %8329 = vmatprep.subr.bf16.mxu0 0
    %8330 = vmatpush1.bf16.xpose.msra.mxu0 0
    %8331 = vmatprep.subr.bf16.mxu0 0
    %8332 = vmatpush1.bf16.xpose.msra.mxu0 0
    %8333 = vmatprep.subr.bf16.mxu0 0
    %8334 = vmatpush1.bf16.xpose.msra.mxu0 %v8317
    %8335 = vmatprep.subr.bf16.mxu0 0
    %8336 = vmatpush2.bf16.xpose.msra.mxu0 0
    %8337 = vmatprep.subr.bf16.mxu0 0
    %8338 = vmatpush2.bf16.xpose.msra.mxu0 0
    %8339 = vmatprep.subr.bf16.mxu0 0
    %8340 = vmatpush2.bf16.xpose.msra.mxu0 0
    %8341 = vmatprep.subr.bf16.mxu0 0
    %8342 = vmatpush2.bf16.xpose.msra.mxu0 0
    %8343 = vmatprep.subr.bf16.mxu0 0
    %8344 = vmatpush2.bf16.xpose.msra.mxu0 0
    %8345 = vmatprep.subr.bf16.mxu0 0
    %8346 = vmatpush2.bf16.xpose.msra.mxu0 0
    %8347 = vmatprep.subr.bf16.mxu0 0
    %8348 = vmatpush2.bf16.xpose.msra.mxu0 0
    %8349 = vmatprep.subr.bf16.mxu0 0
    %8350 = vmatpush2.bf16.xpose.msra.mxu0 0
    %8351 = vmatprep.mubr.bf16.mxu0 0
    %8352 = vmatmul.mubr.bf16.gmra.mxu0 %v8314
    %v8353 = vpop.f32.mrf.mxu0
    %v8354 = vadd.f32 0.0, %v8353
    %v8355 = vpop.f32.mrf.mxu0
    %v8356 = vpop.f32.mrf.mxu0
    %v8357 = vpop.f32.mrf.mxu0
    %8358 = vdwg.mxu0
    %8359 = vrot.lane.b32.xlu0 %v6365, 104
    %v8360 = vpop.permute.xlu0 %8359
    %8361 = vrot.lane.b32.xlu0 %v5142, 104
    %v8362 = vpop.permute.xlu0 %8361
    %v8364 = vsel %vm394, %v8360, 0
    %v8367 = vsel %vm394, %v8362, 0
    %8369 = vmatprep.subr.bf16.mxu0 0
    %8370 = vmatpush1.bf16.xpose.msra.mxu0 0
    %8371 = vmatprep.subr.bf16.mxu0 0
    %8372 = vmatpush1.bf16.xpose.msra.mxu0 0
    %8373 = vmatprep.subr.bf16.mxu0 0
    %8374 = vmatpush1.bf16.xpose.msra.mxu0 0
    %8375 = vmatprep.subr.bf16.mxu0 0
    %8376 = vmatpush1.bf16.xpose.msra.mxu0 0
    %8377 = vmatprep.subr.bf16.mxu0 0
    %8378 = vmatpush1.bf16.xpose.msra.mxu0 0
    %8379 = vmatprep.subr.bf16.mxu0 0
    %8380 = vmatpush1.bf16.xpose.msra.mxu0 0
    %8381 = vmatprep.subr.bf16.mxu0 0
    %8382 = vmatpush1.bf16.xpose.msra.mxu0 0
    %8383 = vmatprep.subr.bf16.mxu0 0
    %8384 = vmatpush1.bf16.xpose.msra.mxu0 %v8367
    %8385 = vmatprep.subr.bf16.mxu0 0
    %8386 = vmatpush2.bf16.xpose.msra.mxu0 0
    %8387 = vmatprep.subr.bf16.mxu0 0
    %8388 = vmatpush2.bf16.xpose.msra.mxu0 0
    %8389 = vmatprep.subr.bf16.mxu0 0
    %8390 = vmatpush2.bf16.xpose.msra.mxu0 0
    %8391 = vmatprep.subr.bf16.mxu0 0
    %8392 = vmatpush2.bf16.xpose.msra.mxu0 0
    %8393 = vmatprep.subr.bf16.mxu0 0
    %8394 = vmatpush2.bf16.xpose.msra.mxu0 0
    %8395 = vmatprep.subr.bf16.mxu0 0
    %8396 = vmatpush2.bf16.xpose.msra.mxu0 0
    %8397 = vmatprep.subr.bf16.mxu0 0
    %8398 = vmatpush2.bf16.xpose.msra.mxu0 0
    %8399 = vmatprep.subr.bf16.mxu0 0
    %8400 = vmatpush2.bf16.xpose.msra.mxu0 0
    %8401 = vmatprep.mubr.bf16.mxu0 0
    %8402 = vmatmul.mubr.bf16.gmra.mxu0 %v8364
    %v8403 = vpop.f32.mrf.mxu0
    %v8404 = vadd.f32 0.0, %v8403
    %v8405 = vpop.f32.mrf.mxu0
    %v8406 = vpop.f32.mrf.mxu0
    %v8407 = vpop.f32.mrf.mxu0
    %8408 = vdwg.mxu0
    %8409 = vrot.lane.b32.xlu0 %v6429, 104
    %v8410 = vpop.permute.xlu0 %8409
    %8411 = vrot.lane.b32.xlu0 %v5143, 104
    %v8412 = vpop.permute.xlu0 %8411
    %v8414 = vsel %vm394, %v8410, 0
    %v8417 = vsel %vm394, %v8412, 0
    %8419 = vmatprep.subr.bf16.mxu0 0
    %8420 = vmatpush1.bf16.xpose.msra.mxu0 0
    %8421 = vmatprep.subr.bf16.mxu0 0
    %8422 = vmatpush1.bf16.xpose.msra.mxu0 0
    %8423 = vmatprep.subr.bf16.mxu0 0
    %8424 = vmatpush1.bf16.xpose.msra.mxu0 0
    %8425 = vmatprep.subr.bf16.mxu0 0
    %8426 = vmatpush1.bf16.xpose.msra.mxu0 0
    %8427 = vmatprep.subr.bf16.mxu0 0
    %8428 = vmatpush1.bf16.xpose.msra.mxu0 0
    %8429 = vmatprep.subr.bf16.mxu0 0
    %8430 = vmatpush1.bf16.xpose.msra.mxu0 0
    %8431 = vmatprep.subr.bf16.mxu0 0
    %8432 = vmatpush1.bf16.xpose.msra.mxu0 0
    %8433 = vmatprep.subr.bf16.mxu0 0
    %8434 = vmatpush1.bf16.xpose.msra.mxu0 %v8417
    %8435 = vmatprep.subr.bf16.mxu0 0
    %8436 = vmatpush2.bf16.xpose.msra.mxu0 0
    %8437 = vmatprep.subr.bf16.mxu0 0
    %8438 = vmatpush2.bf16.xpose.msra.mxu0 0
    %8439 = vmatprep.subr.bf16.mxu0 0
    %8440 = vmatpush2.bf16.xpose.msra.mxu0 0
    %8441 = vmatprep.subr.bf16.mxu0 0
    %8442 = vmatpush2.bf16.xpose.msra.mxu0 0
    %8443 = vmatprep.subr.bf16.mxu0 0
    %8444 = vmatpush2.bf16.xpose.msra.mxu0 0
    %8445 = vmatprep.subr.bf16.mxu0 0
    %8446 = vmatpush2.bf16.xpose.msra.mxu0 0
    %8447 = vmatprep.subr.bf16.mxu0 0
    %8448 = vmatpush2.bf16.xpose.msra.mxu0 0
    %8449 = vmatprep.subr.bf16.mxu0 0
    %8450 = vmatpush2.bf16.xpose.msra.mxu0 0
    %8451 = vmatprep.mubr.bf16.mxu0 0
    %8452 = vmatmul.mubr.bf16.gmra.mxu0 %v8414
    %v8453 = vpop.f32.mrf.mxu0
    %v8454 = vadd.f32 0.0, %v8453
    %v8455 = vpop.f32.mrf.mxu0
    %v8456 = vpop.f32.mrf.mxu0
    %v8457 = vpop.f32.mrf.mxu0
    %8458 = vdwg.mxu0
    %8459 = vrot.lane.b32.xlu0 %v6493, 104
    %v8460 = vpop.permute.xlu0 %8459
    %8461 = vrot.lane.b32.xlu0 %v5144, 104
    %v8462 = vpop.permute.xlu0 %8461
    %v8464 = vsel %vm394, %v8460, 0
    %v8467 = vsel %vm394, %v8462, 0
    %8469 = vmatprep.subr.bf16.mxu0 0
    %8470 = vmatpush1.bf16.xpose.msra.mxu0 0
    %8471 = vmatprep.subr.bf16.mxu0 0
    %8472 = vmatpush1.bf16.xpose.msra.mxu0 0
    %8473 = vmatprep.subr.bf16.mxu0 0
    %8474 = vmatpush1.bf16.xpose.msra.mxu0 0
    %8475 = vmatprep.subr.bf16.mxu0 0
    %8476 = vmatpush1.bf16.xpose.msra.mxu0 0
    %8477 = vmatprep.subr.bf16.mxu0 0
    %8478 = vmatpush1.bf16.xpose.msra.mxu0 0
    %8479 = vmatprep.subr.bf16.mxu0 0
    %8480 = vmatpush1.bf16.xpose.msra.mxu0 0
    %8481 = vmatprep.subr.bf16.mxu0 0
    %8482 = vmatpush1.bf16.xpose.msra.mxu0 0
    %8483 = vmatprep.subr.bf16.mxu0 0
    %8484 = vmatpush1.bf16.xpose.msra.mxu0 %v8467
    %8485 = vmatprep.subr.bf16.mxu0 0
    %8486 = vmatpush2.bf16.xpose.msra.mxu0 0
    %8487 = vmatprep.subr.bf16.mxu0 0
    %8488 = vmatpush2.bf16.xpose.msra.mxu0 0
    %8489 = vmatprep.subr.bf16.mxu0 0
    %8490 = vmatpush2.bf16.xpose.msra.mxu0 0
    %8491 = vmatprep.subr.bf16.mxu0 0
    %8492 = vmatpush2.bf16.xpose.msra.mxu0 0
    %8493 = vmatprep.subr.bf16.mxu0 0
    %8494 = vmatpush2.bf16.xpose.msra.mxu0 0
    %8495 = vmatprep.subr.bf16.mxu0 0
    %8496 = vmatpush2.bf16.xpose.msra.mxu0 0
    %8497 = vmatprep.subr.bf16.mxu0 0
    %8498 = vmatpush2.bf16.xpose.msra.mxu0 0
    %8499 = vmatprep.subr.bf16.mxu0 0
    %8500 = vmatpush2.bf16.xpose.msra.mxu0 0
    %8501 = vmatprep.mubr.bf16.mxu0 0
    %8502 = vmatmul.mubr.bf16.gmra.mxu0 %v8464
    %v8503 = vpop.f32.mrf.mxu0
    %v8504 = vadd.f32 0.0, %v8503
    %v8505 = vpop.f32.mrf.mxu0
    %v8506 = vpop.f32.mrf.mxu0
    %v8507 = vpop.f32.mrf.mxu0
    %8508 = vdwg.mxu0
    %v8509 = vsel %vm5513, %v8154, -inf
    %8510 = vmax.xlane.f32.xlu0 %v8509
    %v8511 = vpop.xlane.xlu0 %8510
    %v8512 = vsel %vm5513, %v8204, -inf
    %8513 = vmax.xlane.f32.xlu0 %v8512
    %v8514 = vpop.xlane.xlu0 %8513
    %v8515 = vsel %vm5513, %v8254, -inf
    %8516 = vmax.xlane.f32.xlu0 %v8515
    %v8517 = vpop.xlane.xlu0 %8516
    %v8518 = vsel %vm5513, %v8304, -inf
    %8519 = vmax.xlane.f32.xlu0 %v8518
    %v8520 = vpop.xlane.xlu0 %8519
    %v8521 = vsel %vm5513, %v8354, -inf
    %8522 = vmax.xlane.f32.xlu0 %v8521
    %v8523 = vpop.xlane.xlu0 %8522
    %v8524 = vsel %vm5513, %v8404, -inf
    %8525 = vmax.xlane.f32.xlu0 %v8524
    %v8526 = vpop.xlane.xlu0 %8525
    %v8527 = vsel %vm5513, %v8454, -inf
    %8528 = vmax.xlane.f32.xlu0 %v8527
    %v8529 = vpop.xlane.xlu0 %8528
    %v8530 = vsel %vm5513, %v8504, -inf
    %8531 = vmax.xlane.f32.xlu0 %v8530
    %v8532 = vpop.xlane.xlu0 %8531
    %v8533 = vsub.f32 %v8154, %v8511
    %v8534 = vsub.f32 %v8204, %v8514
    %v8535 = vsub.f32 %v8254, %v8517
    %v8536 = vsub.f32 %v8304, %v8520
    %v8537 = vsub.f32 %v8354, %v8523
    %v8538 = vsub.f32 %v8404, %v8526
    %v8539 = vsub.f32 %v8454, %v8529
    %v8540 = vsub.f32 %v8504, %v8532
    %v8541 = vmul.f32 %v8533, 1.442695
    %v8542 = vpow.pop %v8541
    %v8543 = vmul.f32 %v8534, 1.442695
    %v8544 = vpow.pop %v8543
    %v8545 = vmul.f32 %v8535, 1.442695
    %v8546 = vpow.pop %v8545
    %v8547 = vmul.f32 %v8536, 1.442695
    %v8548 = vpow.pop %v8547
    %v8549 = vmul.f32 %v8537, 1.442695
    %v8550 = vpow.pop %v8549
    %v8551 = vmul.f32 %v8538, 1.442695
    %v8552 = vpow.pop %v8551
    %v8553 = vmul.f32 %v8539, 1.442695
    %v8554 = vpow.pop %v8553
    %v8555 = vmul.f32 %v8540, 1.442695
    %v8556 = vpow.pop %v8555
    %v8557 = vsel %vm5513, %v8542, 0.0
    %8558 = vadd.xlane.f32.xlu0 %v8557
    %v8559 = vpop.xlane.xlu0 %8558
    %v8560 = vsel %vm5513, %v8544, 0.0
    %8561 = vadd.xlane.f32.xlu0 %v8560
    %v8562 = vpop.xlane.xlu0 %8561
    %v8563 = vsel %vm5513, %v8546, 0.0
    %8564 = vadd.xlane.f32.xlu0 %v8563
    %v8565 = vpop.xlane.xlu0 %8564
    %v8566 = vsel %vm5513, %v8548, 0.0
    %8567 = vadd.xlane.f32.xlu0 %v8566
    %v8568 = vpop.xlane.xlu0 %8567
    %v8569 = vsel %vm5513, %v8550, 0.0
    %8570 = vadd.xlane.f32.xlu0 %v8569
    %v8571 = vpop.xlane.xlu0 %8570
    %v8572 = vsel %vm5513, %v8552, 0.0
    %8573 = vadd.xlane.f32.xlu0 %v8572
    %v8574 = vpop.xlane.xlu0 %8573
    %v8575 = vsel %vm5513, %v8554, 0.0
    %8576 = vadd.xlane.f32.xlu0 %v8575
    %v8577 = vpop.xlane.xlu0 %8576
    %v8578 = vsel %vm5513, %v8556, 0.0
    %8579 = vadd.xlane.f32.xlu0 %v8578
    %v8580 = vpop.xlane.xlu0 %8579
    %v8581 = vrcp.pop %v8559
    %v8582 = vrcp.pop %v8562
    %v8583 = vrcp.pop %v8565
    %v8584 = vrcp.pop %v8568
    %v8585 = vrcp.pop %v8571
    %v8586 = vrcp.pop %v8574
    %v8587 = vrcp.pop %v8577
    %v8588 = vrcp.pop %v8580
    %v8589 = vmul.f32 %v8542, %v8581
    %v8590 = vmul.f32 %v8544, %v8582
    %v8591 = vmul.f32 %v8546, %v8583
    %v8592 = vmul.f32 %v8548, %v8584
    %v8593 = vmul.f32 %v8550, %v8585
    %v8594 = vmul.f32 %v8552, %v8586
    %v8595 = vmul.f32 %v8554, %v8587
    %v8596 = vmul.f32 %v8556, %v8588
    %v8597 = vpack.c.bf16 %v8589, %v8589
    %v8598 = vpack.c.bf16 %v8590, %v8590
    %v8599 = vpack.c.bf16 %v8591, %v8591
    %v8600 = vpack.c.bf16 %v8592, %v8592
    %v8601 = vpack.c.bf16 %v8593, %v8593
    %v8602 = vpack.c.bf16 %v8594, %v8594
    %v8603 = vpack.c.bf16 %v8595, %v8595
    %v8604 = vpack.c.bf16 %v8596, %v8596
    %8605 = vrot.lane.b32.xlu0 %v5137, 72
    %v8606 = vpop.permute.xlu0 %8605
    %v8609 = vsel %vm792, %v8597, 0
    %8611 = vmatprep.subr.bf16.mxu0 0
    %8612 = vmatpush1.bf16.msra.mxu0 0
    %8613 = vmatprep.subr.bf16.mxu0 0
    %8614 = vmatpush1.bf16.msra.mxu0 0
    %8615 = vmatprep.subr.bf16.mxu0 0
    %8616 = vmatpush1.bf16.msra.mxu0 0
    %8617 = vmatprep.subr.bf16.mxu0 0
    %8618 = vmatpush1.bf16.msra.mxu0 0
    %8619 = vmatprep.subr.bf16.mxu0 0
    %8620 = vmatpush1.bf16.msra.mxu0 0
    %8621 = vmatprep.subr.bf16.mxu0 0
    %8622 = vmatpush1.bf16.msra.mxu0 0
    %8623 = vmatprep.subr.bf16.mxu0 0
    %8624 = vmatpush1.bf16.msra.mxu0 0
    %8625 = vmatprep.subr.bf16.mxu0 0
    %8626 = vmatpush1.bf16.msra.mxu0 %v8606
    %8627 = vmatprep.subr.bf16.mxu0 0
    %8628 = vmatpush2.bf16.msra.mxu0 0
    %8629 = vmatprep.subr.bf16.mxu0 0
    %8630 = vmatpush2.bf16.msra.mxu0 0
    %8631 = vmatprep.subr.bf16.mxu0 0
    %8632 = vmatpush2.bf16.msra.mxu0 0
    %8633 = vmatprep.subr.bf16.mxu0 0
    %8634 = vmatpush2.bf16.msra.mxu0 0
    %8635 = vmatprep.subr.bf16.mxu0 0
    %8636 = vmatpush2.bf16.msra.mxu0 0
    %8637 = vmatprep.subr.bf16.mxu0 0
    %8638 = vmatpush2.bf16.msra.mxu0 0
    %8639 = vmatprep.subr.bf16.mxu0 0
    %8640 = vmatpush2.bf16.msra.mxu0 0
    %8641 = vmatprep.subr.bf16.mxu0 0
    %8642 = vmatpush2.bf16.msra.mxu0 0
    %8643 = vmatprep.mubr.bf16.mxu0 0
    %8644 = vmatmul.mubr.bf16.gmra.mxu0 %v8609
    %v8645 = vpop.f32.mrf.mxu0
    %v8646 = vadd.f32 0.0, %v8645
    %v8647 = vpop.f32.mrf.mxu0
    %v8648 = vpop.f32.mrf.mxu0
    %v8649 = vpop.f32.mrf.mxu0
    %8650 = vdwg.mxu0
    %8651 = vrot.lane.b32.xlu0 %v5138, 72
    %v8652 = vpop.permute.xlu0 %8651
    %v8655 = vsel %vm792, %v8598, 0
    %8657 = vmatprep.subr.bf16.mxu0 0
    %8658 = vmatpush1.bf16.msra.mxu0 0
    %8659 = vmatprep.subr.bf16.mxu0 0
    %8660 = vmatpush1.bf16.msra.mxu0 0
    %8661 = vmatprep.subr.bf16.mxu0 0
    %8662 = vmatpush1.bf16.msra.mxu0 0
    %8663 = vmatprep.subr.bf16.mxu0 0
    %8664 = vmatpush1.bf16.msra.mxu0 0
    %8665 = vmatprep.subr.bf16.mxu0 0
    %8666 = vmatpush1.bf16.msra.mxu0 0
    %8667 = vmatprep.subr.bf16.mxu0 0
    %8668 = vmatpush1.bf16.msra.mxu0 0
    %8669 = vmatprep.subr.bf16.mxu0 0
    %8670 = vmatpush1.bf16.msra.mxu0 0
    %8671 = vmatprep.subr.bf16.mxu0 0
    %8672 = vmatpush1.bf16.msra.mxu0 %v8652
    %8673 = vmatprep.subr.bf16.mxu0 0
    %8674 = vmatpush2.bf16.msra.mxu0 0
    %8675 = vmatprep.subr.bf16.mxu0 0
    %8676 = vmatpush2.bf16.msra.mxu0 0
    %8677 = vmatprep.subr.bf16.mxu0 0
    %8678 = vmatpush2.bf16.msra.mxu0 0
    %8679 = vmatprep.subr.bf16.mxu0 0
    %8680 = vmatpush2.bf16.msra.mxu0 0
    %8681 = vmatprep.subr.bf16.mxu0 0
    %8682 = vmatpush2.bf16.msra.mxu0 0
    %8683 = vmatprep.subr.bf16.mxu0 0
    %8684 = vmatpush2.bf16.msra.mxu0 0
    %8685 = vmatprep.subr.bf16.mxu0 0
    %8686 = vmatpush2.bf16.msra.mxu0 0
    %8687 = vmatprep.subr.bf16.mxu0 0
    %8688 = vmatpush2.bf16.msra.mxu0 0
    %8689 = vmatprep.mubr.bf16.mxu0 0
    %8690 = vmatmul.mubr.bf16.gmra.mxu0 %v8655
    %v8691 = vpop.f32.mrf.mxu0
    %v8692 = vadd.f32 0.0, %v8691
    %v8693 = vpop.f32.mrf.mxu0
    %v8694 = vpop.f32.mrf.mxu0
    %v8695 = vpop.f32.mrf.mxu0
    %8696 = vdwg.mxu0
    %8697 = vrot.lane.b32.xlu0 %v5139, 72
    %v8698 = vpop.permute.xlu0 %8697
    %v8701 = vsel %vm792, %v8599, 0
    %8703 = vmatprep.subr.bf16.mxu0 0
    %8704 = vmatpush1.bf16.msra.mxu0 0
    %8705 = vmatprep.subr.bf16.mxu0 0
    %8706 = vmatpush1.bf16.msra.mxu0 0
    %8707 = vmatprep.subr.bf16.mxu0 0
    %8708 = vmatpush1.bf16.msra.mxu0 0
    %8709 = vmatprep.subr.bf16.mxu0 0
    %8710 = vmatpush1.bf16.msra.mxu0 0
    %8711 = vmatprep.subr.bf16.mxu0 0
    %8712 = vmatpush1.bf16.msra.mxu0 0
    %8713 = vmatprep.subr.bf16.mxu0 0
    %8714 = vmatpush1.bf16.msra.mxu0 0
    %8715 = vmatprep.subr.bf16.mxu0 0
    %8716 = vmatpush1.bf16.msra.mxu0 0
    %8717 = vmatprep.subr.bf16.mxu0 0
    %8718 = vmatpush1.bf16.msra.mxu0 %v8698
    %8719 = vmatprep.subr.bf16.mxu0 0
    %8720 = vmatpush2.bf16.msra.mxu0 0
    %8721 = vmatprep.subr.bf16.mxu0 0
    %8722 = vmatpush2.bf16.msra.mxu0 0
    %8723 = vmatprep.subr.bf16.mxu0 0
    %8724 = vmatpush2.bf16.msra.mxu0 0
    %8725 = vmatprep.subr.bf16.mxu0 0
    %8726 = vmatpush2.bf16.msra.mxu0 0
    %8727 = vmatprep.subr.bf16.mxu0 0
    %8728 = vmatpush2.bf16.msra.mxu0 0
    %8729 = vmatprep.subr.bf16.mxu0 0
    %8730 = vmatpush2.bf16.msra.mxu0 0
    %8731 = vmatprep.subr.bf16.mxu0 0
    %8732 = vmatpush2.bf16.msra.mxu0 0
    %8733 = vmatprep.subr.bf16.mxu0 0
    %8734 = vmatpush2.bf16.msra.mxu0 0
    %8735 = vmatprep.mubr.bf16.mxu0 0
    %8736 = vmatmul.mubr.bf16.gmra.mxu0 %v8701
    %v8737 = vpop.f32.mrf.mxu0
    %v8738 = vadd.f32 0.0, %v8737
    %v8739 = vpop.f32.mrf.mxu0
    %v8740 = vpop.f32.mrf.mxu0
    %v8741 = vpop.f32.mrf.mxu0
    %8742 = vdwg.mxu0
    %8743 = vrot.lane.b32.xlu0 %v5140, 72
    %v8744 = vpop.permute.xlu0 %8743
    %v8747 = vsel %vm792, %v8600, 0
    %8749 = vmatprep.subr.bf16.mxu0 0
    %8750 = vmatpush1.bf16.msra.mxu0 0
    %8751 = vmatprep.subr.bf16.mxu0 0
    %8752 = vmatpush1.bf16.msra.mxu0 0
    %8753 = vmatprep.subr.bf16.mxu0 0
    %8754 = vmatpush1.bf16.msra.mxu0 0
    %8755 = vmatprep.subr.bf16.mxu0 0
    %8756 = vmatpush1.bf16.msra.mxu0 0
    %8757 = vmatprep.subr.bf16.mxu0 0
    %8758 = vmatpush1.bf16.msra.mxu0 0
    %8759 = vmatprep.subr.bf16.mxu0 0
    %8760 = vmatpush1.bf16.msra.mxu0 0
    %8761 = vmatprep.subr.bf16.mxu0 0
    %8762 = vmatpush1.bf16.msra.mxu0 0
    %8763 = vmatprep.subr.bf16.mxu0 0
    %8764 = vmatpush1.bf16.msra.mxu0 %v8744
    %8765 = vmatprep.subr.bf16.mxu0 0
    %8766 = vmatpush2.bf16.msra.mxu0 0
    %8767 = vmatprep.subr.bf16.mxu0 0
    %8768 = vmatpush2.bf16.msra.mxu0 0
    %8769 = vmatprep.subr.bf16.mxu0 0
    %8770 = vmatpush2.bf16.msra.mxu0 0
    %8771 = vmatprep.subr.bf16.mxu0 0
    %8772 = vmatpush2.bf16.msra.mxu0 0
    %8773 = vmatprep.subr.bf16.mxu0 0
    %8774 = vmatpush2.bf16.msra.mxu0 0
    %8775 = vmatprep.subr.bf16.mxu0 0
    %8776 = vmatpush2.bf16.msra.mxu0 0
    %8777 = vmatprep.subr.bf16.mxu0 0
    %8778 = vmatpush2.bf16.msra.mxu0 0
    %8779 = vmatprep.subr.bf16.mxu0 0
    %8780 = vmatpush2.bf16.msra.mxu0 0
    %8781 = vmatprep.mubr.bf16.mxu0 0
    %8782 = vmatmul.mubr.bf16.gmra.mxu0 %v8747
    %v8783 = vpop.f32.mrf.mxu0
    %v8784 = vadd.f32 0.0, %v8783
    %v8785 = vpop.f32.mrf.mxu0
    %v8786 = vpop.f32.mrf.mxu0
    %v8787 = vpop.f32.mrf.mxu0
    %8788 = vdwg.mxu0
    %8789 = vrot.lane.b32.xlu0 %v5141, 72
    %v8790 = vpop.permute.xlu0 %8789
    %v8793 = vsel %vm792, %v8601, 0
    %8795 = vmatprep.subr.bf16.mxu0 0
    %8796 = vmatpush1.bf16.msra.mxu0 0
    %8797 = vmatprep.subr.bf16.mxu0 0
    %8798 = vmatpush1.bf16.msra.mxu0 0
    %8799 = vmatprep.subr.bf16.mxu0 0
    %8800 = vmatpush1.bf16.msra.mxu0 0
    %8801 = vmatprep.subr.bf16.mxu0 0
    %8802 = vmatpush1.bf16.msra.mxu0 0
    %8803 = vmatprep.subr.bf16.mxu0 0
    %8804 = vmatpush1.bf16.msra.mxu0 0
    %8805 = vmatprep.subr.bf16.mxu0 0
    %8806 = vmatpush1.bf16.msra.mxu0 0
    %8807 = vmatprep.subr.bf16.mxu0 0
    %8808 = vmatpush1.bf16.msra.mxu0 0
    %8809 = vmatprep.subr.bf16.mxu0 0
    %8810 = vmatpush1.bf16.msra.mxu0 %v8790
    %8811 = vmatprep.subr.bf16.mxu0 0
    %8812 = vmatpush2.bf16.msra.mxu0 0
    %8813 = vmatprep.subr.bf16.mxu0 0
    %8814 = vmatpush2.bf16.msra.mxu0 0
    %8815 = vmatprep.subr.bf16.mxu0 0
    %8816 = vmatpush2.bf16.msra.mxu0 0
    %8817 = vmatprep.subr.bf16.mxu0 0
    %8818 = vmatpush2.bf16.msra.mxu0 0
    %8819 = vmatprep.subr.bf16.mxu0 0
    %8820 = vmatpush2.bf16.msra.mxu0 0
    %8821 = vmatprep.subr.bf16.mxu0 0
    %8822 = vmatpush2.bf16.msra.mxu0 0
    %8823 = vmatprep.subr.bf16.mxu0 0
    %8824 = vmatpush2.bf16.msra.mxu0 0
    %8825 = vmatprep.subr.bf16.mxu0 0
    %8826 = vmatpush2.bf16.msra.mxu0 0
    %8827 = vmatprep.mubr.bf16.mxu0 0
    %8828 = vmatmul.mubr.bf16.gmra.mxu0 %v8793
    %v8829 = vpop.f32.mrf.mxu0
    %v8830 = vadd.f32 0.0, %v8829
    %v8831 = vpop.f32.mrf.mxu0
    %v8832 = vpop.f32.mrf.mxu0
    %v8833 = vpop.f32.mrf.mxu0
    %8834 = vdwg.mxu0
    %8835 = vrot.lane.b32.xlu0 %v5142, 72
    %v8836 = vpop.permute.xlu0 %8835
    %v8839 = vsel %vm792, %v8602, 0
    %8841 = vmatprep.subr.bf16.mxu0 0
    %8842 = vmatpush1.bf16.msra.mxu0 0
    %8843 = vmatprep.subr.bf16.mxu0 0
    %8844 = vmatpush1.bf16.msra.mxu0 0
    %8845 = vmatprep.subr.bf16.mxu0 0
    %8846 = vmatpush1.bf16.msra.mxu0 0
    %8847 = vmatprep.subr.bf16.mxu0 0
    %8848 = vmatpush1.bf16.msra.mxu0 0
    %8849 = vmatprep.subr.bf16.mxu0 0
    %8850 = vmatpush1.bf16.msra.mxu0 0
    %8851 = vmatprep.subr.bf16.mxu0 0
    %8852 = vmatpush1.bf16.msra.mxu0 0
    %8853 = vmatprep.subr.bf16.mxu0 0
    %8854 = vmatpush1.bf16.msra.mxu0 0
    %8855 = vmatprep.subr.bf16.mxu0 0
    %8856 = vmatpush1.bf16.msra.mxu0 %v8836
    %8857 = vmatprep.subr.bf16.mxu0 0
    %8858 = vmatpush2.bf16.msra.mxu0 0
    %8859 = vmatprep.subr.bf16.mxu0 0
    %8860 = vmatpush2.bf16.msra.mxu0 0
    %8861 = vmatprep.subr.bf16.mxu0 0
    %8862 = vmatpush2.bf16.msra.mxu0 0
    %8863 = vmatprep.subr.bf16.mxu0 0
    %8864 = vmatpush2.bf16.msra.mxu0 0
    %8865 = vmatprep.subr.bf16.mxu0 0
    %8866 = vmatpush2.bf16.msra.mxu0 0
    %8867 = vmatprep.subr.bf16.mxu0 0
    %8868 = vmatpush2.bf16.msra.mxu0 0
    %8869 = vmatprep.subr.bf16.mxu0 0
    %8870 = vmatpush2.bf16.msra.mxu0 0
    %8871 = vmatprep.subr.bf16.mxu0 0
    %8872 = vmatpush2.bf16.msra.mxu0 0
    %8873 = vmatprep.mubr.bf16.mxu0 0
    %8874 = vmatmul.mubr.bf16.gmra.mxu0 %v8839
    %v8875 = vpop.f32.mrf.mxu0
    %v8876 = vadd.f32 0.0, %v8875
    %v8877 = vpop.f32.mrf.mxu0
    %v8878 = vpop.f32.mrf.mxu0
    %v8879 = vpop.f32.mrf.mxu0
    %8880 = vdwg.mxu0
    %8881 = vrot.lane.b32.xlu0 %v5143, 72
    %v8882 = vpop.permute.xlu0 %8881
    %v8885 = vsel %vm792, %v8603, 0
    %8887 = vmatprep.subr.bf16.mxu0 0
    %8888 = vmatpush1.bf16.msra.mxu0 0
    %8889 = vmatprep.subr.bf16.mxu0 0
    %8890 = vmatpush1.bf16.msra.mxu0 0
    %8891 = vmatprep.subr.bf16.mxu0 0
    %8892 = vmatpush1.bf16.msra.mxu0 0
    %8893 = vmatprep.subr.bf16.mxu0 0
    %8894 = vmatpush1.bf16.msra.mxu0 0
    %8895 = vmatprep.subr.bf16.mxu0 0
    %8896 = vmatpush1.bf16.msra.mxu0 0
    %8897 = vmatprep.subr.bf16.mxu0 0
    %8898 = vmatpush1.bf16.msra.mxu0 0
    %8899 = vmatprep.subr.bf16.mxu0 0
    %8900 = vmatpush1.bf16.msra.mxu0 0
    %8901 = vmatprep.subr.bf16.mxu0 0
    %8902 = vmatpush1.bf16.msra.mxu0 %v8882
    %8903 = vmatprep.subr.bf16.mxu0 0
    %8904 = vmatpush2.bf16.msra.mxu0 0
    %8905 = vmatprep.subr.bf16.mxu0 0
    %8906 = vmatpush2.bf16.msra.mxu0 0
    %8907 = vmatprep.subr.bf16.mxu0 0
    %8908 = vmatpush2.bf16.msra.mxu0 0
    %8909 = vmatprep.subr.bf16.mxu0 0
    %8910 = vmatpush2.bf16.msra.mxu0 0
    %8911 = vmatprep.subr.bf16.mxu0 0
    %8912 = vmatpush2.bf16.msra.mxu0 0
    %8913 = vmatprep.subr.bf16.mxu0 0
    %8914 = vmatpush2.bf16.msra.mxu0 0
    %8915 = vmatprep.subr.bf16.mxu0 0
    %8916 = vmatpush2.bf16.msra.mxu0 0
    %8917 = vmatprep.subr.bf16.mxu0 0
    %8918 = vmatpush2.bf16.msra.mxu0 0
    %8919 = vmatprep.mubr.bf16.mxu0 0
    %8920 = vmatmul.mubr.bf16.gmra.mxu0 %v8885
    %v8921 = vpop.f32.mrf.mxu0
    %v8922 = vadd.f32 0.0, %v8921
    %v8923 = vpop.f32.mrf.mxu0
    %v8924 = vpop.f32.mrf.mxu0
    %v8925 = vpop.f32.mrf.mxu0
    %8926 = vdwg.mxu0
    %8927 = vrot.lane.b32.xlu0 %v5144, 72
    %v8928 = vpop.permute.xlu0 %8927
    %v8931 = vsel %vm792, %v8604, 0
    %8933 = vmatprep.subr.bf16.mxu0 0
    %8934 = vmatpush1.bf16.msra.mxu0 0
    %8935 = vmatprep.subr.bf16.mxu0 0
    %8936 = vmatpush1.bf16.msra.mxu0 0
    %8937 = vmatprep.subr.bf16.mxu0 0
    %8938 = vmatpush1.bf16.msra.mxu0 0
    %8939 = vmatprep.subr.bf16.mxu0 0
    %8940 = vmatpush1.bf16.msra.mxu0 0
    %8941 = vmatprep.subr.bf16.mxu0 0
    %8942 = vmatpush1.bf16.msra.mxu0 0
    %8943 = vmatprep.subr.bf16.mxu0 0
    %8944 = vmatpush1.bf16.msra.mxu0 0
    %8945 = vmatprep.subr.bf16.mxu0 0
    %8946 = vmatpush1.bf16.msra.mxu0 0
    %8947 = vmatprep.subr.bf16.mxu0 0
    %8948 = vmatpush1.bf16.msra.mxu0 %v8928
    %8949 = vmatprep.subr.bf16.mxu0 0
    %8950 = vmatpush2.bf16.msra.mxu0 0
    %8951 = vmatprep.subr.bf16.mxu0 0
    %8952 = vmatpush2.bf16.msra.mxu0 0
    %8953 = vmatprep.subr.bf16.mxu0 0
    %8954 = vmatpush2.bf16.msra.mxu0 0
    %8955 = vmatprep.subr.bf16.mxu0 0
    %8956 = vmatpush2.bf16.msra.mxu0 0
    %8957 = vmatprep.subr.bf16.mxu0 0
    %8958 = vmatpush2.bf16.msra.mxu0 0
    %8959 = vmatprep.subr.bf16.mxu0 0
    %8960 = vmatpush2.bf16.msra.mxu0 0
    %8961 = vmatprep.subr.bf16.mxu0 0
    %8962 = vmatpush2.bf16.msra.mxu0 0
    %8963 = vmatprep.subr.bf16.mxu0 0
    %8964 = vmatpush2.bf16.msra.mxu0 0
    %8965 = vmatprep.mubr.bf16.mxu0 0
    %8966 = vmatmul.mubr.bf16.gmra.mxu0 %v8931
    %v8967 = vpop.f32.mrf.mxu0
    %v8968 = vadd.f32 0.0, %v8967
    %v8969 = vpop.f32.mrf.mxu0
    %v8970 = vpop.f32.mrf.mxu0
    %v8971 = vpop.f32.mrf.mxu0
    %8972 = vdwg.mxu0
    %v8981 = vcombine.low %v8646, %v8692
    %v8982 = vcombine.low %v8738, %v8784
    %v8984 = vunpack.c.l.s4 1983009808
    %v8985 = vunpack.c.0.s8 %v8984
    %v8986 = vlaneseq
    %v8987 = vshrl.u32 %v8986, 7
    %v8988 = vsub.s32 %v8985, %v8987
    %v8989 = vrot.slane %v8981, %v8988
    %v8991 = vunpack.c.l.s4 1983009808
    %v8992 = vunpack.c.0.s8 %v8991
    %v8993 = vlaneseq
    %v8994 = vshrl.u32 %v8993, 7
    %v8995 = vsub.s32 %v8992, %v8994
    %v8996 = vrot.slane %v8982, %v8995
    %v8997 = vcombine.low %v8989, %v8996
    %v8998 = vcombine.low %v8830, %v8876
    %v8999 = vcombine.low %v8922, %v8968
    %v9001 = vunpack.c.l.s4 1983009808
    %v9002 = vunpack.c.0.s8 %v9001
    %v9003 = vlaneseq
    %v9004 = vshrl.u32 %v9003, 7
    %v9005 = vsub.s32 %v9002, %v9004
    %v9006 = vrot.slane %v8998, %v9005
    %v9008 = vunpack.c.l.s4 1983009808
    %v9009 = vunpack.c.0.s8 %v9008
    %v9010 = vlaneseq
    %v9011 = vshrl.u32 %v9010, 7
    %v9012 = vsub.s32 %v9009, %v9011
    %v9013 = vrot.slane %v8999, %v9012
    %v9014 = vcombine.low %v9006, %v9013
    %v9017 = vpack.c.bf16 %v9014, %v8997
    %s9018 = scalar_lea.vmem [#allocation14], 12
    %v9019 = vld [vmem:[%s9018] sm:$0xf]
    %v9021 = vsel %vm394, %v9017, 0
    %v9024 = vsel %vm2364, %v9019, 0
    %9026 = vmatprep.subr.bf16.mxu0 0
    %9027 = vmatpush1.bf16.msra.mxu0 0
    %9028 = vmatprep.subr.bf16.mxu0 0
    %9029 = vmatpush1.bf16.msra.mxu0 0
    %9030 = vmatprep.subr.bf16.mxu0 0
    %9031 = vmatpush1.bf16.msra.mxu0 0
    %9032 = vmatprep.subr.bf16.mxu0 0
    %9033 = vmatpush1.bf16.msra.mxu0 0
    %9034 = vmatprep.subr.bf16.mxu0 0
    %9035 = vmatpush1.bf16.msra.mxu0 0
    %9036 = vmatprep.subr.bf16.mxu0 0
    %9037 = vmatpush1.bf16.msra.mxu0 0
    %9038 = vmatprep.subr.bf16.mxu0 0
    %9039 = vmatpush1.bf16.msra.mxu0 0
    %9040 = vmatprep.subr.bf16.mxu0 0
    %9041 = vmatpush1.bf16.msra.mxu0 %v9024
    %9042 = vmatprep.subr.bf16.mxu0 0
    %9043 = vmatpush2.bf16.msra.mxu0 0
    %9044 = vmatprep.subr.bf16.mxu0 0
    %9045 = vmatpush2.bf16.msra.mxu0 0
    %9046 = vmatprep.subr.bf16.mxu0 0
    %9047 = vmatpush2.bf16.msra.mxu0 0
    %9048 = vmatprep.subr.bf16.mxu0 0
    %9049 = vmatpush2.bf16.msra.mxu0 0
    %9050 = vmatprep.subr.bf16.mxu0 0
    %9051 = vmatpush2.bf16.msra.mxu0 0
    %9052 = vmatprep.subr.bf16.mxu0 0
    %9053 = vmatpush2.bf16.msra.mxu0 0
    %9054 = vmatprep.subr.bf16.mxu0 0
    %9055 = vmatpush2.bf16.msra.mxu0 0
    %9056 = vmatprep.subr.bf16.mxu0 0
    %9057 = vmatpush2.bf16.msra.mxu0 0
    %9058 = vmatprep.mubr.bf16.mxu0 0
    %9059 = vmatmul.mubr.bf16.gmra.mxu0 %v9021
    %v9060 = vpop.f32.mrf.mxu0
    %v9061 = vadd.f32 0.0, %v9060
    %v9062 = vpop.f32.mrf.mxu0
    %v9063 = vpop.f32.mrf.mxu0
    %v9064 = vadd.f32 0.0, %v9063
    %v9065 = vpop.f32.mrf.mxu0
    %9066 = vdwg.mxu0
    %v9067 = vadd.f32 %v8107, %v9061
    %v9068 = vadd.f32 %v8108, %v9064
    %v9069 = vld [vmem:[#allocation16] sm:$0x1]
    %v9071 = vlaneseq
    %v9072 = vshrl.u32 %v9071, 7
    %v9073 = vsub.s32 0, %v9072
    %v9074 = vrot.slane %v9069, %v9073
    %v9076 = vadd.f32 %v9067, %v9074
    %v9077 = vadd.f32 %v9068, %v9074
    %v9078 = vpack.c.bf16 %v9077, %v9076
    %v9079 = vld [vmem:[%s12] sm:$0xf]
    %v9080 = vld [vmem:[%s12 + $0x4] sm:$0xf]
    %v9081 = vld [vmem:[%s12 + $0x8] sm:$0xf]
    %v9082 = vld [vmem:[%s12 + $0xc] sm:$0xf]
    %v9083 = vld [vmem:[#allocation17] sm:$0x1]
    %v9085 = vlaneseq
    %v9086 = vshrl.u32 %v9085, 7
    %v9087 = vsub.s32 0, %v9086
    %v9088 = vrot.slane %v9083, %v9087
    %v9094 = vunpack.c.l.b16 %v9079
    %v9095 = vunpack.c.l.b16 %v9080
    %v9096 = vunpack.c.l.b16 %v9081
    %v9097 = vunpack.c.l.b16 %v9082
    %v9098 = vpack.c.b16 %v9095, %v9094
    %v9099 = vpack.c.b16 %v9097, %v9096
    %v9103 = vsel %vm261, %v9078, 0
    %9105 = vmatprep.subr.bf16.mxu0 0
    %9106 = vmatpush1.bf16.msra.mxu0 0
    %9107 = vmatprep.subr.bf16.mxu0 0
    %9108 = vmatpush1.bf16.msra.mxu0 0
    %9109 = vmatprep.subr.bf16.mxu0 0
    %9110 = vmatpush1.bf16.msra.mxu0 0
    %9111 = vmatprep.subr.bf16.mxu0 0
    %9112 = vmatpush1.bf16.msra.mxu0 0
    %9113 = vmatprep.subr.bf16.mxu0 0
    %9114 = vmatpush1.bf16.msra.mxu0 0
    %9115 = vmatprep.subr.bf16.mxu0 0
    %9116 = vmatpush1.bf16.msra.mxu0 0
    %9117 = vmatprep.subr.bf16.mxu0 0
    %9118 = vmatpush1.bf16.msra.mxu0 %v9099
    %9119 = vmatprep.subr.bf16.mxu0 0
    %9120 = vmatpush1.bf16.msra.mxu0 %v9098
    %9121 = vmatprep.subr.bf16.mxu0 0
    %9122 = vmatpush2.bf16.msra.mxu0 0
    %9123 = vmatprep.subr.bf16.mxu0 0
    %9124 = vmatpush2.bf16.msra.mxu0 0
    %9125 = vmatprep.subr.bf16.mxu0 0
    %9126 = vmatpush2.bf16.msra.mxu0 0
    %9127 = vmatprep.subr.bf16.mxu0 0
    %9128 = vmatpush2.bf16.msra.mxu0 0
    %9129 = vmatprep.subr.bf16.mxu0 0
    %9130 = vmatpush2.bf16.msra.mxu0 0
    %9131 = vmatprep.subr.bf16.mxu0 0
    %9132 = vmatpush2.bf16.msra.mxu0 0
    %9133 = vmatprep.subr.bf16.mxu0 0
    %9134 = vmatpush2.bf16.msra.mxu0 0
    %9135 = vmatprep.subr.bf16.mxu0 0
    %9136 = vmatpush2.bf16.msra.mxu0 0
    %9137 = vmatprep.mubr.bf16.mxu0 0
    %9138 = vmatmul.mubr.bf16.gmra.mxu0 %v9103
    %v9139 = vpop.f32.mrf.mxu0
    %v9140 = vadd.f32 %v9088, %v9139
    %v9141 = vpop.f32.mrf.mxu0
    %v9142 = vpop.f32.mrf.mxu0
    %v9143 = vadd.f32 %v9088, %v9142
    %v9144 = vpop.f32.mrf.mxu0
    %9145 = vdwg.mxu0
    %v9146 = vmax.f32 %v9140, 0.0
    %v9147 = vmax.f32 %v9143, 0.0
    %v9148 = vpack.c.bf16 %v9147, %v9146
    %v9149 = vld [vmem:[#allocation19] sm:$0xf]
    %v9150 = vld [vmem:[#allocation19 + $0x4] sm:$0xf]
    %v9151 = vld [vmem:[%s15] sm:$0x1]
    %v9153 = vlaneseq
    %v9154 = vshrl.u32 %v9153, 7
    %v9155 = vsub.s32 0, %v9154
    %v9156 = vrot.slane %v9151, %v9155
    %v9160 = vunpack.c.l.b16 %v9149
    %v9161 = vunpack.c.l.b16 %v9150
    %v9162 = vpack.c.b16 %v9161, %v9160
    %v9165 = vsel %vm792, %v9148, 0
    %9167 = vmatprep.subr.bf16.mxu0 0
    %9168 = vmatpush1.bf16.msra.mxu0 0
    %9169 = vmatprep.subr.bf16.mxu0 0
    %9170 = vmatpush1.bf16.msra.mxu0 0
    %9171 = vmatprep.subr.bf16.mxu0 0
    %9172 = vmatpush1.bf16.msra.mxu0 0
    %9173 = vmatprep.subr.bf16.mxu0 0
    %9174 = vmatpush1.bf16.msra.mxu0 0
    %9175 = vmatprep.subr.bf16.mxu0 0
    %9176 = vmatpush1.bf16.msra.mxu0 0
    %9177 = vmatprep.subr.bf16.mxu0 0
    %9178 = vmatpush1.bf16.msra.mxu0 0
    %9179 = vmatprep.subr.bf16.mxu0 0
    %9180 = vmatpush1.bf16.msra.mxu0 0
    %9181 = vmatprep.subr.bf16.mxu0 0
    %9182 = vmatpush1.bf16.msra.mxu0 %v9162
    %9183 = vmatprep.subr.bf16.mxu0 0
    %9184 = vmatpush2.bf16.msra.mxu0 0
    %9185 = vmatprep.subr.bf16.mxu0 0
    %9186 = vmatpush2.bf16.msra.mxu0 0
    %9187 = vmatprep.subr.bf16.mxu0 0
    %9188 = vmatpush2.bf16.msra.mxu0 0
    %9189 = vmatprep.subr.bf16.mxu0 0
    %9190 = vmatpush2.bf16.msra.mxu0 0
    %9191 = vmatprep.subr.bf16.mxu0 0
    %9192 = vmatpush2.bf16.msra.mxu0 0
    %9193 = vmatprep.subr.bf16.mxu0 0
    %9194 = vmatpush2.bf16.msra.mxu0 0
    %9195 = vmatprep.subr.bf16.mxu0 0
    %9196 = vmatpush2.bf16.msra.mxu0 0
    %9197 = vmatprep.subr.bf16.mxu0 0
    %9198 = vmatpush2.bf16.msra.mxu0 0
    %9199 = vmatprep.mubr.bf16.mxu0 0
    %9200 = vmatmul.mubr.bf16.gmra.mxu0 %v9165
    %v9201 = vpop.f32.mrf.mxu0
    %v9202 = vadd.f32 %v9156, %v9201
    %v9203 = vpop.f32.mrf.mxu0
    %v9204 = vpop.f32.mrf.mxu0
    %v9205 = vadd.f32 %v9156, %v9204
    %v9206 = vpop.f32.mrf.mxu0
    %9207 = vdwg.mxu0
    %v9208 = vsel %vm261, %v9202, 0.0
    %9209 = vadd.xlane.f32.xlu0 %v9208
    %v9210 = vpop.xlane.xlu0 %9209
    %v9211 = vsel %vm261, %v9205, 0.0
    %9212 = vadd.xlane.f32.xlu0 %v9211
    %v9213 = vpop.xlane.xlu0 %9212
    %v9214 = vrcp.pop 32.0
    %v9215 = vmul.f32 %v9210, %v9214
    %v9216 = vmul.f32 %v9213, %v9214
    %v9217 = vsub.f32 %v9202, %v9215
    %v9218 = vsub.f32 %v9205, %v9216
    %v9219 = vmul.f32 %v9217, %v9217
    %v9220 = vmul.f32 %v9218, %v9218
    %v9221 = vsel %vm261, %v9219, 0.0
    %9222 = vadd.xlane.f32.xlu0 %v9221
    %v9223 = vpop.xlane.xlu0 %9222
    %v9224 = vsel %vm261, %v9220, 0.0
    %9225 = vadd.xlane.f32.xlu0 %v9224
    %v9226 = vpop.xlane.xlu0 %9225
    %v9227 = vmul.f32 %v9223, %v9214
    %v9228 = vmul.f32 %v9226, %v9214
    %v9229 = vadd.f32 %v9227, 1e-05
    %v9230 = vadd.f32 %v9228, 1e-05
    %v9231 = vrsqrt.pop %v9229
    %v9232 = vrsqrt.pop %v9230
    %v9233 = vmul.f32 %v9217, %v9231
    %v9234 = vmul.f32 %v9218, %v9232
    %v9235 = vld [vmem:[%s16] sm:$0xff]
    %v9236 = vld [vmem:[%s16 + $0x8] sm:$0xff]
    %v9237 = vmul.f32 %v9233, %v9235
    %v9238 = vmul.f32 %v9234, %v9236
    %v9239 = vld [vmem:[#allocation20] sm:$0xff]
    %v9240 = vld [vmem:[#allocation20 + $0x8] sm:$0xff]
    %v9241 = vadd.f32 %v9237, %v9239
    %v9242 = vadd.f32 %v9238, %v9240
    %9243 = vst.msk [vmem:[#allocation22] sm:$0xff] %vm261, %v9241
    %9244 = vst.msk [vmem:[#allocation22 + $0x8] sm:$0xff] %vm261, %v9242
    // Predicated region
    $region122: #{tpu_custom_call.1} parent=1 // pred_check
      _
    $region123: #{tpu_custom_call.1} parent=1 // pred_check_branch
      %9246 = sbr.rel (0) target = $region125
    $region124: #{tpu_custom_call.1} parent=1 // pred_region
      %s9248 = ssub.s32 256, 256
      %9249 = vsyncadd [#allocation4], %s9248
      %s9250 = sshll.u32 [#allocation22], 4
      %s9251 = int_to_ptr.vmem [resolvable:$true] %s9250
      %9256 = dma.vmem_to_hbm [thread:$0]  %s9251, 256, %s18, [#allocation4], 128, 128, 8
    $region125: #{tpu_custom_call.1} parent=1 // pred_fallthru
      _
    // Predicated region
    $region126: #{tpu_custom_call.1} parent=1 // pred_check
      _
    $region127: #{tpu_custom_call.1} parent=1 // pred_check_branch
      %9258 = sbr.rel (0) target = $region129
    $region128: #{tpu_custom_call.1} parent=1 // pred_region
      %9259 = dma.done [#allocation4], 256
    $region129: #{tpu_custom_call.1} parent=1 // pred_fallthru
      _
    %9260 = vsyncpa [#allocation3], 1
    %9261 = vsyncpa [#allocation6], 1
    %9262 = vsyncpa [#allocation9], 1
    %9263 = vsyncpa [#allocation12], 1
    %9264 = vsyncpa [#allocation15], 1
    %9265 = vsyncpa [#allocation18], 1
    %9266 = vsyncpa [#allocation21], 1
    %9267 = vsyncpa [#allocation4], 1

</llo_original>
